<compile_context>
chip_gen: v5e
topology: v5e:2x2
jax: 0.10.0
libtpu: 0.0.40
codegen_flags: <defaults>
</compile_context>

<pallas_src>
import functools
import math

import jax
import jax.numpy as jnp
from jax.experimental import pallas as pl
from jax.experimental.pallas import tpu as pltpu

LANE = 128          # TPU lane width: channel axis padded to a multiple of this.
_EPS = 1e-5         # BatchNorm eps (PyTorch default).
_VEC_ROWS = 24      # packed epilogue vectors (18 used rows, padded to a sublane multiple).


def _round_up(x, m):
    return (x + m - 1) // m * m


def _pool_bounds(n, out):
    """PyTorch AdaptiveAvgPool window bounds: [floor(i*n/out), ceil((i+1)*n/out))."""
    return [((i * n) // out, -((-(i + 1) * n) // out)) for i in range(out)]


# -----------------------------------------------------------------------------
# Parameter packing (one-time, outside the jitted forward).
# -----------------------------------------------------------------------------
def _pad_vec(v, cp):
    return jnp.pad(v, (0, cp - v.shape[0])).reshape(1, cp).astype(jnp.float32)


def _fold_affine(eq_scale, bias, gamma, beta, mean, var, cp):
    """Fold equalized-lr scale + layer bias + inference BatchNorm into y = acc * a + d."""
    bn_scale = gamma * jax.lax.rsqrt(var + _EPS)
    a = eq_scale * bn_scale
    d = (bias - mean) * bn_scale + beta
    return _pad_vec(a, cp), _pad_vec(d, cp)


def pack_se_block_params(params, in_planes):
    """Pre-transpose / zero-pad / bf16-cast all weights and fold BN+bias into f32 affines."""
    C = in_planes
    cp = _round_up(C, LANE)
    conv_scale = 1.0 / math.sqrt(C * 9)
    fc_scale = 1.0 / math.sqrt(C)

    wconv_blocks, wfc_blocks, vec_rows = [], [], []
    for lp in params["convs"]:
        for dy in range(3):
            for dx in range(3):
                blk = jnp.pad(jnp.transpose(lp["weight"][:, :, dy, dx]),
                              ((0, cp - C), (0, cp - C)))
                wconv_blocks.append(blk)
        a, d = _fold_affine(conv_scale, lp["bias"], lp["bn_gamma"], lp["bn_beta"],
                            lp["bn_mean"], lp["bn_var"], cp)
        vec_rows += [a, d, _pad_vec(lp["prelu"], cp)]
    for lp in params["fcs"]:
        wfc_blocks.append(jnp.pad(jnp.transpose(lp["weight"]), ((0, cp - C), (0, cp - C))))
        a, d = _fold_affine(fc_scale, lp["bias"], lp["bn_gamma"], lp["bn_beta"],
                            lp["bn_mean"], lp["bn_var"], cp)
        p = _pad_vec(lp["prelu"], cp) if "prelu" in lp else jnp.zeros((1, cp), jnp.float32)
        vec_rows += [a, d, p]

    wconv = jnp.concatenate(wconv_blocks, axis=0).astype(jnp.bfloat16)   # (27*cp, cp)
    wfc = jnp.concatenate(wfc_blocks, axis=0).astype(jnp.bfloat16)       # (3*cp, cp)
    vecs = jnp.concatenate(vec_rows, axis=0).astype(jnp.float32)         # (18, cp)
    vecs = jnp.pad(vecs, ((0, _VEC_ROWS - vecs.shape[0]), (0, 0)))       # (24, cp)
    return dict(wconv=wconv, wfc=wfc, vecs=vecs)


# -----------------------------------------------------------------------------
# The single fused kernel: pool(5x5) -> 3 conv layers -> gap -> 3 FC layers -> sigmoid.
# Grid = (batch blocks,), "parallel".  x block layout: (H, W, tb, Cp).
# -----------------------------------------------------------------------------
def _se_block_kernel(x_ref, wconv_ref, wfc_ref, vec_ref, o_ref, *, hb, wb, tb, cp):
    f32 = jnp.float32
    bf16 = jnp.bfloat16

    # ---- gap_conv: AdaptiveAvgPool2d(5) as separable leading-axis window sums (VPU). ----
    col_sums = []
    for (w0, w1) in wb:
        col_sums.append(jnp.sum(x_ref[:, w0:w1], axis=1))                # (H, tb, cp) f32
    rows = []
    for (h0, h1) in hb:
        cells = []
        for j, (w0, w1) in enumerate(wb):
            inv = 1.0 / float((h1 - h0) * (w1 - w0))
            cells.append(jnp.sum(col_sums[j][h0:h1], axis=0) * inv)      # (tb, cp)
        rows.append(jnp.stack(cells, axis=0))                            # (5, tb, cp)
    h = jnp.stack(rows, axis=0)                                          # (5, 5, tb, cp) f32

    # ---- convs: 3 x [ReplicationPad(1) + EqualizedConv2d(3x3) + BN + PReLU]. ----
    # Full K = 9*cp contraction per layer inside this single grid step (no K grid).
    for l in range(3):
        a = vec_ref[3 * l + 0:3 * l + 1, :]                              # folded scale  (1, cp)
        d = vec_ref[3 * l + 1:3 * l + 2, :]                              # folded shift  (1, cp)
        p = vec_ref[3 * l + 2:3 * l + 3, :]                              # PReLU slope   (1, cp)
        # Replication pad on the two leading (untiled) spatial axes.
        hr = jnp.concatenate([h[0:1], h, h[4:5]], axis=0)                # (7, 5, tb, cp)
        hpad = jnp.concatenate([hr[:, 0:1], hr, hr[:, 4:5]], axis=1)     # (7, 7, tb, cp)
        acc = jnp.zeros((25 * tb, cp), f32)
        for t in range(9):
            dy, dx = t // 3, t % 3
            # Layout-preserving merge of leading dims (tb is a multiple of 8).
            lhs = hpad[dy:dy + 5, dx:dx + 5].reshape(25 * tb, cp)
            w_t = wconv_ref[(9 * l + t) * cp:(9 * l + t + 1) * cp, :]    # (cp, cp) bf16
            acc = acc + jnp.dot(lhs.astype(bf16), w_t,
                                preferred_element_type=f32)
        y = acc * a + d                                                  # eq-scale+bias+BN affine
        y = jnp.where(y >= 0.0, y, y * p)                                # PReLU
        h = y.reshape(5, 5, tb, cp)

    # ---- gap_fc: mean over the 25 spatial positions (leading axes, VPU). ----
    v = jnp.mean(h, axis=(0, 1))                                         # (tb, cp) f32

    # ---- [EqLinear + BN1d + PReLU] x2, then EqLinear + BN1d + sigmoid. ----
    for k in range(3):
        a = vec_ref[9 + 3 * k + 0:9 + 3 * k + 1, :]
        d = vec_ref[9 + 3 * k + 1:9 + 3 * k + 2, :]
        w_k = wfc_ref[k * cp:(k + 1) * cp, :]                            # (cp, cp) bf16
        v = jnp.dot(v.astype(bf16), w_k, preferred_element_type=f32)
        v = v * a + d
        if k < 2:
            p = vec_ref[9 + 3 * k + 2:9 + 3 * k + 3, :]
            v = jnp.where(v >= 0.0, v, v * p)
    o_ref[...] = (1.0 / (1.0 + jnp.exp(-v))).astype(o_ref.dtype)


# -----------------------------------------------------------------------------
# Forward wrapper.
# -----------------------------------------------------------------------------
def se_block_conv_forward(x, packed):
    """x: (B, C, H, W) float32, packed: from pack_se_block_params -> (B, C, 1, 1)."""
    # TODO(synk): BatchNorm layers use running statistics (eval mode); training-mode
    # batch-statistics / running-stat updates are stateful and not implemented.
    B, C, H, W = x.shape
    assert W >= 8
    Cp = packed["wconv"].shape[1]
    assert Cp == _round_up(C, LANE)

    # Batch block: multiple of 8 sublanes; >=2 parallel grid blocks once B > 8 so v7x's
    # second TensorCore gets work; capped so the (H, W, tb, Cp) input block stays small.
    if B <= 8:
        tb = 8
    else:
        tb = min(32, _round_up((B + 1) // 2, 8))
    max_tb = max(8, (4 * 1024 * 1024 // (H * W * Cp * 4)) // 8 * 8)
    # TODO(synk): for very large H*W*C the full-resolution input block no longer fits VMEM;
    # a separate pooling stage (or spatial tiling of the pool) would be needed there.
    tb = min(tb, max_tb)
    Bp = _round_up(B, tb)

    # Lane-dense layout done once: channels on lanes, batch on sublanes -> (H, W, Bp, Cp).
    xt = jnp.transpose(x, (2, 3, 0, 1))
    xt = jnp.pad(xt, ((0, 0), (0, 0), (0, Bp - B), (0, Cp - C)))

    hb = tuple(_pool_bounds(H, 5))
    wb = tuple(_pool_bounds(W, 5))
    kernel = functools.partial(_se_block_kernel, hb=hb, wb=wb, tb=tb, cp=Cp)

    # Weights / epilogue vectors are grid-invariant (constant index map) -> VMEM resident.
    # At large Cp, request single buffering so the resident copies are not duplicated.
    single_buffer = Cp >= 512

    def _resident(shape):
        index_map = lambda i: tuple(0 for _ in shape)
        if single_buffer:
            try:
                return pl.BlockSpec(shape, index_map, pipeline_mode=pl.Buffered(1))
            except TypeError:  # older jax without pipeline_mode support
                pass
        return pl.BlockSpec(shape, index_map)

    flops = 2 * 25 * Bp * 27 * Cp * Cp + 2 * 3 * Bp * Cp * Cp + Bp * Cp * H * W
    bytes_accessed = (4 * H * W * Bp * Cp + 2 * 30 * Cp * Cp
                      + 4 * _VEC_ROWS * Cp + 4 * Bp * Cp)

    gate = pl.pallas_call(
        kernel,
        out_shape=jax.ShapeDtypeStruct((Bp, Cp), jnp.float32),
        grid_spec=pltpu.PrefetchScalarGridSpec(
            num_scalar_prefetch=0,
            grid=(Bp // tb,),
            in_specs=[
                pl.BlockSpec((H, W, tb, Cp), lambda i: (0, 0, i, 0)),    # input batch block
                _resident((27 * Cp, Cp)),                                # conv weights (bf16)
                _resident((3 * Cp, Cp)),                                 # FC weights (bf16)
                _resident((_VEC_ROWS, Cp)),                              # folded affines + PReLU
            ],
            out_specs=pl.BlockSpec((tb, Cp), lambda i: (i, 0)),
        ),
        compiler_params=pltpu.CompilerParams(
            dimension_semantics=("parallel",),
            vmem_limit_bytes=32 * 1024 * 1024),
        cost_estimate=pl.CostEstimate(
            flops=int(flops),
            transcendentals=int(Bp * Cp),
            bytes_accessed=int(bytes_accessed)),
    )(xt, packed["wconv"], packed["wfc"], packed["vecs"])

    return gate[:B, :C].reshape(B, C, 1, 1)


# -----------------------------------------------------------------------------
# Init + pure-JAX reference (for validation only).
# -----------------------------------------------------------------------------
def init_se_block_params(key, in_planes):
    """Same init as the PyTorch module: N(0,1) weights/biases, default BN/PReLU params."""
    keys = jax.random.split(key, 12)
    ones = jnp.ones((in_planes,), jnp.float32)
    zeros = jnp.zeros((in_planes,), jnp.float32)
    prelu0 = jnp.full((in_planes,), 0.25, jnp.float32)
    ki = iter(keys)
    convs = []
    for _ in range(3):
        convs.append(dict(
            weight=jax.random.normal(next(ki), (in_planes, in_planes, 3, 3), jnp.float32),
            bias=jax.random.normal(next(ki), (in_planes,), jnp.float32),
            bn_gamma=ones, bn_beta=zeros, bn_mean=zeros, bn_var=ones,
            prelu=prelu0,
        ))
    fcs = []
    for i in range(3):
        layer = dict(
            weight=jax.random.normal(next(ki), (in_planes, in_planes), jnp.float32),
            bias=jax.random.normal(next(ki), (in_planes,), jnp.float32),
            bn_gamma=ones, bn_beta=zeros, bn_mean=zeros, bn_var=ones,
        )
        if i < 2:
            layer["prelu"] = prelu0
        fcs.append(layer)
    return dict(convs=convs, fcs=fcs)


def _adaptive_avg_pool2d(x, out_size):
    """Reference-only host-side adaptive pooling (matches PyTorch's window formula)."""
    _, _, H, W = x.shape
    rows = []
    for h0, h1 in _pool_bounds(H, out_size):
        cols = []
        for w0, w1 in _pool_bounds(W, out_size):
            cols.append(jnp.mean(x[:, :, h0:h1, w0:w1], axis=(2, 3)))
        rows.append(jnp.stack(cols, axis=-1))
    return jnp.stack(rows, axis=-2)                      # (B, C, out, out)


def _reference_forward(x, params):
    """Pure-JAX f32 reference of the same forward (no Pallas), for numerical validation."""
    hi = jax.lax.Precision.HIGHEST
    B, C, _, _ = x.shape
    h = _adaptive_avg_pool2d(x, 5)
    conv_scale = 1.0 / math.sqrt(C * 9)
    for lp in params["convs"]:
        hp = jnp.pad(h, ((0, 0), (0, 0), (1, 1), (1, 1)), mode="edge")
        y = jax.lax.conv_general_dilated(
            hp, lp["weight"] * conv_scale, window_strides=(1, 1), padding="VALID",
            dimension_numbers=("NCHW", "OIHW", "NCHW"), precision=hi)
        y = y + lp["bias"][None, :, None, None]
        y = ((y - lp["bn_mean"][None, :, None, None])
             / jnp.sqrt(lp["bn_var"][None, :, None, None] + _EPS)
             * lp["bn_gamma"][None, :, None, None] + lp["bn_beta"][None, :, None, None])
        h = jnp.where(y >= 0, y, lp["prelu"][None, :, None, None] * y)
    v = jnp.mean(h, axis=(2, 3))                                 # gap_fc -> (B, C)
    fc_scale = 1.0 / math.sqrt(C)
    for lp in params["fcs"]:
        v = jnp.matmul(v, (lp["weight"] * fc_scale).T, precision=hi) + lp["bias"]
        v = (v - lp["bn_mean"]) / jnp.sqrt(lp["bn_var"] + _EPS) * lp["bn_gamma"] + lp["bn_beta"]
        if "prelu" in lp:
            v = jnp.where(v >= 0, v, lp["prelu"] * v)
    return jax.nn.sigmoid(v).reshape(B, C, 1, 1)


if __name__ == "__main__":
    batch, in_planes, spatial = 2, 32, 16

    key = jax.random.PRNGKey(0)
    k_params, k_x = jax.random.split(key)
    params = init_se_block_params(k_params, in_planes)
    x = jax.random.normal(k_x, (batch, in_planes, spatial, spatial), dtype=jnp.float32)

    packed = pack_se_block_params(params, in_planes)   # one-time packing, not in the hot path
    fwd = jax.jit(se_block_conv_forward)
    y = fwd(x, packed)
    jax.block_until_ready(y)

    assert y.shape == (batch, in_planes, 1, 1)
    assert bool(jnp.all(jnp.isfinite(y)))
    assert bool(jnp.all((y >= 0.0) & (y <= 1.0)))

    y_ref = _reference_forward(x, params)
    max_err = float(jnp.max(jnp.abs(y - y_ref)))
    # bf16 MXU operands (f32 accumulation) -> slightly looser tolerance than pure f32.
    assert jnp.allclose(y, y_ref, atol=2.5e-2, rtol=2.5e-2), f"max abs err {max_err}"

    print("KERNEL_OK")
</pallas_src>

<mosaic_0001>
module attributes {stable_mosaic.version = 11 : i64} {
  func.func @_se_block_kernel(%arg0: i32, %arg1: memref<16x16x8x128xf32, #tpu.memory_space<vmem>>, %arg2: memref<3456x128xbf16, #tpu.memory_space<vmem>>, %arg3: memref<384x128xbf16, #tpu.memory_space<vmem>>, %arg4: memref<24x128xf32, #tpu.memory_space<vmem>>, %arg5: memref<8x128xf32, #tpu.memory_space<vmem>>) attributes {dimension_semantics = [#tpu.dimension_semantics<parallel>], iteration_bounds = array<i64: 1>, scalar_prefetch = 0 : i64, scratch_operands = 0 : i64, tpu.core_type = #tpu.core_type<tc>, window_params = [{transform_indices = @transform_0, window_bounds = array<i64: 16, 16, 8, 128>}, {pipeline_mode = #tpu.pipeline_mode<synchronous>, transform_indices = @transform_1, window_bounds = array<i64: 3456, 128>}, {pipeline_mode = #tpu.pipeline_mode<synchronous>, transform_indices = @transform_2, window_bounds = array<i64: 384, 128>}, {pipeline_mode = #tpu.pipeline_mode<synchronous>, transform_indices = @transform_3, window_bounds = array<i64: 24, 128>}, {transform_indices = @transform_4, window_bounds = array<i64: 8, 128>}]} {
    %c0 = arith.constant 0 : index
    %c0_0 = arith.constant 0 : index
    %c0_1 = arith.constant 0 : index
    %c0_2 = arith.constant 0 : index
    %0 = vector.load %arg1[%c0, %c0_0, %c0_1, %c0_2] : memref<16x16x8x128xf32, #tpu.memory_space<vmem>>, vector<16x4x8x128xf32>
    %cst = arith.constant dense<0.000000e+00> : vector<16x8x128xf32>
    %1 = vector.multi_reduction <add>, %0, %cst [1] : vector<16x4x8x128xf32> to vector<16x8x128xf32>
    %c0_3 = arith.constant 0 : index
    %c3 = arith.constant 3 : index
    %c0_4 = arith.constant 0 : index
    %c0_5 = arith.constant 0 : index
    %2 = vector.load %arg1[%c0_3, %c3, %c0_4, %c0_5] : memref<16x16x8x128xf32, #tpu.memory_space<vmem>>, vector<16x4x8x128xf32>
    %cst_6 = arith.constant dense<0.000000e+00> : vector<16x8x128xf32>
    %3 = vector.multi_reduction <add>, %2, %cst_6 [1] : vector<16x4x8x128xf32> to vector<16x8x128xf32>
    %c0_7 = arith.constant 0 : index
    %c6 = arith.constant 6 : index
    %c0_8 = arith.constant 0 : index
    %c0_9 = arith.constant 0 : index
    %4 = vector.load %arg1[%c0_7, %c6, %c0_8, %c0_9] : memref<16x16x8x128xf32, #tpu.memory_space<vmem>>, vector<16x4x8x128xf32>
    %cst_10 = arith.constant dense<0.000000e+00> : vector<16x8x128xf32>
    %5 = vector.multi_reduction <add>, %4, %cst_10 [1] : vector<16x4x8x128xf32> to vector<16x8x128xf32>
    %c0_11 = arith.constant 0 : index
    %c9 = arith.constant 9 : index
    %c0_12 = arith.constant 0 : index
    %c0_13 = arith.constant 0 : index
    %6 = vector.load %arg1[%c0_11, %c9, %c0_12, %c0_13] : memref<16x16x8x128xf32, #tpu.memory_space<vmem>>, vector<16x4x8x128xf32>
    %cst_14 = arith.constant dense<0.000000e+00> : vector<16x8x128xf32>
    %7 = vector.multi_reduction <add>, %6, %cst_14 [1] : vector<16x4x8x128xf32> to vector<16x8x128xf32>
    %c0_15 = arith.constant 0 : index
    %c12 = arith.constant 12 : index
    %c0_16 = arith.constant 0 : index
    %c0_17 = arith.constant 0 : index
    %8 = vector.load %arg1[%c0_15, %c12, %c0_16, %c0_17] : memref<16x16x8x128xf32, #tpu.memory_space<vmem>>, vector<16x4x8x128xf32>
    %cst_18 = arith.constant dense<0.000000e+00> : vector<16x8x128xf32>
    %9 = vector.multi_reduction <add>, %8, %cst_18 [1] : vector<16x4x8x128xf32> to vector<16x8x128xf32>
    %10 = vector.extract_strided_slice %1 {offsets = [0, 0, 0], sizes = [4, 8, 128], strides = [1, 1, 1]} : vector<16x8x128xf32> to vector<4x8x128xf32>
    %cst_19 = arith.constant dense<0.000000e+00> : vector<8x128xf32>
    %11 = vector.multi_reduction <add>, %10, %cst_19 [0] : vector<4x8x128xf32> to vector<8x128xf32>
    %cst_20 = arith.constant 6.250000e-02 : f32
    %12 = vector.broadcast %cst_20 : f32 to vector<8x128xf32>
    %13 = arith.mulf %11, %12 : vector<8x128xf32>
    %14 = vector.extract_strided_slice %3 {offsets = [0, 0, 0], sizes = [4, 8, 128], strides = [1, 1, 1]} : vector<16x8x128xf32> to vector<4x8x128xf32>
    %cst_21 = arith.constant dense<0.000000e+00> : vector<8x128xf32>
    %15 = vector.multi_reduction <add>, %14, %cst_21 [0] : vector<4x8x128xf32> to vector<8x128xf32>
    %cst_22 = arith.constant 6.250000e-02 : f32
    %16 = vector.broadcast %cst_22 : f32 to vector<8x128xf32>
    %17 = arith.mulf %15, %16 : vector<8x128xf32>
    %18 = vector.extract_strided_slice %5 {offsets = [0, 0, 0], sizes = [4, 8, 128], strides = [1, 1, 1]} : vector<16x8x128xf32> to vector<4x8x128xf32>
    %cst_23 = arith.constant dense<0.000000e+00> : vector<8x128xf32>
    %19 = vector.multi_reduction <add>, %18, %cst_23 [0] : vector<4x8x128xf32> to vector<8x128xf32>
    %cst_24 = arith.constant 6.250000e-02 : f32
    %20 = vector.broadcast %cst_24 : f32 to vector<8x128xf32>
    %21 = arith.mulf %19, %20 : vector<8x128xf32>
    %22 = vector.extract_strided_slice %7 {offsets = [0, 0, 0], sizes = [4, 8, 128], strides = [1, 1, 1]} : vector<16x8x128xf32> to vector<4x8x128xf32>
    %cst_25 = arith.constant dense<0.000000e+00> : vector<8x128xf32>
    %23 = vector.multi_reduction <add>, %22, %cst_25 [0] : vector<4x8x128xf32> to vector<8x128xf32>
    %cst_26 = arith.constant 6.250000e-02 : f32
    %24 = vector.broadcast %cst_26 : f32 to vector<8x128xf32>
    %25 = arith.mulf %23, %24 : vector<8x128xf32>
    %26 = vector.extract_strided_slice %9 {offsets = [0, 0, 0], sizes = [4, 8, 128], strides = [1, 1, 1]} : vector<16x8x128xf32> to vector<4x8x128xf32>
    %cst_27 = arith.constant dense<0.000000e+00> : vector<8x128xf32>
    %27 = vector.multi_reduction <add>, %26, %cst_27 [0] : vector<4x8x128xf32> to vector<8x128xf32>
    %cst_28 = arith.constant 6.250000e-02 : f32
    %28 = vector.broadcast %cst_28 : f32 to vector<8x128xf32>
    %29 = arith.mulf %27, %28 : vector<8x128xf32>
    %30 = vector.shape_cast %13 : vector<8x128xf32> to vector<1x8x128xf32>
    %31 = vector.shape_cast %17 : vector<8x128xf32> to vector<1x8x128xf32>
    %32 = vector.shape_cast %21 : vector<8x128xf32> to vector<1x8x128xf32>
    %33 = vector.shape_cast %25 : vector<8x128xf32> to vector<1x8x128xf32>
    %34 = vector.shape_cast %29 : vector<8x128xf32> to vector<1x8x128xf32>
    %35 = tpu.concatenate %30, %31, %32, %33, %34 in 0 : vector<1x8x128xf32>, vector<1x8x128xf32>, vector<1x8x128xf32>, vector<1x8x128xf32>, vector<1x8x128xf32> -> vector<5x8x128xf32>
    %36 = vector.extract_strided_slice %1 {offsets = [3, 0, 0], sizes = [4, 8, 128], strides = [1, 1, 1]} : vector<16x8x128xf32> to vector<4x8x128xf32>
    %cst_29 = arith.constant dense<0.000000e+00> : vector<8x128xf32>
    %37 = vector.multi_reduction <add>, %36, %cst_29 [0] : vector<4x8x128xf32> to vector<8x128xf32>
    %cst_30 = arith.constant 6.250000e-02 : f32
    %38 = vector.broadcast %cst_30 : f32 to vector<8x128xf32>
    %39 = arith.mulf %37, %38 : vector<8x128xf32>
    %40 = vector.extract_strided_slice %3 {offsets = [3, 0, 0], sizes = [4, 8, 128], strides = [1, 1, 1]} : vector<16x8x128xf32> to vector<4x8x128xf32>
    %cst_31 = arith.constant dense<0.000000e+00> : vector<8x128xf32>
    %41 = vector.multi_reduction <add>, %40, %cst_31 [0] : vector<4x8x128xf32> to vector<8x128xf32>
    %cst_32 = arith.constant 6.250000e-02 : f32
    %42 = vector.broadcast %cst_32 : f32 to vector<8x128xf32>
    %43 = arith.mulf %41, %42 : vector<8x128xf32>
    %44 = vector.extract_strided_slice %5 {offsets = [3, 0, 0], sizes = [4, 8, 128], strides = [1, 1, 1]} : vector<16x8x128xf32> to vector<4x8x128xf32>
    %cst_33 = arith.constant dense<0.000000e+00> : vector<8x128xf32>
    %45 = vector.multi_reduction <add>, %44, %cst_33 [0] : vector<4x8x128xf32> to vector<8x128xf32>
    %cst_34 = arith.constant 6.250000e-02 : f32
    %46 = vector.broadcast %cst_34 : f32 to vector<8x128xf32>
    %47 = arith.mulf %45, %46 : vector<8x128xf32>
    %48 = vector.extract_strided_slice %7 {offsets = [3, 0, 0], sizes = [4, 8, 128], strides = [1, 1, 1]} : vector<16x8x128xf32> to vector<4x8x128xf32>
    %cst_35 = arith.constant dense<0.000000e+00> : vector<8x128xf32>
    %49 = vector.multi_reduction <add>, %48, %cst_35 [0] : vector<4x8x128xf32> to vector<8x128xf32>
    %cst_36 = arith.constant 6.250000e-02 : f32
    %50 = vector.broadcast %cst_36 : f32 to vector<8x128xf32>
    %51 = arith.mulf %49, %50 : vector<8x128xf32>
    %52 = vector.extract_strided_slice %9 {offsets = [3, 0, 0], sizes = [4, 8, 128], strides = [1, 1, 1]} : vector<16x8x128xf32> to vector<4x8x128xf32>
    %cst_37 = arith.constant dense<0.000000e+00> : vector<8x128xf32>
    %53 = vector.multi_reduction <add>, %52, %cst_37 [0] : vector<4x8x128xf32> to vector<8x128xf32>
    %cst_38 = arith.constant 6.250000e-02 : f32
    %54 = vector.broadcast %cst_38 : f32 to vector<8x128xf32>
    %55 = arith.mulf %53, %54 : vector<8x128xf32>
    %56 = vector.shape_cast %39 : vector<8x128xf32> to vector<1x8x128xf32>
    %57 = vector.shape_cast %43 : vector<8x128xf32> to vector<1x8x128xf32>
    %58 = vector.shape_cast %47 : vector<8x128xf32> to vector<1x8x128xf32>
    %59 = vector.shape_cast %51 : vector<8x128xf32> to vector<1x8x128xf32>
    %60 = vector.shape_cast %55 : vector<8x128xf32> to vector<1x8x128xf32>
    %61 = tpu.concatenate %56, %57, %58, %59, %60 in 0 : vector<1x8x128xf32>, vector<1x8x128xf32>, vector<1x8x128xf32>, vector<1x8x128xf32>, vector<1x8x128xf32> -> vector<5x8x128xf32>
    %62 = vector.extract_strided_slice %1 {offsets = [6, 0, 0], sizes = [4, 8, 128], strides = [1, 1, 1]} : vector<16x8x128xf32> to vector<4x8x128xf32>
    %cst_39 = arith.constant dense<0.000000e+00> : vector<8x128xf32>
    %63 = vector.multi_reduction <add>, %62, %cst_39 [0] : vector<4x8x128xf32> to vector<8x128xf32>
    %cst_40 = arith.constant 6.250000e-02 : f32
    %64 = vector.broadcast %cst_40 : f32 to vector<8x128xf32>
    %65 = arith.mulf %63, %64 : vector<8x128xf32>
    %66 = vector.extract_strided_slice %3 {offsets = [6, 0, 0], sizes = [4, 8, 128], strides = [1, 1, 1]} : vector<16x8x128xf32> to vector<4x8x128xf32>
    %cst_41 = arith.constant dense<0.000000e+00> : vector<8x128xf32>
    %67 = vector.multi_reduction <add>, %66, %cst_41 [0] : vector<4x8x128xf32> to vector<8x128xf32>
    %cst_42 = arith.constant 6.250000e-02 : f32
    %68 = vector.broadcast %cst_42 : f32 to vector<8x128xf32>
    %69 = arith.mulf %67, %68 : vector<8x128xf32>
    %70 = vector.extract_strided_slice %5 {offsets = [6, 0, 0], sizes = [4, 8, 128], strides = [1, 1, 1]} : vector<16x8x128xf32> to vector<4x8x128xf32>
    %cst_43 = arith.constant dense<0.000000e+00> : vector<8x128xf32>
    %71 = vector.multi_reduction <add>, %70, %cst_43 [0] : vector<4x8x128xf32> to vector<8x128xf32>
    %cst_44 = arith.constant 6.250000e-02 : f32
    %72 = vector.broadcast %cst_44 : f32 to vector<8x128xf32>
    %73 = arith.mulf %71, %72 : vector<8x128xf32>
    %74 = vector.extract_strided_slice %7 {offsets = [6, 0, 0], sizes = [4, 8, 128], strides = [1, 1, 1]} : vector<16x8x128xf32> to vector<4x8x128xf32>
    %cst_45 = arith.constant dense<0.000000e+00> : vector<8x128xf32>
    %75 = vector.multi_reduction <add>, %74, %cst_45 [0] : vector<4x8x128xf32> to vector<8x128xf32>
    %cst_46 = arith.constant 6.250000e-02 : f32
    %76 = vector.broadcast %cst_46 : f32 to vector<8x128xf32>
    %77 = arith.mulf %75, %76 : vector<8x128xf32>
    %78 = vector.extract_strided_slice %9 {offsets = [6, 0, 0], sizes = [4, 8, 128], strides = [1, 1, 1]} : vector<16x8x128xf32> to vector<4x8x128xf32>
    %cst_47 = arith.constant dense<0.000000e+00> : vector<8x128xf32>
    %79 = vector.multi_reduction <add>, %78, %cst_47 [0] : vector<4x8x128xf32> to vector<8x128xf32>
    %cst_48 = arith.constant 6.250000e-02 : f32
    %80 = vector.broadcast %cst_48 : f32 to vector<8x128xf32>
    %81 = arith.mulf %79, %80 : vector<8x128xf32>
    %82 = vector.shape_cast %65 : vector<8x128xf32> to vector<1x8x128xf32>
    %83 = vector.shape_cast %69 : vector<8x128xf32> to vector<1x8x128xf32>
    %84 = vector.shape_cast %73 : vector<8x128xf32> to vector<1x8x128xf32>
    %85 = vector.shape_cast %77 : vector<8x128xf32> to vector<1x8x128xf32>
    %86 = vector.shape_cast %81 : vector<8x128xf32> to vector<1x8x128xf32>
    %87 = tpu.concatenate %82, %83, %84, %85, %86 in 0 : vector<1x8x128xf32>, vector<1x8x128xf32>, vector<1x8x128xf32>, vector<1x8x128xf32>, vector<1x8x128xf32> -> vector<5x8x128xf32>
    %88 = vector.extract_strided_slice %1 {offsets = [9, 0, 0], sizes = [4, 8, 128], strides = [1, 1, 1]} : vector<16x8x128xf32> to vector<4x8x128xf32>
    %cst_49 = arith.constant dense<0.000000e+00> : vector<8x128xf32>
    %89 = vector.multi_reduction <add>, %88, %cst_49 [0] : vector<4x8x128xf32> to vector<8x128xf32>
    %cst_50 = arith.constant 6.250000e-02 : f32
    %90 = vector.broadcast %cst_50 : f32 to vector<8x128xf32>
    %91 = arith.mulf %89, %90 : vector<8x128xf32>
    %92 = vector.extract_strided_slice %3 {offsets = [9, 0, 0], sizes = [4, 8, 128], strides = [1, 1, 1]} : vector<16x8x128xf32> to vector<4x8x128xf32>
    %cst_51 = arith.constant dense<0.000000e+00> : vector<8x128xf32>
    %93 = vector.multi_reduction <add>, %92, %cst_51 [0] : vector<4x8x128xf32> to vector<8x128xf32>
    %cst_52 = arith.constant 6.250000e-02 : f32
    %94 = vector.broadcast %cst_52 : f32 to vector<8x128xf32>
    %95 = arith.mulf %93, %94 : vector<8x128xf32>
    %96 = vector.extract_strided_slice %5 {offsets = [9, 0, 0], sizes = [4, 8, 128], strides = [1, 1, 1]} : vector<16x8x128xf32> to vector<4x8x128xf32>
    %cst_53 = arith.constant dense<0.000000e+00> : vector<8x128xf32>
    %97 = vector.multi_reduction <add>, %96, %cst_53 [0] : vector<4x8x128xf32> to vector<8x128xf32>
    %cst_54 = arith.constant 6.250000e-02 : f32
    %98 = vector.broadcast %cst_54 : f32 to vector<8x128xf32>
    %99 = arith.mulf %97, %98 : vector<8x128xf32>
    %100 = vector.extract_strided_slice %7 {offsets = [9, 0, 0], sizes = [4, 8, 128], strides = [1, 1, 1]} : vector<16x8x128xf32> to vector<4x8x128xf32>
    %cst_55 = arith.constant dense<0.000000e+00> : vector<8x128xf32>
    %101 = vector.multi_reduction <add>, %100, %cst_55 [0] : vector<4x8x128xf32> to vector<8x128xf32>
    %cst_56 = arith.constant 6.250000e-02 : f32
    %102 = vector.broadcast %cst_56 : f32 to vector<8x128xf32>
    %103 = arith.mulf %101, %102 : vector<8x128xf32>
    %104 = vector.extract_strided_slice %9 {offsets = [9, 0, 0], sizes = [4, 8, 128], strides = [1, 1, 1]} : vector<16x8x128xf32> to vector<4x8x128xf32>
    %cst_57 = arith.constant dense<0.000000e+00> : vector<8x128xf32>
    %105 = vector.multi_reduction <add>, %104, %cst_57 [0] : vector<4x8x128xf32> to vector<8x128xf32>
    %cst_58 = arith.constant 6.250000e-02 : f32
    %106 = vector.broadcast %cst_58 : f32 to vector<8x128xf32>
    %107 = arith.mulf %105, %106 : vector<8x128xf32>
    %108 = vector.shape_cast %91 : vector<8x128xf32> to vector<1x8x128xf32>
    %109 = vector.shape_cast %95 : vector<8x128xf32> to vector<1x8x128xf32>
    %110 = vector.shape_cast %99 : vector<8x128xf32> to vector<1x8x128xf32>
    %111 = vector.shape_cast %103 : vector<8x128xf32> to vector<1x8x128xf32>
    %112 = vector.shape_cast %107 : vector<8x128xf32> to vector<1x8x128xf32>
    %113 = tpu.concatenate %108, %109, %110, %111, %112 in 0 : vector<1x8x128xf32>, vector<1x8x128xf32>, vector<1x8x128xf32>, vector<1x8x128xf32>, vector<1x8x128xf32> -> vector<5x8x128xf32>
    %114 = vector.extract_strided_slice %1 {offsets = [12, 0, 0], sizes = [4, 8, 128], strides = [1, 1, 1]} : vector<16x8x128xf32> to vector<4x8x128xf32>
    %cst_59 = arith.constant dense<0.000000e+00> : vector<8x128xf32>
    %115 = vector.multi_reduction <add>, %114, %cst_59 [0] : vector<4x8x128xf32> to vector<8x128xf32>
    %cst_60 = arith.constant 6.250000e-02 : f32
    %116 = vector.broadcast %cst_60 : f32 to vector<8x128xf32>
    %117 = arith.mulf %115, %116 : vector<8x128xf32>
    %118 = vector.extract_strided_slice %3 {offsets = [12, 0, 0], sizes = [4, 8, 128], strides = [1, 1, 1]} : vector<16x8x128xf32> to vector<4x8x128xf32>
    %cst_61 = arith.constant dense<0.000000e+00> : vector<8x128xf32>
    %119 = vector.multi_reduction <add>, %118, %cst_61 [0] : vector<4x8x128xf32> to vector<8x128xf32>
    %cst_62 = arith.constant 6.250000e-02 : f32
    %120 = vector.broadcast %cst_62 : f32 to vector<8x128xf32>
    %121 = arith.mulf %119, %120 : vector<8x128xf32>
    %122 = vector.extract_strided_slice %5 {offsets = [12, 0, 0], sizes = [4, 8, 128], strides = [1, 1, 1]} : vector<16x8x128xf32> to vector<4x8x128xf32>
    %cst_63 = arith.constant dense<0.000000e+00> : vector<8x128xf32>
    %123 = vector.multi_reduction <add>, %122, %cst_63 [0] : vector<4x8x128xf32> to vector<8x128xf32>
    %cst_64 = arith.constant 6.250000e-02 : f32
    %124 = vector.broadcast %cst_64 : f32 to vector<8x128xf32>
    %125 = arith.mulf %123, %124 : vector<8x128xf32>
    %126 = vector.extract_strided_slice %7 {offsets = [12, 0, 0], sizes = [4, 8, 128], strides = [1, 1, 1]} : vector<16x8x128xf32> to vector<4x8x128xf32>
    %cst_65 = arith.constant dense<0.000000e+00> : vector<8x128xf32>
    %127 = vector.multi_reduction <add>, %126, %cst_65 [0] : vector<4x8x128xf32> to vector<8x128xf32>
    %cst_66 = arith.constant 6.250000e-02 : f32
    %128 = vector.broadcast %cst_66 : f32 to vector<8x128xf32>
    %129 = arith.mulf %127, %128 : vector<8x128xf32>
    %130 = vector.extract_strided_slice %9 {offsets = [12, 0, 0], sizes = [4, 8, 128], strides = [1, 1, 1]} : vector<16x8x128xf32> to vector<4x8x128xf32>
    %cst_67 = arith.constant dense<0.000000e+00> : vector<8x128xf32>
    %131 = vector.multi_reduction <add>, %130, %cst_67 [0] : vector<4x8x128xf32> to vector<8x128xf32>
    %cst_68 = arith.constant 6.250000e-02 : f32
    %132 = vector.broadcast %cst_68 : f32 to vector<8x128xf32>
    %133 = arith.mulf %131, %132 : vector<8x128xf32>
    %134 = vector.shape_cast %117 : vector<8x128xf32> to vector<1x8x128xf32>
    %135 = vector.shape_cast %121 : vector<8x128xf32> to vector<1x8x128xf32>
    %136 = vector.shape_cast %125 : vector<8x128xf32> to vector<1x8x128xf32>
    %137 = vector.shape_cast %129 : vector<8x128xf32> to vector<1x8x128xf32>
    %138 = vector.shape_cast %133 : vector<8x128xf32> to vector<1x8x128xf32>
    %139 = tpu.concatenate %134, %135, %136, %137, %138 in 0 : vector<1x8x128xf32>, vector<1x8x128xf32>, vector<1x8x128xf32>, vector<1x8x128xf32>, vector<1x8x128xf32> -> vector<5x8x128xf32>
    %140 = vector.shape_cast %35 : vector<5x8x128xf32> to vector<1x5x8x128xf32>
    %141 = vector.shape_cast %61 : vector<5x8x128xf32> to vector<1x5x8x128xf32>
    %142 = vector.shape_cast %87 : vector<5x8x128xf32> to vector<1x5x8x128xf32>
    %143 = vector.shape_cast %113 : vector<5x8x128xf32> to vector<1x5x8x128xf32>
    %144 = vector.shape_cast %139 : vector<5x8x128xf32> to vector<1x5x8x128xf32>
    %145 = tpu.concatenate %140, %141, %142, %143, %144 in 0 : vector<1x5x8x128xf32>, vector<1x5x8x128xf32>, vector<1x5x8x128xf32>, vector<1x5x8x128xf32>, vector<1x5x8x128xf32> -> vector<5x5x8x128xf32>
    %c0_69 = arith.constant 0 : index
    %c0_70 = arith.constant 0 : index
    %146 = vector.load %arg4[%c0_69, %c0_70] : memref<24x128xf32, #tpu.memory_space<vmem>>, vector<1x128xf32>
    %c1 = arith.constant 1 : index
    %c0_71 = arith.constant 0 : index
    %147 = vector.load %arg4[%c1, %c0_71] : memref<24x128xf32, #tpu.memory_space<vmem>>, vector<1x128xf32>
    %c2 = arith.constant 2 : index
    %c0_72 = arith.constant 0 : index
    %148 = vector.load %arg4[%c2, %c0_72] : memref<24x128xf32, #tpu.memory_space<vmem>>, vector<1x128xf32>
    %149 = vector.extract_strided_slice %145 {offsets = [0, 0, 0, 0], sizes = [1, 5, 8, 128], strides = [1, 1, 1, 1]} : vector<5x5x8x128xf32> to vector<1x5x8x128xf32>
    %150 = vector.extract_strided_slice %145 {offsets = [4, 0, 0, 0], sizes = [1, 5, 8, 128], strides = [1, 1, 1, 1]} : vector<5x5x8x128xf32> to vector<1x5x8x128xf32>
    %151 = tpu.concatenate %149, %145, %150 in 0 : vector<1x5x8x128xf32>, vector<5x5x8x128xf32>, vector<1x5x8x128xf32> -> vector<7x5x8x128xf32>
    %152 = vector.extract_strided_slice %151 {offsets = [0, 0, 0, 0], sizes = [7, 1, 8, 128], strides = [1, 1, 1, 1]} : vector<7x5x8x128xf32> to vector<7x1x8x128xf32>
    %153 = vector.extract_strided_slice %151 {offsets = [0, 4, 0, 0], sizes = [7, 1, 8, 128], strides = [1, 1, 1, 1]} : vector<7x5x8x128xf32> to vector<7x1x8x128xf32>
    %154 = tpu.concatenate %152, %151, %153 in 1 : vector<7x1x8x128xf32>, vector<7x5x8x128xf32>, vector<7x1x8x128xf32> -> vector<7x7x8x128xf32>
    %cst_73 = arith.constant 0.000000e+00 : f32
    %155 = vector.broadcast %cst_73 : f32 to vector<200x128xf32>
    %156 = vector.extract_strided_slice %154 {offsets = [0, 0, 0, 0], sizes = [5, 5, 8, 128], strides = [1, 1, 1, 1]} : vector<7x7x8x128xf32> to vector<5x5x8x128xf32>
    %157 = vector.shape_cast %156 : vector<5x5x8x128xf32> to vector<200x128xf32>
    %c0_74 = arith.constant 0 : index
    %c0_75 = arith.constant 0 : index
    %158 = vector.load %arg2[%c0_74, %c0_75] : memref<3456x128xbf16, #tpu.memory_space<vmem>>, vector<128x128xbf16>
    %159 = arith.truncf %157 : vector<200x128xf32> to vector<200x128xbf16>
    %cst_76 = arith.constant dense<0.000000e+00> : vector<200x128xf32>
    %160 = tpu.matmul %159, %158, %cst_76 {dimension_numbers = #tpu.dot_dimension_numbers<[1], [0], [0], [1], [0, 0, 1, 1], [], []>} : vector<200x128xbf16>, vector<128x128xbf16>, vector<200x128xf32> -> vector<200x128xf32>
    %161 = arith.addf %155, %160 : vector<200x128xf32>
    %162 = vector.extract_strided_slice %154 {offsets = [0, 1, 0, 0], sizes = [5, 5, 8, 128], strides = [1, 1, 1, 1]} : vector<7x7x8x128xf32> to vector<5x5x8x128xf32>
    %163 = vector.shape_cast %162 : vector<5x5x8x128xf32> to vector<200x128xf32>
    %c128 = arith.constant 128 : index
    %c0_77 = arith.constant 0 : index
    %164 = vector.load %arg2[%c128, %c0_77] : memref<3456x128xbf16, #tpu.memory_space<vmem>>, vector<128x128xbf16>
    %165 = arith.truncf %163 : vector<200x128xf32> to vector<200x128xbf16>
    %cst_78 = arith.constant dense<0.000000e+00> : vector<200x128xf32>
    %166 = tpu.matmul %165, %164, %cst_78 {dimension_numbers = #tpu.dot_dimension_numbers<[1], [0], [0], [1], [0, 0, 1, 1], [], []>} : vector<200x128xbf16>, vector<128x128xbf16>, vector<200x128xf32> -> vector<200x128xf32>
    %167 = arith.addf %161, %166 : vector<200x128xf32>
    %168 = vector.extract_strided_slice %154 {offsets = [0, 2, 0, 0], sizes = [5, 5, 8, 128], strides = [1, 1, 1, 1]} : vector<7x7x8x128xf32> to vector<5x5x8x128xf32>
    %169 = vector.shape_cast %168 : vector<5x5x8x128xf32> to vector<200x128xf32>
    %c256 = arith.constant 256 : index
    %c0_79 = arith.constant 0 : index
    %170 = vector.load %arg2[%c256, %c0_79] : memref<3456x128xbf16, #tpu.memory_space<vmem>>, vector<128x128xbf16>
    %171 = arith.truncf %169 : vector<200x128xf32> to vector<200x128xbf16>
    %cst_80 = arith.constant dense<0.000000e+00> : vector<200x128xf32>
    %172 = tpu.matmul %171, %170, %cst_80 {dimension_numbers = #tpu.dot_dimension_numbers<[1], [0], [0], [1], [0, 0, 1, 1], [], []>} : vector<200x128xbf16>, vector<128x128xbf16>, vector<200x128xf32> -> vector<200x128xf32>
    %173 = arith.addf %167, %172 : vector<200x128xf32>
    %174 = vector.extract_strided_slice %154 {offsets = [1, 0, 0, 0], sizes = [5, 5, 8, 128], strides = [1, 1, 1, 1]} : vector<7x7x8x128xf32> to vector<5x5x8x128xf32>
    %175 = vector.shape_cast %174 : vector<5x5x8x128xf32> to vector<200x128xf32>
    %c384 = arith.constant 384 : index
    %c0_81 = arith.constant 0 : index
    %176 = vector.load %arg2[%c384, %c0_81] : memref<3456x128xbf16, #tpu.memory_space<vmem>>, vector<128x128xbf16>
    %177 = arith.truncf %175 : vector<200x128xf32> to vector<200x128xbf16>
    %cst_82 = arith.constant dense<0.000000e+00> : vector<200x128xf32>
    %178 = tpu.matmul %177, %176, %cst_82 {dimension_numbers = #tpu.dot_dimension_numbers<[1], [0], [0], [1], [0, 0, 1, 1], [], []>} : vector<200x128xbf16>, vector<128x128xbf16>, vector<200x128xf32> -> vector<200x128xf32>
    %179 = arith.addf %173, %178 : vector<200x128xf32>
    %180 = vector.extract_strided_slice %154 {offsets = [1, 1, 0, 0], sizes = [5, 5, 8, 128], strides = [1, 1, 1, 1]} : vector<7x7x8x128xf32> to vector<5x5x8x128xf32>
    %181 = vector.shape_cast %180 : vector<5x5x8x128xf32> to vector<200x128xf32>
    %c512 = arith.constant 512 : index
    %c0_83 = arith.constant 0 : index
    %182 = vector.load %arg2[%c512, %c0_83] : memref<3456x128xbf16, #tpu.memory_space<vmem>>, vector<128x128xbf16>
    %183 = arith.truncf %181 : vector<200x128xf32> to vector<200x128xbf16>
    %cst_84 = arith.constant dense<0.000000e+00> : vector<200x128xf32>
    %184 = tpu.matmul %183, %182, %cst_84 {dimension_numbers = #tpu.dot_dimension_numbers<[1], [0], [0], [1], [0, 0, 1, 1], [], []>} : vector<200x128xbf16>, vector<128x128xbf16>, vector<200x128xf32> -> vector<200x128xf32>
    %185 = arith.addf %179, %184 : vector<200x128xf32>
    %186 = vector.extract_strided_slice %154 {offsets = [1, 2, 0, 0], sizes = [5, 5, 8, 128], strides = [1, 1, 1, 1]} : vector<7x7x8x128xf32> to vector<5x5x8x128xf32>
    %187 = vector.shape_cast %186 : vector<5x5x8x128xf32> to vector<200x128xf32>
    %c640 = arith.constant 640 : index
    %c0_85 = arith.constant 0 : index
    %188 = vector.load %arg2[%c640, %c0_85] : memref<3456x128xbf16, #tpu.memory_space<vmem>>, vector<128x128xbf16>
    %189 = arith.truncf %187 : vector<200x128xf32> to vector<200x128xbf16>
    %cst_86 = arith.constant dense<0.000000e+00> : vector<200x128xf32>
    %190 = tpu.matmul %189, %188, %cst_86 {dimension_numbers = #tpu.dot_dimension_numbers<[1], [0], [0], [1], [0, 0, 1, 1], [], []>} : vector<200x128xbf16>, vector<128x128xbf16>, vector<200x128xf32> -> vector<200x128xf32>
    %191 = arith.addf %185, %190 : vector<200x128xf32>
    %192 = vector.extract_strided_slice %154 {offsets = [2, 0, 0, 0], sizes = [5, 5, 8, 128], strides = [1, 1, 1, 1]} : vector<7x7x8x128xf32> to vector<5x5x8x128xf32>
    %193 = vector.shape_cast %192 : vector<5x5x8x128xf32> to vector<200x128xf32>
    %c768 = arith.constant 768 : index
    %c0_87 = arith.constant 0 : index
    %194 = vector.load %arg2[%c768, %c0_87] : memref<3456x128xbf16, #tpu.memory_space<vmem>>, vector<128x128xbf16>
    %195 = arith.truncf %193 : vector<200x128xf32> to vector<200x128xbf16>
    %cst_88 = arith.constant dense<0.000000e+00> : vector<200x128xf32>
    %196 = tpu.matmul %195, %194, %cst_88 {dimension_numbers = #tpu.dot_dimension_numbers<[1], [0], [0], [1], [0, 0, 1, 1], [], []>} : vector<200x128xbf16>, vector<128x128xbf16>, vector<200x128xf32> -> vector<200x128xf32>
    %197 = arith.addf %191, %196 : vector<200x128xf32>
    %198 = vector.extract_strided_slice %154 {offsets = [2, 1, 0, 0], sizes = [5, 5, 8, 128], strides = [1, 1, 1, 1]} : vector<7x7x8x128xf32> to vector<5x5x8x128xf32>
    %199 = vector.shape_cast %198 : vector<5x5x8x128xf32> to vector<200x128xf32>
    %c896 = arith.constant 896 : index
    %c0_89 = arith.constant 0 : index
    %200 = vector.load %arg2[%c896, %c0_89] : memref<3456x128xbf16, #tpu.memory_space<vmem>>, vector<128x128xbf16>
    %201 = arith.truncf %199 : vector<200x128xf32> to vector<200x128xbf16>
    %cst_90 = arith.constant dense<0.000000e+00> : vector<200x128xf32>
    %202 = tpu.matmul %201, %200, %cst_90 {dimension_numbers = #tpu.dot_dimension_numbers<[1], [0], [0], [1], [0, 0, 1, 1], [], []>} : vector<200x128xbf16>, vector<128x128xbf16>, vector<200x128xf32> -> vector<200x128xf32>
    %203 = arith.addf %197, %202 : vector<200x128xf32>
    %204 = vector.extract_strided_slice %154 {offsets = [2, 2, 0, 0], sizes = [5, 5, 8, 128], strides = [1, 1, 1, 1]} : vector<7x7x8x128xf32> to vector<5x5x8x128xf32>
    %205 = vector.shape_cast %204 : vector<5x5x8x128xf32> to vector<200x128xf32>
    %c1024 = arith.constant 1024 : index
    %c0_91 = arith.constant 0 : index
    %206 = vector.load %arg2[%c1024, %c0_91] : memref<3456x128xbf16, #tpu.memory_space<vmem>>, vector<128x128xbf16>
    %207 = arith.truncf %205 : vector<200x128xf32> to vector<200x128xbf16>
    %cst_92 = arith.constant dense<0.000000e+00> : vector<200x128xf32>
    %208 = tpu.matmul %207, %206, %cst_92 {dimension_numbers = #tpu.dot_dimension_numbers<[1], [0], [0], [1], [0, 0, 1, 1], [], []>} : vector<200x128xbf16>, vector<128x128xbf16>, vector<200x128xf32> -> vector<200x128xf32>
    %209 = arith.addf %203, %208 : vector<200x128xf32>
    %210 = vector.broadcast %146 : vector<1x128xf32> to vector<200x128xf32>
    %211 = arith.mulf %209, %210 : vector<200x128xf32>
    %212 = vector.broadcast %147 : vector<1x128xf32> to vector<200x128xf32>
    %213 = arith.addf %211, %212 : vector<200x128xf32>
    %cst_93 = arith.constant 0.000000e+00 : f32
    %214 = vector.broadcast %cst_93 : f32 to vector<200x128xf32>
    %215 = arith.cmpf oge, %213, %214 : vector<200x128xf32>
    %216 = vector.broadcast %148 : vector<1x128xf32> to vector<200x128xf32>
    %217 = arith.mulf %213, %216 : vector<200x128xf32>
    %218 = arith.select %215, %213, %217 : vector<200x128xi1>, vector<200x128xf32>
    %219 = vector.shape_cast %218 : vector<200x128xf32> to vector<5x5x8x128xf32>
    %c3_94 = arith.constant 3 : index
    %c0_95 = arith.constant 0 : index
    %220 = vector.load %arg4[%c3_94, %c0_95] : memref<24x128xf32, #tpu.memory_space<vmem>>, vector<1x128xf32>
    %c4 = arith.constant 4 : index
    %c0_96 = arith.constant 0 : index
    %221 = vector.load %arg4[%c4, %c0_96] : memref<24x128xf32, #tpu.memory_space<vmem>>, vector<1x128xf32>
    %c5 = arith.constant 5 : index
    %c0_97 = arith.constant 0 : index
    %222 = vector.load %arg4[%c5, %c0_97] : memref<24x128xf32, #tpu.memory_space<vmem>>, vector<1x128xf32>
    %223 = vector.extract_strided_slice %219 {offsets = [0, 0, 0, 0], sizes = [1, 5, 8, 128], strides = [1, 1, 1, 1]} : vector<5x5x8x128xf32> to vector<1x5x8x128xf32>
    %224 = vector.extract_strided_slice %219 {offsets = [4, 0, 0, 0], sizes = [1, 5, 8, 128], strides = [1, 1, 1, 1]} : vector<5x5x8x128xf32> to vector<1x5x8x128xf32>
    %225 = tpu.concatenate %223, %219, %224 in 0 : vector<1x5x8x128xf32>, vector<5x5x8x128xf32>, vector<1x5x8x128xf32> -> vector<7x5x8x128xf32>
    %226 = vector.extract_strided_slice %225 {offsets = [0, 0, 0, 0], sizes = [7, 1, 8, 128], strides = [1, 1, 1, 1]} : vector<7x5x8x128xf32> to vector<7x1x8x128xf32>
    %227 = vector.extract_strided_slice %225 {offsets = [0, 4, 0, 0], sizes = [7, 1, 8, 128], strides = [1, 1, 1, 1]} : vector<7x5x8x128xf32> to vector<7x1x8x128xf32>
    %228 = tpu.concatenate %226, %225, %227 in 1 : vector<7x1x8x128xf32>, vector<7x5x8x128xf32>, vector<7x1x8x128xf32> -> vector<7x7x8x128xf32>
    %cst_98 = arith.constant 0.000000e+00 : f32
    %229 = vector.broadcast %cst_98 : f32 to vector<200x128xf32>
    %230 = vector.extract_strided_slice %228 {offsets = [0, 0, 0, 0], sizes = [5, 5, 8, 128], strides = [1, 1, 1, 1]} : vector<7x7x8x128xf32> to vector<5x5x8x128xf32>
    %231 = vector.shape_cast %230 : vector<5x5x8x128xf32> to vector<200x128xf32>
    %c1152 = arith.constant 1152 : index
    %c0_99 = arith.constant 0 : index
    %232 = vector.load %arg2[%c1152, %c0_99] : memref<3456x128xbf16, #tpu.memory_space<vmem>>, vector<128x128xbf16>
    %233 = arith.truncf %231 : vector<200x128xf32> to vector<200x128xbf16>
    %cst_100 = arith.constant dense<0.000000e+00> : vector<200x128xf32>
    %234 = tpu.matmul %233, %232, %cst_100 {dimension_numbers = #tpu.dot_dimension_numbers<[1], [0], [0], [1], [0, 0, 1, 1], [], []>} : vector<200x128xbf16>, vector<128x128xbf16>, vector<200x128xf32> -> vector<200x128xf32>
    %235 = arith.addf %229, %234 : vector<200x128xf32>
    %236 = vector.extract_strided_slice %228 {offsets = [0, 1, 0, 0], sizes = [5, 5, 8, 128], strides = [1, 1, 1, 1]} : vector<7x7x8x128xf32> to vector<5x5x8x128xf32>
    %237 = vector.shape_cast %236 : vector<5x5x8x128xf32> to vector<200x128xf32>
    %c1280 = arith.constant 1280 : index
    %c0_101 = arith.constant 0 : index
    %238 = vector.load %arg2[%c1280, %c0_101] : memref<3456x128xbf16, #tpu.memory_space<vmem>>, vector<128x128xbf16>
    %239 = arith.truncf %237 : vector<200x128xf32> to vector<200x128xbf16>
    %cst_102 = arith.constant dense<0.000000e+00> : vector<200x128xf32>
    %240 = tpu.matmul %239, %238, %cst_102 {dimension_numbers = #tpu.dot_dimension_numbers<[1], [0], [0], [1], [0, 0, 1, 1], [], []>} : vector<200x128xbf16>, vector<128x128xbf16>, vector<200x128xf32> -> vector<200x128xf32>
    %241 = arith.addf %235, %240 : vector<200x128xf32>
    %242 = vector.extract_strided_slice %228 {offsets = [0, 2, 0, 0], sizes = [5, 5, 8, 128], strides = [1, 1, 1, 1]} : vector<7x7x8x128xf32> to vector<5x5x8x128xf32>
    %243 = vector.shape_cast %242 : vector<5x5x8x128xf32> to vector<200x128xf32>
    %c1408 = arith.constant 1408 : index
    %c0_103 = arith.constant 0 : index
    %244 = vector.load %arg2[%c1408, %c0_103] : memref<3456x128xbf16, #tpu.memory_space<vmem>>, vector<128x128xbf16>
    %245 = arith.truncf %243 : vector<200x128xf32> to vector<200x128xbf16>
    %cst_104 = arith.constant dense<0.000000e+00> : vector<200x128xf32>
    %246 = tpu.matmul %245, %244, %cst_104 {dimension_numbers = #tpu.dot_dimension_numbers<[1], [0], [0], [1], [0, 0, 1, 1], [], []>} : vector<200x128xbf16>, vector<128x128xbf16>, vector<200x128xf32> -> vector<200x128xf32>
    %247 = arith.addf %241, %246 : vector<200x128xf32>
    %248 = vector.extract_strided_slice %228 {offsets = [1, 0, 0, 0], sizes = [5, 5, 8, 128], strides = [1, 1, 1, 1]} : vector<7x7x8x128xf32> to vector<5x5x8x128xf32>
    %249 = vector.shape_cast %248 : vector<5x5x8x128xf32> to vector<200x128xf32>
    %c1536 = arith.constant 1536 : index
    %c0_105 = arith.constant 0 : index
    %250 = vector.load %arg2[%c1536, %c0_105] : memref<3456x128xbf16, #tpu.memory_space<vmem>>, vector<128x128xbf16>
    %251 = arith.truncf %249 : vector<200x128xf32> to vector<200x128xbf16>
    %cst_106 = arith.constant dense<0.000000e+00> : vector<200x128xf32>
    %252 = tpu.matmul %251, %250, %cst_106 {dimension_numbers = #tpu.dot_dimension_numbers<[1], [0], [0], [1], [0, 0, 1, 1], [], []>} : vector<200x128xbf16>, vector<128x128xbf16>, vector<200x128xf32> -> vector<200x128xf32>
    %253 = arith.addf %247, %252 : vector<200x128xf32>
    %254 = vector.extract_strided_slice %228 {offsets = [1, 1, 0, 0], sizes = [5, 5, 8, 128], strides = [1, 1, 1, 1]} : vector<7x7x8x128xf32> to vector<5x5x8x128xf32>
    %255 = vector.shape_cast %254 : vector<5x5x8x128xf32> to vector<200x128xf32>
    %c1664 = arith.constant 1664 : index
    %c0_107 = arith.constant 0 : index
    %256 = vector.load %arg2[%c1664, %c0_107] : memref<3456x128xbf16, #tpu.memory_space<vmem>>, vector<128x128xbf16>
    %257 = arith.truncf %255 : vector<200x128xf32> to vector<200x128xbf16>
    %cst_108 = arith.constant dense<0.000000e+00> : vector<200x128xf32>
    %258 = tpu.matmul %257, %256, %cst_108 {dimension_numbers = #tpu.dot_dimension_numbers<[1], [0], [0], [1], [0, 0, 1, 1], [], []>} : vector<200x128xbf16>, vector<128x128xbf16>, vector<200x128xf32> -> vector<200x128xf32>
    %259 = arith.addf %253, %258 : vector<200x128xf32>
    %260 = vector.extract_strided_slice %228 {offsets = [1, 2, 0, 0], sizes = [5, 5, 8, 128], strides = [1, 1, 1, 1]} : vector<7x7x8x128xf32> to vector<5x5x8x128xf32>
    %261 = vector.shape_cast %260 : vector<5x5x8x128xf32> to vector<200x128xf32>
    %c1792 = arith.constant 1792 : index
    %c0_109 = arith.constant 0 : index
    %262 = vector.load %arg2[%c1792, %c0_109] : memref<3456x128xbf16, #tpu.memory_space<vmem>>, vector<128x128xbf16>
    %263 = arith.truncf %261 : vector<200x128xf32> to vector<200x128xbf16>
    %cst_110 = arith.constant dense<0.000000e+00> : vector<200x128xf32>
    %264 = tpu.matmul %263, %262, %cst_110 {dimension_numbers = #tpu.dot_dimension_numbers<[1], [0], [0], [1], [0, 0, 1, 1], [], []>} : vector<200x128xbf16>, vector<128x128xbf16>, vector<200x128xf32> -> vector<200x128xf32>
    %265 = arith.addf %259, %264 : vector<200x128xf32>
    %266 = vector.extract_strided_slice %228 {offsets = [2, 0, 0, 0], sizes = [5, 5, 8, 128], strides = [1, 1, 1, 1]} : vector<7x7x8x128xf32> to vector<5x5x8x128xf32>
    %267 = vector.shape_cast %266 : vector<5x5x8x128xf32> to vector<200x128xf32>
    %c1920 = arith.constant 1920 : index
    %c0_111 = arith.constant 0 : index
    %268 = vector.load %arg2[%c1920, %c0_111] : memref<3456x128xbf16, #tpu.memory_space<vmem>>, vector<128x128xbf16>
    %269 = arith.truncf %267 : vector<200x128xf32> to vector<200x128xbf16>
    %cst_112 = arith.constant dense<0.000000e+00> : vector<200x128xf32>
    %270 = tpu.matmul %269, %268, %cst_112 {dimension_numbers = #tpu.dot_dimension_numbers<[1], [0], [0], [1], [0, 0, 1, 1], [], []>} : vector<200x128xbf16>, vector<128x128xbf16>, vector<200x128xf32> -> vector<200x128xf32>
    %271 = arith.addf %265, %270 : vector<200x128xf32>
    %272 = vector.extract_strided_slice %228 {offsets = [2, 1, 0, 0], sizes = [5, 5, 8, 128], strides = [1, 1, 1, 1]} : vector<7x7x8x128xf32> to vector<5x5x8x128xf32>
    %273 = vector.shape_cast %272 : vector<5x5x8x128xf32> to vector<200x128xf32>
    %c2048 = arith.constant 2048 : index
    %c0_113 = arith.constant 0 : index
    %274 = vector.load %arg2[%c2048, %c0_113] : memref<3456x128xbf16, #tpu.memory_space<vmem>>, vector<128x128xbf16>
    %275 = arith.truncf %273 : vector<200x128xf32> to vector<200x128xbf16>
    %cst_114 = arith.constant dense<0.000000e+00> : vector<200x128xf32>
    %276 = tpu.matmul %275, %274, %cst_114 {dimension_numbers = #tpu.dot_dimension_numbers<[1], [0], [0], [1], [0, 0, 1, 1], [], []>} : vector<200x128xbf16>, vector<128x128xbf16>, vector<200x128xf32> -> vector<200x128xf32>
    %277 = arith.addf %271, %276 : vector<200x128xf32>
    %278 = vector.extract_strided_slice %228 {offsets = [2, 2, 0, 0], sizes = [5, 5, 8, 128], strides = [1, 1, 1, 1]} : vector<7x7x8x128xf32> to vector<5x5x8x128xf32>
    %279 = vector.shape_cast %278 : vector<5x5x8x128xf32> to vector<200x128xf32>
    %c2176 = arith.constant 2176 : index
    %c0_115 = arith.constant 0 : index
    %280 = vector.load %arg2[%c2176, %c0_115] : memref<3456x128xbf16, #tpu.memory_space<vmem>>, vector<128x128xbf16>
    %281 = arith.truncf %279 : vector<200x128xf32> to vector<200x128xbf16>
    %cst_116 = arith.constant dense<0.000000e+00> : vector<200x128xf32>
    %282 = tpu.matmul %281, %280, %cst_116 {dimension_numbers = #tpu.dot_dimension_numbers<[1], [0], [0], [1], [0, 0, 1, 1], [], []>} : vector<200x128xbf16>, vector<128x128xbf16>, vector<200x128xf32> -> vector<200x128xf32>
    %283 = arith.addf %277, %282 : vector<200x128xf32>
    %284 = vector.broadcast %220 : vector<1x128xf32> to vector<200x128xf32>
    %285 = arith.mulf %283, %284 : vector<200x128xf32>
    %286 = vector.broadcast %221 : vector<1x128xf32> to vector<200x128xf32>
    %287 = arith.addf %285, %286 : vector<200x128xf32>
    %cst_117 = arith.constant 0.000000e+00 : f32
    %288 = vector.broadcast %cst_117 : f32 to vector<200x128xf32>
    %289 = arith.cmpf oge, %287, %288 : vector<200x128xf32>
    %290 = vector.broadcast %222 : vector<1x128xf32> to vector<200x128xf32>
    %291 = arith.mulf %287, %290 : vector<200x128xf32>
    %292 = arith.select %289, %287, %291 : vector<200x128xi1>, vector<200x128xf32>
    %293 = vector.shape_cast %292 : vector<200x128xf32> to vector<5x5x8x128xf32>
    %c6_118 = arith.constant 6 : index
    %c0_119 = arith.constant 0 : index
    %294 = vector.load %arg4[%c6_118, %c0_119] : memref<24x128xf32, #tpu.memory_space<vmem>>, vector<1x128xf32>
    %c7 = arith.constant 7 : index
    %c0_120 = arith.constant 0 : index
    %295 = vector.load %arg4[%c7, %c0_120] : memref<24x128xf32, #tpu.memory_space<vmem>>, vector<1x128xf32>
    %c8 = arith.constant 8 : index
    %c0_121 = arith.constant 0 : index
    %296 = vector.load %arg4[%c8, %c0_121] : memref<24x128xf32, #tpu.memory_space<vmem>>, vector<1x128xf32>
    %297 = vector.extract_strided_slice %293 {offsets = [0, 0, 0, 0], sizes = [1, 5, 8, 128], strides = [1, 1, 1, 1]} : vector<5x5x8x128xf32> to vector<1x5x8x128xf32>
    %298 = vector.extract_strided_slice %293 {offsets = [4, 0, 0, 0], sizes = [1, 5, 8, 128], strides = [1, 1, 1, 1]} : vector<5x5x8x128xf32> to vector<1x5x8x128xf32>
    %299 = tpu.concatenate %297, %293, %298 in 0 : vector<1x5x8x128xf32>, vector<5x5x8x128xf32>, vector<1x5x8x128xf32> -> vector<7x5x8x128xf32>
    %300 = vector.extract_strided_slice %299 {offsets = [0, 0, 0, 0], sizes = [7, 1, 8, 128], strides = [1, 1, 1, 1]} : vector<7x5x8x128xf32> to vector<7x1x8x128xf32>
    %301 = vector.extract_strided_slice %299 {offsets = [0, 4, 0, 0], sizes = [7, 1, 8, 128], strides = [1, 1, 1, 1]} : vector<7x5x8x128xf32> to vector<7x1x8x128xf32>
    %302 = tpu.concatenate %300, %299, %301 in 1 : vector<7x1x8x128xf32>, vector<7x5x8x128xf32>, vector<7x1x8x128xf32> -> vector<7x7x8x128xf32>
    %cst_122 = arith.constant 0.000000e+00 : f32
    %303 = vector.broadcast %cst_122 : f32 to vector<200x128xf32>
    %304 = vector.extract_strided_slice %302 {offsets = [0, 0, 0, 0], sizes = [5, 5, 8, 128], strides = [1, 1, 1, 1]} : vector<7x7x8x128xf32> to vector<5x5x8x128xf32>
    %305 = vector.shape_cast %304 : vector<5x5x8x128xf32> to vector<200x128xf32>
    %c2304 = arith.constant 2304 : index
    %c0_123 = arith.constant 0 : index
    %306 = vector.load %arg2[%c2304, %c0_123] : memref<3456x128xbf16, #tpu.memory_space<vmem>>, vector<128x128xbf16>
    %307 = arith.truncf %305 : vector<200x128xf32> to vector<200x128xbf16>
    %cst_124 = arith.constant dense<0.000000e+00> : vector<200x128xf32>
    %308 = tpu.matmul %307, %306, %cst_124 {dimension_numbers = #tpu.dot_dimension_numbers<[1], [0], [0], [1], [0, 0, 1, 1], [], []>} : vector<200x128xbf16>, vector<128x128xbf16>, vector<200x128xf32> -> vector<200x128xf32>
    %309 = arith.addf %303, %308 : vector<200x128xf32>
    %310 = vector.extract_strided_slice %302 {offsets = [0, 1, 0, 0], sizes = [5, 5, 8, 128], strides = [1, 1, 1, 1]} : vector<7x7x8x128xf32> to vector<5x5x8x128xf32>
    %311 = vector.shape_cast %310 : vector<5x5x8x128xf32> to vector<200x128xf32>
    %c2432 = arith.constant 2432 : index
    %c0_125 = arith.constant 0 : index
    %312 = vector.load %arg2[%c2432, %c0_125] : memref<3456x128xbf16, #tpu.memory_space<vmem>>, vector<128x128xbf16>
    %313 = arith.truncf %311 : vector<200x128xf32> to vector<200x128xbf16>
    %cst_126 = arith.constant dense<0.000000e+00> : vector<200x128xf32>
    %314 = tpu.matmul %313, %312, %cst_126 {dimension_numbers = #tpu.dot_dimension_numbers<[1], [0], [0], [1], [0, 0, 1, 1], [], []>} : vector<200x128xbf16>, vector<128x128xbf16>, vector<200x128xf32> -> vector<200x128xf32>
    %315 = arith.addf %309, %314 : vector<200x128xf32>
    %316 = vector.extract_strided_slice %302 {offsets = [0, 2, 0, 0], sizes = [5, 5, 8, 128], strides = [1, 1, 1, 1]} : vector<7x7x8x128xf32> to vector<5x5x8x128xf32>
    %317 = vector.shape_cast %316 : vector<5x5x8x128xf32> to vector<200x128xf32>
    %c2560 = arith.constant 2560 : index
    %c0_127 = arith.constant 0 : index
    %318 = vector.load %arg2[%c2560, %c0_127] : memref<3456x128xbf16, #tpu.memory_space<vmem>>, vector<128x128xbf16>
    %319 = arith.truncf %317 : vector<200x128xf32> to vector<200x128xbf16>
    %cst_128 = arith.constant dense<0.000000e+00> : vector<200x128xf32>
    %320 = tpu.matmul %319, %318, %cst_128 {dimension_numbers = #tpu.dot_dimension_numbers<[1], [0], [0], [1], [0, 0, 1, 1], [], []>} : vector<200x128xbf16>, vector<128x128xbf16>, vector<200x128xf32> -> vector<200x128xf32>
    %321 = arith.addf %315, %320 : vector<200x128xf32>
    %322 = vector.extract_strided_slice %302 {offsets = [1, 0, 0, 0], sizes = [5, 5, 8, 128], strides = [1, 1, 1, 1]} : vector<7x7x8x128xf32> to vector<5x5x8x128xf32>
    %323 = vector.shape_cast %322 : vector<5x5x8x128xf32> to vector<200x128xf32>
    %c2688 = arith.constant 2688 : index
    %c0_129 = arith.constant 0 : index
    %324 = vector.load %arg2[%c2688, %c0_129] : memref<3456x128xbf16, #tpu.memory_space<vmem>>, vector<128x128xbf16>
    %325 = arith.truncf %323 : vector<200x128xf32> to vector<200x128xbf16>
    %cst_130 = arith.constant dense<0.000000e+00> : vector<200x128xf32>
    %326 = tpu.matmul %325, %324, %cst_130 {dimension_numbers = #tpu.dot_dimension_numbers<[1], [0], [0], [1], [0, 0, 1, 1], [], []>} : vector<200x128xbf16>, vector<128x128xbf16>, vector<200x128xf32> -> vector<200x128xf32>
    %327 = arith.addf %321, %326 : vector<200x128xf32>
    %328 = vector.extract_strided_slice %302 {offsets = [1, 1, 0, 0], sizes = [5, 5, 8, 128], strides = [1, 1, 1, 1]} : vector<7x7x8x128xf32> to vector<5x5x8x128xf32>
    %329 = vector.shape_cast %328 : vector<5x5x8x128xf32> to vector<200x128xf32>
    %c2816 = arith.constant 2816 : index
    %c0_131 = arith.constant 0 : index
    %330 = vector.load %arg2[%c2816, %c0_131] : memref<3456x128xbf16, #tpu.memory_space<vmem>>, vector<128x128xbf16>
    %331 = arith.truncf %329 : vector<200x128xf32> to vector<200x128xbf16>
    %cst_132 = arith.constant dense<0.000000e+00> : vector<200x128xf32>
    %332 = tpu.matmul %331, %330, %cst_132 {dimension_numbers = #tpu.dot_dimension_numbers<[1], [0], [0], [1], [0, 0, 1, 1], [], []>} : vector<200x128xbf16>, vector<128x128xbf16>, vector<200x128xf32> -> vector<200x128xf32>
    %333 = arith.addf %327, %332 : vector<200x128xf32>
    %334 = vector.extract_strided_slice %302 {offsets = [1, 2, 0, 0], sizes = [5, 5, 8, 128], strides = [1, 1, 1, 1]} : vector<7x7x8x128xf32> to vector<5x5x8x128xf32>
    %335 = vector.shape_cast %334 : vector<5x5x8x128xf32> to vector<200x128xf32>
    %c2944 = arith.constant 2944 : index
    %c0_133 = arith.constant 0 : index
    %336 = vector.load %arg2[%c2944, %c0_133] : memref<3456x128xbf16, #tpu.memory_space<vmem>>, vector<128x128xbf16>
    %337 = arith.truncf %335 : vector<200x128xf32> to vector<200x128xbf16>
    %cst_134 = arith.constant dense<0.000000e+00> : vector<200x128xf32>
    %338 = tpu.matmul %337, %336, %cst_134 {dimension_numbers = #tpu.dot_dimension_numbers<[1], [0], [0], [1], [0, 0, 1, 1], [], []>} : vector<200x128xbf16>, vector<128x128xbf16>, vector<200x128xf32> -> vector<200x128xf32>
    %339 = arith.addf %333, %338 : vector<200x128xf32>
    %340 = vector.extract_strided_slice %302 {offsets = [2, 0, 0, 0], sizes = [5, 5, 8, 128], strides = [1, 1, 1, 1]} : vector<7x7x8x128xf32> to vector<5x5x8x128xf32>
    %341 = vector.shape_cast %340 : vector<5x5x8x128xf32> to vector<200x128xf32>
    %c3072 = arith.constant 3072 : index
    %c0_135 = arith.constant 0 : index
    %342 = vector.load %arg2[%c3072, %c0_135] : memref<3456x128xbf16, #tpu.memory_space<vmem>>, vector<128x128xbf16>
    %343 = arith.truncf %341 : vector<200x128xf32> to vector<200x128xbf16>
    %cst_136 = arith.constant dense<0.000000e+00> : vector<200x128xf32>
    %344 = tpu.matmul %343, %342, %cst_136 {dimension_numbers = #tpu.dot_dimension_numbers<[1], [0], [0], [1], [0, 0, 1, 1], [], []>} : vector<200x128xbf16>, vector<128x128xbf16>, vector<200x128xf32> -> vector<200x128xf32>
    %345 = arith.addf %339, %344 : vector<200x128xf32>
    %346 = vector.extract_strided_slice %302 {offsets = [2, 1, 0, 0], sizes = [5, 5, 8, 128], strides = [1, 1, 1, 1]} : vector<7x7x8x128xf32> to vector<5x5x8x128xf32>
    %347 = vector.shape_cast %346 : vector<5x5x8x128xf32> to vector<200x128xf32>
    %c3200 = arith.constant 3200 : index
    %c0_137 = arith.constant 0 : index
    %348 = vector.load %arg2[%c3200, %c0_137] : memref<3456x128xbf16, #tpu.memory_space<vmem>>, vector<128x128xbf16>
    %349 = arith.truncf %347 : vector<200x128xf32> to vector<200x128xbf16>
    %cst_138 = arith.constant dense<0.000000e+00> : vector<200x128xf32>
    %350 = tpu.matmul %349, %348, %cst_138 {dimension_numbers = #tpu.dot_dimension_numbers<[1], [0], [0], [1], [0, 0, 1, 1], [], []>} : vector<200x128xbf16>, vector<128x128xbf16>, vector<200x128xf32> -> vector<200x128xf32>
    %351 = arith.addf %345, %350 : vector<200x128xf32>
    %352 = vector.extract_strided_slice %302 {offsets = [2, 2, 0, 0], sizes = [5, 5, 8, 128], strides = [1, 1, 1, 1]} : vector<7x7x8x128xf32> to vector<5x5x8x128xf32>
    %353 = vector.shape_cast %352 : vector<5x5x8x128xf32> to vector<200x128xf32>
    %c3328 = arith.constant 3328 : index
    %c0_139 = arith.constant 0 : index
    %354 = vector.load %arg2[%c3328, %c0_139] : memref<3456x128xbf16, #tpu.memory_space<vmem>>, vector<128x128xbf16>
    %355 = arith.truncf %353 : vector<200x128xf32> to vector<200x128xbf16>
    %cst_140 = arith.constant dense<0.000000e+00> : vector<200x128xf32>
    %356 = tpu.matmul %355, %354, %cst_140 {dimension_numbers = #tpu.dot_dimension_numbers<[1], [0], [0], [1], [0, 0, 1, 1], [], []>} : vector<200x128xbf16>, vector<128x128xbf16>, vector<200x128xf32> -> vector<200x128xf32>
    %357 = arith.addf %351, %356 : vector<200x128xf32>
    %358 = vector.broadcast %294 : vector<1x128xf32> to vector<200x128xf32>
    %359 = arith.mulf %357, %358 : vector<200x128xf32>
    %360 = vector.broadcast %295 : vector<1x128xf32> to vector<200x128xf32>
    %361 = arith.addf %359, %360 : vector<200x128xf32>
    %cst_141 = arith.constant 0.000000e+00 : f32
    %362 = vector.broadcast %cst_141 : f32 to vector<200x128xf32>
    %363 = arith.cmpf oge, %361, %362 : vector<200x128xf32>
    %364 = vector.broadcast %296 : vector<1x128xf32> to vector<200x128xf32>
    %365 = arith.mulf %361, %364 : vector<200x128xf32>
    %366 = arith.select %363, %361, %365 : vector<200x128xi1>, vector<200x128xf32>
    %367 = vector.shape_cast %366 : vector<200x128xf32> to vector<5x5x8x128xf32>
    %cst_142 = arith.constant dense<0.000000e+00> : vector<8x128xf32>
    %368 = vector.multi_reduction <add>, %367, %cst_142 [0, 1] : vector<5x5x8x128xf32> to vector<8x128xf32>
    %cst_143 = arith.constant 2.500000e+01 : f32
    %369 = vector.broadcast %cst_143 : f32 to vector<8x128xf32>
    %370 = arith.divf %368, %369 : vector<8x128xf32>
    %c9_144 = arith.constant 9 : index
    %c0_145 = arith.constant 0 : index
    %371 = vector.load %arg4[%c9_144, %c0_145] : memref<24x128xf32, #tpu.memory_space<vmem>>, vector<1x128xf32>
    %c10 = arith.constant 10 : index
    %c0_146 = arith.constant 0 : index
    %372 = vector.load %arg4[%c10, %c0_146] : memref<24x128xf32, #tpu.memory_space<vmem>>, vector<1x128xf32>
    %c0_147 = arith.constant 0 : index
    %c0_148 = arith.constant 0 : index
    %373 = vector.load %arg3[%c0_147, %c0_148] : memref<384x128xbf16, #tpu.memory_space<vmem>>, vector<128x128xbf16>
    %374 = arith.truncf %370 : vector<8x128xf32> to vector<8x128xbf16>
    %cst_149 = arith.constant dense<0.000000e+00> : vector<8x128xf32>
    %375 = tpu.matmul %374, %373, %cst_149 {dimension_numbers = #tpu.dot_dimension_numbers<[1], [0], [0], [1], [0, 0, 1, 1], [], []>} : vector<8x128xbf16>, vector<128x128xbf16>, vector<8x128xf32> -> vector<8x128xf32>
    %376 = vector.broadcast %371 : vector<1x128xf32> to vector<8x128xf32>
    %377 = arith.mulf %375, %376 : vector<8x128xf32>
    %378 = vector.broadcast %372 : vector<1x128xf32> to vector<8x128xf32>
    %379 = arith.addf %377, %378 : vector<8x128xf32>
    %c11 = arith.constant 11 : index
    %c0_150 = arith.constant 0 : index
    %380 = vector.load %arg4[%c11, %c0_150] : memref<24x128xf32, #tpu.memory_space<vmem>>, vector<1x128xf32>
    %cst_151 = arith.constant 0.000000e+00 : f32
    %381 = vector.broadcast %cst_151 : f32 to vector<8x128xf32>
    %382 = arith.cmpf oge, %379, %381 : vector<8x128xf32>
    %383 = vector.broadcast %380 : vector<1x128xf32> to vector<8x128xf32>
    %384 = arith.mulf %379, %383 : vector<8x128xf32>
    %385 = arith.select %382, %379, %384 : vector<8x128xi1>, vector<8x128xf32>
    %c12_152 = arith.constant 12 : index
    %c0_153 = arith.constant 0 : index
    %386 = vector.load %arg4[%c12_152, %c0_153] : memref<24x128xf32, #tpu.memory_space<vmem>>, vector<1x128xf32>
    %c13 = arith.constant 13 : index
    %c0_154 = arith.constant 0 : index
    %387 = vector.load %arg4[%c13, %c0_154] : memref<24x128xf32, #tpu.memory_space<vmem>>, vector<1x128xf32>
    %c128_155 = arith.constant 128 : index
    %c0_156 = arith.constant 0 : index
    %388 = vector.load %arg3[%c128_155, %c0_156] : memref<384x128xbf16, #tpu.memory_space<vmem>>, vector<128x128xbf16>
    %389 = arith.truncf %385 : vector<8x128xf32> to vector<8x128xbf16>
    %cst_157 = arith.constant dense<0.000000e+00> : vector<8x128xf32>
    %390 = tpu.matmul %389, %388, %cst_157 {dimension_numbers = #tpu.dot_dimension_numbers<[1], [0], [0], [1], [0, 0, 1, 1], [], []>} : vector<8x128xbf16>, vector<128x128xbf16>, vector<8x128xf32> -> vector<8x128xf32>
    %391 = vector.broadcast %386 : vector<1x128xf32> to vector<8x128xf32>
    %392 = arith.mulf %390, %391 : vector<8x128xf32>
    %393 = vector.broadcast %387 : vector<1x128xf32> to vector<8x128xf32>
    %394 = arith.addf %392, %393 : vector<8x128xf32>
    %c14 = arith.constant 14 : index
    %c0_158 = arith.constant 0 : index
    %395 = vector.load %arg4[%c14, %c0_158] : memref<24x128xf32, #tpu.memory_space<vmem>>, vector<1x128xf32>
    %cst_159 = arith.constant 0.000000e+00 : f32
    %396 = vector.broadcast %cst_159 : f32 to vector<8x128xf32>
    %397 = arith.cmpf oge, %394, %396 : vector<8x128xf32>
    %398 = vector.broadcast %395 : vector<1x128xf32> to vector<8x128xf32>
    %399 = arith.mulf %394, %398 : vector<8x128xf32>
    %400 = arith.select %397, %394, %399 : vector<8x128xi1>, vector<8x128xf32>
    %c15 = arith.constant 15 : index
    %c0_160 = arith.constant 0 : index
    %401 = vector.load %arg4[%c15, %c0_160] : memref<24x128xf32, #tpu.memory_space<vmem>>, vector<1x128xf32>
    %c16 = arith.constant 16 : index
    %c0_161 = arith.constant 0 : index
    %402 = vector.load %arg4[%c16, %c0_161] : memref<24x128xf32, #tpu.memory_space<vmem>>, vector<1x128xf32>
    %c256_162 = arith.constant 256 : index
    %c0_163 = arith.constant 0 : index
    %403 = vector.load %arg3[%c256_162, %c0_163] : memref<384x128xbf16, #tpu.memory_space<vmem>>, vector<128x128xbf16>
    %404 = arith.truncf %400 : vector<8x128xf32> to vector<8x128xbf16>
    %cst_164 = arith.constant dense<0.000000e+00> : vector<8x128xf32>
    %405 = tpu.matmul %404, %403, %cst_164 {dimension_numbers = #tpu.dot_dimension_numbers<[1], [0], [0], [1], [0, 0, 1, 1], [], []>} : vector<8x128xbf16>, vector<128x128xbf16>, vector<8x128xf32> -> vector<8x128xf32>
    %406 = vector.broadcast %401 : vector<1x128xf32> to vector<8x128xf32>
    %407 = arith.mulf %405, %406 : vector<8x128xf32>
    %408 = vector.broadcast %402 : vector<1x128xf32> to vector<8x128xf32>
    %409 = arith.addf %407, %408 : vector<8x128xf32>
    %cst_165 = arith.constant 0.000000e+00 : f32
    %410 = vector.broadcast %cst_165 : f32 to vector<8x128xf32>
    %411 = arith.subf %410, %409 : vector<8x128xf32>
    %412 = math.exp %411 : vector<8x128xf32>
    %cst_166 = arith.constant 1.000000e+00 : f32
    %413 = vector.broadcast %cst_166 : f32 to vector<8x128xf32>
    %414 = arith.addf %413, %412 : vector<8x128xf32>
    %cst_167 = arith.constant 1.000000e+00 : f32
    %415 = vector.broadcast %cst_167 : f32 to vector<8x128xf32>
    %416 = arith.divf %415, %414 : vector<8x128xf32>
    %c0_168 = arith.constant 0 : index
    %c0_169 = arith.constant 0 : index
    %417 = vector.load %arg5[%c0_168, %c0_169] : memref<8x128xf32, #tpu.memory_space<vmem>>, vector<8x128xf32>
    tpu.vector_store %arg5[%c0_168, %c0_169], %416 {strides = array<i32>} : memref<8x128xf32, #tpu.memory_space<vmem>>, vector<8x128xf32>,
    return
  }
  func.func @transform_0(%arg0: i32) -> (i32, i32, i32, i32) {
    %c0_i32 = arith.constant 0 : i32
    %c0_i32_0 = arith.constant 0 : i32
    %c0_i32_1 = arith.constant 0 : i32
    %c0_i32_2 = arith.constant 0 : i32
    return %c0_i32, %c0_i32_0, %arg0, %c0_i32_1 : i32, i32, i32, i32
  }
  func.func @transform_1(%arg0: i32) -> (i32, i32) {
    %c0_i32 = arith.constant 0 : i32
    %c0_i32_0 = arith.constant 0 : i32
    %c0_i32_1 = arith.constant 0 : i32
    return %c0_i32, %c0_i32_0 : i32, i32
  }
  func.func @transform_2(%arg0: i32) -> (i32, i32) {
    %c0_i32 = arith.constant 0 : i32
    %c0_i32_0 = arith.constant 0 : i32
    %c0_i32_1 = arith.constant 0 : i32
    return %c0_i32, %c0_i32_0 : i32, i32
  }
  func.func @transform_3(%arg0: i32) -> (i32, i32) {
    %c0_i32 = arith.constant 0 : i32
    %c0_i32_0 = arith.constant 0 : i32
    %c0_i32_1 = arith.constant 0 : i32
    return %c0_i32, %c0_i32_0 : i32, i32
  }
  func.func @transform_4(%arg0: i32) -> (i32, i32) {
    %c0_i32 = arith.constant 0 : i32
    %c0_i32_0 = arith.constant 0 : i32
    return %arg0, %c0_i32 : i32, i32
  }
}

</mosaic_0001>

<llo_original>
// kernel: se_block_conv_forward.1
$region0: #{se_block_conv_forward.1}
  #allocation0 [shape = 'u32[]', space=smem, size = 0x4, offset = 0x4, fixed_abs, tag = 'smem constant byte address 0x4 - core index']
  #allocation1 [shape = 'u32[72,128]{1,0:T(1,128)}', space=vmem, size = 0x9000, scoped, tag = 'internal scratch']
  %s0 = inlined_call_operand.vmem [shape: f32[16,16,8,128], index: 0, kind: input, shape index: {}]
  %s1 = inlined_call_operand.vmem [shape: bf16[3456,128], index: 1, kind: input, shape index: {}]
  %s2 = inlined_call_operand.vmem [shape: bf16[384,128], index: 2, kind: input, shape index: {}]
  %s3 = inlined_call_operand.vmem [shape: f32[24,128], index: 3, kind: input, shape index: {}]
  %s4 = inlined_call_operand.vmem [shape: f32[8,128], index: 4, kind: output, shape index: {}]
  %s5 = sld [smem:[#allocation0]]
  $region26: #{se_block_conv_forward.1} parent=0
    _
  %s7 = ssub.s32 1, %s5
  %s8 = scalar_select 0, %s7, %s5
  // Predicated region
  $region2: #{se_block_conv_forward.1} parent=0 // pred_check
    _
  $region3: #{se_block_conv_forward.1} parent=0 // pred_check_branch
    %10 = sbr.rel (0) target = $region5
  $region4: #{se_block_conv_forward.1} parent=0 // pred_region
    _
  $region5: #{se_block_conv_forward.1} parent=0 // pred_fallthru
    _
  // Predicated region
  $region6: #{se_block_conv_forward.1} parent=0 // pred_check
    _
  $region7: #{se_block_conv_forward.1} parent=0 // pred_check_branch
    %12 = sbr.rel (0) target = $region9
  $region8: #{se_block_conv_forward.1} parent=0 // pred_region
    _
  $region9: #{se_block_conv_forward.1} parent=0 // pred_fallthru
    _
  // Predicated region
  $region10: #{se_block_conv_forward.1} parent=0 // pred_check
    _
  $region11: #{se_block_conv_forward.1} parent=0 // pred_check_branch
    %14 = sbr.rel (0) target = $region13
  $region12: #{se_block_conv_forward.1} parent=0 // pred_region
    _
  $region13: #{se_block_conv_forward.1} parent=0 // pred_fallthru
    _
  // Predicated region
  $region14: #{se_block_conv_forward.1} parent=0 // pred_check
    _
  $region15: #{se_block_conv_forward.1} parent=0 // pred_check_branch
    %16 = sbr.rel (0) target = $region17
  $region16: #{se_block_conv_forward.1} parent=0 // pred_region
    _
  $region17: #{se_block_conv_forward.1} parent=0 // pred_fallthru
    _
  %v17 = vld [vmem:[%s0] sm:$0xff]
  %v18 = vld [vmem:[%s0 + $0x8] sm:$0xff]
  %v19 = vld [vmem:[%s0 + $0x10] sm:$0xff]
  %v20 = vld [vmem:[%s0 + $0x18] sm:$0xff]
  %v21 = vld [vmem:[%s0 + $0x80] sm:$0xff]
  %v22 = vld [vmem:[%s0 + $0x88] sm:$0xff]
  %v23 = vld [vmem:[%s0 + $0x90] sm:$0xff]
  %v24 = vld [vmem:[%s0 + $0x98] sm:$0xff]
  %v25 = vld [vmem:[%s0 + $0x100] sm:$0xff]
  %v26 = vld [vmem:[%s0 + $0x108] sm:$0xff]
  %v27 = vld [vmem:[%s0 + $0x110] sm:$0xff]
  %v28 = vld [vmem:[%s0 + $0x118] sm:$0xff]
  %v29 = vld [vmem:[%s0 + $0x180] sm:$0xff]
  %v30 = vld [vmem:[%s0 + $0x188] sm:$0xff]
  %v31 = vld [vmem:[%s0 + $0x190] sm:$0xff]
  %v32 = vld [vmem:[%s0 + $0x198] sm:$0xff]
  %v33 = vld [vmem:[%s0 + $0x200] sm:$0xff]
  %v34 = vld [vmem:[%s0 + $0x208] sm:$0xff]
  %v35 = vld [vmem:[%s0 + $0x210] sm:$0xff]
  %v36 = vld [vmem:[%s0 + $0x218] sm:$0xff]
  %v37 = vld [vmem:[%s0 + $0x280] sm:$0xff]
  %v38 = vld [vmem:[%s0 + $0x288] sm:$0xff]
  %v39 = vld [vmem:[%s0 + $0x290] sm:$0xff]
  %v40 = vld [vmem:[%s0 + $0x298] sm:$0xff]
  %v41 = vld [vmem:[%s0 + $0x300] sm:$0xff]
  %v42 = vld [vmem:[%s0 + $0x308] sm:$0xff]
  %v43 = vld [vmem:[%s0 + $0x310] sm:$0xff]
  %v44 = vld [vmem:[%s0 + $0x318] sm:$0xff]
  %v45 = vld [vmem:[%s0 + $0x380] sm:$0xff]
  %v46 = vld [vmem:[%s0 + $0x388] sm:$0xff]
  %v47 = vld [vmem:[%s0 + $0x390] sm:$0xff]
  %v48 = vld [vmem:[%s0 + $0x398] sm:$0xff]
  %v49 = vld [vmem:[%s0 + $0x400] sm:$0xff]
  %v50 = vld [vmem:[%s0 + $0x408] sm:$0xff]
  %v51 = vld [vmem:[%s0 + $0x410] sm:$0xff]
  %v52 = vld [vmem:[%s0 + $0x418] sm:$0xff]
  %v53 = vld [vmem:[%s0 + $0x480] sm:$0xff]
  %v54 = vld [vmem:[%s0 + $0x488] sm:$0xff]
  %v55 = vld [vmem:[%s0 + $0x490] sm:$0xff]
  %v56 = vld [vmem:[%s0 + $0x498] sm:$0xff]
  %v57 = vld [vmem:[%s0 + $0x500] sm:$0xff]
  %v58 = vld [vmem:[%s0 + $0x508] sm:$0xff]
  %v59 = vld [vmem:[%s0 + $0x510] sm:$0xff]
  %v60 = vld [vmem:[%s0 + $0x518] sm:$0xff]
  %v61 = vld [vmem:[%s0 + $0x580] sm:$0xff]
  %v62 = vld [vmem:[%s0 + $0x588] sm:$0xff]
  %v63 = vld [vmem:[%s0 + $0x590] sm:$0xff]
  %v64 = vld [vmem:[%s0 + $0x598] sm:$0xff]
  %v65 = vld [vmem:[%s0 + $0x600] sm:$0xff]
  %v66 = vld [vmem:[%s0 + $0x608] sm:$0xff]
  %v67 = vld [vmem:[%s0 + $0x610] sm:$0xff]
  %v68 = vld [vmem:[%s0 + $0x618] sm:$0xff]
  %v69 = vld [vmem:[%s0 + $0x680] sm:$0xff]
  %v70 = vld [vmem:[%s0 + $0x688] sm:$0xff]
  %v71 = vld [vmem:[%s0 + $0x690] sm:$0xff]
  %v72 = vld [vmem:[%s0 + $0x698] sm:$0xff]
  %v73 = vld [vmem:[%s0 + $0x700] sm:$0xff]
  %v74 = vld [vmem:[%s0 + $0x708] sm:$0xff]
  %v75 = vld [vmem:[%s0 + $0x710] sm:$0xff]
  %v76 = vld [vmem:[%s0 + $0x718] sm:$0xff]
  %v77 = vld [vmem:[%s0 + $0x780] sm:$0xff]
  %v78 = vld [vmem:[%s0 + $0x788] sm:$0xff]
  %v79 = vld [vmem:[%s0 + $0x790] sm:$0xff]
  %v80 = vld [vmem:[%s0 + $0x798] sm:$0xff]
  %v81 = vadd.f32 %v17, %v18
  %v82 = vadd.f32 %v81, %v19
  %v83 = vadd.f32 %v82, %v20
  %v84 = vadd.f32 %v21, %v22
  %v85 = vadd.f32 %v84, %v23
  %v86 = vadd.f32 %v85, %v24
  %v87 = vadd.f32 %v25, %v26
  %v88 = vadd.f32 %v87, %v27
  %v89 = vadd.f32 %v88, %v28
  %v90 = vadd.f32 %v29, %v30
  %v91 = vadd.f32 %v90, %v31
  %v92 = vadd.f32 %v91, %v32
  %v93 = vadd.f32 %v33, %v34
  %v94 = vadd.f32 %v93, %v35
  %v95 = vadd.f32 %v94, %v36
  %v96 = vadd.f32 %v37, %v38
  %v97 = vadd.f32 %v96, %v39
  %v98 = vadd.f32 %v97, %v40
  %v99 = vadd.f32 %v41, %v42
  %v100 = vadd.f32 %v99, %v43
  %v101 = vadd.f32 %v100, %v44
  %v102 = vadd.f32 %v45, %v46
  %v103 = vadd.f32 %v102, %v47
  %v104 = vadd.f32 %v103, %v48
  %v105 = vadd.f32 %v49, %v50
  %v106 = vadd.f32 %v105, %v51
  %v107 = vadd.f32 %v106, %v52
  %v108 = vadd.f32 %v53, %v54
  %v109 = vadd.f32 %v108, %v55
  %v110 = vadd.f32 %v109, %v56
  %v111 = vadd.f32 %v57, %v58
  %v112 = vadd.f32 %v111, %v59
  %v113 = vadd.f32 %v112, %v60
  %v114 = vadd.f32 %v61, %v62
  %v115 = vadd.f32 %v114, %v63
  %v116 = vadd.f32 %v115, %v64
  %v117 = vadd.f32 %v65, %v66
  %v118 = vadd.f32 %v117, %v67
  %v119 = vadd.f32 %v118, %v68
  %v120 = vadd.f32 %v69, %v70
  %v121 = vadd.f32 %v120, %v71
  %v122 = vadd.f32 %v121, %v72
  %v123 = vadd.f32 %v73, %v74
  %v124 = vadd.f32 %v123, %v75
  %v125 = vadd.f32 %v124, %v76
  %v126 = vadd.f32 %v77, %v78
  %v127 = vadd.f32 %v126, %v79
  %v128 = vadd.f32 %v127, %v80
  %s129 = scalar_lea.vmem %s0, 24
  %v130 = vld [vmem:[%s129] sm:$0xff]
  %v131 = vld [vmem:[%s129 + $0x8] sm:$0xff]
  %v132 = vld [vmem:[%s129 + $0x10] sm:$0xff]
  %v133 = vld [vmem:[%s129 + $0x18] sm:$0xff]
  %v134 = vld [vmem:[%s129 + $0x80] sm:$0xff]
  %v135 = vld [vmem:[%s129 + $0x88] sm:$0xff]
  %v136 = vld [vmem:[%s129 + $0x90] sm:$0xff]
  %v137 = vld [vmem:[%s129 + $0x98] sm:$0xff]
  %v138 = vld [vmem:[%s129 + $0x100] sm:$0xff]
  %v139 = vld [vmem:[%s129 + $0x108] sm:$0xff]
  %v140 = vld [vmem:[%s129 + $0x110] sm:$0xff]
  %v141 = vld [vmem:[%s129 + $0x118] sm:$0xff]
  %v142 = vld [vmem:[%s129 + $0x180] sm:$0xff]
  %v143 = vld [vmem:[%s129 + $0x188] sm:$0xff]
  %v144 = vld [vmem:[%s129 + $0x190] sm:$0xff]
  %v145 = vld [vmem:[%s129 + $0x198] sm:$0xff]
  %v146 = vld [vmem:[%s129 + $0x200] sm:$0xff]
  %v147 = vld [vmem:[%s129 + $0x208] sm:$0xff]
  %v148 = vld [vmem:[%s129 + $0x210] sm:$0xff]
  %v149 = vld [vmem:[%s129 + $0x218] sm:$0xff]
  %v150 = vld [vmem:[%s129 + $0x280] sm:$0xff]
  %v151 = vld [vmem:[%s129 + $0x288] sm:$0xff]
  %v152 = vld [vmem:[%s129 + $0x290] sm:$0xff]
  %v153 = vld [vmem:[%s129 + $0x298] sm:$0xff]
  %v154 = vld [vmem:[%s129 + $0x300] sm:$0xff]
  %v155 = vld [vmem:[%s129 + $0x308] sm:$0xff]
  %v156 = vld [vmem:[%s129 + $0x310] sm:$0xff]
  %v157 = vld [vmem:[%s129 + $0x318] sm:$0xff]
  %v158 = vld [vmem:[%s129 + $0x380] sm:$0xff]
  %v159 = vld [vmem:[%s129 + $0x388] sm:$0xff]
  %v160 = vld [vmem:[%s129 + $0x390] sm:$0xff]
  %v161 = vld [vmem:[%s129 + $0x398] sm:$0xff]
  %v162 = vld [vmem:[%s129 + $0x400] sm:$0xff]
  %v163 = vld [vmem:[%s129 + $0x408] sm:$0xff]
  %v164 = vld [vmem:[%s129 + $0x410] sm:$0xff]
  %v165 = vld [vmem:[%s129 + $0x418] sm:$0xff]
  %v166 = vld [vmem:[%s129 + $0x480] sm:$0xff]
  %v167 = vld [vmem:[%s129 + $0x488] sm:$0xff]
  %v168 = vld [vmem:[%s129 + $0x490] sm:$0xff]
  %v169 = vld [vmem:[%s129 + $0x498] sm:$0xff]
  %v170 = vld [vmem:[%s129 + $0x500] sm:$0xff]
  %v171 = vld [vmem:[%s129 + $0x508] sm:$0xff]
  %v172 = vld [vmem:[%s129 + $0x510] sm:$0xff]
  %v173 = vld [vmem:[%s129 + $0x518] sm:$0xff]
  %v174 = vld [vmem:[%s129 + $0x580] sm:$0xff]
  %v175 = vld [vmem:[%s129 + $0x588] sm:$0xff]
  %v176 = vld [vmem:[%s129 + $0x590] sm:$0xff]
  %v177 = vld [vmem:[%s129 + $0x598] sm:$0xff]
  %v178 = vld [vmem:[%s129 + $0x600] sm:$0xff]
  %v179 = vld [vmem:[%s129 + $0x608] sm:$0xff]
  %v180 = vld [vmem:[%s129 + $0x610] sm:$0xff]
  %v181 = vld [vmem:[%s129 + $0x618] sm:$0xff]
  %v182 = vld [vmem:[%s129 + $0x680] sm:$0xff]
  %v183 = vld [vmem:[%s129 + $0x688] sm:$0xff]
  %v184 = vld [vmem:[%s129 + $0x690] sm:$0xff]
  %v185 = vld [vmem:[%s129 + $0x698] sm:$0xff]
  %v186 = vld [vmem:[%s129 + $0x700] sm:$0xff]
  %v187 = vld [vmem:[%s129 + $0x708] sm:$0xff]
  %v188 = vld [vmem:[%s129 + $0x710] sm:$0xff]
  %v189 = vld [vmem:[%s129 + $0x718] sm:$0xff]
  %v190 = vld [vmem:[%s129 + $0x780] sm:$0xff]
  %v191 = vld [vmem:[%s129 + $0x788] sm:$0xff]
  %v192 = vld [vmem:[%s129 + $0x790] sm:$0xff]
  %v193 = vld [vmem:[%s129 + $0x798] sm:$0xff]
  %v194 = vadd.f32 %v130, %v131
  %v195 = vadd.f32 %v194, %v132
  %v196 = vadd.f32 %v195, %v133
  %v197 = vadd.f32 %v134, %v135
  %v198 = vadd.f32 %v197, %v136
  %v199 = vadd.f32 %v198, %v137
  %v200 = vadd.f32 %v138, %v139
  %v201 = vadd.f32 %v200, %v140
  %v202 = vadd.f32 %v201, %v141
  %v203 = vadd.f32 %v142, %v143
  %v204 = vadd.f32 %v203, %v144
  %v205 = vadd.f32 %v204, %v145
  %v206 = vadd.f32 %v146, %v147
  %v207 = vadd.f32 %v206, %v148
  %v208 = vadd.f32 %v207, %v149
  %v209 = vadd.f32 %v150, %v151
  %v210 = vadd.f32 %v209, %v152
  %v211 = vadd.f32 %v210, %v153
  %v212 = vadd.f32 %v154, %v155
  %v213 = vadd.f32 %v212, %v156
  %v214 = vadd.f32 %v213, %v157
  %v215 = vadd.f32 %v158, %v159
  %v216 = vadd.f32 %v215, %v160
  %v217 = vadd.f32 %v216, %v161
  %v218 = vadd.f32 %v162, %v163
  %v219 = vadd.f32 %v218, %v164
  %v220 = vadd.f32 %v219, %v165
  %v221 = vadd.f32 %v166, %v167
  %v222 = vadd.f32 %v221, %v168
  %v223 = vadd.f32 %v222, %v169
  %v224 = vadd.f32 %v170, %v171
  %v225 = vadd.f32 %v224, %v172
  %v226 = vadd.f32 %v225, %v173
  %v227 = vadd.f32 %v174, %v175
  %v228 = vadd.f32 %v227, %v176
  %v229 = vadd.f32 %v228, %v177
  %v230 = vadd.f32 %v178, %v179
  %v231 = vadd.f32 %v230, %v180
  %v232 = vadd.f32 %v231, %v181
  %v233 = vadd.f32 %v182, %v183
  %v234 = vadd.f32 %v233, %v184
  %v235 = vadd.f32 %v234, %v185
  %v236 = vadd.f32 %v186, %v187
  %v237 = vadd.f32 %v236, %v188
  %v238 = vadd.f32 %v237, %v189
  %v239 = vadd.f32 %v190, %v191
  %v240 = vadd.f32 %v239, %v192
  %v241 = vadd.f32 %v240, %v193
  %s242 = scalar_lea.vmem %s0, 48
  %v243 = vld [vmem:[%s242] sm:$0xff]
  %v244 = vld [vmem:[%s242 + $0x8] sm:$0xff]
  %v245 = vld [vmem:[%s242 + $0x10] sm:$0xff]
  %v246 = vld [vmem:[%s242 + $0x18] sm:$0xff]
  %v247 = vld [vmem:[%s242 + $0x80] sm:$0xff]
  %v248 = vld [vmem:[%s242 + $0x88] sm:$0xff]
  %v249 = vld [vmem:[%s242 + $0x90] sm:$0xff]
  %v250 = vld [vmem:[%s242 + $0x98] sm:$0xff]
  %v251 = vld [vmem:[%s242 + $0x100] sm:$0xff]
  %v252 = vld [vmem:[%s242 + $0x108] sm:$0xff]
  %v253 = vld [vmem:[%s242 + $0x110] sm:$0xff]
  %v254 = vld [vmem:[%s242 + $0x118] sm:$0xff]
  %v255 = vld [vmem:[%s242 + $0x180] sm:$0xff]
  %v256 = vld [vmem:[%s242 + $0x188] sm:$0xff]
  %v257 = vld [vmem:[%s242 + $0x190] sm:$0xff]
  %v258 = vld [vmem:[%s242 + $0x198] sm:$0xff]
  %v259 = vld [vmem:[%s242 + $0x200] sm:$0xff]
  %v260 = vld [vmem:[%s242 + $0x208] sm:$0xff]
  %v261 = vld [vmem:[%s242 + $0x210] sm:$0xff]
  %v262 = vld [vmem:[%s242 + $0x218] sm:$0xff]
  %v263 = vld [vmem:[%s242 + $0x280] sm:$0xff]
  %v264 = vld [vmem:[%s242 + $0x288] sm:$0xff]
  %v265 = vld [vmem:[%s242 + $0x290] sm:$0xff]
  %v266 = vld [vmem:[%s242 + $0x298] sm:$0xff]
  %v267 = vld [vmem:[%s242 + $0x300] sm:$0xff]
  %v268 = vld [vmem:[%s242 + $0x308] sm:$0xff]
  %v269 = vld [vmem:[%s242 + $0x310] sm:$0xff]
  %v270 = vld [vmem:[%s242 + $0x318] sm:$0xff]
  %v271 = vld [vmem:[%s242 + $0x380] sm:$0xff]
  %v272 = vld [vmem:[%s242 + $0x388] sm:$0xff]
  %v273 = vld [vmem:[%s242 + $0x390] sm:$0xff]
  %v274 = vld [vmem:[%s242 + $0x398] sm:$0xff]
  %v275 = vld [vmem:[%s242 + $0x400] sm:$0xff]
  %v276 = vld [vmem:[%s242 + $0x408] sm:$0xff]
  %v277 = vld [vmem:[%s242 + $0x410] sm:$0xff]
  %v278 = vld [vmem:[%s242 + $0x418] sm:$0xff]
  %v279 = vld [vmem:[%s242 + $0x480] sm:$0xff]
  %v280 = vld [vmem:[%s242 + $0x488] sm:$0xff]
  %v281 = vld [vmem:[%s242 + $0x490] sm:$0xff]
  %v282 = vld [vmem:[%s242 + $0x498] sm:$0xff]
  %v283 = vld [vmem:[%s242 + $0x500] sm:$0xff]
  %v284 = vld [vmem:[%s242 + $0x508] sm:$0xff]
  %v285 = vld [vmem:[%s242 + $0x510] sm:$0xff]
  %v286 = vld [vmem:[%s242 + $0x518] sm:$0xff]
  %v287 = vld [vmem:[%s242 + $0x580] sm:$0xff]
  %v288 = vld [vmem:[%s242 + $0x588] sm:$0xff]
  %v289 = vld [vmem:[%s242 + $0x590] sm:$0xff]
  %v290 = vld [vmem:[%s242 + $0x598] sm:$0xff]
  %v291 = vld [vmem:[%s242 + $0x600] sm:$0xff]
  %v292 = vld [vmem:[%s242 + $0x608] sm:$0xff]
  %v293 = vld [vmem:[%s242 + $0x610] sm:$0xff]
  %v294 = vld [vmem:[%s242 + $0x618] sm:$0xff]
  %v295 = vld [vmem:[%s242 + $0x680] sm:$0xff]
  %v296 = vld [vmem:[%s242 + $0x688] sm:$0xff]
  %v297 = vld [vmem:[%s242 + $0x690] sm:$0xff]
  %v298 = vld [vmem:[%s242 + $0x698] sm:$0xff]
  %v299 = vld [vmem:[%s242 + $0x700] sm:$0xff]
  %v300 = vld [vmem:[%s242 + $0x708] sm:$0xff]
  %v301 = vld [vmem:[%s242 + $0x710] sm:$0xff]
  %v302 = vld [vmem:[%s242 + $0x718] sm:$0xff]
  %v303 = vld [vmem:[%s242 + $0x780] sm:$0xff]
  %v304 = vld [vmem:[%s242 + $0x788] sm:$0xff]
  %v305 = vld [vmem:[%s242 + $0x790] sm:$0xff]
  %v306 = vld [vmem:[%s242 + $0x798] sm:$0xff]
  %v307 = vadd.f32 %v243, %v244
  %v308 = vadd.f32 %v307, %v245
  %v309 = vadd.f32 %v308, %v246
  %v310 = vadd.f32 %v247, %v248
  %v311 = vadd.f32 %v310, %v249
  %v312 = vadd.f32 %v311, %v250
  %v313 = vadd.f32 %v251, %v252
  %v314 = vadd.f32 %v313, %v253
  %v315 = vadd.f32 %v314, %v254
  %v316 = vadd.f32 %v255, %v256
  %v317 = vadd.f32 %v316, %v257
  %v318 = vadd.f32 %v317, %v258
  %v319 = vadd.f32 %v259, %v260
  %v320 = vadd.f32 %v319, %v261
  %v321 = vadd.f32 %v320, %v262
  %v322 = vadd.f32 %v263, %v264
  %v323 = vadd.f32 %v322, %v265
  %v324 = vadd.f32 %v323, %v266
  %v325 = vadd.f32 %v267, %v268
  %v326 = vadd.f32 %v325, %v269
  %v327 = vadd.f32 %v326, %v270
  %v328 = vadd.f32 %v271, %v272
  %v329 = vadd.f32 %v328, %v273
  %v330 = vadd.f32 %v329, %v274
  %v331 = vadd.f32 %v275, %v276
  %v332 = vadd.f32 %v331, %v277
  %v333 = vadd.f32 %v332, %v278
  %v334 = vadd.f32 %v279, %v280
  %v335 = vadd.f32 %v334, %v281
  %v336 = vadd.f32 %v335, %v282
  %v337 = vadd.f32 %v283, %v284
  %v338 = vadd.f32 %v337, %v285
  %v339 = vadd.f32 %v338, %v286
  %v340 = vadd.f32 %v287, %v288
  %v341 = vadd.f32 %v340, %v289
  %v342 = vadd.f32 %v341, %v290
  %v343 = vadd.f32 %v291, %v292
  %v344 = vadd.f32 %v343, %v293
  %v345 = vadd.f32 %v344, %v294
  %v346 = vadd.f32 %v295, %v296
  %v347 = vadd.f32 %v346, %v297
  %v348 = vadd.f32 %v347, %v298
  %v349 = vadd.f32 %v299, %v300
  %v350 = vadd.f32 %v349, %v301
  %v351 = vadd.f32 %v350, %v302
  %v352 = vadd.f32 %v303, %v304
  %v353 = vadd.f32 %v352, %v305
  %v354 = vadd.f32 %v353, %v306
  %s355 = scalar_lea.vmem %s0, 72
  %v356 = vld [vmem:[%s355] sm:$0xff]
  %v357 = vld [vmem:[%s355 + $0x8] sm:$0xff]
  %v358 = vld [vmem:[%s355 + $0x10] sm:$0xff]
  %v359 = vld [vmem:[%s355 + $0x18] sm:$0xff]
  %v360 = vld [vmem:[%s355 + $0x80] sm:$0xff]
  %v361 = vld [vmem:[%s355 + $0x88] sm:$0xff]
  %v362 = vld [vmem:[%s355 + $0x90] sm:$0xff]
  %v363 = vld [vmem:[%s355 + $0x98] sm:$0xff]
  %v364 = vld [vmem:[%s355 + $0x100] sm:$0xff]
  %v365 = vld [vmem:[%s355 + $0x108] sm:$0xff]
  %v366 = vld [vmem:[%s355 + $0x110] sm:$0xff]
  %v367 = vld [vmem:[%s355 + $0x118] sm:$0xff]
  %v368 = vld [vmem:[%s355 + $0x180] sm:$0xff]
  %v369 = vld [vmem:[%s355 + $0x188] sm:$0xff]
  %v370 = vld [vmem:[%s355 + $0x190] sm:$0xff]
  %v371 = vld [vmem:[%s355 + $0x198] sm:$0xff]
  %v372 = vld [vmem:[%s355 + $0x200] sm:$0xff]
  %v373 = vld [vmem:[%s355 + $0x208] sm:$0xff]
  %v374 = vld [vmem:[%s355 + $0x210] sm:$0xff]
  %v375 = vld [vmem:[%s355 + $0x218] sm:$0xff]
  %v376 = vld [vmem:[%s355 + $0x280] sm:$0xff]
  %v377 = vld [vmem:[%s355 + $0x288] sm:$0xff]
  %v378 = vld [vmem:[%s355 + $0x290] sm:$0xff]
  %v379 = vld [vmem:[%s355 + $0x298] sm:$0xff]
  %v380 = vld [vmem:[%s355 + $0x300] sm:$0xff]
  %v381 = vld [vmem:[%s355 + $0x308] sm:$0xff]
  %v382 = vld [vmem:[%s355 + $0x310] sm:$0xff]
  %v383 = vld [vmem:[%s355 + $0x318] sm:$0xff]
  %v384 = vld [vmem:[%s355 + $0x380] sm:$0xff]
  %v385 = vld [vmem:[%s355 + $0x388] sm:$0xff]
  %v386 = vld [vmem:[%s355 + $0x390] sm:$0xff]
  %v387 = vld [vmem:[%s355 + $0x398] sm:$0xff]
  %v388 = vld [vmem:[%s355 + $0x400] sm:$0xff]
  %v389 = vld [vmem:[%s355 + $0x408] sm:$0xff]
  %v390 = vld [vmem:[%s355 + $0x410] sm:$0xff]
  %v391 = vld [vmem:[%s355 + $0x418] sm:$0xff]
  %v392 = vld [vmem:[%s355 + $0x480] sm:$0xff]
  %v393 = vld [vmem:[%s355 + $0x488] sm:$0xff]
  %v394 = vld [vmem:[%s355 + $0x490] sm:$0xff]
  %v395 = vld [vmem:[%s355 + $0x498] sm:$0xff]
  %v396 = vld [vmem:[%s355 + $0x500] sm:$0xff]
  %v397 = vld [vmem:[%s355 + $0x508] sm:$0xff]
  %v398 = vld [vmem:[%s355 + $0x510] sm:$0xff]
  %v399 = vld [vmem:[%s355 + $0x518] sm:$0xff]
  %v400 = vld [vmem:[%s355 + $0x580] sm:$0xff]
  %v401 = vld [vmem:[%s355 + $0x588] sm:$0xff]
  %v402 = vld [vmem:[%s355 + $0x590] sm:$0xff]
  %v403 = vld [vmem:[%s355 + $0x598] sm:$0xff]
  %v404 = vld [vmem:[%s355 + $0x600] sm:$0xff]
  %v405 = vld [vmem:[%s355 + $0x608] sm:$0xff]
  %v406 = vld [vmem:[%s355 + $0x610] sm:$0xff]
  %v407 = vld [vmem:[%s355 + $0x618] sm:$0xff]
  %v408 = vld [vmem:[%s355 + $0x680] sm:$0xff]
  %v409 = vld [vmem:[%s355 + $0x688] sm:$0xff]
  %v410 = vld [vmem:[%s355 + $0x690] sm:$0xff]
  %v411 = vld [vmem:[%s355 + $0x698] sm:$0xff]
  %v412 = vld [vmem:[%s355 + $0x700] sm:$0xff]
  %v413 = vld [vmem:[%s355 + $0x708] sm:$0xff]
  %v414 = vld [vmem:[%s355 + $0x710] sm:$0xff]
  %v415 = vld [vmem:[%s355 + $0x718] sm:$0xff]
  %v416 = vld [vmem:[%s355 + $0x780] sm:$0xff]
  %v417 = vld [vmem:[%s355 + $0x788] sm:$0xff]
  %v418 = vld [vmem:[%s355 + $0x790] sm:$0xff]
  %v419 = vld [vmem:[%s355 + $0x798] sm:$0xff]
  %v420 = vadd.f32 %v356, %v357
  %v421 = vadd.f32 %v420, %v358
  %v422 = vadd.f32 %v421, %v359
  %v423 = vadd.f32 %v360, %v361
  %v424 = vadd.f32 %v423, %v362
  %v425 = vadd.f32 %v424, %v363
  %v426 = vadd.f32 %v364, %v365
  %v427 = vadd.f32 %v426, %v366
  %v428 = vadd.f32 %v427, %v367
  %v429 = vadd.f32 %v368, %v369
  %v430 = vadd.f32 %v429, %v370
  %v431 = vadd.f32 %v430, %v371
  %v432 = vadd.f32 %v372, %v373
  %v433 = vadd.f32 %v432, %v374
  %v434 = vadd.f32 %v433, %v375
  %v435 = vadd.f32 %v376, %v377
  %v436 = vadd.f32 %v435, %v378
  %v437 = vadd.f32 %v436, %v379
  %v438 = vadd.f32 %v380, %v381
  %v439 = vadd.f32 %v438, %v382
  %v440 = vadd.f32 %v439, %v383
  %v441 = vadd.f32 %v384, %v385
  %v442 = vadd.f32 %v441, %v386
  %v443 = vadd.f32 %v442, %v387
  %v444 = vadd.f32 %v388, %v389
  %v445 = vadd.f32 %v444, %v390
  %v446 = vadd.f32 %v445, %v391
  %v447 = vadd.f32 %v392, %v393
  %v448 = vadd.f32 %v447, %v394
  %v449 = vadd.f32 %v448, %v395
  %v450 = vadd.f32 %v396, %v397
  %v451 = vadd.f32 %v450, %v398
  %v452 = vadd.f32 %v451, %v399
  %v453 = vadd.f32 %v400, %v401
  %v454 = vadd.f32 %v453, %v402
  %v455 = vadd.f32 %v454, %v403
  %v456 = vadd.f32 %v404, %v405
  %v457 = vadd.f32 %v456, %v406
  %v458 = vadd.f32 %v457, %v407
  %v459 = vadd.f32 %v408, %v409
  %v460 = vadd.f32 %v459, %v410
  %v461 = vadd.f32 %v460, %v411
  %v462 = vadd.f32 %v412, %v413
  %v463 = vadd.f32 %v462, %v414
  %v464 = vadd.f32 %v463, %v415
  %v465 = vadd.f32 %v416, %v417
  %v466 = vadd.f32 %v465, %v418
  %v467 = vadd.f32 %v466, %v419
  %s468 = scalar_lea.vmem %s0, 96
  %v469 = vld [vmem:[%s468] sm:$0xff]
  %v470 = vld [vmem:[%s468 + $0x8] sm:$0xff]
  %v471 = vld [vmem:[%s468 + $0x10] sm:$0xff]
  %v472 = vld [vmem:[%s468 + $0x18] sm:$0xff]
  %v473 = vld [vmem:[%s468 + $0x80] sm:$0xff]
  %v474 = vld [vmem:[%s468 + $0x88] sm:$0xff]
  %v475 = vld [vmem:[%s468 + $0x90] sm:$0xff]
  %v476 = vld [vmem:[%s468 + $0x98] sm:$0xff]
  %v477 = vld [vmem:[%s468 + $0x100] sm:$0xff]
  %v478 = vld [vmem:[%s468 + $0x108] sm:$0xff]
  %v479 = vld [vmem:[%s468 + $0x110] sm:$0xff]
  %v480 = vld [vmem:[%s468 + $0x118] sm:$0xff]
  %v481 = vld [vmem:[%s468 + $0x180] sm:$0xff]
  %v482 = vld [vmem:[%s468 + $0x188] sm:$0xff]
  %v483 = vld [vmem:[%s468 + $0x190] sm:$0xff]
  %v484 = vld [vmem:[%s468 + $0x198] sm:$0xff]
  %v485 = vld [vmem:[%s468 + $0x200] sm:$0xff]
  %v486 = vld [vmem:[%s468 + $0x208] sm:$0xff]
  %v487 = vld [vmem:[%s468 + $0x210] sm:$0xff]
  %v488 = vld [vmem:[%s468 + $0x218] sm:$0xff]
  %v489 = vld [vmem:[%s468 + $0x280] sm:$0xff]
  %v490 = vld [vmem:[%s468 + $0x288] sm:$0xff]
  %v491 = vld [vmem:[%s468 + $0x290] sm:$0xff]
  %v492 = vld [vmem:[%s468 + $0x298] sm:$0xff]
  %v493 = vld [vmem:[%s468 + $0x300] sm:$0xff]
  %v494 = vld [vmem:[%s468 + $0x308] sm:$0xff]
  %v495 = vld [vmem:[%s468 + $0x310] sm:$0xff]
  %v496 = vld [vmem:[%s468 + $0x318] sm:$0xff]
  %v497 = vld [vmem:[%s468 + $0x380] sm:$0xff]
  %v498 = vld [vmem:[%s468 + $0x388] sm:$0xff]
  %v499 = vld [vmem:[%s468 + $0x390] sm:$0xff]
  %v500 = vld [vmem:[%s468 + $0x398] sm:$0xff]
  %v501 = vld [vmem:[%s468 + $0x400] sm:$0xff]
  %v502 = vld [vmem:[%s468 + $0x408] sm:$0xff]
  %v503 = vld [vmem:[%s468 + $0x410] sm:$0xff]
  %v504 = vld [vmem:[%s468 + $0x418] sm:$0xff]
  %v505 = vld [vmem:[%s468 + $0x480] sm:$0xff]
  %v506 = vld [vmem:[%s468 + $0x488] sm:$0xff]
  %v507 = vld [vmem:[%s468 + $0x490] sm:$0xff]
  %v508 = vld [vmem:[%s468 + $0x498] sm:$0xff]
  %v509 = vld [vmem:[%s468 + $0x500] sm:$0xff]
  %v510 = vld [vmem:[%s468 + $0x508] sm:$0xff]
  %v511 = vld [vmem:[%s468 + $0x510] sm:$0xff]
  %v512 = vld [vmem:[%s468 + $0x518] sm:$0xff]
  %v513 = vld [vmem:[%s468 + $0x580] sm:$0xff]
  %v514 = vld [vmem:[%s468 + $0x588] sm:$0xff]
  %v515 = vld [vmem:[%s468 + $0x590] sm:$0xff]
  %v516 = vld [vmem:[%s468 + $0x598] sm:$0xff]
  %v517 = vld [vmem:[%s468 + $0x600] sm:$0xff]
  %v518 = vld [vmem:[%s468 + $0x608] sm:$0xff]
  %v519 = vld [vmem:[%s468 + $0x610] sm:$0xff]
  %v520 = vld [vmem:[%s468 + $0x618] sm:$0xff]
  %v521 = vld [vmem:[%s468 + $0x680] sm:$0xff]
  %v522 = vld [vmem:[%s468 + $0x688] sm:$0xff]
  %v523 = vld [vmem:[%s468 + $0x690] sm:$0xff]
  %v524 = vld [vmem:[%s468 + $0x698] sm:$0xff]
  %v525 = vld [vmem:[%s468 + $0x700] sm:$0xff]
  %v526 = vld [vmem:[%s468 + $0x708] sm:$0xff]
  %v527 = vld [vmem:[%s468 + $0x710] sm:$0xff]
  %v528 = vld [vmem:[%s468 + $0x718] sm:$0xff]
  %v529 = vld [vmem:[%s468 + $0x780] sm:$0xff]
  %v530 = vld [vmem:[%s468 + $0x788] sm:$0xff]
  %v531 = vld [vmem:[%s468 + $0x790] sm:$0xff]
  %v532 = vld [vmem:[%s468 + $0x798] sm:$0xff]
  %v533 = vadd.f32 %v469, %v470
  %v534 = vadd.f32 %v533, %v471
  %v535 = vadd.f32 %v534, %v472
  %v536 = vadd.f32 %v473, %v474
  %v537 = vadd.f32 %v536, %v475
  %v538 = vadd.f32 %v537, %v476
  %v539 = vadd.f32 %v477, %v478
  %v540 = vadd.f32 %v539, %v479
  %v541 = vadd.f32 %v540, %v480
  %v542 = vadd.f32 %v481, %v482
  %v543 = vadd.f32 %v542, %v483
  %v544 = vadd.f32 %v543, %v484
  %v545 = vadd.f32 %v485, %v486
  %v546 = vadd.f32 %v545, %v487
  %v547 = vadd.f32 %v546, %v488
  %v548 = vadd.f32 %v489, %v490
  %v549 = vadd.f32 %v548, %v491
  %v550 = vadd.f32 %v549, %v492
  %v551 = vadd.f32 %v493, %v494
  %v552 = vadd.f32 %v551, %v495
  %v553 = vadd.f32 %v552, %v496
  %v554 = vadd.f32 %v497, %v498
  %v555 = vadd.f32 %v554, %v499
  %v556 = vadd.f32 %v555, %v500
  %v557 = vadd.f32 %v501, %v502
  %v558 = vadd.f32 %v557, %v503
  %v559 = vadd.f32 %v558, %v504
  %v560 = vadd.f32 %v505, %v506
  %v561 = vadd.f32 %v560, %v507
  %v562 = vadd.f32 %v561, %v508
  %v563 = vadd.f32 %v509, %v510
  %v564 = vadd.f32 %v563, %v511
  %v565 = vadd.f32 %v564, %v512
  %v566 = vadd.f32 %v513, %v514
  %v567 = vadd.f32 %v566, %v515
  %v568 = vadd.f32 %v567, %v516
  %v569 = vadd.f32 %v517, %v518
  %v570 = vadd.f32 %v569, %v519
  %v571 = vadd.f32 %v570, %v520
  %v572 = vadd.f32 %v521, %v522
  %v573 = vadd.f32 %v572, %v523
  %v574 = vadd.f32 %v573, %v524
  %v575 = vadd.f32 %v525, %v526
  %v576 = vadd.f32 %v575, %v527
  %v577 = vadd.f32 %v576, %v528
  %v578 = vadd.f32 %v529, %v530
  %v579 = vadd.f32 %v578, %v531
  %v580 = vadd.f32 %v579, %v532
  %v581 = vadd.f32 %v83, %v86
  %v582 = vadd.f32 %v581, %v89
  %v583 = vadd.f32 %v582, %v92
  %v584 = vmul.f32 %v583, 0.0625
  %v585 = vadd.f32 %v196, %v199
  %v586 = vadd.f32 %v585, %v202
  %v587 = vadd.f32 %v586, %v205
  %v588 = vmul.f32 %v587, 0.0625
  %v589 = vadd.f32 %v309, %v312
  %v590 = vadd.f32 %v589, %v315
  %v591 = vadd.f32 %v590, %v318
  %v592 = vmul.f32 %v591, 0.0625
  %v593 = vadd.f32 %v422, %v425
  %v594 = vadd.f32 %v593, %v428
  %v595 = vadd.f32 %v594, %v431
  %v596 = vmul.f32 %v595, 0.0625
  %v597 = vadd.f32 %v535, %v538
  %v598 = vadd.f32 %v597, %v541
  %v599 = vadd.f32 %v598, %v544
  %v600 = vmul.f32 %v599, 0.0625
  %v601 = vadd.f32 %v92, %v95
  %v602 = vadd.f32 %v601, %v98
  %v603 = vadd.f32 %v602, %v101
  %v604 = vmul.f32 %v603, 0.0625
  %v605 = vadd.f32 %v205, %v208
  %v606 = vadd.f32 %v605, %v211
  %v607 = vadd.f32 %v606, %v214
  %v608 = vmul.f32 %v607, 0.0625
  %v609 = vadd.f32 %v318, %v321
  %v610 = vadd.f32 %v609, %v324
  %v611 = vadd.f32 %v610, %v327
  %v612 = vmul.f32 %v611, 0.0625
  %v613 = vadd.f32 %v431, %v434
  %v614 = vadd.f32 %v613, %v437
  %v615 = vadd.f32 %v614, %v440
  %v616 = vmul.f32 %v615, 0.0625
  %v617 = vadd.f32 %v544, %v547
  %v618 = vadd.f32 %v617, %v550
  %v619 = vadd.f32 %v618, %v553
  %v620 = vmul.f32 %v619, 0.0625
  %v621 = vadd.f32 %v101, %v104
  %v622 = vadd.f32 %v621, %v107
  %v623 = vadd.f32 %v622, %v110
  %v624 = vmul.f32 %v623, 0.0625
  %v625 = vadd.f32 %v214, %v217
  %v626 = vadd.f32 %v625, %v220
  %v627 = vadd.f32 %v626, %v223
  %v628 = vmul.f32 %v627, 0.0625
  %v629 = vadd.f32 %v327, %v330
  %v630 = vadd.f32 %v629, %v333
  %v631 = vadd.f32 %v630, %v336
  %v632 = vmul.f32 %v631, 0.0625
  %v633 = vadd.f32 %v440, %v443
  %v634 = vadd.f32 %v633, %v446
  %v635 = vadd.f32 %v634, %v449
  %v636 = vmul.f32 %v635, 0.0625
  %v637 = vadd.f32 %v553, %v556
  %v638 = vadd.f32 %v637, %v559
  %v639 = vadd.f32 %v638, %v562
  %v640 = vmul.f32 %v639, 0.0625
  %v641 = vadd.f32 %v110, %v113
  %v642 = vadd.f32 %v641, %v116
  %v643 = vadd.f32 %v642, %v119
  %v644 = vmul.f32 %v643, 0.0625
  %v645 = vadd.f32 %v223, %v226
  %v646 = vadd.f32 %v645, %v229
  %v647 = vadd.f32 %v646, %v232
  %v648 = vmul.f32 %v647, 0.0625
  %v649 = vadd.f32 %v336, %v339
  %v650 = vadd.f32 %v649, %v342
  %v651 = vadd.f32 %v650, %v345
  %v652 = vmul.f32 %v651, 0.0625
  %v653 = vadd.f32 %v449, %v452
  %v654 = vadd.f32 %v653, %v455
  %v655 = vadd.f32 %v654, %v458
  %v656 = vmul.f32 %v655, 0.0625
  %v657 = vadd.f32 %v562, %v565
  %v658 = vadd.f32 %v657, %v568
  %v659 = vadd.f32 %v658, %v571
  %v660 = vmul.f32 %v659, 0.0625
  %v661 = vadd.f32 %v119, %v122
  %v662 = vadd.f32 %v661, %v125
  %v663 = vadd.f32 %v662, %v128
  %v664 = vmul.f32 %v663, 0.0625
  %v665 = vadd.f32 %v232, %v235
  %v666 = vadd.f32 %v665, %v238
  %v667 = vadd.f32 %v666, %v241
  %v668 = vmul.f32 %v667, 0.0625
  %v669 = vadd.f32 %v345, %v348
  %v670 = vadd.f32 %v669, %v351
  %v671 = vadd.f32 %v670, %v354
  %v672 = vmul.f32 %v671, 0.0625
  %v673 = vadd.f32 %v458, %v461
  %v674 = vadd.f32 %v673, %v464
  %v675 = vadd.f32 %v674, %v467
  %v676 = vmul.f32 %v675, 0.0625
  %v677 = vadd.f32 %v571, %v574
  %v678 = vadd.f32 %v677, %v577
  %v679 = vadd.f32 %v678, %v580
  %v680 = vmul.f32 %v679, 0.0625
  %v681 = vld [vmem:[%s3] sm:$0x1]
  %v682 = vld [vmem:[%s3 + $0x1] sm:$0x1]
  %v683 = vld [vmem:[%s3 + $0x2] sm:$0x1]
  %v684 = vld [vmem:[%s1] sm:$0xf]
  %v685 = vld [vmem:[%s1 + $0x4] sm:$0xf]
  %v686 = vld [vmem:[%s1 + $0x8] sm:$0xf]
  %v687 = vld [vmem:[%s1 + $0xc] sm:$0xf]
  %v688 = vld [vmem:[%s1 + $0x10] sm:$0xf]
  %v689 = vld [vmem:[%s1 + $0x14] sm:$0xf]
  %v690 = vld [vmem:[%s1 + $0x18] sm:$0xf]
  %v691 = vld [vmem:[%s1 + $0x1c] sm:$0xf]
  %v692 = vld [vmem:[%s1 + $0x20] sm:$0xf]
  %v693 = vld [vmem:[%s1 + $0x24] sm:$0xf]
  %v694 = vld [vmem:[%s1 + $0x28] sm:$0xf]
  %v695 = vld [vmem:[%s1 + $0x2c] sm:$0xf]
  %v696 = vld [vmem:[%s1 + $0x30] sm:$0xf]
  %v697 = vld [vmem:[%s1 + $0x34] sm:$0xf]
  %v698 = vld [vmem:[%s1 + $0x38] sm:$0xf]
  %v699 = vld [vmem:[%s1 + $0x3c] sm:$0xf]
  %v700 = vpack.c.bf16 %v584, %v584
  %v701 = vpack.c.bf16 %v592, %v588
  %v702 = vpack.c.bf16 %v584, %v596
  %v703 = vpack.c.bf16 %v588, %v584
  %v704 = vpack.c.bf16 %v596, %v592
  %v705 = vpack.c.bf16 %v604, %v604
  %v706 = vpack.c.bf16 %v612, %v608
  %v707 = vpack.c.bf16 %v624, %v616
  %v708 = vpack.c.bf16 %v628, %v624
  %v709 = vpack.c.bf16 %v636, %v632
  %v710 = vpack.c.bf16 %v644, %v644
  %v711 = vpack.c.bf16 %v652, %v648
  %v712 = vpack.c.bf16 %v656, %v656
  %v713 = vld [vmem:[%s1 + $0x40] sm:$0xf]
  %v714 = vld [vmem:[%s1 + $0x44] sm:$0xf]
  %v715 = vld [vmem:[%s1 + $0x48] sm:$0xf]
  %v716 = vld [vmem:[%s1 + $0x4c] sm:$0xf]
  %v717 = vld [vmem:[%s1 + $0x50] sm:$0xf]
  %v718 = vld [vmem:[%s1 + $0x54] sm:$0xf]
  %v719 = vld [vmem:[%s1 + $0x58] sm:$0xf]
  %v720 = vld [vmem:[%s1 + $0x5c] sm:$0xf]
  %v721 = vld [vmem:[%s1 + $0x60] sm:$0xf]
  %v722 = vld [vmem:[%s1 + $0x64] sm:$0xf]
  %v723 = vld [vmem:[%s1 + $0x68] sm:$0xf]
  %v724 = vld [vmem:[%s1 + $0x6c] sm:$0xf]
  %v725 = vld [vmem:[%s1 + $0x70] sm:$0xf]
  %v726 = vld [vmem:[%s1 + $0x74] sm:$0xf]
  %v727 = vld [vmem:[%s1 + $0x78] sm:$0xf]
  %v728 = vld [vmem:[%s1 + $0x7c] sm:$0xf]
  %v729 = vpack.c.bf16 %v584, %v600
  %v730 = vpack.c.bf16 %v600, %v596
  %v731 = vpack.c.bf16 %v608, %v604
  %v732 = vpack.c.bf16 %v616, %v612
  %v733 = vpack.c.bf16 %v624, %v620
  %v734 = vpack.c.bf16 %v632, %v628
  %v735 = vpack.c.bf16 %v640, %v636
  %v736 = vpack.c.bf16 %v648, %v644
  %v737 = vpack.c.bf16 %v656, %v652
  %v738 = vpack.c.bf16 %v660, %v660
  %v755 = vunpack.c.l.b16 %v713
  %v756 = vunpack.c.l.b16 %v714
  %v757 = vunpack.c.l.b16 %v715
  %v758 = vunpack.c.l.b16 %v716
  %v759 = vunpack.c.l.b16 %v717
  %v760 = vunpack.c.l.b16 %v718
  %v761 = vunpack.c.l.b16 %v719
  %v762 = vunpack.c.l.b16 %v720
  %v763 = vunpack.c.l.b16 %v721
  %v764 = vunpack.c.l.b16 %v722
  %v765 = vunpack.c.l.b16 %v723
  %v766 = vunpack.c.l.b16 %v724
  %v767 = vunpack.c.l.b16 %v725
  %v768 = vunpack.c.l.b16 %v726
  %v769 = vunpack.c.l.b16 %v727
  %v770 = vunpack.c.l.b16 %v728
  %v771 = vpack.c.b16 %v756, %v755
  %v772 = vpack.c.b16 %v758, %v757
  %v773 = vpack.c.b16 %v760, %v759
  %v774 = vpack.c.b16 %v762, %v761
  %v775 = vpack.c.b16 %v764, %v763
  %v776 = vpack.c.b16 %v766, %v765
  %v777 = vpack.c.b16 %v768, %v767
  %v778 = vpack.c.b16 %v770, %v769
  %787 = vmatpush.bf16.msra.mxu0 %v778
  %788 = vmatpush.bf16.msra.mxu0 %v777
  %789 = vmatpush.bf16.msra.mxu0 %v776
  %790 = vmatpush.bf16.msra.mxu0 %v775
  %791 = vmatpush.bf16.msra.mxu0 %v774
  %792 = vmatpush.bf16.msra.mxu0 %v773
  %793 = vmatpush.bf16.msra.mxu0 %v772
  %794 = vmatpush.bf16.msra.mxu0 %v771
  %795 = vmatmul.bf16.gmra.mxu0 %v703
  %v796 = vpop.f32.mrf.mxu0
  %v797 = vadd.f32 0.0, %v796
  %v798 = vpop.f32.mrf.mxu0
  %v799 = vadd.f32 0.0, %v798
  %800 = vmatmul.bf16.gmra.mxu0 %v704
  %v801 = vpop.f32.mrf.mxu0
  %v802 = vadd.f32 0.0, %v801
  %v803 = vpop.f32.mrf.mxu0
  %v804 = vadd.f32 0.0, %v803
  %805 = vmatmul.bf16.gmra.mxu0 %v729
  %v806 = vpop.f32.mrf.mxu0
  %v807 = vadd.f32 0.0, %v806
  %v808 = vpop.f32.mrf.mxu0
  %v809 = vadd.f32 0.0, %v808
  %810 = vmatmul.bf16.gmra.mxu0 %v701
  %v811 = vpop.f32.mrf.mxu0
  %v812 = vadd.f32 0.0, %v811
  %v813 = vpop.f32.mrf.mxu0
  %v814 = vadd.f32 0.0, %v813
  %815 = vmatmul.bf16.gmra.mxu0 %v730
  %v816 = vpop.f32.mrf.mxu0
  %v817 = vadd.f32 0.0, %v816
  %v818 = vpop.f32.mrf.mxu0
  %v819 = vadd.f32 0.0, %v818
  %820 = vmatmul.bf16.gmra.mxu0 %v731
  %v821 = vpop.f32.mrf.mxu0
  %v822 = vadd.f32 0.0, %v821
  %v823 = vpop.f32.mrf.mxu0
  %v824 = vadd.f32 0.0, %v823
  %825 = vmatmul.bf16.gmra.mxu0 %v732
  %v826 = vpop.f32.mrf.mxu0
  %v827 = vadd.f32 0.0, %v826
  %v828 = vpop.f32.mrf.mxu0
  %v829 = vadd.f32 0.0, %v828
  %830 = vmatmul.bf16.gmra.mxu0 %v733
  %v831 = vpop.f32.mrf.mxu0
  %v832 = vadd.f32 0.0, %v831
  %v833 = vpop.f32.mrf.mxu0
  %v834 = vadd.f32 0.0, %v833
  %835 = vmatmul.bf16.gmra.mxu0 %v734
  %v836 = vpop.f32.mrf.mxu0
  %v837 = vadd.f32 0.0, %v836
  %v838 = vpop.f32.mrf.mxu0
  %v839 = vadd.f32 0.0, %v838
  %840 = vmatmul.bf16.gmra.mxu0 %v735
  %v841 = vpop.f32.mrf.mxu0
  %v842 = vadd.f32 0.0, %v841
  %v843 = vpop.f32.mrf.mxu0
  %v844 = vadd.f32 0.0, %v843
  %845 = vmatmul.bf16.gmra.mxu0 %v736
  %v846 = vpop.f32.mrf.mxu0
  %v847 = vadd.f32 0.0, %v846
  %v848 = vpop.f32.mrf.mxu0
  %v849 = vadd.f32 0.0, %v848
  %850 = vmatmul.bf16.gmra.mxu0 %v737
  %v851 = vpop.f32.mrf.mxu0
  %v852 = vadd.f32 0.0, %v851
  %v853 = vpop.f32.mrf.mxu0
  %v854 = vadd.f32 0.0, %v853
  %855 = vmatmul.bf16.gmra.mxu0 %v738
  %v856 = vpop.f32.mrf.mxu0
  %v857 = vadd.f32 0.0, %v856
  %v858 = vpop.f32.mrf.mxu0
  %859 = vdwg.mxu0
  %v876 = vunpack.c.l.b16 %v684
  %v877 = vunpack.c.l.b16 %v685
  %v878 = vunpack.c.l.b16 %v686
  %v879 = vunpack.c.l.b16 %v687
  %v880 = vunpack.c.l.b16 %v688
  %v881 = vunpack.c.l.b16 %v689
  %v882 = vunpack.c.l.b16 %v690
  %v883 = vunpack.c.l.b16 %v691
  %v884 = vunpack.c.l.b16 %v692
  %v885 = vunpack.c.l.b16 %v693
  %v886 = vunpack.c.l.b16 %v694
  %v887 = vunpack.c.l.b16 %v695
  %v888 = vunpack.c.l.b16 %v696
  %v889 = vunpack.c.l.b16 %v697
  %v890 = vunpack.c.l.b16 %v698
  %v891 = vunpack.c.l.b16 %v699
  %v892 = vpack.c.b16 %v877, %v876
  %v893 = vpack.c.b16 %v879, %v878
  %v894 = vpack.c.b16 %v881, %v880
  %v895 = vpack.c.b16 %v883, %v882
  %v896 = vpack.c.b16 %v885, %v884
  %v897 = vpack.c.b16 %v887, %v886
  %v898 = vpack.c.b16 %v889, %v888
  %v899 = vpack.c.b16 %v891, %v890
  %908 = vmatpush.bf16.msra.mxu0 %v899
  %909 = vmatpush.bf16.msra.mxu0 %v898
  %910 = vmatpush.bf16.msra.mxu0 %v897
  %911 = vmatpush.bf16.msra.mxu0 %v896
  %912 = vmatpush.bf16.msra.mxu0 %v895
  %913 = vmatpush.bf16.msra.mxu0 %v894
  %914 = vmatpush.bf16.msra.mxu0 %v893
  %915 = vmatpush.bf16.msra.mxu0 %v892
  %916 = vmatmul.bf16.gmra.mxu0 %v700
  %v917 = vpop.f32.mrf.mxu0
  %v918 = vadd.f32 %v797, %v917
  %v919 = vpop.f32.mrf.mxu0
  %v920 = vadd.f32 %v799, %v919
  %921 = vmatmul.bf16.gmra.mxu0 %v701
  %v922 = vpop.f32.mrf.mxu0
  %v923 = vadd.f32 %v802, %v922
  %v924 = vpop.f32.mrf.mxu0
  %v925 = vadd.f32 %v804, %v924
  %926 = vmatmul.bf16.gmra.mxu0 %v702
  %v927 = vpop.f32.mrf.mxu0
  %v928 = vadd.f32 %v807, %v927
  %v929 = vpop.f32.mrf.mxu0
  %v930 = vadd.f32 %v809, %v929
  %931 = vmatmul.bf16.gmra.mxu0 %v703
  %v932 = vpop.f32.mrf.mxu0
  %v933 = vadd.f32 %v812, %v932
  %v934 = vpop.f32.mrf.mxu0
  %v935 = vadd.f32 %v814, %v934
  %936 = vmatmul.bf16.gmra.mxu0 %v704
  %v937 = vpop.f32.mrf.mxu0
  %v938 = vadd.f32 %v817, %v937
  %v939 = vpop.f32.mrf.mxu0
  %v940 = vadd.f32 %v819, %v939
  %941 = vmatmul.bf16.gmra.mxu0 %v705
  %v942 = vpop.f32.mrf.mxu0
  %v943 = vadd.f32 %v822, %v942
  %v944 = vpop.f32.mrf.mxu0
  %v945 = vadd.f32 %v824, %v944
  %946 = vmatmul.bf16.gmra.mxu0 %v706
  %v947 = vpop.f32.mrf.mxu0
  %v948 = vadd.f32 %v827, %v947
  %v949 = vpop.f32.mrf.mxu0
  %v950 = vadd.f32 %v829, %v949
  %951 = vmatmul.bf16.gmra.mxu0 %v707
  %v952 = vpop.f32.mrf.mxu0
  %v953 = vadd.f32 %v832, %v952
  %v954 = vpop.f32.mrf.mxu0
  %v955 = vadd.f32 %v834, %v954
  %956 = vmatmul.bf16.gmra.mxu0 %v708
  %v957 = vpop.f32.mrf.mxu0
  %v958 = vadd.f32 %v837, %v957
  %v959 = vpop.f32.mrf.mxu0
  %v960 = vadd.f32 %v839, %v959
  %961 = vmatmul.bf16.gmra.mxu0 %v709
  %v962 = vpop.f32.mrf.mxu0
  %v963 = vadd.f32 %v842, %v962
  %v964 = vpop.f32.mrf.mxu0
  %v965 = vadd.f32 %v844, %v964
  %966 = vmatmul.bf16.gmra.mxu0 %v710
  %v967 = vpop.f32.mrf.mxu0
  %v968 = vadd.f32 %v847, %v967
  %v969 = vpop.f32.mrf.mxu0
  %v970 = vadd.f32 %v849, %v969
  %971 = vmatmul.bf16.gmra.mxu0 %v711
  %v972 = vpop.f32.mrf.mxu0
  %v973 = vadd.f32 %v852, %v972
  %v974 = vpop.f32.mrf.mxu0
  %v975 = vadd.f32 %v854, %v974
  %976 = vmatmul.bf16.gmra.mxu0 %v712
  %v977 = vpop.f32.mrf.mxu0
  %v978 = vadd.f32 %v857, %v977
  %v979 = vpop.f32.mrf.mxu0
  %980 = vdwg.mxu0
  %v981 = vld [vmem:[%s1 + $0x80] sm:$0xf]
  %v982 = vld [vmem:[%s1 + $0x84] sm:$0xf]
  %v983 = vld [vmem:[%s1 + $0x88] sm:$0xf]
  %v984 = vld [vmem:[%s1 + $0x8c] sm:$0xf]
  %v985 = vld [vmem:[%s1 + $0x90] sm:$0xf]
  %v986 = vld [vmem:[%s1 + $0x94] sm:$0xf]
  %v987 = vld [vmem:[%s1 + $0x98] sm:$0xf]
  %v988 = vld [vmem:[%s1 + $0x9c] sm:$0xf]
  %v989 = vld [vmem:[%s1 + $0xa0] sm:$0xf]
  %v990 = vld [vmem:[%s1 + $0xa4] sm:$0xf]
  %v991 = vld [vmem:[%s1 + $0xa8] sm:$0xf]
  %v992 = vld [vmem:[%s1 + $0xac] sm:$0xf]
  %v993 = vld [vmem:[%s1 + $0xb0] sm:$0xf]
  %v994 = vld [vmem:[%s1 + $0xb4] sm:$0xf]
  %v995 = vld [vmem:[%s1 + $0xb8] sm:$0xf]
  %v996 = vld [vmem:[%s1 + $0xbc] sm:$0xf]
  %v997 = vpack.c.bf16 %v588, %v600
  %v998 = vpack.c.bf16 %v600, %v600
  %v999 = vpack.c.bf16 %v620, %v616
  %v1000 = vpack.c.bf16 %v628, %v620
  %v1001 = vpack.c.bf16 %v640, %v640
  %v1002 = vpack.c.bf16 %v660, %v656
  %v1019 = vunpack.c.l.b16 %v981
  %v1020 = vunpack.c.l.b16 %v982
  %v1021 = vunpack.c.l.b16 %v983
  %v1022 = vunpack.c.l.b16 %v984
  %v1023 = vunpack.c.l.b16 %v985
  %v1024 = vunpack.c.l.b16 %v986
  %v1025 = vunpack.c.l.b16 %v987
  %v1026 = vunpack.c.l.b16 %v988
  %v1027 = vunpack.c.l.b16 %v989
  %v1028 = vunpack.c.l.b16 %v990
  %v1029 = vunpack.c.l.b16 %v991
  %v1030 = vunpack.c.l.b16 %v992
  %v1031 = vunpack.c.l.b16 %v993
  %v1032 = vunpack.c.l.b16 %v994
  %v1033 = vunpack.c.l.b16 %v995
  %v1034 = vunpack.c.l.b16 %v996
  %v1035 = vpack.c.b16 %v1020, %v1019
  %v1036 = vpack.c.b16 %v1022, %v1021
  %v1037 = vpack.c.b16 %v1024, %v1023
  %v1038 = vpack.c.b16 %v1026, %v1025
  %v1039 = vpack.c.b16 %v1028, %v1027
  %v1040 = vpack.c.b16 %v1030, %v1029
  %v1041 = vpack.c.b16 %v1032, %v1031
  %v1042 = vpack.c.b16 %v1034, %v1033
  %1051 = vmatpush.bf16.msra.mxu0 %v1042
  %1052 = vmatpush.bf16.msra.mxu0 %v1041
  %1053 = vmatpush.bf16.msra.mxu0 %v1040
  %1054 = vmatpush.bf16.msra.mxu0 %v1039
  %1055 = vmatpush.bf16.msra.mxu0 %v1038
  %1056 = vmatpush.bf16.msra.mxu0 %v1037
  %1057 = vmatpush.bf16.msra.mxu0 %v1036
  %1058 = vmatpush.bf16.msra.mxu0 %v1035
  %1059 = vmatmul.bf16.gmra.mxu0 %v701
  %v1060 = vpop.f32.mrf.mxu0
  %v1061 = vadd.f32 0.0, %v1060
  %v1062 = vpop.f32.mrf.mxu0
  %v1063 = vadd.f32 0.0, %v1062
  %1064 = vmatmul.bf16.gmra.mxu0 %v730
  %v1065 = vpop.f32.mrf.mxu0
  %v1066 = vadd.f32 0.0, %v1065
  %v1067 = vpop.f32.mrf.mxu0
  %v1068 = vadd.f32 0.0, %v1067
  %1069 = vmatmul.bf16.gmra.mxu0 %v997
  %v1070 = vpop.f32.mrf.mxu0
  %v1071 = vadd.f32 0.0, %v1070
  %v1072 = vpop.f32.mrf.mxu0
  %v1073 = vadd.f32 0.0, %v1072
  %1074 = vmatmul.bf16.gmra.mxu0 %v704
  %v1075 = vpop.f32.mrf.mxu0
  %v1076 = vadd.f32 0.0, %v1075
  %v1077 = vpop.f32.mrf.mxu0
  %v1078 = vadd.f32 0.0, %v1077
  %1079 = vmatmul.bf16.gmra.mxu0 %v998
  %v1080 = vpop.f32.mrf.mxu0
  %v1081 = vadd.f32 0.0, %v1080
  %v1082 = vpop.f32.mrf.mxu0
  %v1083 = vadd.f32 0.0, %v1082
  %1084 = vmatmul.bf16.gmra.mxu0 %v706
  %v1085 = vpop.f32.mrf.mxu0
  %v1086 = vadd.f32 0.0, %v1085
  %v1087 = vpop.f32.mrf.mxu0
  %v1088 = vadd.f32 0.0, %v1087
  %1089 = vmatmul.bf16.gmra.mxu0 %v999
  %v1090 = vpop.f32.mrf.mxu0
  %v1091 = vadd.f32 0.0, %v1090
  %v1092 = vpop.f32.mrf.mxu0
  %v1093 = vadd.f32 0.0, %v1092
  %1094 = vmatmul.bf16.gmra.mxu0 %v1000
  %v1095 = vpop.f32.mrf.mxu0
  %v1096 = vadd.f32 0.0, %v1095
  %v1097 = vpop.f32.mrf.mxu0
  %v1098 = vadd.f32 0.0, %v1097
  %1099 = vmatmul.bf16.gmra.mxu0 %v709
  %v1100 = vpop.f32.mrf.mxu0
  %v1101 = vadd.f32 0.0, %v1100
  %v1102 = vpop.f32.mrf.mxu0
  %v1103 = vadd.f32 0.0, %v1102
  %1104 = vmatmul.bf16.gmra.mxu0 %v1001
  %v1105 = vpop.f32.mrf.mxu0
  %v1106 = vadd.f32 0.0, %v1105
  %v1107 = vpop.f32.mrf.mxu0
  %v1108 = vadd.f32 0.0, %v1107
  %1109 = vmatmul.bf16.gmra.mxu0 %v711
  %v1110 = vpop.f32.mrf.mxu0
  %v1111 = vadd.f32 0.0, %v1110
  %v1112 = vpop.f32.mrf.mxu0
  %v1113 = vadd.f32 0.0, %v1112
  %1114 = vmatmul.bf16.gmra.mxu0 %v1002
  %v1115 = vpop.f32.mrf.mxu0
  %v1116 = vadd.f32 0.0, %v1115
  %v1117 = vpop.f32.mrf.mxu0
  %v1118 = vadd.f32 0.0, %v1117
  %1119 = vmatmul.bf16.gmra.mxu0 %v738
  %v1120 = vpop.f32.mrf.mxu0
  %v1121 = vadd.f32 0.0, %v1120
  %v1122 = vpop.f32.mrf.mxu0
  %1123 = vdwg.mxu0
  %v1124 = vadd.f32 %v918, %v1061
  %v1125 = vadd.f32 %v920, %v1063
  %v1126 = vadd.f32 %v923, %v1066
  %v1127 = vadd.f32 %v925, %v1068
  %v1128 = vadd.f32 %v928, %v1071
  %v1129 = vadd.f32 %v930, %v1073
  %v1130 = vadd.f32 %v933, %v1076
  %v1131 = vadd.f32 %v935, %v1078
  %v1132 = vadd.f32 %v938, %v1081
  %v1133 = vadd.f32 %v940, %v1083
  %v1134 = vadd.f32 %v943, %v1086
  %v1135 = vadd.f32 %v945, %v1088
  %v1136 = vadd.f32 %v948, %v1091
  %v1137 = vadd.f32 %v950, %v1093
  %v1138 = vadd.f32 %v953, %v1096
  %v1139 = vadd.f32 %v955, %v1098
  %v1140 = vadd.f32 %v958, %v1101
  %v1141 = vadd.f32 %v960, %v1103
  %v1142 = vadd.f32 %v963, %v1106
  %v1143 = vadd.f32 %v965, %v1108
  %v1144 = vadd.f32 %v968, %v1111
  %v1145 = vadd.f32 %v970, %v1113
  %v1146 = vadd.f32 %v973, %v1116
  %v1147 = vadd.f32 %v975, %v1118
  %v1148 = vadd.f32 %v978, %v1121
  %v1149 = vld [vmem:[%s1 + $0xc0] sm:$0xf]
  %v1150 = vld [vmem:[%s1 + $0xc4] sm:$0xf]
  %v1151 = vld [vmem:[%s1 + $0xc8] sm:$0xf]
  %v1152 = vld [vmem:[%s1 + $0xcc] sm:$0xf]
  %v1153 = vld [vmem:[%s1 + $0xd0] sm:$0xf]
  %v1154 = vld [vmem:[%s1 + $0xd4] sm:$0xf]
  %v1155 = vld [vmem:[%s1 + $0xd8] sm:$0xf]
  %v1156 = vld [vmem:[%s1 + $0xdc] sm:$0xf]
  %v1157 = vld [vmem:[%s1 + $0xe0] sm:$0xf]
  %v1158 = vld [vmem:[%s1 + $0xe4] sm:$0xf]
  %v1159 = vld [vmem:[%s1 + $0xe8] sm:$0xf]
  %v1160 = vld [vmem:[%s1 + $0xec] sm:$0xf]
  %v1161 = vld [vmem:[%s1 + $0xf0] sm:$0xf]
  %v1162 = vld [vmem:[%s1 + $0xf4] sm:$0xf]
  %v1163 = vld [vmem:[%s1 + $0xf8] sm:$0xf]
  %v1164 = vld [vmem:[%s1 + $0xfc] sm:$0xf]
  %v1165 = vpack.c.bf16 %v604, %v596
  %v1166 = vpack.c.bf16 %v624, %v624
  %v1167 = vpack.c.bf16 %v644, %v636
  %v1168 = vpack.c.bf16 %v664, %v664
  %v1169 = vpack.c.bf16 %v672, %v668
  %v1170 = vpack.c.bf16 %v676, %v676
  %v1187 = vunpack.c.l.b16 %v1149
  %v1188 = vunpack.c.l.b16 %v1150
  %v1189 = vunpack.c.l.b16 %v1151
  %v1190 = vunpack.c.l.b16 %v1152
  %v1191 = vunpack.c.l.b16 %v1153
  %v1192 = vunpack.c.l.b16 %v1154
  %v1193 = vunpack.c.l.b16 %v1155
  %v1194 = vunpack.c.l.b16 %v1156
  %v1195 = vunpack.c.l.b16 %v1157
  %v1196 = vunpack.c.l.b16 %v1158
  %v1197 = vunpack.c.l.b16 %v1159
  %v1198 = vunpack.c.l.b16 %v1160
  %v1199 = vunpack.c.l.b16 %v1161
  %v1200 = vunpack.c.l.b16 %v1162
  %v1201 = vunpack.c.l.b16 %v1163
  %v1202 = vunpack.c.l.b16 %v1164
  %v1203 = vpack.c.b16 %v1188, %v1187
  %v1204 = vpack.c.b16 %v1190, %v1189
  %v1205 = vpack.c.b16 %v1192, %v1191
  %v1206 = vpack.c.b16 %v1194, %v1193
  %v1207 = vpack.c.b16 %v1196, %v1195
  %v1208 = vpack.c.b16 %v1198, %v1197
  %v1209 = vpack.c.b16 %v1200, %v1199
  %v1210 = vpack.c.b16 %v1202, %v1201
  %1219 = vmatpush.bf16.msra.mxu0 %v1210
  %1220 = vmatpush.bf16.msra.mxu0 %v1209
  %1221 = vmatpush.bf16.msra.mxu0 %v1208
  %1222 = vmatpush.bf16.msra.mxu0 %v1207
  %1223 = vmatpush.bf16.msra.mxu0 %v1206
  %1224 = vmatpush.bf16.msra.mxu0 %v1205
  %1225 = vmatpush.bf16.msra.mxu0 %v1204
  %1226 = vmatpush.bf16.msra.mxu0 %v1203
  %1227 = vmatmul.bf16.gmra.mxu0 %v700
  %v1228 = vpop.f32.mrf.mxu0
  %v1229 = vadd.f32 0.0, %v1228
  %v1230 = vpop.f32.mrf.mxu0
  %v1231 = vadd.f32 0.0, %v1230
  %1232 = vmatmul.bf16.gmra.mxu0 %v701
  %v1233 = vpop.f32.mrf.mxu0
  %v1234 = vadd.f32 0.0, %v1233
  %v1235 = vpop.f32.mrf.mxu0
  %v1236 = vadd.f32 0.0, %v1235
  %1237 = vmatmul.bf16.gmra.mxu0 %v1165
  %v1238 = vpop.f32.mrf.mxu0
  %v1239 = vadd.f32 0.0, %v1238
  %v1240 = vpop.f32.mrf.mxu0
  %v1241 = vadd.f32 0.0, %v1240
  %1242 = vmatmul.bf16.gmra.mxu0 %v731
  %v1243 = vpop.f32.mrf.mxu0
  %v1244 = vadd.f32 0.0, %v1243
  %v1245 = vpop.f32.mrf.mxu0
  %v1246 = vadd.f32 0.0, %v1245
  %1247 = vmatmul.bf16.gmra.mxu0 %v732
  %v1248 = vpop.f32.mrf.mxu0
  %v1249 = vadd.f32 0.0, %v1248
  %v1250 = vpop.f32.mrf.mxu0
  %v1251 = vadd.f32 0.0, %v1250
  %1252 = vmatmul.bf16.gmra.mxu0 %v1166
  %v1253 = vpop.f32.mrf.mxu0
  %v1254 = vadd.f32 0.0, %v1253
  %v1255 = vpop.f32.mrf.mxu0
  %v1256 = vadd.f32 0.0, %v1255
  %1257 = vmatmul.bf16.gmra.mxu0 %v734
  %v1258 = vpop.f32.mrf.mxu0
  %v1259 = vadd.f32 0.0, %v1258
  %v1260 = vpop.f32.mrf.mxu0
  %v1261 = vadd.f32 0.0, %v1260
  %1262 = vmatmul.bf16.gmra.mxu0 %v1167
  %v1263 = vpop.f32.mrf.mxu0
  %v1264 = vadd.f32 0.0, %v1263
  %v1265 = vpop.f32.mrf.mxu0
  %v1266 = vadd.f32 0.0, %v1265
  %1267 = vmatmul.bf16.gmra.mxu0 %v736
  %v1268 = vpop.f32.mrf.mxu0
  %v1269 = vadd.f32 0.0, %v1268
  %v1270 = vpop.f32.mrf.mxu0
  %v1271 = vadd.f32 0.0, %v1270
  %1272 = vmatmul.bf16.gmra.mxu0 %v737
  %v1273 = vpop.f32.mrf.mxu0
  %v1274 = vadd.f32 0.0, %v1273
  %v1275 = vpop.f32.mrf.mxu0
  %v1276 = vadd.f32 0.0, %v1275
  %1277 = vmatmul.bf16.gmra.mxu0 %v1168
  %v1278 = vpop.f32.mrf.mxu0
  %v1279 = vadd.f32 0.0, %v1278
  %v1280 = vpop.f32.mrf.mxu0
  %v1281 = vadd.f32 0.0, %v1280
  %1282 = vmatmul.bf16.gmra.mxu0 %v1169
  %v1283 = vpop.f32.mrf.mxu0
  %v1284 = vadd.f32 0.0, %v1283
  %v1285 = vpop.f32.mrf.mxu0
  %v1286 = vadd.f32 0.0, %v1285
  %1287 = vmatmul.bf16.gmra.mxu0 %v1170
  %v1288 = vpop.f32.mrf.mxu0
  %v1289 = vadd.f32 0.0, %v1288
  %v1290 = vpop.f32.mrf.mxu0
  %1291 = vdwg.mxu0
  %v1292 = vadd.f32 %v1124, %v1229
  %v1293 = vadd.f32 %v1125, %v1231
  %v1294 = vadd.f32 %v1126, %v1234
  %v1295 = vadd.f32 %v1127, %v1236
  %v1296 = vadd.f32 %v1128, %v1239
  %v1297 = vadd.f32 %v1129, %v1241
  %v1298 = vadd.f32 %v1130, %v1244
  %v1299 = vadd.f32 %v1131, %v1246
  %v1300 = vadd.f32 %v1132, %v1249
  %v1301 = vadd.f32 %v1133, %v1251
  %v1302 = vadd.f32 %v1134, %v1254
  %v1303 = vadd.f32 %v1135, %v1256
  %v1304 = vadd.f32 %v1136, %v1259
  %v1305 = vadd.f32 %v1137, %v1261
  %v1306 = vadd.f32 %v1138, %v1264
  %v1307 = vadd.f32 %v1139, %v1266
  %v1308 = vadd.f32 %v1140, %v1269
  %v1309 = vadd.f32 %v1141, %v1271
  %v1310 = vadd.f32 %v1142, %v1274
  %v1311 = vadd.f32 %v1143, %v1276
  %v1312 = vadd.f32 %v1144, %v1279
  %v1313 = vadd.f32 %v1145, %v1281
  %v1314 = vadd.f32 %v1146, %v1284
  %v1315 = vadd.f32 %v1147, %v1286
  %v1316 = vadd.f32 %v1148, %v1289
  %v1317 = vld [vmem:[%s1 + $0x100] sm:$0xf]
  %v1318 = vld [vmem:[%s1 + $0x104] sm:$0xf]
  %v1319 = vld [vmem:[%s1 + $0x108] sm:$0xf]
  %v1320 = vld [vmem:[%s1 + $0x10c] sm:$0xf]
  %v1321 = vld [vmem:[%s1 + $0x110] sm:$0xf]
  %v1322 = vld [vmem:[%s1 + $0x114] sm:$0xf]
  %v1323 = vld [vmem:[%s1 + $0x118] sm:$0xf]
  %v1324 = vld [vmem:[%s1 + $0x11c] sm:$0xf]
  %v1325 = vld [vmem:[%s1 + $0x120] sm:$0xf]
  %v1326 = vld [vmem:[%s1 + $0x124] sm:$0xf]
  %v1327 = vld [vmem:[%s1 + $0x128] sm:$0xf]
  %v1328 = vld [vmem:[%s1 + $0x12c] sm:$0xf]
  %v1329 = vld [vmem:[%s1 + $0x130] sm:$0xf]
  %v1330 = vld [vmem:[%s1 + $0x134] sm:$0xf]
  %v1331 = vld [vmem:[%s1 + $0x138] sm:$0xf]
  %v1332 = vld [vmem:[%s1 + $0x13c] sm:$0xf]
  %v1333 = vpack.c.bf16 %v604, %v600
  %v1334 = vpack.c.bf16 %v644, %v640
  %v1335 = vpack.c.bf16 %v668, %v664
  %v1336 = vpack.c.bf16 %v676, %v672
  %v1337 = vpack.c.bf16 %v680, %v680
  %v1354 = vunpack.c.l.b16 %v1317
  %v1355 = vunpack.c.l.b16 %v1318
  %v1356 = vunpack.c.l.b16 %v1319
  %v1357 = vunpack.c.l.b16 %v1320
  %v1358 = vunpack.c.l.b16 %v1321
  %v1359 = vunpack.c.l.b16 %v1322
  %v1360 = vunpack.c.l.b16 %v1323
  %v1361 = vunpack.c.l.b16 %v1324
  %v1362 = vunpack.c.l.b16 %v1325
  %v1363 = vunpack.c.l.b16 %v1326
  %v1364 = vunpack.c.l.b16 %v1327
  %v1365 = vunpack.c.l.b16 %v1328
  %v1366 = vunpack.c.l.b16 %v1329
  %v1367 = vunpack.c.l.b16 %v1330
  %v1368 = vunpack.c.l.b16 %v1331
  %v1369 = vunpack.c.l.b16 %v1332
  %v1370 = vpack.c.b16 %v1355, %v1354
  %v1371 = vpack.c.b16 %v1357, %v1356
  %v1372 = vpack.c.b16 %v1359, %v1358
  %v1373 = vpack.c.b16 %v1361, %v1360
  %v1374 = vpack.c.b16 %v1363, %v1362
  %v1375 = vpack.c.b16 %v1365, %v1364
  %v1376 = vpack.c.b16 %v1367, %v1366
  %v1377 = vpack.c.b16 %v1369, %v1368
  %1386 = vmatpush.bf16.msra.mxu0 %v1377
  %1387 = vmatpush.bf16.msra.mxu0 %v1376
  %1388 = vmatpush.bf16.msra.mxu0 %v1375
  %1389 = vmatpush.bf16.msra.mxu0 %v1374
  %1390 = vmatpush.bf16.msra.mxu0 %v1373
  %1391 = vmatpush.bf16.msra.mxu0 %v1372
  %1392 = vmatpush.bf16.msra.mxu0 %v1371
  %1393 = vmatpush.bf16.msra.mxu0 %v1370
  %1394 = vmatmul.bf16.gmra.mxu0 %v703
  %v1395 = vpop.f32.mrf.mxu0
  %v1396 = vadd.f32 0.0, %v1395
  %v1397 = vpop.f32.mrf.mxu0
  %v1398 = vadd.f32 0.0, %v1397
  %1399 = vmatmul.bf16.gmra.mxu0 %v704
  %v1400 = vpop.f32.mrf.mxu0
  %v1401 = vadd.f32 0.0, %v1400
  %v1402 = vpop.f32.mrf.mxu0
  %v1403 = vadd.f32 0.0, %v1402
  %1404 = vmatmul.bf16.gmra.mxu0 %v1333
  %v1405 = vpop.f32.mrf.mxu0
  %v1406 = vadd.f32 0.0, %v1405
  %v1407 = vpop.f32.mrf.mxu0
  %v1408 = vadd.f32 0.0, %v1407
  %1409 = vmatmul.bf16.gmra.mxu0 %v706
  %v1410 = vpop.f32.mrf.mxu0
  %v1411 = vadd.f32 0.0, %v1410
  %v1412 = vpop.f32.mrf.mxu0
  %v1413 = vadd.f32 0.0, %v1412
  %1414 = vmatmul.bf16.gmra.mxu0 %v999
  %v1415 = vpop.f32.mrf.mxu0
  %v1416 = vadd.f32 0.0, %v1415
  %v1417 = vpop.f32.mrf.mxu0
  %v1418 = vadd.f32 0.0, %v1417
  %1419 = vmatmul.bf16.gmra.mxu0 %v708
  %v1420 = vpop.f32.mrf.mxu0
  %v1421 = vadd.f32 0.0, %v1420
  %v1422 = vpop.f32.mrf.mxu0
  %v1423 = vadd.f32 0.0, %v1422
  %1424 = vmatmul.bf16.gmra.mxu0 %v709
  %v1425 = vpop.f32.mrf.mxu0
  %v1426 = vadd.f32 0.0, %v1425
  %v1427 = vpop.f32.mrf.mxu0
  %v1428 = vadd.f32 0.0, %v1427
  %1429 = vmatmul.bf16.gmra.mxu0 %v1334
  %v1430 = vpop.f32.mrf.mxu0
  %v1431 = vadd.f32 0.0, %v1430
  %v1432 = vpop.f32.mrf.mxu0
  %v1433 = vadd.f32 0.0, %v1432
  %1434 = vmatmul.bf16.gmra.mxu0 %v711
  %v1435 = vpop.f32.mrf.mxu0
  %v1436 = vadd.f32 0.0, %v1435
  %v1437 = vpop.f32.mrf.mxu0
  %v1438 = vadd.f32 0.0, %v1437
  %1439 = vmatmul.bf16.gmra.mxu0 %v1002
  %v1440 = vpop.f32.mrf.mxu0
  %v1441 = vadd.f32 0.0, %v1440
  %v1442 = vpop.f32.mrf.mxu0
  %v1443 = vadd.f32 0.0, %v1442
  %1444 = vmatmul.bf16.gmra.mxu0 %v1335
  %v1445 = vpop.f32.mrf.mxu0
  %v1446 = vadd.f32 0.0, %v1445
  %v1447 = vpop.f32.mrf.mxu0
  %v1448 = vadd.f32 0.0, %v1447
  %1449 = vmatmul.bf16.gmra.mxu0 %v1336
  %v1450 = vpop.f32.mrf.mxu0
  %v1451 = vadd.f32 0.0, %v1450
  %v1452 = vpop.f32.mrf.mxu0
  %v1453 = vadd.f32 0.0, %v1452
  %1454 = vmatmul.bf16.gmra.mxu0 %v1337
  %v1455 = vpop.f32.mrf.mxu0
  %v1456 = vadd.f32 0.0, %v1455
  %v1457 = vpop.f32.mrf.mxu0
  %1458 = vdwg.mxu0
  %v1459 = vadd.f32 %v1292, %v1396
  %v1460 = vadd.f32 %v1293, %v1398
  %v1461 = vadd.f32 %v1294, %v1401
  %v1462 = vadd.f32 %v1295, %v1403
  %v1463 = vadd.f32 %v1296, %v1406
  %v1464 = vadd.f32 %v1297, %v1408
  %v1465 = vadd.f32 %v1298, %v1411
  %v1466 = vadd.f32 %v1299, %v1413
  %v1467 = vadd.f32 %v1300, %v1416
  %v1468 = vadd.f32 %v1301, %v1418
  %v1469 = vadd.f32 %v1302, %v1421
  %v1470 = vadd.f32 %v1303, %v1423
  %v1471 = vadd.f32 %v1304, %v1426
  %v1472 = vadd.f32 %v1305, %v1428
  %v1473 = vadd.f32 %v1306, %v1431
  %v1474 = vadd.f32 %v1307, %v1433
  %v1475 = vadd.f32 %v1308, %v1436
  %v1476 = vadd.f32 %v1309, %v1438
  %v1477 = vadd.f32 %v1310, %v1441
  %v1478 = vadd.f32 %v1311, %v1443
  %v1479 = vadd.f32 %v1312, %v1446
  %v1480 = vadd.f32 %v1313, %v1448
  %v1481 = vadd.f32 %v1314, %v1451
  %v1482 = vadd.f32 %v1315, %v1453
  %v1483 = vadd.f32 %v1316, %v1456
  %v1484 = vld [vmem:[%s1 + $0x140] sm:$0xf]
  %v1485 = vld [vmem:[%s1 + $0x144] sm:$0xf]
  %v1486 = vld [vmem:[%s1 + $0x148] sm:$0xf]
  %v1487 = vld [vmem:[%s1 + $0x14c] sm:$0xf]
  %v1488 = vld [vmem:[%s1 + $0x150] sm:$0xf]
  %v1489 = vld [vmem:[%s1 + $0x154] sm:$0xf]
  %v1490 = vld [vmem:[%s1 + $0x158] sm:$0xf]
  %v1491 = vld [vmem:[%s1 + $0x15c] sm:$0xf]
  %v1492 = vld [vmem:[%s1 + $0x160] sm:$0xf]
  %v1493 = vld [vmem:[%s1 + $0x164] sm:$0xf]
  %v1494 = vld [vmem:[%s1 + $0x168] sm:$0xf]
  %v1495 = vld [vmem:[%s1 + $0x16c] sm:$0xf]
  %v1496 = vld [vmem:[%s1 + $0x170] sm:$0xf]
  %v1497 = vld [vmem:[%s1 + $0x174] sm:$0xf]
  %v1498 = vld [vmem:[%s1 + $0x178] sm:$0xf]
  %v1499 = vld [vmem:[%s1 + $0x17c] sm:$0xf]
  %v1500 = vpack.c.bf16 %v608, %v600
  %v1501 = vpack.c.bf16 %v620, %v620
  %v1502 = vpack.c.bf16 %v648, %v640
  %v1503 = vpack.c.bf16 %v680, %v676
  %v1520 = vunpack.c.l.b16 %v1484
  %v1521 = vunpack.c.l.b16 %v1485
  %v1522 = vunpack.c.l.b16 %v1486
  %v1523 = vunpack.c.l.b16 %v1487
  %v1524 = vunpack.c.l.b16 %v1488
  %v1525 = vunpack.c.l.b16 %v1489
  %v1526 = vunpack.c.l.b16 %v1490
  %v1527 = vunpack.c.l.b16 %v1491
  %v1528 = vunpack.c.l.b16 %v1492
  %v1529 = vunpack.c.l.b16 %v1493
  %v1530 = vunpack.c.l.b16 %v1494
  %v1531 = vunpack.c.l.b16 %v1495
  %v1532 = vunpack.c.l.b16 %v1496
  %v1533 = vunpack.c.l.b16 %v1497
  %v1534 = vunpack.c.l.b16 %v1498
  %v1535 = vunpack.c.l.b16 %v1499
  %v1536 = vpack.c.b16 %v1521, %v1520
  %v1537 = vpack.c.b16 %v1523, %v1522
  %v1538 = vpack.c.b16 %v1525, %v1524
  %v1539 = vpack.c.b16 %v1527, %v1526
  %v1540 = vpack.c.b16 %v1529, %v1528
  %v1541 = vpack.c.b16 %v1531, %v1530
  %v1542 = vpack.c.b16 %v1533, %v1532
  %v1543 = vpack.c.b16 %v1535, %v1534
  %1552 = vmatpush.bf16.msra.mxu0 %v1543
  %1553 = vmatpush.bf16.msra.mxu0 %v1542
  %1554 = vmatpush.bf16.msra.mxu0 %v1541
  %1555 = vmatpush.bf16.msra.mxu0 %v1540
  %1556 = vmatpush.bf16.msra.mxu0 %v1539
  %1557 = vmatpush.bf16.msra.mxu0 %v1538
  %1558 = vmatpush.bf16.msra.mxu0 %v1537
  %1559 = vmatpush.bf16.msra.mxu0 %v1536
  %1560 = vmatmul.bf16.gmra.mxu0 %v701
  %v1561 = vpop.f32.mrf.mxu0
  %v1562 = vadd.f32 0.0, %v1561
  %v1563 = vpop.f32.mrf.mxu0
  %v1564 = vadd.f32 0.0, %v1563
  %1565 = vmatmul.bf16.gmra.mxu0 %v730
  %v1566 = vpop.f32.mrf.mxu0
  %v1567 = vadd.f32 0.0, %v1566
  %v1568 = vpop.f32.mrf.mxu0
  %v1569 = vadd.f32 0.0, %v1568
  %1570 = vmatmul.bf16.gmra.mxu0 %v1500
  %v1571 = vpop.f32.mrf.mxu0
  %v1572 = vadd.f32 0.0, %v1571
  %v1573 = vpop.f32.mrf.mxu0
  %v1574 = vadd.f32 0.0, %v1573
  %1575 = vmatmul.bf16.gmra.mxu0 %v732
  %v1576 = vpop.f32.mrf.mxu0
  %v1577 = vadd.f32 0.0, %v1576
  %v1578 = vpop.f32.mrf.mxu0
  %v1579 = vadd.f32 0.0, %v1578
  %1580 = vmatmul.bf16.gmra.mxu0 %v1501
  %v1581 = vpop.f32.mrf.mxu0
  %v1582 = vadd.f32 0.0, %v1581
  %v1583 = vpop.f32.mrf.mxu0
  %v1584 = vadd.f32 0.0, %v1583
  %1585 = vmatmul.bf16.gmra.mxu0 %v734
  %v1586 = vpop.f32.mrf.mxu0
  %v1587 = vadd.f32 0.0, %v1586
  %v1588 = vpop.f32.mrf.mxu0
  %v1589 = vadd.f32 0.0, %v1588
  %1590 = vmatmul.bf16.gmra.mxu0 %v735
  %v1591 = vpop.f32.mrf.mxu0
  %v1592 = vadd.f32 0.0, %v1591
  %v1593 = vpop.f32.mrf.mxu0
  %v1594 = vadd.f32 0.0, %v1593
  %1595 = vmatmul.bf16.gmra.mxu0 %v1502
  %v1596 = vpop.f32.mrf.mxu0
  %v1597 = vadd.f32 0.0, %v1596
  %v1598 = vpop.f32.mrf.mxu0
  %v1599 = vadd.f32 0.0, %v1598
  %1600 = vmatmul.bf16.gmra.mxu0 %v737
  %v1601 = vpop.f32.mrf.mxu0
  %v1602 = vadd.f32 0.0, %v1601
  %v1603 = vpop.f32.mrf.mxu0
  %v1604 = vadd.f32 0.0, %v1603
  %1605 = vmatmul.bf16.gmra.mxu0 %v738
  %v1606 = vpop.f32.mrf.mxu0
  %v1607 = vadd.f32 0.0, %v1606
  %v1608 = vpop.f32.mrf.mxu0
  %v1609 = vadd.f32 0.0, %v1608
  %1610 = vmatmul.bf16.gmra.mxu0 %v1169
  %v1611 = vpop.f32.mrf.mxu0
  %v1612 = vadd.f32 0.0, %v1611
  %v1613 = vpop.f32.mrf.mxu0
  %v1614 = vadd.f32 0.0, %v1613
  %1615 = vmatmul.bf16.gmra.mxu0 %v1503
  %v1616 = vpop.f32.mrf.mxu0
  %v1617 = vadd.f32 0.0, %v1616
  %v1618 = vpop.f32.mrf.mxu0
  %v1619 = vadd.f32 0.0, %v1618
  %1620 = vmatmul.bf16.gmra.mxu0 %v1337
  %v1621 = vpop.f32.mrf.mxu0
  %v1622 = vadd.f32 0.0, %v1621
  %v1623 = vpop.f32.mrf.mxu0
  %1624 = vdwg.mxu0
  %v1625 = vadd.f32 %v1459, %v1562
  %v1626 = vadd.f32 %v1460, %v1564
  %v1627 = vadd.f32 %v1461, %v1567
  %v1628 = vadd.f32 %v1462, %v1569
  %v1629 = vadd.f32 %v1463, %v1572
  %v1630 = vadd.f32 %v1464, %v1574
  %v1631 = vadd.f32 %v1465, %v1577
  %v1632 = vadd.f32 %v1466, %v1579
  %v1633 = vadd.f32 %v1467, %v1582
  %v1634 = vadd.f32 %v1468, %v1584
  %v1635 = vadd.f32 %v1469, %v1587
  %v1636 = vadd.f32 %v1470, %v1589
  %v1637 = vadd.f32 %v1471, %v1592
  %v1638 = vadd.f32 %v1472, %v1594
  %v1639 = vadd.f32 %v1473, %v1597
  %v1640 = vadd.f32 %v1474, %v1599
  %v1641 = vadd.f32 %v1475, %v1602
  %v1642 = vadd.f32 %v1476, %v1604
  %v1643 = vadd.f32 %v1477, %v1607
  %v1644 = vadd.f32 %v1478, %v1609
  %v1645 = vadd.f32 %v1479, %v1612
  %v1646 = vadd.f32 %v1480, %v1614
  %v1647 = vadd.f32 %v1481, %v1617
  %v1648 = vadd.f32 %v1482, %v1619
  %v1649 = vadd.f32 %v1483, %v1622
  %v1650 = vld [vmem:[%s1 + $0x180] sm:$0xf]
  %v1651 = vld [vmem:[%s1 + $0x184] sm:$0xf]
  %v1652 = vld [vmem:[%s1 + $0x188] sm:$0xf]
  %v1653 = vld [vmem:[%s1 + $0x18c] sm:$0xf]
  %v1654 = vld [vmem:[%s1 + $0x190] sm:$0xf]
  %v1655 = vld [vmem:[%s1 + $0x194] sm:$0xf]
  %v1656 = vld [vmem:[%s1 + $0x198] sm:$0xf]
  %v1657 = vld [vmem:[%s1 + $0x19c] sm:$0xf]
  %v1658 = vld [vmem:[%s1 + $0x1a0] sm:$0xf]
  %v1659 = vld [vmem:[%s1 + $0x1a4] sm:$0xf]
  %v1660 = vld [vmem:[%s1 + $0x1a8] sm:$0xf]
  %v1661 = vld [vmem:[%s1 + $0x1ac] sm:$0xf]
  %v1662 = vld [vmem:[%s1 + $0x1b0] sm:$0xf]
  %v1663 = vld [vmem:[%s1 + $0x1b4] sm:$0xf]
  %v1664 = vld [vmem:[%s1 + $0x1b8] sm:$0xf]
  %v1665 = vld [vmem:[%s1 + $0x1bc] sm:$0xf]
  %v1666 = vpack.c.bf16 %v664, %v656
  %v1683 = vunpack.c.l.b16 %v1650
  %v1684 = vunpack.c.l.b16 %v1651
  %v1685 = vunpack.c.l.b16 %v1652
  %v1686 = vunpack.c.l.b16 %v1653
  %v1687 = vunpack.c.l.b16 %v1654
  %v1688 = vunpack.c.l.b16 %v1655
  %v1689 = vunpack.c.l.b16 %v1656
  %v1690 = vunpack.c.l.b16 %v1657
  %v1691 = vunpack.c.l.b16 %v1658
  %v1692 = vunpack.c.l.b16 %v1659
  %v1693 = vunpack.c.l.b16 %v1660
  %v1694 = vunpack.c.l.b16 %v1661
  %v1695 = vunpack.c.l.b16 %v1662
  %v1696 = vunpack.c.l.b16 %v1663
  %v1697 = vunpack.c.l.b16 %v1664
  %v1698 = vunpack.c.l.b16 %v1665
  %v1699 = vpack.c.b16 %v1684, %v1683
  %v1700 = vpack.c.b16 %v1686, %v1685
  %v1701 = vpack.c.b16 %v1688, %v1687
  %v1702 = vpack.c.b16 %v1690, %v1689
  %v1703 = vpack.c.b16 %v1692, %v1691
  %v1704 = vpack.c.b16 %v1694, %v1693
  %v1705 = vpack.c.b16 %v1696, %v1695
  %v1706 = vpack.c.b16 %v1698, %v1697
  %1715 = vmatpush.bf16.msra.mxu0 %v1706
  %1716 = vmatpush.bf16.msra.mxu0 %v1705
  %1717 = vmatpush.bf16.msra.mxu0 %v1704
  %1718 = vmatpush.bf16.msra.mxu0 %v1703
  %1719 = vmatpush.bf16.msra.mxu0 %v1702
  %1720 = vmatpush.bf16.msra.mxu0 %v1701
  %1721 = vmatpush.bf16.msra.mxu0 %v1700
  %1722 = vmatpush.bf16.msra.mxu0 %v1699
  %1723 = vmatmul.bf16.gmra.mxu0 %v705
  %v1724 = vpop.f32.mrf.mxu0
  %v1725 = vadd.f32 0.0, %v1724
  %v1726 = vpop.f32.mrf.mxu0
  %v1727 = vadd.f32 0.0, %v1726
  %1728 = vmatmul.bf16.gmra.mxu0 %v706
  %v1729 = vpop.f32.mrf.mxu0
  %v1730 = vadd.f32 0.0, %v1729
  %v1731 = vpop.f32.mrf.mxu0
  %v1732 = vadd.f32 0.0, %v1731
  %1733 = vmatmul.bf16.gmra.mxu0 %v707
  %v1734 = vpop.f32.mrf.mxu0
  %v1735 = vadd.f32 0.0, %v1734
  %v1736 = vpop.f32.mrf.mxu0
  %v1737 = vadd.f32 0.0, %v1736
  %1738 = vmatmul.bf16.gmra.mxu0 %v708
  %v1739 = vpop.f32.mrf.mxu0
  %v1740 = vadd.f32 0.0, %v1739
  %v1741 = vpop.f32.mrf.mxu0
  %v1742 = vadd.f32 0.0, %v1741
  %1743 = vmatmul.bf16.gmra.mxu0 %v709
  %v1744 = vpop.f32.mrf.mxu0
  %v1745 = vadd.f32 0.0, %v1744
  %v1746 = vpop.f32.mrf.mxu0
  %v1747 = vadd.f32 0.0, %v1746
  %1748 = vmatmul.bf16.gmra.mxu0 %v710
  %v1749 = vpop.f32.mrf.mxu0
  %v1750 = vadd.f32 0.0, %v1749
  %v1751 = vpop.f32.mrf.mxu0
  %v1752 = vadd.f32 0.0, %v1751
  %1753 = vmatmul.bf16.gmra.mxu0 %v711
  %v1754 = vpop.f32.mrf.mxu0
  %v1755 = vadd.f32 0.0, %v1754
  %v1756 = vpop.f32.mrf.mxu0
  %v1757 = vadd.f32 0.0, %v1756
  %1758 = vmatmul.bf16.gmra.mxu0 %v1666
  %v1759 = vpop.f32.mrf.mxu0
  %v1760 = vadd.f32 0.0, %v1759
  %v1761 = vpop.f32.mrf.mxu0
  %v1762 = vadd.f32 0.0, %v1761
  %1763 = vmatmul.bf16.gmra.mxu0 %v1335
  %v1764 = vpop.f32.mrf.mxu0
  %v1765 = vadd.f32 0.0, %v1764
  %v1766 = vpop.f32.mrf.mxu0
  %v1767 = vadd.f32 0.0, %v1766
  %1768 = vmatmul.bf16.gmra.mxu0 %v1336
  %v1769 = vpop.f32.mrf.mxu0
  %v1770 = vadd.f32 0.0, %v1769
  %v1771 = vpop.f32.mrf.mxu0
  %v1772 = vadd.f32 0.0, %v1771
  %1773 = vmatmul.bf16.gmra.mxu0 %v1168
  %v1774 = vpop.f32.mrf.mxu0
  %v1775 = vadd.f32 0.0, %v1774
  %v1776 = vpop.f32.mrf.mxu0
  %v1777 = vadd.f32 0.0, %v1776
  %1778 = vmatmul.bf16.gmra.mxu0 %v1169
  %v1779 = vpop.f32.mrf.mxu0
  %v1780 = vadd.f32 0.0, %v1779
  %v1781 = vpop.f32.mrf.mxu0
  %v1782 = vadd.f32 0.0, %v1781
  %1783 = vmatmul.bf16.gmra.mxu0 %v1170
  %v1784 = vpop.f32.mrf.mxu0
  %v1785 = vadd.f32 0.0, %v1784
  %v1786 = vpop.f32.mrf.mxu0
  %1787 = vdwg.mxu0
  %v1788 = vadd.f32 %v1625, %v1725
  %v1789 = vadd.f32 %v1626, %v1727
  %v1790 = vadd.f32 %v1627, %v1730
  %v1791 = vadd.f32 %v1628, %v1732
  %v1792 = vadd.f32 %v1629, %v1735
  %v1793 = vadd.f32 %v1630, %v1737
  %v1794 = vadd.f32 %v1631, %v1740
  %v1795 = vadd.f32 %v1632, %v1742
  %v1796 = vadd.f32 %v1633, %v1745
  %v1797 = vadd.f32 %v1634, %v1747
  %v1798 = vadd.f32 %v1635, %v1750
  %v1799 = vadd.f32 %v1636, %v1752
  %v1800 = vadd.f32 %v1637, %v1755
  %v1801 = vadd.f32 %v1638, %v1757
  %v1802 = vadd.f32 %v1639, %v1760
  %v1803 = vadd.f32 %v1640, %v1762
  %v1804 = vadd.f32 %v1641, %v1765
  %v1805 = vadd.f32 %v1642, %v1767
  %v1806 = vadd.f32 %v1643, %v1770
  %v1807 = vadd.f32 %v1644, %v1772
  %v1808 = vadd.f32 %v1645, %v1775
  %v1809 = vadd.f32 %v1646, %v1777
  %v1810 = vadd.f32 %v1647, %v1780
  %v1811 = vadd.f32 %v1648, %v1782
  %v1812 = vadd.f32 %v1649, %v1785
  %v1813 = vld [vmem:[%s1 + $0x1c0] sm:$0xf]
  %v1814 = vld [vmem:[%s1 + $0x1c4] sm:$0xf]
  %v1815 = vld [vmem:[%s1 + $0x1c8] sm:$0xf]
  %v1816 = vld [vmem:[%s1 + $0x1cc] sm:$0xf]
  %v1817 = vld [vmem:[%s1 + $0x1d0] sm:$0xf]
  %v1818 = vld [vmem:[%s1 + $0x1d4] sm:$0xf]
  %v1819 = vld [vmem:[%s1 + $0x1d8] sm:$0xf]
  %v1820 = vld [vmem:[%s1 + $0x1dc] sm:$0xf]
  %v1821 = vld [vmem:[%s1 + $0x1e0] sm:$0xf]
  %v1822 = vld [vmem:[%s1 + $0x1e4] sm:$0xf]
  %v1823 = vld [vmem:[%s1 + $0x1e8] sm:$0xf]
  %v1824 = vld [vmem:[%s1 + $0x1ec] sm:$0xf]
  %v1825 = vld [vmem:[%s1 + $0x1f0] sm:$0xf]
  %v1826 = vld [vmem:[%s1 + $0x1f4] sm:$0xf]
  %v1827 = vld [vmem:[%s1 + $0x1f8] sm:$0xf]
  %v1828 = vld [vmem:[%s1 + $0x1fc] sm:$0xf]
  %v1829 = vpack.c.bf16 %v664, %v660
  %v1846 = vunpack.c.l.b16 %v1813
  %v1847 = vunpack.c.l.b16 %v1814
  %v1848 = vunpack.c.l.b16 %v1815
  %v1849 = vunpack.c.l.b16 %v1816
  %v1850 = vunpack.c.l.b16 %v1817
  %v1851 = vunpack.c.l.b16 %v1818
  %v1852 = vunpack.c.l.b16 %v1819
  %v1853 = vunpack.c.l.b16 %v1820
  %v1854 = vunpack.c.l.b16 %v1821
  %v1855 = vunpack.c.l.b16 %v1822
  %v1856 = vunpack.c.l.b16 %v1823
  %v1857 = vunpack.c.l.b16 %v1824
  %v1858 = vunpack.c.l.b16 %v1825
  %v1859 = vunpack.c.l.b16 %v1826
  %v1860 = vunpack.c.l.b16 %v1827
  %v1861 = vunpack.c.l.b16 %v1828
  %v1862 = vpack.c.b16 %v1847, %v1846
  %v1863 = vpack.c.b16 %v1849, %v1848
  %v1864 = vpack.c.b16 %v1851, %v1850
  %v1865 = vpack.c.b16 %v1853, %v1852
  %v1866 = vpack.c.b16 %v1855, %v1854
  %v1867 = vpack.c.b16 %v1857, %v1856
  %v1868 = vpack.c.b16 %v1859, %v1858
  %v1869 = vpack.c.b16 %v1861, %v1860
  %1878 = vmatpush.bf16.msra.mxu0 %v1869
  %1879 = vmatpush.bf16.msra.mxu0 %v1868
  %1880 = vmatpush.bf16.msra.mxu0 %v1867
  %1881 = vmatpush.bf16.msra.mxu0 %v1866
  %1882 = vmatpush.bf16.msra.mxu0 %v1865
  %1883 = vmatpush.bf16.msra.mxu0 %v1864
  %1884 = vmatpush.bf16.msra.mxu0 %v1863
  %1885 = vmatpush.bf16.msra.mxu0 %v1862
  %1886 = vmatmul.bf16.gmra.mxu0 %v731
  %v1887 = vpop.f32.mrf.mxu0
  %v1888 = vadd.f32 0.0, %v1887
  %v1889 = vpop.f32.mrf.mxu0
  %v1890 = vadd.f32 0.0, %v1889
  %1891 = vmatmul.bf16.gmra.mxu0 %v732
  %v1892 = vpop.f32.mrf.mxu0
  %v1893 = vadd.f32 0.0, %v1892
  %v1894 = vpop.f32.mrf.mxu0
  %v1895 = vadd.f32 0.0, %v1894
  %1896 = vmatmul.bf16.gmra.mxu0 %v733
  %v1897 = vpop.f32.mrf.mxu0
  %v1898 = vadd.f32 0.0, %v1897
  %v1899 = vpop.f32.mrf.mxu0
  %v1900 = vadd.f32 0.0, %v1899
  %1901 = vmatmul.bf16.gmra.mxu0 %v734
  %v1902 = vpop.f32.mrf.mxu0
  %v1903 = vadd.f32 0.0, %v1902
  %v1904 = vpop.f32.mrf.mxu0
  %v1905 = vadd.f32 0.0, %v1904
  %1906 = vmatmul.bf16.gmra.mxu0 %v735
  %v1907 = vpop.f32.mrf.mxu0
  %v1908 = vadd.f32 0.0, %v1907
  %v1909 = vpop.f32.mrf.mxu0
  %v1910 = vadd.f32 0.0, %v1909
  %1911 = vmatmul.bf16.gmra.mxu0 %v736
  %v1912 = vpop.f32.mrf.mxu0
  %v1913 = vadd.f32 0.0, %v1912
  %v1914 = vpop.f32.mrf.mxu0
  %v1915 = vadd.f32 0.0, %v1914
  %1916 = vmatmul.bf16.gmra.mxu0 %v737
  %v1917 = vpop.f32.mrf.mxu0
  %v1918 = vadd.f32 0.0, %v1917
  %v1919 = vpop.f32.mrf.mxu0
  %v1920 = vadd.f32 0.0, %v1919
  %1921 = vmatmul.bf16.gmra.mxu0 %v1829
  %v1922 = vpop.f32.mrf.mxu0
  %v1923 = vadd.f32 0.0, %v1922
  %v1924 = vpop.f32.mrf.mxu0
  %v1925 = vadd.f32 0.0, %v1924
  %1926 = vmatmul.bf16.gmra.mxu0 %v1169
  %v1927 = vpop.f32.mrf.mxu0
  %v1928 = vadd.f32 0.0, %v1927
  %v1929 = vpop.f32.mrf.mxu0
  %v1930 = vadd.f32 0.0, %v1929
  %1931 = vmatmul.bf16.gmra.mxu0 %v1503
  %v1932 = vpop.f32.mrf.mxu0
  %v1933 = vadd.f32 0.0, %v1932
  %v1934 = vpop.f32.mrf.mxu0
  %v1935 = vadd.f32 0.0, %v1934
  %1936 = vmatmul.bf16.gmra.mxu0 %v1335
  %v1937 = vpop.f32.mrf.mxu0
  %v1938 = vadd.f32 0.0, %v1937
  %v1939 = vpop.f32.mrf.mxu0
  %v1940 = vadd.f32 0.0, %v1939
  %1941 = vmatmul.bf16.gmra.mxu0 %v1336
  %v1942 = vpop.f32.mrf.mxu0
  %v1943 = vadd.f32 0.0, %v1942
  %v1944 = vpop.f32.mrf.mxu0
  %v1945 = vadd.f32 0.0, %v1944
  %1946 = vmatmul.bf16.gmra.mxu0 %v1337
  %v1947 = vpop.f32.mrf.mxu0
  %v1948 = vadd.f32 0.0, %v1947
  %v1949 = vpop.f32.mrf.mxu0
  %1950 = vdwg.mxu0
  %v1951 = vadd.f32 %v1788, %v1888
  %v1952 = vadd.f32 %v1789, %v1890
  %v1953 = vadd.f32 %v1790, %v1893
  %v1954 = vadd.f32 %v1791, %v1895
  %v1955 = vadd.f32 %v1792, %v1898
  %v1956 = vadd.f32 %v1793, %v1900
  %v1957 = vadd.f32 %v1794, %v1903
  %v1958 = vadd.f32 %v1795, %v1905
  %v1959 = vadd.f32 %v1796, %v1908
  %v1960 = vadd.f32 %v1797, %v1910
  %v1961 = vadd.f32 %v1798, %v1913
  %v1962 = vadd.f32 %v1799, %v1915
  %v1963 = vadd.f32 %v1800, %v1918
  %v1964 = vadd.f32 %v1801, %v1920
  %v1965 = vadd.f32 %v1802, %v1923
  %v1966 = vadd.f32 %v1803, %v1925
  %v1967 = vadd.f32 %v1804, %v1928
  %v1968 = vadd.f32 %v1805, %v1930
  %v1969 = vadd.f32 %v1806, %v1933
  %v1970 = vadd.f32 %v1807, %v1935
  %v1971 = vadd.f32 %v1808, %v1938
  %v1972 = vadd.f32 %v1809, %v1940
  %v1973 = vadd.f32 %v1810, %v1943
  %v1974 = vadd.f32 %v1811, %v1945
  %v1975 = vadd.f32 %v1812, %v1948
  %v1976 = vld [vmem:[%s1 + $0x200] sm:$0xf]
  %v1977 = vld [vmem:[%s1 + $0x204] sm:$0xf]
  %v1978 = vld [vmem:[%s1 + $0x208] sm:$0xf]
  %v1979 = vld [vmem:[%s1 + $0x20c] sm:$0xf]
  %v1980 = vld [vmem:[%s1 + $0x210] sm:$0xf]
  %v1981 = vld [vmem:[%s1 + $0x214] sm:$0xf]
  %v1982 = vld [vmem:[%s1 + $0x218] sm:$0xf]
  %v1983 = vld [vmem:[%s1 + $0x21c] sm:$0xf]
  %v1984 = vld [vmem:[%s1 + $0x220] sm:$0xf]
  %v1985 = vld [vmem:[%s1 + $0x224] sm:$0xf]
  %v1986 = vld [vmem:[%s1 + $0x228] sm:$0xf]
  %v1987 = vld [vmem:[%s1 + $0x22c] sm:$0xf]
  %v1988 = vld [vmem:[%s1 + $0x230] sm:$0xf]
  %v1989 = vld [vmem:[%s1 + $0x234] sm:$0xf]
  %v1990 = vld [vmem:[%s1 + $0x238] sm:$0xf]
  %v1991 = vld [vmem:[%s1 + $0x23c] sm:$0xf]
  %v1992 = vpack.c.bf16 %v668, %v660
  %v2009 = vunpack.c.l.b16 %v1976
  %v2010 = vunpack.c.l.b16 %v1977
  %v2011 = vunpack.c.l.b16 %v1978
  %v2012 = vunpack.c.l.b16 %v1979
  %v2013 = vunpack.c.l.b16 %v1980
  %v2014 = vunpack.c.l.b16 %v1981
  %v2015 = vunpack.c.l.b16 %v1982
  %v2016 = vunpack.c.l.b16 %v1983
  %v2017 = vunpack.c.l.b16 %v1984
  %v2018 = vunpack.c.l.b16 %v1985
  %v2019 = vunpack.c.l.b16 %v1986
  %v2020 = vunpack.c.l.b16 %v1987
  %v2021 = vunpack.c.l.b16 %v1988
  %v2022 = vunpack.c.l.b16 %v1989
  %v2023 = vunpack.c.l.b16 %v1990
  %v2024 = vunpack.c.l.b16 %v1991
  %v2025 = vpack.c.b16 %v2010, %v2009
  %v2026 = vpack.c.b16 %v2012, %v2011
  %v2027 = vpack.c.b16 %v2014, %v2013
  %v2028 = vpack.c.b16 %v2016, %v2015
  %v2029 = vpack.c.b16 %v2018, %v2017
  %v2030 = vpack.c.b16 %v2020, %v2019
  %v2031 = vpack.c.b16 %v2022, %v2021
  %v2032 = vpack.c.b16 %v2024, %v2023
  %2041 = vmatpush.bf16.msra.mxu0 %v2032
  %2042 = vmatpush.bf16.msra.mxu0 %v2031
  %2043 = vmatpush.bf16.msra.mxu0 %v2030
  %2044 = vmatpush.bf16.msra.mxu0 %v2029
  %2045 = vmatpush.bf16.msra.mxu0 %v2028
  %2046 = vmatpush.bf16.msra.mxu0 %v2027
  %2047 = vmatpush.bf16.msra.mxu0 %v2026
  %2048 = vmatpush.bf16.msra.mxu0 %v2025
  %2049 = vmatmul.bf16.gmra.mxu0 %v706
  %v2050 = vpop.f32.mrf.mxu0
  %v2051 = vadd.f32 0.0, %v2050
  %v2052 = vpop.f32.mrf.mxu0
  %v2053 = vadd.f32 0.0, %v2052
  %2054 = vmatmul.bf16.gmra.mxu0 %v999
  %v2055 = vpop.f32.mrf.mxu0
  %v2056 = vadd.f32 0.0, %v2055
  %v2057 = vpop.f32.mrf.mxu0
  %v2058 = vadd.f32 0.0, %v2057
  %2059 = vmatmul.bf16.gmra.mxu0 %v1000
  %v2060 = vpop.f32.mrf.mxu0
  %v2061 = vadd.f32 0.0, %v2060
  %v2062 = vpop.f32.mrf.mxu0
  %v2063 = vadd.f32 0.0, %v2062
  %2064 = vmatmul.bf16.gmra.mxu0 %v709
  %v2065 = vpop.f32.mrf.mxu0
  %v2066 = vadd.f32 0.0, %v2065
  %v2067 = vpop.f32.mrf.mxu0
  %v2068 = vadd.f32 0.0, %v2067
  %2069 = vmatmul.bf16.gmra.mxu0 %v1001
  %v2070 = vpop.f32.mrf.mxu0
  %v2071 = vadd.f32 0.0, %v2070
  %v2072 = vpop.f32.mrf.mxu0
  %v2073 = vadd.f32 0.0, %v2072
  %2074 = vmatmul.bf16.gmra.mxu0 %v711
  %v2075 = vpop.f32.mrf.mxu0
  %v2076 = vadd.f32 0.0, %v2075
  %v2077 = vpop.f32.mrf.mxu0
  %v2078 = vadd.f32 0.0, %v2077
  %2079 = vmatmul.bf16.gmra.mxu0 %v1002
  %v2080 = vpop.f32.mrf.mxu0
  %v2081 = vadd.f32 0.0, %v2080
  %v2082 = vpop.f32.mrf.mxu0
  %v2083 = vadd.f32 0.0, %v2082
  %2084 = vmatmul.bf16.gmra.mxu0 %v1992
  %v2085 = vpop.f32.mrf.mxu0
  %v2086 = vadd.f32 0.0, %v2085
  %v2087 = vpop.f32.mrf.mxu0
  %v2088 = vadd.f32 0.0, %v2087
  %2089 = vmatmul.bf16.gmra.mxu0 %v1336
  %v2090 = vpop.f32.mrf.mxu0
  %v2091 = vadd.f32 0.0, %v2090
  %v2092 = vpop.f32.mrf.mxu0
  %v2093 = vadd.f32 0.0, %v2092
  %2094 = vmatmul.bf16.gmra.mxu0 %v1337
  %v2095 = vpop.f32.mrf.mxu0
  %v2096 = vadd.f32 0.0, %v2095
  %v2097 = vpop.f32.mrf.mxu0
  %v2098 = vadd.f32 0.0, %v2097
  %2099 = vmatmul.bf16.gmra.mxu0 %v1169
  %v2100 = vpop.f32.mrf.mxu0
  %v2101 = vadd.f32 0.0, %v2100
  %v2102 = vpop.f32.mrf.mxu0
  %v2103 = vadd.f32 0.0, %v2102
  %2104 = vmatmul.bf16.gmra.mxu0 %v1503
  %v2105 = vpop.f32.mrf.mxu0
  %v2106 = vadd.f32 0.0, %v2105
  %v2107 = vpop.f32.mrf.mxu0
  %v2108 = vadd.f32 0.0, %v2107
  %2109 = vmatmul.bf16.gmra.mxu0 %v1337
  %v2110 = vpop.f32.mrf.mxu0
  %v2111 = vadd.f32 0.0, %v2110
  %v2112 = vpop.f32.mrf.mxu0
  %2113 = vdwg.mxu0
  %v2114 = vadd.f32 %v1951, %v2051
  %v2115 = vadd.f32 %v1952, %v2053
  %v2116 = vadd.f32 %v1953, %v2056
  %v2117 = vadd.f32 %v1954, %v2058
  %v2118 = vadd.f32 %v1955, %v2061
  %v2119 = vadd.f32 %v1956, %v2063
  %v2120 = vadd.f32 %v1957, %v2066
  %v2121 = vadd.f32 %v1958, %v2068
  %v2122 = vadd.f32 %v1959, %v2071
  %v2123 = vadd.f32 %v1960, %v2073
  %v2124 = vadd.f32 %v1961, %v2076
  %v2125 = vadd.f32 %v1962, %v2078
  %v2126 = vadd.f32 %v1963, %v2081
  %v2127 = vadd.f32 %v1964, %v2083
  %v2128 = vadd.f32 %v1965, %v2086
  %v2129 = vadd.f32 %v1966, %v2088
  %v2130 = vadd.f32 %v1967, %v2091
  %v2131 = vadd.f32 %v1968, %v2093
  %v2132 = vadd.f32 %v1969, %v2096
  %v2133 = vadd.f32 %v1970, %v2098
  %v2134 = vadd.f32 %v1971, %v2101
  %v2135 = vadd.f32 %v1972, %v2103
  %v2136 = vadd.f32 %v1973, %v2106
  %v2137 = vadd.f32 %v1974, %v2108
  %v2138 = vadd.f32 %v1975, %v2111
  %v2139 = vperm.slane %v681, 0
  %v2140 = vmul.f32 %v2114, %v2139
  %v2141 = vmul.f32 %v2115, %v2139
  %v2142 = vmul.f32 %v2116, %v2139
  %v2143 = vmul.f32 %v2117, %v2139
  %v2144 = vmul.f32 %v2118, %v2139
  %v2145 = vmul.f32 %v2119, %v2139
  %v2146 = vmul.f32 %v2120, %v2139
  %v2147 = vmul.f32 %v2121, %v2139
  %v2148 = vmul.f32 %v2122, %v2139
  %v2149 = vmul.f32 %v2123, %v2139
  %v2150 = vmul.f32 %v2124, %v2139
  %v2151 = vmul.f32 %v2125, %v2139
  %v2152 = vmul.f32 %v2126, %v2139
  %v2153 = vmul.f32 %v2127, %v2139
  %v2154 = vmul.f32 %v2128, %v2139
  %v2155 = vmul.f32 %v2129, %v2139
  %v2156 = vmul.f32 %v2130, %v2139
  %v2157 = vmul.f32 %v2131, %v2139
  %v2158 = vmul.f32 %v2132, %v2139
  %v2159 = vmul.f32 %v2133, %v2139
  %v2160 = vmul.f32 %v2134, %v2139
  %v2161 = vmul.f32 %v2135, %v2139
  %v2162 = vmul.f32 %v2136, %v2139
  %v2163 = vmul.f32 %v2137, %v2139
  %v2164 = vmul.f32 %v2138, %v2139
  %v2165 = vperm.slane %v682, 0
  %v2166 = vadd.f32 %v2140, %v2165
  %v2167 = vadd.f32 %v2141, %v2165
  %v2168 = vadd.f32 %v2142, %v2165
  %v2169 = vadd.f32 %v2143, %v2165
  %v2170 = vadd.f32 %v2144, %v2165
  %v2171 = vadd.f32 %v2145, %v2165
  %v2172 = vadd.f32 %v2146, %v2165
  %v2173 = vadd.f32 %v2147, %v2165
  %v2174 = vadd.f32 %v2148, %v2165
  %v2175 = vadd.f32 %v2149, %v2165
  %v2176 = vadd.f32 %v2150, %v2165
  %v2177 = vadd.f32 %v2151, %v2165
  %v2178 = vadd.f32 %v2152, %v2165
  %v2179 = vadd.f32 %v2153, %v2165
  %v2180 = vadd.f32 %v2154, %v2165
  %v2181 = vadd.f32 %v2155, %v2165
  %v2182 = vadd.f32 %v2156, %v2165
  %v2183 = vadd.f32 %v2157, %v2165
  %v2184 = vadd.f32 %v2158, %v2165
  %v2185 = vadd.f32 %v2159, %v2165
  %v2186 = vadd.f32 %v2160, %v2165
  %v2187 = vadd.f32 %v2161, %v2165
  %v2188 = vadd.f32 %v2162, %v2165
  %v2189 = vadd.f32 %v2163, %v2165
  %v2190 = vadd.f32 %v2164, %v2165
  %vm2191 = vcmp.ge.f32.partialorder %v2166, 0.0
  %vm2192 = vcmp.ge.f32.partialorder %v2167, 0.0
  %vm2193 = vcmp.ge.f32.partialorder %v2168, 0.0
  %vm2194 = vcmp.ge.f32.partialorder %v2169, 0.0
  %vm2195 = vcmp.ge.f32.partialorder %v2170, 0.0
  %vm2196 = vcmp.ge.f32.partialorder %v2171, 0.0
  %vm2197 = vcmp.ge.f32.partialorder %v2172, 0.0
  %vm2198 = vcmp.ge.f32.partialorder %v2173, 0.0
  %vm2199 = vcmp.ge.f32.partialorder %v2174, 0.0
  %vm2200 = vcmp.ge.f32.partialorder %v2175, 0.0
  %vm2201 = vcmp.ge.f32.partialorder %v2176, 0.0
  %vm2202 = vcmp.ge.f32.partialorder %v2177, 0.0
  %vm2203 = vcmp.ge.f32.partialorder %v2178, 0.0
  %vm2204 = vcmp.ge.f32.partialorder %v2179, 0.0
  %vm2205 = vcmp.ge.f32.partialorder %v2180, 0.0
  %vm2206 = vcmp.ge.f32.partialorder %v2181, 0.0
  %vm2207 = vcmp.ge.f32.partialorder %v2182, 0.0
  %vm2208 = vcmp.ge.f32.partialorder %v2183, 0.0
  %vm2209 = vcmp.ge.f32.partialorder %v2184, 0.0
  %vm2210 = vcmp.ge.f32.partialorder %v2185, 0.0
  %vm2211 = vcmp.ge.f32.partialorder %v2186, 0.0
  %vm2212 = vcmp.ge.f32.partialorder %v2187, 0.0
  %vm2213 = vcmp.ge.f32.partialorder %v2188, 0.0
  %vm2214 = vcmp.ge.f32.partialorder %v2189, 0.0
  %vm2215 = vcmp.ge.f32.partialorder %v2190, 0.0
  %v2216 = vperm.slane %v683, 0
  %v2217 = vmul.f32 %v2166, %v2216
  %v2218 = vmul.f32 %v2167, %v2216
  %v2219 = vmul.f32 %v2168, %v2216
  %v2220 = vmul.f32 %v2169, %v2216
  %v2221 = vmul.f32 %v2170, %v2216
  %v2222 = vmul.f32 %v2171, %v2216
  %v2223 = vmul.f32 %v2172, %v2216
  %v2224 = vmul.f32 %v2173, %v2216
  %v2225 = vmul.f32 %v2174, %v2216
  %v2226 = vmul.f32 %v2175, %v2216
  %v2227 = vmul.f32 %v2176, %v2216
  %v2228 = vmul.f32 %v2177, %v2216
  %v2229 = vmul.f32 %v2178, %v2216
  %v2230 = vmul.f32 %v2179, %v2216
  %v2231 = vmul.f32 %v2180, %v2216
  %v2232 = vmul.f32 %v2181, %v2216
  %v2233 = vmul.f32 %v2182, %v2216
  %v2234 = vmul.f32 %v2183, %v2216
  %v2235 = vmul.f32 %v2184, %v2216
  %v2236 = vmul.f32 %v2185, %v2216
  %v2237 = vmul.f32 %v2186, %v2216
  %v2238 = vmul.f32 %v2187, %v2216
  %v2239 = vmul.f32 %v2188, %v2216
  %v2240 = vmul.f32 %v2189, %v2216
  %v2241 = vmul.f32 %v2190, %v2216
  %v2242 = vsel %vm2191, %v2166, %v2217
  %v2243 = vsel %vm2192, %v2167, %v2218
  %v2244 = vsel %vm2193, %v2168, %v2219
  %v2245 = vsel %vm2194, %v2169, %v2220
  %v2246 = vsel %vm2195, %v2170, %v2221
  %v2247 = vsel %vm2196, %v2171, %v2222
  %v2248 = vsel %vm2197, %v2172, %v2223
  %v2249 = vsel %vm2198, %v2173, %v2224
  %v2250 = vsel %vm2199, %v2174, %v2225
  %v2251 = vsel %vm2200, %v2175, %v2226
  %v2252 = vsel %vm2201, %v2176, %v2227
  %v2253 = vsel %vm2202, %v2177, %v2228
  %v2254 = vsel %vm2203, %v2178, %v2229
  %v2255 = vsel %vm2204, %v2179, %v2230
  %v2256 = vsel %vm2205, %v2180, %v2231
  %v2257 = vsel %vm2206, %v2181, %v2232
  %v2258 = vsel %vm2207, %v2182, %v2233
  %v2259 = vsel %vm2208, %v2183, %v2234
  %v2260 = vsel %vm2209, %v2184, %v2235
  %v2261 = vsel %vm2210, %v2185, %v2236
  %v2262 = vsel %vm2211, %v2186, %v2237
  %v2263 = vsel %vm2212, %v2187, %v2238
  %v2264 = vsel %vm2213, %v2188, %v2239
  %v2265 = vsel %vm2214, %v2189, %v2240
  %v2266 = vsel %vm2215, %v2190, %v2241
  %v2267 = vld [vmem:[%s3 + $0x3] sm:$0x1]
  %v2268 = vld [vmem:[%s3 + $0x4] sm:$0x1]
  %v2269 = vld [vmem:[%s3 + $0x5] sm:$0x1]
  %v2270 = vld [vmem:[%s1 + $0x240] sm:$0xf]
  %v2271 = vld [vmem:[%s1 + $0x244] sm:$0xf]
  %v2272 = vld [vmem:[%s1 + $0x248] sm:$0xf]
  %v2273 = vld [vmem:[%s1 + $0x24c] sm:$0xf]
  %v2274 = vld [vmem:[%s1 + $0x250] sm:$0xf]
  %v2275 = vld [vmem:[%s1 + $0x254] sm:$0xf]
  %v2276 = vld [vmem:[%s1 + $0x258] sm:$0xf]
  %v2277 = vld [vmem:[%s1 + $0x25c] sm:$0xf]
  %v2278 = vld [vmem:[%s1 + $0x260] sm:$0xf]
  %v2279 = vld [vmem:[%s1 + $0x264] sm:$0xf]
  %v2280 = vld [vmem:[%s1 + $0x268] sm:$0xf]
  %v2281 = vld [vmem:[%s1 + $0x26c] sm:$0xf]
  %v2282 = vld [vmem:[%s1 + $0x270] sm:$0xf]
  %v2283 = vld [vmem:[%s1 + $0x274] sm:$0xf]
  %v2284 = vld [vmem:[%s1 + $0x278] sm:$0xf]
  %v2285 = vld [vmem:[%s1 + $0x27c] sm:$0xf]
  %v2286 = vpack.c.bf16 %v2242, %v2242
  %v2287 = vpack.c.bf16 %v2244, %v2243
  %v2288 = vpack.c.bf16 %v2242, %v2245
  %v2289 = vpack.c.bf16 %v2243, %v2242
  %v2290 = vpack.c.bf16 %v2245, %v2244
  %v2291 = vpack.c.bf16 %v2247, %v2247
  %v2292 = vpack.c.bf16 %v2249, %v2248
  %v2293 = vpack.c.bf16 %v2252, %v2250
  %v2294 = vpack.c.bf16 %v2253, %v2252
  %v2295 = vpack.c.bf16 %v2255, %v2254
  %v2296 = vpack.c.bf16 %v2257, %v2257
  %v2297 = vpack.c.bf16 %v2259, %v2258
  %v2298 = vpack.c.bf16 %v2260, %v2260
  %v2299 = vld [vmem:[%s1 + $0x280] sm:$0xf]
  %v2300 = vld [vmem:[%s1 + $0x284] sm:$0xf]
  %v2301 = vld [vmem:[%s1 + $0x288] sm:$0xf]
  %v2302 = vld [vmem:[%s1 + $0x28c] sm:$0xf]
  %v2303 = vld [vmem:[%s1 + $0x290] sm:$0xf]
  %v2304 = vld [vmem:[%s1 + $0x294] sm:$0xf]
  %v2305 = vld [vmem:[%s1 + $0x298] sm:$0xf]
  %v2306 = vld [vmem:[%s1 + $0x29c] sm:$0xf]
  %v2307 = vld [vmem:[%s1 + $0x2a0] sm:$0xf]
  %v2308 = vld [vmem:[%s1 + $0x2a4] sm:$0xf]
  %v2309 = vld [vmem:[%s1 + $0x2a8] sm:$0xf]
  %v2310 = vld [vmem:[%s1 + $0x2ac] sm:$0xf]
  %v2311 = vld [vmem:[%s1 + $0x2b0] sm:$0xf]
  %v2312 = vld [vmem:[%s1 + $0x2b4] sm:$0xf]
  %v2313 = vld [vmem:[%s1 + $0x2b8] sm:$0xf]
  %v2314 = vld [vmem:[%s1 + $0x2bc] sm:$0xf]
  %v2315 = vpack.c.bf16 %v2242, %v2246
  %v2316 = vpack.c.bf16 %v2246, %v2245
  %v2317 = vpack.c.bf16 %v2248, %v2247
  %v2318 = vpack.c.bf16 %v2250, %v2249
  %v2319 = vpack.c.bf16 %v2252, %v2251
  %v2320 = vpack.c.bf16 %v2254, %v2253
  %v2321 = vpack.c.bf16 %v2256, %v2255
  %v2322 = vpack.c.bf16 %v2258, %v2257
  %v2323 = vpack.c.bf16 %v2260, %v2259
  %v2324 = vpack.c.bf16 %v2261, %v2261
  %v2341 = vunpack.c.l.b16 %v2299
  %v2342 = vunpack.c.l.b16 %v2300
  %v2343 = vunpack.c.l.b16 %v2301
  %v2344 = vunpack.c.l.b16 %v2302
  %v2345 = vunpack.c.l.b16 %v2303
  %v2346 = vunpack.c.l.b16 %v2304
  %v2347 = vunpack.c.l.b16 %v2305
  %v2348 = vunpack.c.l.b16 %v2306
  %v2349 = vunpack.c.l.b16 %v2307
  %v2350 = vunpack.c.l.b16 %v2308
  %v2351 = vunpack.c.l.b16 %v2309
  %v2352 = vunpack.c.l.b16 %v2310
  %v2353 = vunpack.c.l.b16 %v2311
  %v2354 = vunpack.c.l.b16 %v2312
  %v2355 = vunpack.c.l.b16 %v2313
  %v2356 = vunpack.c.l.b16 %v2314
  %v2357 = vpack.c.b16 %v2342, %v2341
  %v2358 = vpack.c.b16 %v2344, %v2343
  %v2359 = vpack.c.b16 %v2346, %v2345
  %v2360 = vpack.c.b16 %v2348, %v2347
  %v2361 = vpack.c.b16 %v2350, %v2349
  %v2362 = vpack.c.b16 %v2352, %v2351
  %v2363 = vpack.c.b16 %v2354, %v2353
  %v2364 = vpack.c.b16 %v2356, %v2355
  %2373 = vmatpush.bf16.msra.mxu0 %v2364
  %2374 = vmatpush.bf16.msra.mxu0 %v2363
  %2375 = vmatpush.bf16.msra.mxu0 %v2362
  %2376 = vmatpush.bf16.msra.mxu0 %v2361
  %2377 = vmatpush.bf16.msra.mxu0 %v2360
  %2378 = vmatpush.bf16.msra.mxu0 %v2359
  %2379 = vmatpush.bf16.msra.mxu0 %v2358
  %2380 = vmatpush.bf16.msra.mxu0 %v2357
  %2381 = vmatmul.bf16.gmra.mxu0 %v2289
  %v2382 = vpop.f32.mrf.mxu0
  %v2383 = vadd.f32 0.0, %v2382
  %v2384 = vpop.f32.mrf.mxu0
  %v2385 = vadd.f32 0.0, %v2384
  %2386 = vmatmul.bf16.gmra.mxu0 %v2290
  %v2387 = vpop.f32.mrf.mxu0
  %v2388 = vadd.f32 0.0, %v2387
  %v2389 = vpop.f32.mrf.mxu0
  %v2390 = vadd.f32 0.0, %v2389
  %2391 = vmatmul.bf16.gmra.mxu0 %v2315
  %v2392 = vpop.f32.mrf.mxu0
  %v2393 = vadd.f32 0.0, %v2392
  %v2394 = vpop.f32.mrf.mxu0
  %v2395 = vadd.f32 0.0, %v2394
  %2396 = vmatmul.bf16.gmra.mxu0 %v2287
  %v2397 = vpop.f32.mrf.mxu0
  %v2398 = vadd.f32 0.0, %v2397
  %v2399 = vpop.f32.mrf.mxu0
  %v2400 = vadd.f32 0.0, %v2399
  %2401 = vmatmul.bf16.gmra.mxu0 %v2316
  %v2402 = vpop.f32.mrf.mxu0
  %v2403 = vadd.f32 0.0, %v2402
  %v2404 = vpop.f32.mrf.mxu0
  %v2405 = vadd.f32 0.0, %v2404
  %2406 = vmatmul.bf16.gmra.mxu0 %v2317
  %v2407 = vpop.f32.mrf.mxu0
  %v2408 = vadd.f32 0.0, %v2407
  %v2409 = vpop.f32.mrf.mxu0
  %v2410 = vadd.f32 0.0, %v2409
  %2411 = vmatmul.bf16.gmra.mxu0 %v2318
  %v2412 = vpop.f32.mrf.mxu0
  %v2413 = vadd.f32 0.0, %v2412
  %v2414 = vpop.f32.mrf.mxu0
  %v2415 = vadd.f32 0.0, %v2414
  %2416 = vmatmul.bf16.gmra.mxu0 %v2319
  %v2417 = vpop.f32.mrf.mxu0
  %v2418 = vadd.f32 0.0, %v2417
  %v2419 = vpop.f32.mrf.mxu0
  %v2420 = vadd.f32 0.0, %v2419
  %2421 = vmatmul.bf16.gmra.mxu0 %v2320
  %v2422 = vpop.f32.mrf.mxu0
  %v2423 = vadd.f32 0.0, %v2422
  %v2424 = vpop.f32.mrf.mxu0
  %v2425 = vadd.f32 0.0, %v2424
  %2426 = vmatmul.bf16.gmra.mxu0 %v2321
  %v2427 = vpop.f32.mrf.mxu0
  %v2428 = vadd.f32 0.0, %v2427
  %v2429 = vpop.f32.mrf.mxu0
  %v2430 = vadd.f32 0.0, %v2429
  %2431 = vmatmul.bf16.gmra.mxu0 %v2322
  %v2432 = vpop.f32.mrf.mxu0
  %v2433 = vadd.f32 0.0, %v2432
  %v2434 = vpop.f32.mrf.mxu0
  %v2435 = vadd.f32 0.0, %v2434
  %2436 = vmatmul.bf16.gmra.mxu0 %v2323
  %v2437 = vpop.f32.mrf.mxu0
  %v2438 = vadd.f32 0.0, %v2437
  %v2439 = vpop.f32.mrf.mxu0
  %v2440 = vadd.f32 0.0, %v2439
  %2441 = vmatmul.bf16.gmra.mxu0 %v2324
  %v2442 = vpop.f32.mrf.mxu0
  %v2443 = vadd.f32 0.0, %v2442
  %v2444 = vpop.f32.mrf.mxu0
  %2445 = vdwg.mxu0
  %v2462 = vunpack.c.l.b16 %v2270
  %v2463 = vunpack.c.l.b16 %v2271
  %v2464 = vunpack.c.l.b16 %v2272
  %v2465 = vunpack.c.l.b16 %v2273
  %v2466 = vunpack.c.l.b16 %v2274
  %v2467 = vunpack.c.l.b16 %v2275
  %v2468 = vunpack.c.l.b16 %v2276
  %v2469 = vunpack.c.l.b16 %v2277
  %v2470 = vunpack.c.l.b16 %v2278
  %v2471 = vunpack.c.l.b16 %v2279
  %v2472 = vunpack.c.l.b16 %v2280
  %v2473 = vunpack.c.l.b16 %v2281
  %v2474 = vunpack.c.l.b16 %v2282
  %v2475 = vunpack.c.l.b16 %v2283
  %v2476 = vunpack.c.l.b16 %v2284
  %v2477 = vunpack.c.l.b16 %v2285
  %v2478 = vpack.c.b16 %v2463, %v2462
  %v2479 = vpack.c.b16 %v2465, %v2464
  %v2480 = vpack.c.b16 %v2467, %v2466
  %v2481 = vpack.c.b16 %v2469, %v2468
  %v2482 = vpack.c.b16 %v2471, %v2470
  %v2483 = vpack.c.b16 %v2473, %v2472
  %v2484 = vpack.c.b16 %v2475, %v2474
  %v2485 = vpack.c.b16 %v2477, %v2476
  %2494 = vmatpush.bf16.msra.mxu0 %v2485
  %2495 = vmatpush.bf16.msra.mxu0 %v2484
  %2496 = vmatpush.bf16.msra.mxu0 %v2483
  %2497 = vmatpush.bf16.msra.mxu0 %v2482
  %2498 = vmatpush.bf16.msra.mxu0 %v2481
  %2499 = vmatpush.bf16.msra.mxu0 %v2480
  %2500 = vmatpush.bf16.msra.mxu0 %v2479
  %2501 = vmatpush.bf16.msra.mxu0 %v2478
  %2502 = vmatmul.bf16.gmra.mxu0 %v2286
  %v2503 = vpop.f32.mrf.mxu0
  %v2504 = vadd.f32 %v2383, %v2503
  %v2505 = vpop.f32.mrf.mxu0
  %v2506 = vadd.f32 %v2385, %v2505
  %2507 = vmatmul.bf16.gmra.mxu0 %v2287
  %v2508 = vpop.f32.mrf.mxu0
  %v2509 = vadd.f32 %v2388, %v2508
  %v2510 = vpop.f32.mrf.mxu0
  %v2511 = vadd.f32 %v2390, %v2510
  %2512 = vmatmul.bf16.gmra.mxu0 %v2288
  %v2513 = vpop.f32.mrf.mxu0
  %v2514 = vadd.f32 %v2393, %v2513
  %v2515 = vpop.f32.mrf.mxu0
  %v2516 = vadd.f32 %v2395, %v2515
  %2517 = vmatmul.bf16.gmra.mxu0 %v2289
  %v2518 = vpop.f32.mrf.mxu0
  %v2519 = vadd.f32 %v2398, %v2518
  %v2520 = vpop.f32.mrf.mxu0
  %v2521 = vadd.f32 %v2400, %v2520
  %2522 = vmatmul.bf16.gmra.mxu0 %v2290
  %v2523 = vpop.f32.mrf.mxu0
  %v2524 = vadd.f32 %v2403, %v2523
  %v2525 = vpop.f32.mrf.mxu0
  %v2526 = vadd.f32 %v2405, %v2525
  %2527 = vmatmul.bf16.gmra.mxu0 %v2291
  %v2528 = vpop.f32.mrf.mxu0
  %v2529 = vadd.f32 %v2408, %v2528
  %v2530 = vpop.f32.mrf.mxu0
  %v2531 = vadd.f32 %v2410, %v2530
  %2532 = vmatmul.bf16.gmra.mxu0 %v2292
  %v2533 = vpop.f32.mrf.mxu0
  %v2534 = vadd.f32 %v2413, %v2533
  %v2535 = vpop.f32.mrf.mxu0
  %v2536 = vadd.f32 %v2415, %v2535
  %2537 = vmatmul.bf16.gmra.mxu0 %v2293
  %v2538 = vpop.f32.mrf.mxu0
  %v2539 = vadd.f32 %v2418, %v2538
  %v2540 = vpop.f32.mrf.mxu0
  %v2541 = vadd.f32 %v2420, %v2540
  %2542 = vmatmul.bf16.gmra.mxu0 %v2294
  %v2543 = vpop.f32.mrf.mxu0
  %v2544 = vadd.f32 %v2423, %v2543
  %v2545 = vpop.f32.mrf.mxu0
  %v2546 = vadd.f32 %v2425, %v2545
  %2547 = vmatmul.bf16.gmra.mxu0 %v2295
  %v2548 = vpop.f32.mrf.mxu0
  %v2549 = vadd.f32 %v2428, %v2548
  %v2550 = vpop.f32.mrf.mxu0
  %v2551 = vadd.f32 %v2430, %v2550
  %2552 = vmatmul.bf16.gmra.mxu0 %v2296
  %v2553 = vpop.f32.mrf.mxu0
  %v2554 = vadd.f32 %v2433, %v2553
  %v2555 = vpop.f32.mrf.mxu0
  %v2556 = vadd.f32 %v2435, %v2555
  %2557 = vmatmul.bf16.gmra.mxu0 %v2297
  %v2558 = vpop.f32.mrf.mxu0
  %v2559 = vadd.f32 %v2438, %v2558
  %v2560 = vpop.f32.mrf.mxu0
  %v2561 = vadd.f32 %v2440, %v2560
  %2562 = vmatmul.bf16.gmra.mxu0 %v2298
  %v2563 = vpop.f32.mrf.mxu0
  %v2564 = vadd.f32 %v2443, %v2563
  %v2565 = vpop.f32.mrf.mxu0
  %2566 = vdwg.mxu0
  %v2567 = vld [vmem:[%s1 + $0x2c0] sm:$0xf]
  %v2568 = vld [vmem:[%s1 + $0x2c4] sm:$0xf]
  %v2569 = vld [vmem:[%s1 + $0x2c8] sm:$0xf]
  %v2570 = vld [vmem:[%s1 + $0x2cc] sm:$0xf]
  %v2571 = vld [vmem:[%s1 + $0x2d0] sm:$0xf]
  %v2572 = vld [vmem:[%s1 + $0x2d4] sm:$0xf]
  %v2573 = vld [vmem:[%s1 + $0x2d8] sm:$0xf]
  %v2574 = vld [vmem:[%s1 + $0x2dc] sm:$0xf]
  %v2575 = vld [vmem:[%s1 + $0x2e0] sm:$0xf]
  %v2576 = vld [vmem:[%s1 + $0x2e4] sm:$0xf]
  %v2577 = vld [vmem:[%s1 + $0x2e8] sm:$0xf]
  %v2578 = vld [vmem:[%s1 + $0x2ec] sm:$0xf]
  %v2579 = vld [vmem:[%s1 + $0x2f0] sm:$0xf]
  %v2580 = vld [vmem:[%s1 + $0x2f4] sm:$0xf]
  %v2581 = vld [vmem:[%s1 + $0x2f8] sm:$0xf]
  %v2582 = vld [vmem:[%s1 + $0x2fc] sm:$0xf]
  %v2583 = vpack.c.bf16 %v2243, %v2246
  %v2584 = vpack.c.bf16 %v2246, %v2246
  %v2585 = vpack.c.bf16 %v2251, %v2250
  %v2586 = vpack.c.bf16 %v2253, %v2251
  %v2587 = vpack.c.bf16 %v2256, %v2256
  %v2588 = vpack.c.bf16 %v2261, %v2260
  %v2605 = vunpack.c.l.b16 %v2567
  %v2606 = vunpack.c.l.b16 %v2568
  %v2607 = vunpack.c.l.b16 %v2569
  %v2608 = vunpack.c.l.b16 %v2570
  %v2609 = vunpack.c.l.b16 %v2571
  %v2610 = vunpack.c.l.b16 %v2572
  %v2611 = vunpack.c.l.b16 %v2573
  %v2612 = vunpack.c.l.b16 %v2574
  %v2613 = vunpack.c.l.b16 %v2575
  %v2614 = vunpack.c.l.b16 %v2576
  %v2615 = vunpack.c.l.b16 %v2577
  %v2616 = vunpack.c.l.b16 %v2578
  %v2617 = vunpack.c.l.b16 %v2579
  %v2618 = vunpack.c.l.b16 %v2580
  %v2619 = vunpack.c.l.b16 %v2581
  %v2620 = vunpack.c.l.b16 %v2582
  %v2621 = vpack.c.b16 %v2606, %v2605
  %v2622 = vpack.c.b16 %v2608, %v2607
  %v2623 = vpack.c.b16 %v2610, %v2609
  %v2624 = vpack.c.b16 %v2612, %v2611
  %v2625 = vpack.c.b16 %v2614, %v2613
  %v2626 = vpack.c.b16 %v2616, %v2615
  %v2627 = vpack.c.b16 %v2618, %v2617
  %v2628 = vpack.c.b16 %v2620, %v2619
  %2637 = vmatpush.bf16.msra.mxu0 %v2628
  %2638 = vmatpush.bf16.msra.mxu0 %v2627
  %2639 = vmatpush.bf16.msra.mxu0 %v2626
  %2640 = vmatpush.bf16.msra.mxu0 %v2625
  %2641 = vmatpush.bf16.msra.mxu0 %v2624
  %2642 = vmatpush.bf16.msra.mxu0 %v2623
  %2643 = vmatpush.bf16.msra.mxu0 %v2622
  %2644 = vmatpush.bf16.msra.mxu0 %v2621
  %2645 = vmatmul.bf16.gmra.mxu0 %v2287
  %v2646 = vpop.f32.mrf.mxu0
  %v2647 = vadd.f32 0.0, %v2646
  %v2648 = vpop.f32.mrf.mxu0
  %v2649 = vadd.f32 0.0, %v2648
  %2650 = vmatmul.bf16.gmra.mxu0 %v2316
  %v2651 = vpop.f32.mrf.mxu0
  %v2652 = vadd.f32 0.0, %v2651
  %v2653 = vpop.f32.mrf.mxu0
  %v2654 = vadd.f32 0.0, %v2653
  %2655 = vmatmul.bf16.gmra.mxu0 %v2583
  %v2656 = vpop.f32.mrf.mxu0
  %v2657 = vadd.f32 0.0, %v2656
  %v2658 = vpop.f32.mrf.mxu0
  %v2659 = vadd.f32 0.0, %v2658
  %2660 = vmatmul.bf16.gmra.mxu0 %v2290
  %v2661 = vpop.f32.mrf.mxu0
  %v2662 = vadd.f32 0.0, %v2661
  %v2663 = vpop.f32.mrf.mxu0
  %v2664 = vadd.f32 0.0, %v2663
  %2665 = vmatmul.bf16.gmra.mxu0 %v2584
  %v2666 = vpop.f32.mrf.mxu0
  %v2667 = vadd.f32 0.0, %v2666
  %v2668 = vpop.f32.mrf.mxu0
  %v2669 = vadd.f32 0.0, %v2668
  %2670 = vmatmul.bf16.gmra.mxu0 %v2292
  %v2671 = vpop.f32.mrf.mxu0
  %v2672 = vadd.f32 0.0, %v2671
  %v2673 = vpop.f32.mrf.mxu0
  %v2674 = vadd.f32 0.0, %v2673
  %2675 = vmatmul.bf16.gmra.mxu0 %v2585
  %v2676 = vpop.f32.mrf.mxu0
  %v2677 = vadd.f32 0.0, %v2676
  %v2678 = vpop.f32.mrf.mxu0
  %v2679 = vadd.f32 0.0, %v2678
  %2680 = vmatmul.bf16.gmra.mxu0 %v2586
  %v2681 = vpop.f32.mrf.mxu0
  %v2682 = vadd.f32 0.0, %v2681
  %v2683 = vpop.f32.mrf.mxu0
  %v2684 = vadd.f32 0.0, %v2683
  %2685 = vmatmul.bf16.gmra.mxu0 %v2295
  %v2686 = vpop.f32.mrf.mxu0
  %v2687 = vadd.f32 0.0, %v2686
  %v2688 = vpop.f32.mrf.mxu0
  %v2689 = vadd.f32 0.0, %v2688
  %2690 = vmatmul.bf16.gmra.mxu0 %v2587
  %v2691 = vpop.f32.mrf.mxu0
  %v2692 = vadd.f32 0.0, %v2691
  %v2693 = vpop.f32.mrf.mxu0
  %v2694 = vadd.f32 0.0, %v2693
  %2695 = vmatmul.bf16.gmra.mxu0 %v2297
  %v2696 = vpop.f32.mrf.mxu0
  %v2697 = vadd.f32 0.0, %v2696
  %v2698 = vpop.f32.mrf.mxu0
  %v2699 = vadd.f32 0.0, %v2698
  %2700 = vmatmul.bf16.gmra.mxu0 %v2588
  %v2701 = vpop.f32.mrf.mxu0
  %v2702 = vadd.f32 0.0, %v2701
  %v2703 = vpop.f32.mrf.mxu0
  %v2704 = vadd.f32 0.0, %v2703
  %2705 = vmatmul.bf16.gmra.mxu0 %v2324
  %v2706 = vpop.f32.mrf.mxu0
  %v2707 = vadd.f32 0.0, %v2706
  %v2708 = vpop.f32.mrf.mxu0
  %2709 = vdwg.mxu0
  %v2710 = vadd.f32 %v2504, %v2647
  %v2711 = vadd.f32 %v2506, %v2649
  %v2712 = vadd.f32 %v2509, %v2652
  %v2713 = vadd.f32 %v2511, %v2654
  %v2714 = vadd.f32 %v2514, %v2657
  %v2715 = vadd.f32 %v2516, %v2659
  %v2716 = vadd.f32 %v2519, %v2662
  %v2717 = vadd.f32 %v2521, %v2664
  %v2718 = vadd.f32 %v2524, %v2667
  %v2719 = vadd.f32 %v2526, %v2669
  %v2720 = vadd.f32 %v2529, %v2672
  %v2721 = vadd.f32 %v2531, %v2674
  %v2722 = vadd.f32 %v2534, %v2677
  %v2723 = vadd.f32 %v2536, %v2679
  %v2724 = vadd.f32 %v2539, %v2682
  %v2725 = vadd.f32 %v2541, %v2684
  %v2726 = vadd.f32 %v2544, %v2687
  %v2727 = vadd.f32 %v2546, %v2689
  %v2728 = vadd.f32 %v2549, %v2692
  %v2729 = vadd.f32 %v2551, %v2694
  %v2730 = vadd.f32 %v2554, %v2697
  %v2731 = vadd.f32 %v2556, %v2699
  %v2732 = vadd.f32 %v2559, %v2702
  %v2733 = vadd.f32 %v2561, %v2704
  %v2734 = vadd.f32 %v2564, %v2707
  %v2735 = vld [vmem:[%s1 + $0x300] sm:$0xf]
  %v2736 = vld [vmem:[%s1 + $0x304] sm:$0xf]
  %v2737 = vld [vmem:[%s1 + $0x308] sm:$0xf]
  %v2738 = vld [vmem:[%s1 + $0x30c] sm:$0xf]
  %v2739 = vld [vmem:[%s1 + $0x310] sm:$0xf]
  %v2740 = vld [vmem:[%s1 + $0x314] sm:$0xf]
  %v2741 = vld [vmem:[%s1 + $0x318] sm:$0xf]
  %v2742 = vld [vmem:[%s1 + $0x31c] sm:$0xf]
  %v2743 = vld [vmem:[%s1 + $0x320] sm:$0xf]
  %v2744 = vld [vmem:[%s1 + $0x324] sm:$0xf]
  %v2745 = vld [vmem:[%s1 + $0x328] sm:$0xf]
  %v2746 = vld [vmem:[%s1 + $0x32c] sm:$0xf]
  %v2747 = vld [vmem:[%s1 + $0x330] sm:$0xf]
  %v2748 = vld [vmem:[%s1 + $0x334] sm:$0xf]
  %v2749 = vld [vmem:[%s1 + $0x338] sm:$0xf]
  %v2750 = vld [vmem:[%s1 + $0x33c] sm:$0xf]
  %v2751 = vpack.c.bf16 %v2247, %v2245
  %v2752 = vpack.c.bf16 %v2252, %v2252
  %v2753 = vpack.c.bf16 %v2257, %v2255
  %v2754 = vpack.c.bf16 %v2262, %v2262
  %v2755 = vpack.c.bf16 %v2264, %v2263
  %v2756 = vpack.c.bf16 %v2265, %v2265
  %v2773 = vunpack.c.l.b16 %v2735
  %v2774 = vunpack.c.l.b16 %v2736
  %v2775 = vunpack.c.l.b16 %v2737
  %v2776 = vunpack.c.l.b16 %v2738
  %v2777 = vunpack.c.l.b16 %v2739
  %v2778 = vunpack.c.l.b16 %v2740
  %v2779 = vunpack.c.l.b16 %v2741
  %v2780 = vunpack.c.l.b16 %v2742
  %v2781 = vunpack.c.l.b16 %v2743
  %v2782 = vunpack.c.l.b16 %v2744
  %v2783 = vunpack.c.l.b16 %v2745
  %v2784 = vunpack.c.l.b16 %v2746
  %v2785 = vunpack.c.l.b16 %v2747
  %v2786 = vunpack.c.l.b16 %v2748
  %v2787 = vunpack.c.l.b16 %v2749
  %v2788 = vunpack.c.l.b16 %v2750
  %v2789 = vpack.c.b16 %v2774, %v2773
  %v2790 = vpack.c.b16 %v2776, %v2775
  %v2791 = vpack.c.b16 %v2778, %v2777
  %v2792 = vpack.c.b16 %v2780, %v2779
  %v2793 = vpack.c.b16 %v2782, %v2781
  %v2794 = vpack.c.b16 %v2784, %v2783
  %v2795 = vpack.c.b16 %v2786, %v2785
  %v2796 = vpack.c.b16 %v2788, %v2787
  %2805 = vmatpush.bf16.msra.mxu0 %v2796
  %2806 = vmatpush.bf16.msra.mxu0 %v2795
  %2807 = vmatpush.bf16.msra.mxu0 %v2794
  %2808 = vmatpush.bf16.msra.mxu0 %v2793
  %2809 = vmatpush.bf16.msra.mxu0 %v2792
  %2810 = vmatpush.bf16.msra.mxu0 %v2791
  %2811 = vmatpush.bf16.msra.mxu0 %v2790
  %2812 = vmatpush.bf16.msra.mxu0 %v2789
  %2813 = vmatmul.bf16.gmra.mxu0 %v2286
  %v2814 = vpop.f32.mrf.mxu0
  %v2815 = vadd.f32 0.0, %v2814
  %v2816 = vpop.f32.mrf.mxu0
  %v2817 = vadd.f32 0.0, %v2816
  %2818 = vmatmul.bf16.gmra.mxu0 %v2287
  %v2819 = vpop.f32.mrf.mxu0
  %v2820 = vadd.f32 0.0, %v2819
  %v2821 = vpop.f32.mrf.mxu0
  %v2822 = vadd.f32 0.0, %v2821
  %2823 = vmatmul.bf16.gmra.mxu0 %v2751
  %v2824 = vpop.f32.mrf.mxu0
  %v2825 = vadd.f32 0.0, %v2824
  %v2826 = vpop.f32.mrf.mxu0
  %v2827 = vadd.f32 0.0, %v2826
  %2828 = vmatmul.bf16.gmra.mxu0 %v2317
  %v2829 = vpop.f32.mrf.mxu0
  %v2830 = vadd.f32 0.0, %v2829
  %v2831 = vpop.f32.mrf.mxu0
  %v2832 = vadd.f32 0.0, %v2831
  %2833 = vmatmul.bf16.gmra.mxu0 %v2318
  %v2834 = vpop.f32.mrf.mxu0
  %v2835 = vadd.f32 0.0, %v2834
  %v2836 = vpop.f32.mrf.mxu0
  %v2837 = vadd.f32 0.0, %v2836
  %2838 = vmatmul.bf16.gmra.mxu0 %v2752
  %v2839 = vpop.f32.mrf.mxu0
  %v2840 = vadd.f32 0.0, %v2839
  %v2841 = vpop.f32.mrf.mxu0
  %v2842 = vadd.f32 0.0, %v2841
  %2843 = vmatmul.bf16.gmra.mxu0 %v2320
  %v2844 = vpop.f32.mrf.mxu0
  %v2845 = vadd.f32 0.0, %v2844
  %v2846 = vpop.f32.mrf.mxu0
  %v2847 = vadd.f32 0.0, %v2846
  %2848 = vmatmul.bf16.gmra.mxu0 %v2753
  %v2849 = vpop.f32.mrf.mxu0
  %v2850 = vadd.f32 0.0, %v2849
  %v2851 = vpop.f32.mrf.mxu0
  %v2852 = vadd.f32 0.0, %v2851
  %2853 = vmatmul.bf16.gmra.mxu0 %v2322
  %v2854 = vpop.f32.mrf.mxu0
  %v2855 = vadd.f32 0.0, %v2854
  %v2856 = vpop.f32.mrf.mxu0
  %v2857 = vadd.f32 0.0, %v2856
  %2858 = vmatmul.bf16.gmra.mxu0 %v2323
  %v2859 = vpop.f32.mrf.mxu0
  %v2860 = vadd.f32 0.0, %v2859
  %v2861 = vpop.f32.mrf.mxu0
  %v2862 = vadd.f32 0.0, %v2861
  %2863 = vmatmul.bf16.gmra.mxu0 %v2754
  %v2864 = vpop.f32.mrf.mxu0
  %v2865 = vadd.f32 0.0, %v2864
  %v2866 = vpop.f32.mrf.mxu0
  %v2867 = vadd.f32 0.0, %v2866
  %2868 = vmatmul.bf16.gmra.mxu0 %v2755
  %v2869 = vpop.f32.mrf.mxu0
  %v2870 = vadd.f32 0.0, %v2869
  %v2871 = vpop.f32.mrf.mxu0
  %v2872 = vadd.f32 0.0, %v2871
  %2873 = vmatmul.bf16.gmra.mxu0 %v2756
  %v2874 = vpop.f32.mrf.mxu0
  %v2875 = vadd.f32 0.0, %v2874
  %v2876 = vpop.f32.mrf.mxu0
  %2877 = vdwg.mxu0
  %v2878 = vadd.f32 %v2710, %v2815
  %v2879 = vadd.f32 %v2711, %v2817
  %v2880 = vadd.f32 %v2712, %v2820
  %v2881 = vadd.f32 %v2713, %v2822
  %v2882 = vadd.f32 %v2714, %v2825
  %v2883 = vadd.f32 %v2715, %v2827
  %v2884 = vadd.f32 %v2716, %v2830
  %v2885 = vadd.f32 %v2717, %v2832
  %v2886 = vadd.f32 %v2718, %v2835
  %v2887 = vadd.f32 %v2719, %v2837
  %v2888 = vadd.f32 %v2720, %v2840
  %v2889 = vadd.f32 %v2721, %v2842
  %v2890 = vadd.f32 %v2722, %v2845
  %v2891 = vadd.f32 %v2723, %v2847
  %v2892 = vadd.f32 %v2724, %v2850
  %v2893 = vadd.f32 %v2725, %v2852
  %v2894 = vadd.f32 %v2726, %v2855
  %v2895 = vadd.f32 %v2727, %v2857
  %v2896 = vadd.f32 %v2728, %v2860
  %v2897 = vadd.f32 %v2729, %v2862
  %v2898 = vadd.f32 %v2730, %v2865
  %v2899 = vadd.f32 %v2731, %v2867
  %v2900 = vadd.f32 %v2732, %v2870
  %v2901 = vadd.f32 %v2733, %v2872
  %v2902 = vadd.f32 %v2734, %v2875
  %v2903 = vld [vmem:[%s1 + $0x340] sm:$0xf]
  %v2904 = vld [vmem:[%s1 + $0x344] sm:$0xf]
  %v2905 = vld [vmem:[%s1 + $0x348] sm:$0xf]
  %v2906 = vld [vmem:[%s1 + $0x34c] sm:$0xf]
  %v2907 = vld [vmem:[%s1 + $0x350] sm:$0xf]
  %v2908 = vld [vmem:[%s1 + $0x354] sm:$0xf]
  %v2909 = vld [vmem:[%s1 + $0x358] sm:$0xf]
  %v2910 = vld [vmem:[%s1 + $0x35c] sm:$0xf]
  %v2911 = vld [vmem:[%s1 + $0x360] sm:$0xf]
  %v2912 = vld [vmem:[%s1 + $0x364] sm:$0xf]
  %v2913 = vld [vmem:[%s1 + $0x368] sm:$0xf]
  %v2914 = vld [vmem:[%s1 + $0x36c] sm:$0xf]
  %v2915 = vld [vmem:[%s1 + $0x370] sm:$0xf]
  %v2916 = vld [vmem:[%s1 + $0x374] sm:$0xf]
  %v2917 = vld [vmem:[%s1 + $0x378] sm:$0xf]
  %v2918 = vld [vmem:[%s1 + $0x37c] sm:$0xf]
  %v2919 = vpack.c.bf16 %v2247, %v2246
  %v2920 = vpack.c.bf16 %v2257, %v2256
  %v2921 = vpack.c.bf16 %v2263, %v2262
  %v2922 = vpack.c.bf16 %v2265, %v2264
  %v2923 = vpack.c.bf16 %v2266, %v2266
  %v2940 = vunpack.c.l.b16 %v2903
  %v2941 = vunpack.c.l.b16 %v2904
  %v2942 = vunpack.c.l.b16 %v2905
  %v2943 = vunpack.c.l.b16 %v2906
  %v2944 = vunpack.c.l.b16 %v2907
  %v2945 = vunpack.c.l.b16 %v2908
  %v2946 = vunpack.c.l.b16 %v2909
  %v2947 = vunpack.c.l.b16 %v2910
  %v2948 = vunpack.c.l.b16 %v2911
  %v2949 = vunpack.c.l.b16 %v2912
  %v2950 = vunpack.c.l.b16 %v2913
  %v2951 = vunpack.c.l.b16 %v2914
  %v2952 = vunpack.c.l.b16 %v2915
  %v2953 = vunpack.c.l.b16 %v2916
  %v2954 = vunpack.c.l.b16 %v2917
  %v2955 = vunpack.c.l.b16 %v2918
  %v2956 = vpack.c.b16 %v2941, %v2940
  %v2957 = vpack.c.b16 %v2943, %v2942
  %v2958 = vpack.c.b16 %v2945, %v2944
  %v2959 = vpack.c.b16 %v2947, %v2946
  %v2960 = vpack.c.b16 %v2949, %v2948
  %v2961 = vpack.c.b16 %v2951, %v2950
  %v2962 = vpack.c.b16 %v2953, %v2952
  %v2963 = vpack.c.b16 %v2955, %v2954
  %2972 = vmatpush.bf16.msra.mxu0 %v2963
  %2973 = vmatpush.bf16.msra.mxu0 %v2962
  %2974 = vmatpush.bf16.msra.mxu0 %v2961
  %2975 = vmatpush.bf16.msra.mxu0 %v2960
  %2976 = vmatpush.bf16.msra.mxu0 %v2959
  %2977 = vmatpush.bf16.msra.mxu0 %v2958
  %2978 = vmatpush.bf16.msra.mxu0 %v2957
  %2979 = vmatpush.bf16.msra.mxu0 %v2956
  %2980 = vmatmul.bf16.gmra.mxu0 %v2289
  %v2981 = vpop.f32.mrf.mxu0
  %v2982 = vadd.f32 0.0, %v2981
  %v2983 = vpop.f32.mrf.mxu0
  %v2984 = vadd.f32 0.0, %v2983
  %2985 = vmatmul.bf16.gmra.mxu0 %v2290
  %v2986 = vpop.f32.mrf.mxu0
  %v2987 = vadd.f32 0.0, %v2986
  %v2988 = vpop.f32.mrf.mxu0
  %v2989 = vadd.f32 0.0, %v2988
  %2990 = vmatmul.bf16.gmra.mxu0 %v2919
  %v2991 = vpop.f32.mrf.mxu0
  %v2992 = vadd.f32 0.0, %v2991
  %v2993 = vpop.f32.mrf.mxu0
  %v2994 = vadd.f32 0.0, %v2993
  %2995 = vmatmul.bf16.gmra.mxu0 %v2292
  %v2996 = vpop.f32.mrf.mxu0
  %v2997 = vadd.f32 0.0, %v2996
  %v2998 = vpop.f32.mrf.mxu0
  %v2999 = vadd.f32 0.0, %v2998
  %3000 = vmatmul.bf16.gmra.mxu0 %v2585
  %v3001 = vpop.f32.mrf.mxu0
  %v3002 = vadd.f32 0.0, %v3001
  %v3003 = vpop.f32.mrf.mxu0
  %v3004 = vadd.f32 0.0, %v3003
  %3005 = vmatmul.bf16.gmra.mxu0 %v2294
  %v3006 = vpop.f32.mrf.mxu0
  %v3007 = vadd.f32 0.0, %v3006
  %v3008 = vpop.f32.mrf.mxu0
  %v3009 = vadd.f32 0.0, %v3008
  %3010 = vmatmul.bf16.gmra.mxu0 %v2295
  %v3011 = vpop.f32.mrf.mxu0
  %v3012 = vadd.f32 0.0, %v3011
  %v3013 = vpop.f32.mrf.mxu0
  %v3014 = vadd.f32 0.0, %v3013
  %3015 = vmatmul.bf16.gmra.mxu0 %v2920
  %v3016 = vpop.f32.mrf.mxu0
  %v3017 = vadd.f32 0.0, %v3016
  %v3018 = vpop.f32.mrf.mxu0
  %v3019 = vadd.f32 0.0, %v3018
  %3020 = vmatmul.bf16.gmra.mxu0 %v2297
  %v3021 = vpop.f32.mrf.mxu0
  %v3022 = vadd.f32 0.0, %v3021
  %v3023 = vpop.f32.mrf.mxu0
  %v3024 = vadd.f32 0.0, %v3023
  %3025 = vmatmul.bf16.gmra.mxu0 %v2588
  %v3026 = vpop.f32.mrf.mxu0
  %v3027 = vadd.f32 0.0, %v3026
  %v3028 = vpop.f32.mrf.mxu0
  %v3029 = vadd.f32 0.0, %v3028
  %3030 = vmatmul.bf16.gmra.mxu0 %v2921
  %v3031 = vpop.f32.mrf.mxu0
  %v3032 = vadd.f32 0.0, %v3031
  %v3033 = vpop.f32.mrf.mxu0
  %v3034 = vadd.f32 0.0, %v3033
  %3035 = vmatmul.bf16.gmra.mxu0 %v2922
  %v3036 = vpop.f32.mrf.mxu0
  %v3037 = vadd.f32 0.0, %v3036
  %v3038 = vpop.f32.mrf.mxu0
  %v3039 = vadd.f32 0.0, %v3038
  %3040 = vmatmul.bf16.gmra.mxu0 %v2923
  %v3041 = vpop.f32.mrf.mxu0
  %v3042 = vadd.f32 0.0, %v3041
  %v3043 = vpop.f32.mrf.mxu0
  %3044 = vdwg.mxu0
  %v3045 = vadd.f32 %v2878, %v2982
  %v3046 = vadd.f32 %v2879, %v2984
  %v3047 = vadd.f32 %v2880, %v2987
  %v3048 = vadd.f32 %v2881, %v2989
  %v3049 = vadd.f32 %v2882, %v2992
  %v3050 = vadd.f32 %v2883, %v2994
  %v3051 = vadd.f32 %v2884, %v2997
  %v3052 = vadd.f32 %v2885, %v2999
  %v3053 = vadd.f32 %v2886, %v3002
  %v3054 = vadd.f32 %v2887, %v3004
  %v3055 = vadd.f32 %v2888, %v3007
  %v3056 = vadd.f32 %v2889, %v3009
  %v3057 = vadd.f32 %v2890, %v3012
  %v3058 = vadd.f32 %v2891, %v3014
  %v3059 = vadd.f32 %v2892, %v3017
  %v3060 = vadd.f32 %v2893, %v3019
  %v3061 = vadd.f32 %v2894, %v3022
  %v3062 = vadd.f32 %v2895, %v3024
  %v3063 = vadd.f32 %v2896, %v3027
  %v3064 = vadd.f32 %v2897, %v3029
  %v3065 = vadd.f32 %v2898, %v3032
  %v3066 = vadd.f32 %v2899, %v3034
  %v3067 = vadd.f32 %v2900, %v3037
  %v3068 = vadd.f32 %v2901, %v3039
  %v3069 = vadd.f32 %v2902, %v3042
  %v3070 = vld [vmem:[%s1 + $0x380] sm:$0xf]
  %v3071 = vld [vmem:[%s1 + $0x384] sm:$0xf]
  %v3072 = vld [vmem:[%s1 + $0x388] sm:$0xf]
  %v3073 = vld [vmem:[%s1 + $0x38c] sm:$0xf]
  %v3074 = vld [vmem:[%s1 + $0x390] sm:$0xf]
  %v3075 = vld [vmem:[%s1 + $0x394] sm:$0xf]
  %v3076 = vld [vmem:[%s1 + $0x398] sm:$0xf]
  %v3077 = vld [vmem:[%s1 + $0x39c] sm:$0xf]
  %v3078 = vld [vmem:[%s1 + $0x3a0] sm:$0xf]
  %v3079 = vld [vmem:[%s1 + $0x3a4] sm:$0xf]
  %v3080 = vld [vmem:[%s1 + $0x3a8] sm:$0xf]
  %v3081 = vld [vmem:[%s1 + $0x3ac] sm:$0xf]
  %v3082 = vld [vmem:[%s1 + $0x3b0] sm:$0xf]
  %v3083 = vld [vmem:[%s1 + $0x3b4] sm:$0xf]
  %v3084 = vld [vmem:[%s1 + $0x3b8] sm:$0xf]
  %v3085 = vld [vmem:[%s1 + $0x3bc] sm:$0xf]
  %v3086 = vpack.c.bf16 %v2248, %v2246
  %v3087 = vpack.c.bf16 %v2251, %v2251
  %v3088 = vpack.c.bf16 %v2258, %v2256
  %v3089 = vpack.c.bf16 %v2266, %v2265
  %v3106 = vunpack.c.l.b16 %v3070
  %v3107 = vunpack.c.l.b16 %v3071
  %v3108 = vunpack.c.l.b16 %v3072
  %v3109 = vunpack.c.l.b16 %v3073
  %v3110 = vunpack.c.l.b16 %v3074
  %v3111 = vunpack.c.l.b16 %v3075
  %v3112 = vunpack.c.l.b16 %v3076
  %v3113 = vunpack.c.l.b16 %v3077
  %v3114 = vunpack.c.l.b16 %v3078
  %v3115 = vunpack.c.l.b16 %v3079
  %v3116 = vunpack.c.l.b16 %v3080
  %v3117 = vunpack.c.l.b16 %v3081
  %v3118 = vunpack.c.l.b16 %v3082
  %v3119 = vunpack.c.l.b16 %v3083
  %v3120 = vunpack.c.l.b16 %v3084
  %v3121 = vunpack.c.l.b16 %v3085
  %v3122 = vpack.c.b16 %v3107, %v3106
  %v3123 = vpack.c.b16 %v3109, %v3108
  %v3124 = vpack.c.b16 %v3111, %v3110
  %v3125 = vpack.c.b16 %v3113, %v3112
  %v3126 = vpack.c.b16 %v3115, %v3114
  %v3127 = vpack.c.b16 %v3117, %v3116
  %v3128 = vpack.c.b16 %v3119, %v3118
  %v3129 = vpack.c.b16 %v3121, %v3120
  %3138 = vmatpush.bf16.msra.mxu0 %v3129
  %3139 = vmatpush.bf16.msra.mxu0 %v3128
  %3140 = vmatpush.bf16.msra.mxu0 %v3127
  %3141 = vmatpush.bf16.msra.mxu0 %v3126
  %3142 = vmatpush.bf16.msra.mxu0 %v3125
  %3143 = vmatpush.bf16.msra.mxu0 %v3124
  %3144 = vmatpush.bf16.msra.mxu0 %v3123
  %3145 = vmatpush.bf16.msra.mxu0 %v3122
  %3146 = vmatmul.bf16.gmra.mxu0 %v2287
  %v3147 = vpop.f32.mrf.mxu0
  %v3148 = vadd.f32 0.0, %v3147
  %v3149 = vpop.f32.mrf.mxu0
  %v3150 = vadd.f32 0.0, %v3149
  %3151 = vmatmul.bf16.gmra.mxu0 %v2316
  %v3152 = vpop.f32.mrf.mxu0
  %v3153 = vadd.f32 0.0, %v3152
  %v3154 = vpop.f32.mrf.mxu0
  %v3155 = vadd.f32 0.0, %v3154
  %3156 = vmatmul.bf16.gmra.mxu0 %v3086
  %v3157 = vpop.f32.mrf.mxu0
  %v3158 = vadd.f32 0.0, %v3157
  %v3159 = vpop.f32.mrf.mxu0
  %v3160 = vadd.f32 0.0, %v3159
  %3161 = vmatmul.bf16.gmra.mxu0 %v2318
  %v3162 = vpop.f32.mrf.mxu0
  %v3163 = vadd.f32 0.0, %v3162
  %v3164 = vpop.f32.mrf.mxu0
  %v3165 = vadd.f32 0.0, %v3164
  %3166 = vmatmul.bf16.gmra.mxu0 %v3087
  %v3167 = vpop.f32.mrf.mxu0
  %v3168 = vadd.f32 0.0, %v3167
  %v3169 = vpop.f32.mrf.mxu0
  %v3170 = vadd.f32 0.0, %v3169
  %3171 = vmatmul.bf16.gmra.mxu0 %v2320
  %v3172 = vpop.f32.mrf.mxu0
  %v3173 = vadd.f32 0.0, %v3172
  %v3174 = vpop.f32.mrf.mxu0
  %v3175 = vadd.f32 0.0, %v3174
  %3176 = vmatmul.bf16.gmra.mxu0 %v2321
  %v3177 = vpop.f32.mrf.mxu0
  %v3178 = vadd.f32 0.0, %v3177
  %v3179 = vpop.f32.mrf.mxu0
  %v3180 = vadd.f32 0.0, %v3179
  %3181 = vmatmul.bf16.gmra.mxu0 %v3088
  %v3182 = vpop.f32.mrf.mxu0
  %v3183 = vadd.f32 0.0, %v3182
  %v3184 = vpop.f32.mrf.mxu0
  %v3185 = vadd.f32 0.0, %v3184
  %3186 = vmatmul.bf16.gmra.mxu0 %v2323
  %v3187 = vpop.f32.mrf.mxu0
  %v3188 = vadd.f32 0.0, %v3187
  %v3189 = vpop.f32.mrf.mxu0
  %v3190 = vadd.f32 0.0, %v3189
  %3191 = vmatmul.bf16.gmra.mxu0 %v2324
  %v3192 = vpop.f32.mrf.mxu0
  %v3193 = vadd.f32 0.0, %v3192
  %v3194 = vpop.f32.mrf.mxu0
  %v3195 = vadd.f32 0.0, %v3194
  %3196 = vmatmul.bf16.gmra.mxu0 %v2755
  %v3197 = vpop.f32.mrf.mxu0
  %v3198 = vadd.f32 0.0, %v3197
  %v3199 = vpop.f32.mrf.mxu0
  %v3200 = vadd.f32 0.0, %v3199
  %3201 = vmatmul.bf16.gmra.mxu0 %v3089
  %v3202 = vpop.f32.mrf.mxu0
  %v3203 = vadd.f32 0.0, %v3202
  %v3204 = vpop.f32.mrf.mxu0
  %v3205 = vadd.f32 0.0, %v3204
  %3206 = vmatmul.bf16.gmra.mxu0 %v2923
  %v3207 = vpop.f32.mrf.mxu0
  %v3208 = vadd.f32 0.0, %v3207
  %v3209 = vpop.f32.mrf.mxu0
  %3210 = vdwg.mxu0
  %v3211 = vadd.f32 %v3045, %v3148
  %v3212 = vadd.f32 %v3046, %v3150
  %v3213 = vadd.f32 %v3047, %v3153
  %v3214 = vadd.f32 %v3048, %v3155
  %v3215 = vadd.f32 %v3049, %v3158
  %v3216 = vadd.f32 %v3050, %v3160
  %v3217 = vadd.f32 %v3051, %v3163
  %v3218 = vadd.f32 %v3052, %v3165
  %v3219 = vadd.f32 %v3053, %v3168
  %v3220 = vadd.f32 %v3054, %v3170
  %v3221 = vadd.f32 %v3055, %v3173
  %v3222 = vadd.f32 %v3056, %v3175
  %v3223 = vadd.f32 %v3057, %v3178
  %v3224 = vadd.f32 %v3058, %v3180
  %v3225 = vadd.f32 %v3059, %v3183
  %v3226 = vadd.f32 %v3060, %v3185
  %v3227 = vadd.f32 %v3061, %v3188
  %v3228 = vadd.f32 %v3062, %v3190
  %v3229 = vadd.f32 %v3063, %v3193
  %v3230 = vadd.f32 %v3064, %v3195
  %v3231 = vadd.f32 %v3065, %v3198
  %v3232 = vadd.f32 %v3066, %v3200
  %v3233 = vadd.f32 %v3067, %v3203
  %v3234 = vadd.f32 %v3068, %v3205
  %v3235 = vadd.f32 %v3069, %v3208
  %v3236 = vld [vmem:[%s1 + $0x3c0] sm:$0xf]
  %v3237 = vld [vmem:[%s1 + $0x3c4] sm:$0xf]
  %v3238 = vld [vmem:[%s1 + $0x3c8] sm:$0xf]
  %v3239 = vld [vmem:[%s1 + $0x3cc] sm:$0xf]
  %v3240 = vld [vmem:[%s1 + $0x3d0] sm:$0xf]
  %v3241 = vld [vmem:[%s1 + $0x3d4] sm:$0xf]
  %v3242 = vld [vmem:[%s1 + $0x3d8] sm:$0xf]
  %v3243 = vld [vmem:[%s1 + $0x3dc] sm:$0xf]
  %v3244 = vld [vmem:[%s1 + $0x3e0] sm:$0xf]
  %v3245 = vld [vmem:[%s1 + $0x3e4] sm:$0xf]
  %v3246 = vld [vmem:[%s1 + $0x3e8] sm:$0xf]
  %v3247 = vld [vmem:[%s1 + $0x3ec] sm:$0xf]
  %v3248 = vld [vmem:[%s1 + $0x3f0] sm:$0xf]
  %v3249 = vld [vmem:[%s1 + $0x3f4] sm:$0xf]
  %v3250 = vld [vmem:[%s1 + $0x3f8] sm:$0xf]
  %v3251 = vld [vmem:[%s1 + $0x3fc] sm:$0xf]
  %v3252 = vpack.c.bf16 %v2262, %v2260
  %v3269 = vunpack.c.l.b16 %v3236
  %v3270 = vunpack.c.l.b16 %v3237
  %v3271 = vunpack.c.l.b16 %v3238
  %v3272 = vunpack.c.l.b16 %v3239
  %v3273 = vunpack.c.l.b16 %v3240
  %v3274 = vunpack.c.l.b16 %v3241
  %v3275 = vunpack.c.l.b16 %v3242
  %v3276 = vunpack.c.l.b16 %v3243
  %v3277 = vunpack.c.l.b16 %v3244
  %v3278 = vunpack.c.l.b16 %v3245
  %v3279 = vunpack.c.l.b16 %v3246
  %v3280 = vunpack.c.l.b16 %v3247
  %v3281 = vunpack.c.l.b16 %v3248
  %v3282 = vunpack.c.l.b16 %v3249
  %v3283 = vunpack.c.l.b16 %v3250
  %v3284 = vunpack.c.l.b16 %v3251
  %v3285 = vpack.c.b16 %v3270, %v3269
  %v3286 = vpack.c.b16 %v3272, %v3271
  %v3287 = vpack.c.b16 %v3274, %v3273
  %v3288 = vpack.c.b16 %v3276, %v3275
  %v3289 = vpack.c.b16 %v3278, %v3277
  %v3290 = vpack.c.b16 %v3280, %v3279
  %v3291 = vpack.c.b16 %v3282, %v3281
  %v3292 = vpack.c.b16 %v3284, %v3283
  %3301 = vmatpush.bf16.msra.mxu0 %v3292
  %3302 = vmatpush.bf16.msra.mxu0 %v3291
  %3303 = vmatpush.bf16.msra.mxu0 %v3290
  %3304 = vmatpush.bf16.msra.mxu0 %v3289
  %3305 = vmatpush.bf16.msra.mxu0 %v3288
  %3306 = vmatpush.bf16.msra.mxu0 %v3287
  %3307 = vmatpush.bf16.msra.mxu0 %v3286
  %3308 = vmatpush.bf16.msra.mxu0 %v3285
  %3309 = vmatmul.bf16.gmra.mxu0 %v2291
  %v3310 = vpop.f32.mrf.mxu0
  %v3311 = vadd.f32 0.0, %v3310
  %v3312 = vpop.f32.mrf.mxu0
  %v3313 = vadd.f32 0.0, %v3312
  %3314 = vmatmul.bf16.gmra.mxu0 %v2292
  %v3315 = vpop.f32.mrf.mxu0
  %v3316 = vadd.f32 0.0, %v3315
  %v3317 = vpop.f32.mrf.mxu0
  %v3318 = vadd.f32 0.0, %v3317
  %3319 = vmatmul.bf16.gmra.mxu0 %v2293
  %v3320 = vpop.f32.mrf.mxu0
  %v3321 = vadd.f32 0.0, %v3320
  %v3322 = vpop.f32.mrf.mxu0
  %v3323 = vadd.f32 0.0, %v3322
  %3324 = vmatmul.bf16.gmra.mxu0 %v2294
  %v3325 = vpop.f32.mrf.mxu0
  %v3326 = vadd.f32 0.0, %v3325
  %v3327 = vpop.f32.mrf.mxu0
  %v3328 = vadd.f32 0.0, %v3327
  %3329 = vmatmul.bf16.gmra.mxu0 %v2295
  %v3330 = vpop.f32.mrf.mxu0
  %v3331 = vadd.f32 0.0, %v3330
  %v3332 = vpop.f32.mrf.mxu0
  %v3333 = vadd.f32 0.0, %v3332
  %3334 = vmatmul.bf16.gmra.mxu0 %v2296
  %v3335 = vpop.f32.mrf.mxu0
  %v3336 = vadd.f32 0.0, %v3335
  %v3337 = vpop.f32.mrf.mxu0
  %v3338 = vadd.f32 0.0, %v3337
  %3339 = vmatmul.bf16.gmra.mxu0 %v2297
  %v3340 = vpop.f32.mrf.mxu0
  %v3341 = vadd.f32 0.0, %v3340
  %v3342 = vpop.f32.mrf.mxu0
  %v3343 = vadd.f32 0.0, %v3342
  %3344 = vmatmul.bf16.gmra.mxu0 %v3252
  %v3345 = vpop.f32.mrf.mxu0
  %v3346 = vadd.f32 0.0, %v3345
  %v3347 = vpop.f32.mrf.mxu0
  %v3348 = vadd.f32 0.0, %v3347
  %3349 = vmatmul.bf16.gmra.mxu0 %v2921
  %v3350 = vpop.f32.mrf.mxu0
  %v3351 = vadd.f32 0.0, %v3350
  %v3352 = vpop.f32.mrf.mxu0
  %v3353 = vadd.f32 0.0, %v3352
  %3354 = vmatmul.bf16.gmra.mxu0 %v2922
  %v3355 = vpop.f32.mrf.mxu0
  %v3356 = vadd.f32 0.0, %v3355
  %v3357 = vpop.f32.mrf.mxu0
  %v3358 = vadd.f32 0.0, %v3357
  %3359 = vmatmul.bf16.gmra.mxu0 %v2754
  %v3360 = vpop.f32.mrf.mxu0
  %v3361 = vadd.f32 0.0, %v3360
  %v3362 = vpop.f32.mrf.mxu0
  %v3363 = vadd.f32 0.0, %v3362
  %3364 = vmatmul.bf16.gmra.mxu0 %v2755
  %v3365 = vpop.f32.mrf.mxu0
  %v3366 = vadd.f32 0.0, %v3365
  %v3367 = vpop.f32.mrf.mxu0
  %v3368 = vadd.f32 0.0, %v3367
  %3369 = vmatmul.bf16.gmra.mxu0 %v2756
  %v3370 = vpop.f32.mrf.mxu0
  %v3371 = vadd.f32 0.0, %v3370
  %v3372 = vpop.f32.mrf.mxu0
  %3373 = vdwg.mxu0
  %v3374 = vadd.f32 %v3211, %v3311
  %v3375 = vadd.f32 %v3212, %v3313
  %v3376 = vadd.f32 %v3213, %v3316
  %v3377 = vadd.f32 %v3214, %v3318
  %v3378 = vadd.f32 %v3215, %v3321
  %v3379 = vadd.f32 %v3216, %v3323
  %v3380 = vadd.f32 %v3217, %v3326
  %v3381 = vadd.f32 %v3218, %v3328
  %v3382 = vadd.f32 %v3219, %v3331
  %v3383 = vadd.f32 %v3220, %v3333
  %v3384 = vadd.f32 %v3221, %v3336
  %v3385 = vadd.f32 %v3222, %v3338
  %v3386 = vadd.f32 %v3223, %v3341
  %v3387 = vadd.f32 %v3224, %v3343
  %v3388 = vadd.f32 %v3225, %v3346
  %v3389 = vadd.f32 %v3226, %v3348
  %v3390 = vadd.f32 %v3227, %v3351
  %v3391 = vadd.f32 %v3228, %v3353
  %v3392 = vadd.f32 %v3229, %v3356
  %v3393 = vadd.f32 %v3230, %v3358
  %v3394 = vadd.f32 %v3231, %v3361
  %v3395 = vadd.f32 %v3232, %v3363
  %v3396 = vadd.f32 %v3233, %v3366
  %v3397 = vadd.f32 %v3234, %v3368
  %v3398 = vadd.f32 %v3235, %v3371
  %v3399 = vld [vmem:[%s1 + $0x400] sm:$0xf]
  %v3400 = vld [vmem:[%s1 + $0x404] sm:$0xf]
  %v3401 = vld [vmem:[%s1 + $0x408] sm:$0xf]
  %v3402 = vld [vmem:[%s1 + $0x40c] sm:$0xf]
  %v3403 = vld [vmem:[%s1 + $0x410] sm:$0xf]
  %v3404 = vld [vmem:[%s1 + $0x414] sm:$0xf]
  %v3405 = vld [vmem:[%s1 + $0x418] sm:$0xf]
  %v3406 = vld [vmem:[%s1 + $0x41c] sm:$0xf]
  %v3407 = vld [vmem:[%s1 + $0x420] sm:$0xf]
  %v3408 = vld [vmem:[%s1 + $0x424] sm:$0xf]
  %v3409 = vld [vmem:[%s1 + $0x428] sm:$0xf]
  %v3410 = vld [vmem:[%s1 + $0x42c] sm:$0xf]
  %v3411 = vld [vmem:[%s1 + $0x430] sm:$0xf]
  %v3412 = vld [vmem:[%s1 + $0x434] sm:$0xf]
  %v3413 = vld [vmem:[%s1 + $0x438] sm:$0xf]
  %v3414 = vld [vmem:[%s1 + $0x43c] sm:$0xf]
  %v3415 = vpack.c.bf16 %v2262, %v2261
  %v3432 = vunpack.c.l.b16 %v3399
  %v3433 = vunpack.c.l.b16 %v3400
  %v3434 = vunpack.c.l.b16 %v3401
  %v3435 = vunpack.c.l.b16 %v3402
  %v3436 = vunpack.c.l.b16 %v3403
  %v3437 = vunpack.c.l.b16 %v3404
  %v3438 = vunpack.c.l.b16 %v3405
  %v3439 = vunpack.c.l.b16 %v3406
  %v3440 = vunpack.c.l.b16 %v3407
  %v3441 = vunpack.c.l.b16 %v3408
  %v3442 = vunpack.c.l.b16 %v3409
  %v3443 = vunpack.c.l.b16 %v3410
  %v3444 = vunpack.c.l.b16 %v3411
  %v3445 = vunpack.c.l.b16 %v3412
  %v3446 = vunpack.c.l.b16 %v3413
  %v3447 = vunpack.c.l.b16 %v3414
  %v3448 = vpack.c.b16 %v3433, %v3432
  %v3449 = vpack.c.b16 %v3435, %v3434
  %v3450 = vpack.c.b16 %v3437, %v3436
  %v3451 = vpack.c.b16 %v3439, %v3438
  %v3452 = vpack.c.b16 %v3441, %v3440
  %v3453 = vpack.c.b16 %v3443, %v3442
  %v3454 = vpack.c.b16 %v3445, %v3444
  %v3455 = vpack.c.b16 %v3447, %v3446
  %3464 = vmatpush.bf16.msra.mxu0 %v3455
  %3465 = vmatpush.bf16.msra.mxu0 %v3454
  %3466 = vmatpush.bf16.msra.mxu0 %v3453
  %3467 = vmatpush.bf16.msra.mxu0 %v3452
  %3468 = vmatpush.bf16.msra.mxu0 %v3451
  %3469 = vmatpush.bf16.msra.mxu0 %v3450
  %3470 = vmatpush.bf16.msra.mxu0 %v3449
  %3471 = vmatpush.bf16.msra.mxu0 %v3448
  %3472 = vmatmul.bf16.gmra.mxu0 %v2317
  %v3473 = vpop.f32.mrf.mxu0
  %v3474 = vadd.f32 0.0, %v3473
  %v3475 = vpop.f32.mrf.mxu0
  %v3476 = vadd.f32 0.0, %v3475
  %3477 = vmatmul.bf16.gmra.mxu0 %v2318
  %v3478 = vpop.f32.mrf.mxu0
  %v3479 = vadd.f32 0.0, %v3478
  %v3480 = vpop.f32.mrf.mxu0
  %v3481 = vadd.f32 0.0, %v3480
  %3482 = vmatmul.bf16.gmra.mxu0 %v2319
  %v3483 = vpop.f32.mrf.mxu0
  %v3484 = vadd.f32 0.0, %v3483
  %v3485 = vpop.f32.mrf.mxu0
  %v3486 = vadd.f32 0.0, %v3485
  %3487 = vmatmul.bf16.gmra.mxu0 %v2320
  %v3488 = vpop.f32.mrf.mxu0
  %v3489 = vadd.f32 0.0, %v3488
  %v3490 = vpop.f32.mrf.mxu0
  %v3491 = vadd.f32 0.0, %v3490
  %3492 = vmatmul.bf16.gmra.mxu0 %v2321
  %v3493 = vpop.f32.mrf.mxu0
  %v3494 = vadd.f32 0.0, %v3493
  %v3495 = vpop.f32.mrf.mxu0
  %v3496 = vadd.f32 0.0, %v3495
  %3497 = vmatmul.bf16.gmra.mxu0 %v2322
  %v3498 = vpop.f32.mrf.mxu0
  %v3499 = vadd.f32 0.0, %v3498
  %v3500 = vpop.f32.mrf.mxu0
  %v3501 = vadd.f32 0.0, %v3500
  %3502 = vmatmul.bf16.gmra.mxu0 %v2323
  %v3503 = vpop.f32.mrf.mxu0
  %v3504 = vadd.f32 0.0, %v3503
  %v3505 = vpop.f32.mrf.mxu0
  %v3506 = vadd.f32 0.0, %v3505
  %3507 = vmatmul.bf16.gmra.mxu0 %v3415
  %v3508 = vpop.f32.mrf.mxu0
  %v3509 = vadd.f32 0.0, %v3508
  %v3510 = vpop.f32.mrf.mxu0
  %v3511 = vadd.f32 0.0, %v3510
  %3512 = vmatmul.bf16.gmra.mxu0 %v2755
  %v3513 = vpop.f32.mrf.mxu0
  %v3514 = vadd.f32 0.0, %v3513
  %v3515 = vpop.f32.mrf.mxu0
  %v3516 = vadd.f32 0.0, %v3515
  %3517 = vmatmul.bf16.gmra.mxu0 %v3089
  %v3518 = vpop.f32.mrf.mxu0
  %v3519 = vadd.f32 0.0, %v3518
  %v3520 = vpop.f32.mrf.mxu0
  %v3521 = vadd.f32 0.0, %v3520
  %3522 = vmatmul.bf16.gmra.mxu0 %v2921
  %v3523 = vpop.f32.mrf.mxu0
  %v3524 = vadd.f32 0.0, %v3523
  %v3525 = vpop.f32.mrf.mxu0
  %v3526 = vadd.f32 0.0, %v3525
  %3527 = vmatmul.bf16.gmra.mxu0 %v2922
  %v3528 = vpop.f32.mrf.mxu0
  %v3529 = vadd.f32 0.0, %v3528
  %v3530 = vpop.f32.mrf.mxu0
  %v3531 = vadd.f32 0.0, %v3530
  %3532 = vmatmul.bf16.gmra.mxu0 %v2923
  %v3533 = vpop.f32.mrf.mxu0
  %v3534 = vadd.f32 0.0, %v3533
  %v3535 = vpop.f32.mrf.mxu0
  %3536 = vdwg.mxu0
  %v3537 = vadd.f32 %v3374, %v3474
  %v3538 = vadd.f32 %v3375, %v3476
  %v3539 = vadd.f32 %v3376, %v3479
  %v3540 = vadd.f32 %v3377, %v3481
  %v3541 = vadd.f32 %v3378, %v3484
  %v3542 = vadd.f32 %v3379, %v3486
  %v3543 = vadd.f32 %v3380, %v3489
  %v3544 = vadd.f32 %v3381, %v3491
  %v3545 = vadd.f32 %v3382, %v3494
  %v3546 = vadd.f32 %v3383, %v3496
  %v3547 = vadd.f32 %v3384, %v3499
  %v3548 = vadd.f32 %v3385, %v3501
  %v3549 = vadd.f32 %v3386, %v3504
  %v3550 = vadd.f32 %v3387, %v3506
  %v3551 = vadd.f32 %v3388, %v3509
  %v3552 = vadd.f32 %v3389, %v3511
  %v3553 = vadd.f32 %v3390, %v3514
  %v3554 = vadd.f32 %v3391, %v3516
  %v3555 = vadd.f32 %v3392, %v3519
  %v3556 = vadd.f32 %v3393, %v3521
  %v3557 = vadd.f32 %v3394, %v3524
  %v3558 = vadd.f32 %v3395, %v3526
  %v3559 = vadd.f32 %v3396, %v3529
  %v3560 = vadd.f32 %v3397, %v3531
  %v3561 = vadd.f32 %v3398, %v3534
  %v3562 = vld [vmem:[%s1 + $0x440] sm:$0xf]
  %v3563 = vld [vmem:[%s1 + $0x444] sm:$0xf]
  %v3564 = vld [vmem:[%s1 + $0x448] sm:$0xf]
  %v3565 = vld [vmem:[%s1 + $0x44c] sm:$0xf]
  %v3566 = vld [vmem:[%s1 + $0x450] sm:$0xf]
  %v3567 = vld [vmem:[%s1 + $0x454] sm:$0xf]
  %v3568 = vld [vmem:[%s1 + $0x458] sm:$0xf]
  %v3569 = vld [vmem:[%s1 + $0x45c] sm:$0xf]
  %v3570 = vld [vmem:[%s1 + $0x460] sm:$0xf]
  %v3571 = vld [vmem:[%s1 + $0x464] sm:$0xf]
  %v3572 = vld [vmem:[%s1 + $0x468] sm:$0xf]
  %v3573 = vld [vmem:[%s1 + $0x46c] sm:$0xf]
  %v3574 = vld [vmem:[%s1 + $0x470] sm:$0xf]
  %v3575 = vld [vmem:[%s1 + $0x474] sm:$0xf]
  %v3576 = vld [vmem:[%s1 + $0x478] sm:$0xf]
  %v3577 = vld [vmem:[%s1 + $0x47c] sm:$0xf]
  %v3578 = vpack.c.bf16 %v2263, %v2261
  %v3595 = vunpack.c.l.b16 %v3562
  %v3596 = vunpack.c.l.b16 %v3563
  %v3597 = vunpack.c.l.b16 %v3564
  %v3598 = vunpack.c.l.b16 %v3565
  %v3599 = vunpack.c.l.b16 %v3566
  %v3600 = vunpack.c.l.b16 %v3567
  %v3601 = vunpack.c.l.b16 %v3568
  %v3602 = vunpack.c.l.b16 %v3569
  %v3603 = vunpack.c.l.b16 %v3570
  %v3604 = vunpack.c.l.b16 %v3571
  %v3605 = vunpack.c.l.b16 %v3572
  %v3606 = vunpack.c.l.b16 %v3573
  %v3607 = vunpack.c.l.b16 %v3574
  %v3608 = vunpack.c.l.b16 %v3575
  %v3609 = vunpack.c.l.b16 %v3576
  %v3610 = vunpack.c.l.b16 %v3577
  %v3611 = vpack.c.b16 %v3596, %v3595
  %v3612 = vpack.c.b16 %v3598, %v3597
  %v3613 = vpack.c.b16 %v3600, %v3599
  %v3614 = vpack.c.b16 %v3602, %v3601
  %v3615 = vpack.c.b16 %v3604, %v3603
  %v3616 = vpack.c.b16 %v3606, %v3605
  %v3617 = vpack.c.b16 %v3608, %v3607
  %v3618 = vpack.c.b16 %v3610, %v3609
  %3627 = vmatpush.bf16.msra.mxu0 %v3618
  %3628 = vmatpush.bf16.msra.mxu0 %v3617
  %3629 = vmatpush.bf16.msra.mxu0 %v3616
  %3630 = vmatpush.bf16.msra.mxu0 %v3615
  %3631 = vmatpush.bf16.msra.mxu0 %v3614
  %3632 = vmatpush.bf16.msra.mxu0 %v3613
  %3633 = vmatpush.bf16.msra.mxu0 %v3612
  %3634 = vmatpush.bf16.msra.mxu0 %v3611
  %3635 = vmatmul.bf16.gmra.mxu0 %v2292
  %v3636 = vpop.f32.mrf.mxu0
  %v3637 = vadd.f32 0.0, %v3636
  %v3638 = vpop.f32.mrf.mxu0
  %v3639 = vadd.f32 0.0, %v3638
  %3640 = vmatmul.bf16.gmra.mxu0 %v2585
  %v3641 = vpop.f32.mrf.mxu0
  %v3642 = vadd.f32 0.0, %v3641
  %v3643 = vpop.f32.mrf.mxu0
  %v3644 = vadd.f32 0.0, %v3643
  %3645 = vmatmul.bf16.gmra.mxu0 %v2586
  %v3646 = vpop.f32.mrf.mxu0
  %v3647 = vadd.f32 0.0, %v3646
  %v3648 = vpop.f32.mrf.mxu0
  %v3649 = vadd.f32 0.0, %v3648
  %3650 = vmatmul.bf16.gmra.mxu0 %v2295
  %v3651 = vpop.f32.mrf.mxu0
  %v3652 = vadd.f32 0.0, %v3651
  %v3653 = vpop.f32.mrf.mxu0
  %v3654 = vadd.f32 0.0, %v3653
  %3655 = vmatmul.bf16.gmra.mxu0 %v2587
  %v3656 = vpop.f32.mrf.mxu0
  %v3657 = vadd.f32 0.0, %v3656
  %v3658 = vpop.f32.mrf.mxu0
  %v3659 = vadd.f32 0.0, %v3658
  %3660 = vmatmul.bf16.gmra.mxu0 %v2297
  %v3661 = vpop.f32.mrf.mxu0
  %v3662 = vadd.f32 0.0, %v3661
  %v3663 = vpop.f32.mrf.mxu0
  %v3664 = vadd.f32 0.0, %v3663
  %3665 = vmatmul.bf16.gmra.mxu0 %v2588
  %v3666 = vpop.f32.mrf.mxu0
  %v3667 = vadd.f32 0.0, %v3666
  %v3668 = vpop.f32.mrf.mxu0
  %v3669 = vadd.f32 0.0, %v3668
  %3670 = vmatmul.bf16.gmra.mxu0 %v3578
  %v3671 = vpop.f32.mrf.mxu0
  %v3672 = vadd.f32 0.0, %v3671
  %v3673 = vpop.f32.mrf.mxu0
  %v3674 = vadd.f32 0.0, %v3673
  %3675 = vmatmul.bf16.gmra.mxu0 %v2922
  %v3676 = vpop.f32.mrf.mxu0
  %v3677 = vadd.f32 0.0, %v3676
  %v3678 = vpop.f32.mrf.mxu0
  %v3679 = vadd.f32 0.0, %v3678
  %3680 = vmatmul.bf16.gmra.mxu0 %v2923
  %v3681 = vpop.f32.mrf.mxu0
  %v3682 = vadd.f32 0.0, %v3681
  %v3683 = vpop.f32.mrf.mxu0
  %v3684 = vadd.f32 0.0, %v3683
  %3685 = vmatmul.bf16.gmra.mxu0 %v2755
  %v3686 = vpop.f32.mrf.mxu0
  %v3687 = vadd.f32 0.0, %v3686
  %v3688 = vpop.f32.mrf.mxu0
  %v3689 = vadd.f32 0.0, %v3688
  %3690 = vmatmul.bf16.gmra.mxu0 %v3089
  %v3691 = vpop.f32.mrf.mxu0
  %v3692 = vadd.f32 0.0, %v3691
  %v3693 = vpop.f32.mrf.mxu0
  %v3694 = vadd.f32 0.0, %v3693
  %3695 = vmatmul.bf16.gmra.mxu0 %v2923
  %v3696 = vpop.f32.mrf.mxu0
  %v3697 = vadd.f32 0.0, %v3696
  %v3698 = vpop.f32.mrf.mxu0
  %3699 = vdwg.mxu0
  %v3700 = vadd.f32 %v3537, %v3637
  %v3701 = vadd.f32 %v3538, %v3639
  %v3702 = vadd.f32 %v3539, %v3642
  %v3703 = vadd.f32 %v3540, %v3644
  %v3704 = vadd.f32 %v3541, %v3647
  %v3705 = vadd.f32 %v3542, %v3649
  %v3706 = vadd.f32 %v3543, %v3652
  %v3707 = vadd.f32 %v3544, %v3654
  %v3708 = vadd.f32 %v3545, %v3657
  %v3709 = vadd.f32 %v3546, %v3659
  %v3710 = vadd.f32 %v3547, %v3662
  %v3711 = vadd.f32 %v3548, %v3664
  %v3712 = vadd.f32 %v3549, %v3667
  %v3713 = vadd.f32 %v3550, %v3669
  %v3714 = vadd.f32 %v3551, %v3672
  %v3715 = vadd.f32 %v3552, %v3674
  %v3716 = vadd.f32 %v3553, %v3677
  %v3717 = vadd.f32 %v3554, %v3679
  %v3718 = vadd.f32 %v3555, %v3682
  %v3719 = vadd.f32 %v3556, %v3684
  %v3720 = vadd.f32 %v3557, %v3687
  %v3721 = vadd.f32 %v3558, %v3689
  %v3722 = vadd.f32 %v3559, %v3692
  %v3723 = vadd.f32 %v3560, %v3694
  %v3724 = vadd.f32 %v3561, %v3697
  %v3725 = vperm.slane %v2267, 0
  %v3726 = vmul.f32 %v3700, %v3725
  %v3727 = vmul.f32 %v3701, %v3725
  %v3728 = vmul.f32 %v3702, %v3725
  %v3729 = vmul.f32 %v3703, %v3725
  %v3730 = vmul.f32 %v3704, %v3725
  %v3731 = vmul.f32 %v3705, %v3725
  %v3732 = vmul.f32 %v3706, %v3725
  %v3733 = vmul.f32 %v3707, %v3725
  %v3734 = vmul.f32 %v3708, %v3725
  %v3735 = vmul.f32 %v3709, %v3725
  %v3736 = vmul.f32 %v3710, %v3725
  %v3737 = vmul.f32 %v3711, %v3725
  %v3738 = vmul.f32 %v3712, %v3725
  %v3739 = vmul.f32 %v3713, %v3725
  %v3740 = vmul.f32 %v3714, %v3725
  %v3741 = vmul.f32 %v3715, %v3725
  %v3742 = vmul.f32 %v3716, %v3725
  %v3743 = vmul.f32 %v3717, %v3725
  %v3744 = vmul.f32 %v3718, %v3725
  %v3745 = vmul.f32 %v3719, %v3725
  %v3746 = vmul.f32 %v3720, %v3725
  %v3747 = vmul.f32 %v3721, %v3725
  %v3748 = vmul.f32 %v3722, %v3725
  %v3749 = vmul.f32 %v3723, %v3725
  %v3750 = vmul.f32 %v3724, %v3725
  %v3751 = vperm.slane %v2268, 0
  %v3752 = vadd.f32 %v3726, %v3751
  %v3753 = vadd.f32 %v3727, %v3751
  %v3754 = vadd.f32 %v3728, %v3751
  %v3755 = vadd.f32 %v3729, %v3751
  %v3756 = vadd.f32 %v3730, %v3751
  %v3757 = vadd.f32 %v3731, %v3751
  %v3758 = vadd.f32 %v3732, %v3751
  %v3759 = vadd.f32 %v3733, %v3751
  %v3760 = vadd.f32 %v3734, %v3751
  %v3761 = vadd.f32 %v3735, %v3751
  %v3762 = vadd.f32 %v3736, %v3751
  %v3763 = vadd.f32 %v3737, %v3751
  %v3764 = vadd.f32 %v3738, %v3751
  %v3765 = vadd.f32 %v3739, %v3751
  %v3766 = vadd.f32 %v3740, %v3751
  %v3767 = vadd.f32 %v3741, %v3751
  %v3768 = vadd.f32 %v3742, %v3751
  %v3769 = vadd.f32 %v3743, %v3751
  %v3770 = vadd.f32 %v3744, %v3751
  %v3771 = vadd.f32 %v3745, %v3751
  %v3772 = vadd.f32 %v3746, %v3751
  %v3773 = vadd.f32 %v3747, %v3751
  %v3774 = vadd.f32 %v3748, %v3751
  %v3775 = vadd.f32 %v3749, %v3751
  %v3776 = vadd.f32 %v3750, %v3751
  %vm3777 = vcmp.ge.f32.partialorder %v3752, 0.0
  %vm3778 = vcmp.ge.f32.partialorder %v3753, 0.0
  %vm3779 = vcmp.ge.f32.partialorder %v3754, 0.0
  %vm3780 = vcmp.ge.f32.partialorder %v3755, 0.0
  %vm3781 = vcmp.ge.f32.partialorder %v3756, 0.0
  %vm3782 = vcmp.ge.f32.partialorder %v3757, 0.0
  %vm3783 = vcmp.ge.f32.partialorder %v3758, 0.0
  %vm3784 = vcmp.ge.f32.partialorder %v3759, 0.0
  %vm3785 = vcmp.ge.f32.partialorder %v3760, 0.0
  %vm3786 = vcmp.ge.f32.partialorder %v3761, 0.0
  %vm3787 = vcmp.ge.f32.partialorder %v3762, 0.0
  %vm3788 = vcmp.ge.f32.partialorder %v3763, 0.0
  %vm3789 = vcmp.ge.f32.partialorder %v3764, 0.0
  %vm3790 = vcmp.ge.f32.partialorder %v3765, 0.0
  %vm3791 = vcmp.ge.f32.partialorder %v3766, 0.0
  %vm3792 = vcmp.ge.f32.partialorder %v3767, 0.0
  %vm3793 = vcmp.ge.f32.partialorder %v3768, 0.0
  %vm3794 = vcmp.ge.f32.partialorder %v3769, 0.0
  %vm3795 = vcmp.ge.f32.partialorder %v3770, 0.0
  %vm3796 = vcmp.ge.f32.partialorder %v3771, 0.0
  %vm3797 = vcmp.ge.f32.partialorder %v3772, 0.0
  %vm3798 = vcmp.ge.f32.partialorder %v3773, 0.0
  %vm3799 = vcmp.ge.f32.partialorder %v3774, 0.0
  %vm3800 = vcmp.ge.f32.partialorder %v3775, 0.0
  %vm3801 = vcmp.ge.f32.partialorder %v3776, 0.0
  %v3802 = vperm.slane %v2269, 0
  %v3803 = vmul.f32 %v3752, %v3802
  %v3804 = vmul.f32 %v3753, %v3802
  %v3805 = vmul.f32 %v3754, %v3802
  %v3806 = vmul.f32 %v3755, %v3802
  %v3807 = vmul.f32 %v3756, %v3802
  %v3808 = vmul.f32 %v3757, %v3802
  %v3809 = vmul.f32 %v3758, %v3802
  %v3810 = vmul.f32 %v3759, %v3802
  %v3811 = vmul.f32 %v3760, %v3802
  %v3812 = vmul.f32 %v3761, %v3802
  %v3813 = vmul.f32 %v3762, %v3802
  %v3814 = vmul.f32 %v3763, %v3802
  %v3815 = vmul.f32 %v3764, %v3802
  %v3816 = vmul.f32 %v3765, %v3802
  %v3817 = vmul.f32 %v3766, %v3802
  %v3818 = vmul.f32 %v3767, %v3802
  %v3819 = vmul.f32 %v3768, %v3802
  %v3820 = vmul.f32 %v3769, %v3802
  %v3821 = vmul.f32 %v3770, %v3802
  %v3822 = vmul.f32 %v3771, %v3802
  %v3823 = vmul.f32 %v3772, %v3802
  %v3824 = vmul.f32 %v3773, %v3802
  %v3825 = vmul.f32 %v3774, %v3802
  %v3826 = vmul.f32 %v3775, %v3802
  %v3827 = vmul.f32 %v3776, %v3802
  %v3828 = vsel %vm3777, %v3752, %v3803
  %v3829 = vsel %vm3778, %v3753, %v3804
  %v3830 = vsel %vm3779, %v3754, %v3805
  %v3831 = vsel %vm3780, %v3755, %v3806
  %v3832 = vsel %vm3781, %v3756, %v3807
  %v3833 = vsel %vm3782, %v3757, %v3808
  %v3834 = vsel %vm3783, %v3758, %v3809
  %v3835 = vsel %vm3784, %v3759, %v3810
  %v3836 = vsel %vm3785, %v3760, %v3811
  %v3837 = vsel %vm3786, %v3761, %v3812
  %v3838 = vsel %vm3787, %v3762, %v3813
  %v3839 = vsel %vm3788, %v3763, %v3814
  %v3840 = vsel %vm3789, %v3764, %v3815
  %v3841 = vsel %vm3790, %v3765, %v3816
  %v3842 = vsel %vm3791, %v3766, %v3817
  %v3843 = vsel %vm3792, %v3767, %v3818
  %v3844 = vsel %vm3793, %v3768, %v3819
  %v3845 = vsel %vm3794, %v3769, %v3820
  %v3846 = vsel %vm3795, %v3770, %v3821
  %v3847 = vsel %vm3796, %v3771, %v3822
  %v3848 = vsel %vm3797, %v3772, %v3823
  %v3849 = vsel %vm3798, %v3773, %v3824
  %v3850 = vsel %vm3799, %v3774, %v3825
  %v3851 = vsel %vm3800, %v3775, %v3826
  %v3852 = vsel %vm3801, %v3776, %v3827
  %v3853 = vld [vmem:[%s3 + $0x6] sm:$0x1]
  %v3854 = vld [vmem:[%s3 + $0x7] sm:$0x1]
  %v3855 = vld [vmem:[%s3 + $0x8] sm:$0x1]
  %v3856 = vld [vmem:[%s1 + $0x480] sm:$0xf]
  %v3857 = vld [vmem:[%s1 + $0x484] sm:$0xf]
  %v3858 = vld [vmem:[%s1 + $0x488] sm:$0xf]
  %v3859 = vld [vmem:[%s1 + $0x48c] sm:$0xf]
  %v3860 = vld [vmem:[%s1 + $0x490] sm:$0xf]
  %v3861 = vld [vmem:[%s1 + $0x494] sm:$0xf]
  %v3862 = vld [vmem:[%s1 + $0x498] sm:$0xf]
  %v3863 = vld [vmem:[%s1 + $0x49c] sm:$0xf]
  %v3864 = vld [vmem:[%s1 + $0x4a0] sm:$0xf]
  %v3865 = vld [vmem:[%s1 + $0x4a4] sm:$0xf]
  %v3866 = vld [vmem:[%s1 + $0x4a8] sm:$0xf]
  %v3867 = vld [vmem:[%s1 + $0x4ac] sm:$0xf]
  %v3868 = vld [vmem:[%s1 + $0x4b0] sm:$0xf]
  %v3869 = vld [vmem:[%s1 + $0x4b4] sm:$0xf]
  %v3870 = vld [vmem:[%s1 + $0x4b8] sm:$0xf]
  %v3871 = vld [vmem:[%s1 + $0x4bc] sm:$0xf]
  %v3872 = vpack.c.bf16 %v3828, %v3828
  %v3873 = vpack.c.bf16 %v3830, %v3829
  %v3874 = vpack.c.bf16 %v3828, %v3831
  %v3875 = vpack.c.bf16 %v3829, %v3828
  %v3876 = vpack.c.bf16 %v3831, %v3830
  %v3877 = vpack.c.bf16 %v3833, %v3833
  %v3878 = vpack.c.bf16 %v3835, %v3834
  %v3879 = vpack.c.bf16 %v3838, %v3836
  %v3880 = vpack.c.bf16 %v3839, %v3838
  %v3881 = vpack.c.bf16 %v3841, %v3840
  %v3882 = vpack.c.bf16 %v3843, %v3843
  %v3883 = vpack.c.bf16 %v3845, %v3844
  %v3884 = vpack.c.bf16 %v3846, %v3846
  %v3885 = vld [vmem:[%s1 + $0x4c0] sm:$0xf]
  %v3886 = vld [vmem:[%s1 + $0x4c4] sm:$0xf]
  %v3887 = vld [vmem:[%s1 + $0x4c8] sm:$0xf]
  %v3888 = vld [vmem:[%s1 + $0x4cc] sm:$0xf]
  %v3889 = vld [vmem:[%s1 + $0x4d0] sm:$0xf]
  %v3890 = vld [vmem:[%s1 + $0x4d4] sm:$0xf]
  %v3891 = vld [vmem:[%s1 + $0x4d8] sm:$0xf]
  %v3892 = vld [vmem:[%s1 + $0x4dc] sm:$0xf]
  %v3893 = vld [vmem:[%s1 + $0x4e0] sm:$0xf]
  %v3894 = vld [vmem:[%s1 + $0x4e4] sm:$0xf]
  %v3895 = vld [vmem:[%s1 + $0x4e8] sm:$0xf]
  %v3896 = vld [vmem:[%s1 + $0x4ec] sm:$0xf]
  %v3897 = vld [vmem:[%s1 + $0x4f0] sm:$0xf]
  %v3898 = vld [vmem:[%s1 + $0x4f4] sm:$0xf]
  %v3899 = vld [vmem:[%s1 + $0x4f8] sm:$0xf]
  %v3900 = vld [vmem:[%s1 + $0x4fc] sm:$0xf]
  %v3901 = vpack.c.bf16 %v3828, %v3832
  %v3902 = vpack.c.bf16 %v3832, %v3831
  %v3903 = vpack.c.bf16 %v3834, %v3833
  %v3904 = vpack.c.bf16 %v3836, %v3835
  %v3905 = vpack.c.bf16 %v3838, %v3837
  %v3906 = vpack.c.bf16 %v3840, %v3839
  %v3907 = vpack.c.bf16 %v3842, %v3841
  %v3908 = vpack.c.bf16 %v3844, %v3843
  %v3909 = vpack.c.bf16 %v3846, %v3845
  %v3910 = vpack.c.bf16 %v3847, %v3847
  %v3927 = vunpack.c.l.b16 %v3885
  %v3928 = vunpack.c.l.b16 %v3886
  %v3929 = vunpack.c.l.b16 %v3887
  %v3930 = vunpack.c.l.b16 %v3888
  %v3931 = vunpack.c.l.b16 %v3889
  %v3932 = vunpack.c.l.b16 %v3890
  %v3933 = vunpack.c.l.b16 %v3891
  %v3934 = vunpack.c.l.b16 %v3892
  %v3935 = vunpack.c.l.b16 %v3893
  %v3936 = vunpack.c.l.b16 %v3894
  %v3937 = vunpack.c.l.b16 %v3895
  %v3938 = vunpack.c.l.b16 %v3896
  %v3939 = vunpack.c.l.b16 %v3897
  %v3940 = vunpack.c.l.b16 %v3898
  %v3941 = vunpack.c.l.b16 %v3899
  %v3942 = vunpack.c.l.b16 %v3900
  %v3943 = vpack.c.b16 %v3928, %v3927
  %v3944 = vpack.c.b16 %v3930, %v3929
  %v3945 = vpack.c.b16 %v3932, %v3931
  %v3946 = vpack.c.b16 %v3934, %v3933
  %v3947 = vpack.c.b16 %v3936, %v3935
  %v3948 = vpack.c.b16 %v3938, %v3937
  %v3949 = vpack.c.b16 %v3940, %v3939
  %v3950 = vpack.c.b16 %v3942, %v3941
  %3959 = vmatpush.bf16.msra.mxu0 %v3950
  %3960 = vmatpush.bf16.msra.mxu0 %v3949
  %3961 = vmatpush.bf16.msra.mxu0 %v3948
  %3962 = vmatpush.bf16.msra.mxu0 %v3947
  %3963 = vmatpush.bf16.msra.mxu0 %v3946
  %3964 = vmatpush.bf16.msra.mxu0 %v3945
  %3965 = vmatpush.bf16.msra.mxu0 %v3944
  %3966 = vmatpush.bf16.msra.mxu0 %v3943
  %3967 = vmatmul.bf16.gmra.mxu0 %v3875
  %v3968 = vpop.f32.mrf.mxu0
  %v3969 = vadd.f32 0.0, %v3968
  %v3970 = vpop.f32.mrf.mxu0
  %v3971 = vadd.f32 0.0, %v3970
  %3972 = vmatmul.bf16.gmra.mxu0 %v3876
  %v3973 = vpop.f32.mrf.mxu0
  %v3974 = vadd.f32 0.0, %v3973
  %v3975 = vpop.f32.mrf.mxu0
  %v3976 = vadd.f32 0.0, %v3975
  %3977 = vmatmul.bf16.gmra.mxu0 %v3901
  %v3978 = vpop.f32.mrf.mxu0
  %v3979 = vadd.f32 0.0, %v3978
  %v3980 = vpop.f32.mrf.mxu0
  %v3981 = vadd.f32 0.0, %v3980
  %3982 = vmatmul.bf16.gmra.mxu0 %v3873
  %v3983 = vpop.f32.mrf.mxu0
  %v3984 = vadd.f32 0.0, %v3983
  %v3985 = vpop.f32.mrf.mxu0
  %v3986 = vadd.f32 0.0, %v3985
  %3987 = vmatmul.bf16.gmra.mxu0 %v3902
  %v3988 = vpop.f32.mrf.mxu0
  %v3989 = vadd.f32 0.0, %v3988
  %v3990 = vpop.f32.mrf.mxu0
  %v3991 = vadd.f32 0.0, %v3990
  %3992 = vmatmul.bf16.gmra.mxu0 %v3903
  %v3993 = vpop.f32.mrf.mxu0
  %v3994 = vadd.f32 0.0, %v3993
  %v3995 = vpop.f32.mrf.mxu0
  %v3996 = vadd.f32 0.0, %v3995
  %3997 = vmatmul.bf16.gmra.mxu0 %v3904
  %v3998 = vpop.f32.mrf.mxu0
  %v3999 = vadd.f32 0.0, %v3998
  %v4000 = vpop.f32.mrf.mxu0
  %v4001 = vadd.f32 0.0, %v4000
  %4002 = vmatmul.bf16.gmra.mxu0 %v3905
  %v4003 = vpop.f32.mrf.mxu0
  %v4004 = vadd.f32 0.0, %v4003
  %v4005 = vpop.f32.mrf.mxu0
  %v4006 = vadd.f32 0.0, %v4005
  %4007 = vmatmul.bf16.gmra.mxu0 %v3906
  %v4008 = vpop.f32.mrf.mxu0
  %v4009 = vadd.f32 0.0, %v4008
  %v4010 = vpop.f32.mrf.mxu0
  %v4011 = vadd.f32 0.0, %v4010
  %4012 = vmatmul.bf16.gmra.mxu0 %v3907
  %v4013 = vpop.f32.mrf.mxu0
  %v4014 = vadd.f32 0.0, %v4013
  %v4015 = vpop.f32.mrf.mxu0
  %v4016 = vadd.f32 0.0, %v4015
  %4017 = vmatmul.bf16.gmra.mxu0 %v3908
  %v4018 = vpop.f32.mrf.mxu0
  %v4019 = vadd.f32 0.0, %v4018
  %v4020 = vpop.f32.mrf.mxu0
  %v4021 = vadd.f32 0.0, %v4020
  %4022 = vmatmul.bf16.gmra.mxu0 %v3909
  %v4023 = vpop.f32.mrf.mxu0
  %v4024 = vadd.f32 0.0, %v4023
  %v4025 = vpop.f32.mrf.mxu0
  %v4026 = vadd.f32 0.0, %v4025
  %4027 = vmatmul.bf16.gmra.mxu0 %v3910
  %v4028 = vpop.f32.mrf.mxu0
  %v4029 = vadd.f32 0.0, %v4028
  %v4030 = vpop.f32.mrf.mxu0
  %4031 = vdwg.mxu0
  %v4048 = vunpack.c.l.b16 %v3856
  %v4049 = vunpack.c.l.b16 %v3857
  %v4050 = vunpack.c.l.b16 %v3858
  %v4051 = vunpack.c.l.b16 %v3859
  %v4052 = vunpack.c.l.b16 %v3860
  %v4053 = vunpack.c.l.b16 %v3861
  %v4054 = vunpack.c.l.b16 %v3862
  %v4055 = vunpack.c.l.b16 %v3863
  %v4056 = vunpack.c.l.b16 %v3864
  %v4057 = vunpack.c.l.b16 %v3865
  %v4058 = vunpack.c.l.b16 %v3866
  %v4059 = vunpack.c.l.b16 %v3867
  %v4060 = vunpack.c.l.b16 %v3868
  %v4061 = vunpack.c.l.b16 %v3869
  %v4062 = vunpack.c.l.b16 %v3870
  %v4063 = vunpack.c.l.b16 %v3871
  %v4064 = vpack.c.b16 %v4049, %v4048
  %v4065 = vpack.c.b16 %v4051, %v4050
  %v4066 = vpack.c.b16 %v4053, %v4052
  %v4067 = vpack.c.b16 %v4055, %v4054
  %v4068 = vpack.c.b16 %v4057, %v4056
  %v4069 = vpack.c.b16 %v4059, %v4058
  %v4070 = vpack.c.b16 %v4061, %v4060
  %v4071 = vpack.c.b16 %v4063, %v4062
  %4080 = vmatpush.bf16.msra.mxu0 %v4071
  %4081 = vmatpush.bf16.msra.mxu0 %v4070
  %4082 = vmatpush.bf16.msra.mxu0 %v4069
  %4083 = vmatpush.bf16.msra.mxu0 %v4068
  %4084 = vmatpush.bf16.msra.mxu0 %v4067
  %4085 = vmatpush.bf16.msra.mxu0 %v4066
  %4086 = vmatpush.bf16.msra.mxu0 %v4065
  %4087 = vmatpush.bf16.msra.mxu0 %v4064
  %4088 = vmatmul.bf16.gmra.mxu0 %v3872
  %v4089 = vpop.f32.mrf.mxu0
  %v4090 = vadd.f32 %v3969, %v4089
  %v4091 = vpop.f32.mrf.mxu0
  %v4092 = vadd.f32 %v3971, %v4091
  %4093 = vmatmul.bf16.gmra.mxu0 %v3873
  %v4094 = vpop.f32.mrf.mxu0
  %v4095 = vadd.f32 %v3974, %v4094
  %v4096 = vpop.f32.mrf.mxu0
  %v4097 = vadd.f32 %v3976, %v4096
  %4098 = vmatmul.bf16.gmra.mxu0 %v3874
  %v4099 = vpop.f32.mrf.mxu0
  %v4100 = vadd.f32 %v3979, %v4099
  %v4101 = vpop.f32.mrf.mxu0
  %v4102 = vadd.f32 %v3981, %v4101
  %4103 = vmatmul.bf16.gmra.mxu0 %v3875
  %v4104 = vpop.f32.mrf.mxu0
  %v4105 = vadd.f32 %v3984, %v4104
  %v4106 = vpop.f32.mrf.mxu0
  %v4107 = vadd.f32 %v3986, %v4106
  %4108 = vmatmul.bf16.gmra.mxu0 %v3876
  %v4109 = vpop.f32.mrf.mxu0
  %v4110 = vadd.f32 %v3989, %v4109
  %v4111 = vpop.f32.mrf.mxu0
  %v4112 = vadd.f32 %v3991, %v4111
  %4113 = vmatmul.bf16.gmra.mxu0 %v3877
  %v4114 = vpop.f32.mrf.mxu0
  %v4115 = vadd.f32 %v3994, %v4114
  %v4116 = vpop.f32.mrf.mxu0
  %v4117 = vadd.f32 %v3996, %v4116
  %4118 = vmatmul.bf16.gmra.mxu0 %v3878
  %v4119 = vpop.f32.mrf.mxu0
  %v4120 = vadd.f32 %v3999, %v4119
  %v4121 = vpop.f32.mrf.mxu0
  %v4122 = vadd.f32 %v4001, %v4121
  %4123 = vmatmul.bf16.gmra.mxu0 %v3879
  %v4124 = vpop.f32.mrf.mxu0
  %v4125 = vadd.f32 %v4004, %v4124
  %v4126 = vpop.f32.mrf.mxu0
  %v4127 = vadd.f32 %v4006, %v4126
  %4128 = vmatmul.bf16.gmra.mxu0 %v3880
  %v4129 = vpop.f32.mrf.mxu0
  %v4130 = vadd.f32 %v4009, %v4129
  %v4131 = vpop.f32.mrf.mxu0
  %v4132 = vadd.f32 %v4011, %v4131
  %4133 = vmatmul.bf16.gmra.mxu0 %v3881
  %v4134 = vpop.f32.mrf.mxu0
  %v4135 = vadd.f32 %v4014, %v4134
  %v4136 = vpop.f32.mrf.mxu0
  %v4137 = vadd.f32 %v4016, %v4136
  %4138 = vmatmul.bf16.gmra.mxu0 %v3882
  %v4139 = vpop.f32.mrf.mxu0
  %v4140 = vadd.f32 %v4019, %v4139
  %v4141 = vpop.f32.mrf.mxu0
  %v4142 = vadd.f32 %v4021, %v4141
  %4143 = vmatmul.bf16.gmra.mxu0 %v3883
  %v4144 = vpop.f32.mrf.mxu0
  %v4145 = vadd.f32 %v4024, %v4144
  %v4146 = vpop.f32.mrf.mxu0
  %v4147 = vadd.f32 %v4026, %v4146
  %4148 = vmatmul.bf16.gmra.mxu0 %v3884
  %v4149 = vpop.f32.mrf.mxu0
  %v4150 = vadd.f32 %v4029, %v4149
  %v4151 = vpop.f32.mrf.mxu0
  %4152 = vdwg.mxu0
  %v4153 = vld [vmem:[%s1 + $0x500] sm:$0xf]
  %v4154 = vld [vmem:[%s1 + $0x504] sm:$0xf]
  %v4155 = vld [vmem:[%s1 + $0x508] sm:$0xf]
  %v4156 = vld [vmem:[%s1 + $0x50c] sm:$0xf]
  %v4157 = vld [vmem:[%s1 + $0x510] sm:$0xf]
  %v4158 = vld [vmem:[%s1 + $0x514] sm:$0xf]
  %v4159 = vld [vmem:[%s1 + $0x518] sm:$0xf]
  %v4160 = vld [vmem:[%s1 + $0x51c] sm:$0xf]
  %v4161 = vld [vmem:[%s1 + $0x520] sm:$0xf]
  %v4162 = vld [vmem:[%s1 + $0x524] sm:$0xf]
  %v4163 = vld [vmem:[%s1 + $0x528] sm:$0xf]
  %v4164 = vld [vmem:[%s1 + $0x52c] sm:$0xf]
  %v4165 = vld [vmem:[%s1 + $0x530] sm:$0xf]
  %v4166 = vld [vmem:[%s1 + $0x534] sm:$0xf]
  %v4167 = vld [vmem:[%s1 + $0x538] sm:$0xf]
  %v4168 = vld [vmem:[%s1 + $0x53c] sm:$0xf]
  %v4169 = vpack.c.bf16 %v3829, %v3832
  %v4170 = vpack.c.bf16 %v3832, %v3832
  %v4171 = vpack.c.bf16 %v3837, %v3836
  %v4172 = vpack.c.bf16 %v3839, %v3837
  %v4173 = vpack.c.bf16 %v3842, %v3842
  %v4174 = vpack.c.bf16 %v3847, %v3846
  %v4191 = vunpack.c.l.b16 %v4153
  %v4192 = vunpack.c.l.b16 %v4154
  %v4193 = vunpack.c.l.b16 %v4155
  %v4194 = vunpack.c.l.b16 %v4156
  %v4195 = vunpack.c.l.b16 %v4157
  %v4196 = vunpack.c.l.b16 %v4158
  %v4197 = vunpack.c.l.b16 %v4159
  %v4198 = vunpack.c.l.b16 %v4160
  %v4199 = vunpack.c.l.b16 %v4161
  %v4200 = vunpack.c.l.b16 %v4162
  %v4201 = vunpack.c.l.b16 %v4163
  %v4202 = vunpack.c.l.b16 %v4164
  %v4203 = vunpack.c.l.b16 %v4165
  %v4204 = vunpack.c.l.b16 %v4166
  %v4205 = vunpack.c.l.b16 %v4167
  %v4206 = vunpack.c.l.b16 %v4168
  %v4207 = vpack.c.b16 %v4192, %v4191
  %v4208 = vpack.c.b16 %v4194, %v4193
  %v4209 = vpack.c.b16 %v4196, %v4195
  %v4210 = vpack.c.b16 %v4198, %v4197
  %v4211 = vpack.c.b16 %v4200, %v4199
  %v4212 = vpack.c.b16 %v4202, %v4201
  %v4213 = vpack.c.b16 %v4204, %v4203
  %v4214 = vpack.c.b16 %v4206, %v4205
  %4223 = vmatpush.bf16.msra.mxu0 %v4214
  %4224 = vmatpush.bf16.msra.mxu0 %v4213
  %4225 = vmatpush.bf16.msra.mxu0 %v4212
  %4226 = vmatpush.bf16.msra.mxu0 %v4211
  %4227 = vmatpush.bf16.msra.mxu0 %v4210
  %4228 = vmatpush.bf16.msra.mxu0 %v4209
  %4229 = vmatpush.bf16.msra.mxu0 %v4208
  %4230 = vmatpush.bf16.msra.mxu0 %v4207
  %4231 = vmatmul.bf16.gmra.mxu0 %v3873
  %v4232 = vpop.f32.mrf.mxu0
  %v4233 = vadd.f32 0.0, %v4232
  %v4234 = vpop.f32.mrf.mxu0
  %v4235 = vadd.f32 0.0, %v4234
  %4236 = vmatmul.bf16.gmra.mxu0 %v3902
  %v4237 = vpop.f32.mrf.mxu0
  %v4238 = vadd.f32 0.0, %v4237
  %v4239 = vpop.f32.mrf.mxu0
  %v4240 = vadd.f32 0.0, %v4239
  %4241 = vmatmul.bf16.gmra.mxu0 %v4169
  %v4242 = vpop.f32.mrf.mxu0
  %v4243 = vadd.f32 0.0, %v4242
  %v4244 = vpop.f32.mrf.mxu0
  %v4245 = vadd.f32 0.0, %v4244
  %4246 = vmatmul.bf16.gmra.mxu0 %v3876
  %v4247 = vpop.f32.mrf.mxu0
  %v4248 = vadd.f32 0.0, %v4247
  %v4249 = vpop.f32.mrf.mxu0
  %v4250 = vadd.f32 0.0, %v4249
  %4251 = vmatmul.bf16.gmra.mxu0 %v4170
  %v4252 = vpop.f32.mrf.mxu0
  %v4253 = vadd.f32 0.0, %v4252
  %v4254 = vpop.f32.mrf.mxu0
  %v4255 = vadd.f32 0.0, %v4254
  %4256 = vmatmul.bf16.gmra.mxu0 %v3878
  %v4257 = vpop.f32.mrf.mxu0
  %v4258 = vadd.f32 0.0, %v4257
  %v4259 = vpop.f32.mrf.mxu0
  %v4260 = vadd.f32 0.0, %v4259
  %4261 = vmatmul.bf16.gmra.mxu0 %v4171
  %v4262 = vpop.f32.mrf.mxu0
  %v4263 = vadd.f32 0.0, %v4262
  %v4264 = vpop.f32.mrf.mxu0
  %v4265 = vadd.f32 0.0, %v4264
  %4266 = vmatmul.bf16.gmra.mxu0 %v4172
  %v4267 = vpop.f32.mrf.mxu0
  %v4268 = vadd.f32 0.0, %v4267
  %v4269 = vpop.f32.mrf.mxu0
  %v4270 = vadd.f32 0.0, %v4269
  %4271 = vmatmul.bf16.gmra.mxu0 %v3881
  %v4272 = vpop.f32.mrf.mxu0
  %v4273 = vadd.f32 0.0, %v4272
  %v4274 = vpop.f32.mrf.mxu0
  %v4275 = vadd.f32 0.0, %v4274
  %4276 = vmatmul.bf16.gmra.mxu0 %v4173
  %v4277 = vpop.f32.mrf.mxu0
  %v4278 = vadd.f32 0.0, %v4277
  %v4279 = vpop.f32.mrf.mxu0
  %v4280 = vadd.f32 0.0, %v4279
  %4281 = vmatmul.bf16.gmra.mxu0 %v3883
  %v4282 = vpop.f32.mrf.mxu0
  %v4283 = vadd.f32 0.0, %v4282
  %v4284 = vpop.f32.mrf.mxu0
  %v4285 = vadd.f32 0.0, %v4284
  %4286 = vmatmul.bf16.gmra.mxu0 %v4174
  %v4287 = vpop.f32.mrf.mxu0
  %v4288 = vadd.f32 0.0, %v4287
  %v4289 = vpop.f32.mrf.mxu0
  %v4290 = vadd.f32 0.0, %v4289
  %4291 = vmatmul.bf16.gmra.mxu0 %v3910
  %v4292 = vpop.f32.mrf.mxu0
  %v4293 = vadd.f32 0.0, %v4292
  %v4294 = vpop.f32.mrf.mxu0
  %4295 = vdwg.mxu0
  %v4296 = vadd.f32 %v4090, %v4233
  %v4297 = vadd.f32 %v4092, %v4235
  %v4298 = vadd.f32 %v4095, %v4238
  %v4299 = vadd.f32 %v4097, %v4240
  %v4300 = vadd.f32 %v4100, %v4243
  %v4301 = vadd.f32 %v4102, %v4245
  %v4302 = vadd.f32 %v4105, %v4248
  %v4303 = vadd.f32 %v4107, %v4250
  %v4304 = vadd.f32 %v4110, %v4253
  %v4305 = vadd.f32 %v4112, %v4255
  %v4306 = vadd.f32 %v4115, %v4258
  %v4307 = vadd.f32 %v4117, %v4260
  %v4308 = vadd.f32 %v4120, %v4263
  %v4309 = vadd.f32 %v4122, %v4265
  %v4310 = vadd.f32 %v4125, %v4268
  %v4311 = vadd.f32 %v4127, %v4270
  %v4312 = vadd.f32 %v4130, %v4273
  %v4313 = vadd.f32 %v4132, %v4275
  %v4314 = vadd.f32 %v4135, %v4278
  %v4315 = vadd.f32 %v4137, %v4280
  %v4316 = vadd.f32 %v4140, %v4283
  %v4317 = vadd.f32 %v4142, %v4285
  %v4318 = vadd.f32 %v4145, %v4288
  %v4319 = vadd.f32 %v4147, %v4290
  %v4320 = vadd.f32 %v4150, %v4293
  %v4321 = vld [vmem:[%s1 + $0x540] sm:$0xf]
  %v4322 = vld [vmem:[%s1 + $0x544] sm:$0xf]
  %v4323 = vld [vmem:[%s1 + $0x548] sm:$0xf]
  %v4324 = vld [vmem:[%s1 + $0x54c] sm:$0xf]
  %v4325 = vld [vmem:[%s1 + $0x550] sm:$0xf]
  %v4326 = vld [vmem:[%s1 + $0x554] sm:$0xf]
  %v4327 = vld [vmem:[%s1 + $0x558] sm:$0xf]
  %v4328 = vld [vmem:[%s1 + $0x55c] sm:$0xf]
  %v4329 = vld [vmem:[%s1 + $0x560] sm:$0xf]
  %v4330 = vld [vmem:[%s1 + $0x564] sm:$0xf]
  %v4331 = vld [vmem:[%s1 + $0x568] sm:$0xf]
  %v4332 = vld [vmem:[%s1 + $0x56c] sm:$0xf]
  %v4333 = vld [vmem:[%s1 + $0x570] sm:$0xf]
  %v4334 = vld [vmem:[%s1 + $0x574] sm:$0xf]
  %v4335 = vld [vmem:[%s1 + $0x578] sm:$0xf]
  %v4336 = vld [vmem:[%s1 + $0x57c] sm:$0xf]
  %v4337 = vpack.c.bf16 %v3833, %v3831
  %v4338 = vpack.c.bf16 %v3838, %v3838
  %v4339 = vpack.c.bf16 %v3843, %v3841
  %v4340 = vpack.c.bf16 %v3848, %v3848
  %v4341 = vpack.c.bf16 %v3850, %v3849
  %v4342 = vpack.c.bf16 %v3851, %v3851
  %v4359 = vunpack.c.l.b16 %v4321
  %v4360 = vunpack.c.l.b16 %v4322
  %v4361 = vunpack.c.l.b16 %v4323
  %v4362 = vunpack.c.l.b16 %v4324
  %v4363 = vunpack.c.l.b16 %v4325
  %v4364 = vunpack.c.l.b16 %v4326
  %v4365 = vunpack.c.l.b16 %v4327
  %v4366 = vunpack.c.l.b16 %v4328
  %v4367 = vunpack.c.l.b16 %v4329
  %v4368 = vunpack.c.l.b16 %v4330
  %v4369 = vunpack.c.l.b16 %v4331
  %v4370 = vunpack.c.l.b16 %v4332
  %v4371 = vunpack.c.l.b16 %v4333
  %v4372 = vunpack.c.l.b16 %v4334
  %v4373 = vunpack.c.l.b16 %v4335
  %v4374 = vunpack.c.l.b16 %v4336
  %v4375 = vpack.c.b16 %v4360, %v4359
  %v4376 = vpack.c.b16 %v4362, %v4361
  %v4377 = vpack.c.b16 %v4364, %v4363
  %v4378 = vpack.c.b16 %v4366, %v4365
  %v4379 = vpack.c.b16 %v4368, %v4367
  %v4380 = vpack.c.b16 %v4370, %v4369
  %v4381 = vpack.c.b16 %v4372, %v4371
  %v4382 = vpack.c.b16 %v4374, %v4373
  %4391 = vmatpush.bf16.msra.mxu0 %v4382
  %4392 = vmatpush.bf16.msra.mxu0 %v4381
  %4393 = vmatpush.bf16.msra.mxu0 %v4380
  %4394 = vmatpush.bf16.msra.mxu0 %v4379
  %4395 = vmatpush.bf16.msra.mxu0 %v4378
  %4396 = vmatpush.bf16.msra.mxu0 %v4377
  %4397 = vmatpush.bf16.msra.mxu0 %v4376
  %4398 = vmatpush.bf16.msra.mxu0 %v4375
  %4399 = vmatmul.bf16.gmra.mxu0 %v3872
  %v4400 = vpop.f32.mrf.mxu0
  %v4401 = vadd.f32 0.0, %v4400
  %v4402 = vpop.f32.mrf.mxu0
  %v4403 = vadd.f32 0.0, %v4402
  %4404 = vmatmul.bf16.gmra.mxu0 %v3873
  %v4405 = vpop.f32.mrf.mxu0
  %v4406 = vadd.f32 0.0, %v4405
  %v4407 = vpop.f32.mrf.mxu0
  %v4408 = vadd.f32 0.0, %v4407
  %4409 = vmatmul.bf16.gmra.mxu0 %v4337
  %v4410 = vpop.f32.mrf.mxu0
  %v4411 = vadd.f32 0.0, %v4410
  %v4412 = vpop.f32.mrf.mxu0
  %v4413 = vadd.f32 0.0, %v4412
  %4414 = vmatmul.bf16.gmra.mxu0 %v3903
  %v4415 = vpop.f32.mrf.mxu0
  %v4416 = vadd.f32 0.0, %v4415
  %v4417 = vpop.f32.mrf.mxu0
  %v4418 = vadd.f32 0.0, %v4417
  %4419 = vmatmul.bf16.gmra.mxu0 %v3904
  %v4420 = vpop.f32.mrf.mxu0
  %v4421 = vadd.f32 0.0, %v4420
  %v4422 = vpop.f32.mrf.mxu0
  %v4423 = vadd.f32 0.0, %v4422
  %4424 = vmatmul.bf16.gmra.mxu0 %v4338
  %v4425 = vpop.f32.mrf.mxu0
  %v4426 = vadd.f32 0.0, %v4425
  %v4427 = vpop.f32.mrf.mxu0
  %v4428 = vadd.f32 0.0, %v4427
  %4429 = vmatmul.bf16.gmra.mxu0 %v3906
  %v4430 = vpop.f32.mrf.mxu0
  %v4431 = vadd.f32 0.0, %v4430
  %v4432 = vpop.f32.mrf.mxu0
  %v4433 = vadd.f32 0.0, %v4432
  %4434 = vmatmul.bf16.gmra.mxu0 %v4339
  %v4435 = vpop.f32.mrf.mxu0
  %v4436 = vadd.f32 0.0, %v4435
  %v4437 = vpop.f32.mrf.mxu0
  %v4438 = vadd.f32 0.0, %v4437
  %4439 = vmatmul.bf16.gmra.mxu0 %v3908
  %v4440 = vpop.f32.mrf.mxu0
  %v4441 = vadd.f32 0.0, %v4440
  %v4442 = vpop.f32.mrf.mxu0
  %v4443 = vadd.f32 0.0, %v4442
  %4444 = vmatmul.bf16.gmra.mxu0 %v3909
  %v4445 = vpop.f32.mrf.mxu0
  %v4446 = vadd.f32 0.0, %v4445
  %v4447 = vpop.f32.mrf.mxu0
  %v4448 = vadd.f32 0.0, %v4447
  %4449 = vmatmul.bf16.gmra.mxu0 %v4340
  %v4450 = vpop.f32.mrf.mxu0
  %v4451 = vadd.f32 0.0, %v4450
  %v4452 = vpop.f32.mrf.mxu0
  %v4453 = vadd.f32 0.0, %v4452
  %4454 = vmatmul.bf16.gmra.mxu0 %v4341
  %v4455 = vpop.f32.mrf.mxu0
  %v4456 = vadd.f32 0.0, %v4455
  %v4457 = vpop.f32.mrf.mxu0
  %v4458 = vadd.f32 0.0, %v4457
  %4459 = vmatmul.bf16.gmra.mxu0 %v4342
  %v4460 = vpop.f32.mrf.mxu0
  %v4461 = vadd.f32 0.0, %v4460
  %v4462 = vpop.f32.mrf.mxu0
  %4463 = vdwg.mxu0
  %v4464 = vadd.f32 %v4296, %v4401
  %v4465 = vadd.f32 %v4297, %v4403
  %v4466 = vadd.f32 %v4298, %v4406
  %v4467 = vadd.f32 %v4299, %v4408
  %v4468 = vadd.f32 %v4300, %v4411
  %v4469 = vadd.f32 %v4301, %v4413
  %v4470 = vadd.f32 %v4302, %v4416
  %v4471 = vadd.f32 %v4303, %v4418
  %v4472 = vadd.f32 %v4304, %v4421
  %v4473 = vadd.f32 %v4305, %v4423
  %v4474 = vadd.f32 %v4306, %v4426
  %v4475 = vadd.f32 %v4307, %v4428
  %v4476 = vadd.f32 %v4308, %v4431
  %v4477 = vadd.f32 %v4309, %v4433
  %v4478 = vadd.f32 %v4310, %v4436
  %v4479 = vadd.f32 %v4311, %v4438
  %v4480 = vadd.f32 %v4312, %v4441
  %v4481 = vadd.f32 %v4313, %v4443
  %v4482 = vadd.f32 %v4314, %v4446
  %v4483 = vadd.f32 %v4315, %v4448
  %v4484 = vadd.f32 %v4316, %v4451
  %v4485 = vadd.f32 %v4317, %v4453
  %v4486 = vadd.f32 %v4318, %v4456
  %v4487 = vadd.f32 %v4319, %v4458
  %v4488 = vadd.f32 %v4320, %v4461
  %v4489 = vld [vmem:[%s1 + $0x580] sm:$0xf]
  %v4490 = vld [vmem:[%s1 + $0x584] sm:$0xf]
  %v4491 = vld [vmem:[%s1 + $0x588] sm:$0xf]
  %v4492 = vld [vmem:[%s1 + $0x58c] sm:$0xf]
  %v4493 = vld [vmem:[%s1 + $0x590] sm:$0xf]
  %v4494 = vld [vmem:[%s1 + $0x594] sm:$0xf]
  %v4495 = vld [vmem:[%s1 + $0x598] sm:$0xf]
  %v4496 = vld [vmem:[%s1 + $0x59c] sm:$0xf]
  %v4497 = vld [vmem:[%s1 + $0x5a0] sm:$0xf]
  %v4498 = vld [vmem:[%s1 + $0x5a4] sm:$0xf]
  %v4499 = vld [vmem:[%s1 + $0x5a8] sm:$0xf]
  %v4500 = vld [vmem:[%s1 + $0x5ac] sm:$0xf]
  %v4501 = vld [vmem:[%s1 + $0x5b0] sm:$0xf]
  %v4502 = vld [vmem:[%s1 + $0x5b4] sm:$0xf]
  %v4503 = vld [vmem:[%s1 + $0x5b8] sm:$0xf]
  %v4504 = vld [vmem:[%s1 + $0x5bc] sm:$0xf]
  %v4505 = vpack.c.bf16 %v3833, %v3832
  %v4506 = vpack.c.bf16 %v3843, %v3842
  %v4507 = vpack.c.bf16 %v3849, %v3848
  %v4508 = vpack.c.bf16 %v3851, %v3850
  %v4509 = vpack.c.bf16 %v3852, %v3852
  %v4526 = vunpack.c.l.b16 %v4489
  %v4527 = vunpack.c.l.b16 %v4490
  %v4528 = vunpack.c.l.b16 %v4491
  %v4529 = vunpack.c.l.b16 %v4492
  %v4530 = vunpack.c.l.b16 %v4493
  %v4531 = vunpack.c.l.b16 %v4494
  %v4532 = vunpack.c.l.b16 %v4495
  %v4533 = vunpack.c.l.b16 %v4496
  %v4534 = vunpack.c.l.b16 %v4497
  %v4535 = vunpack.c.l.b16 %v4498
  %v4536 = vunpack.c.l.b16 %v4499
  %v4537 = vunpack.c.l.b16 %v4500
  %v4538 = vunpack.c.l.b16 %v4501
  %v4539 = vunpack.c.l.b16 %v4502
  %v4540 = vunpack.c.l.b16 %v4503
  %v4541 = vunpack.c.l.b16 %v4504
  %v4542 = vpack.c.b16 %v4527, %v4526
  %v4543 = vpack.c.b16 %v4529, %v4528
  %v4544 = vpack.c.b16 %v4531, %v4530
  %v4545 = vpack.c.b16 %v4533, %v4532
  %v4546 = vpack.c.b16 %v4535, %v4534
  %v4547 = vpack.c.b16 %v4537, %v4536
  %v4548 = vpack.c.b16 %v4539, %v4538
  %v4549 = vpack.c.b16 %v4541, %v4540
  %4558 = vmatpush.bf16.msra.mxu0 %v4549
  %4559 = vmatpush.bf16.msra.mxu0 %v4548
  %4560 = vmatpush.bf16.msra.mxu0 %v4547
  %4561 = vmatpush.bf16.msra.mxu0 %v4546
  %4562 = vmatpush.bf16.msra.mxu0 %v4545
  %4563 = vmatpush.bf16.msra.mxu0 %v4544
  %4564 = vmatpush.bf16.msra.mxu0 %v4543
  %4565 = vmatpush.bf16.msra.mxu0 %v4542
  %4566 = vmatmul.bf16.gmra.mxu0 %v3875
  %v4567 = vpop.f32.mrf.mxu0
  %v4568 = vadd.f32 0.0, %v4567
  %v4569 = vpop.f32.mrf.mxu0
  %v4570 = vadd.f32 0.0, %v4569
  %4571 = vmatmul.bf16.gmra.mxu0 %v3876
  %v4572 = vpop.f32.mrf.mxu0
  %v4573 = vadd.f32 0.0, %v4572
  %v4574 = vpop.f32.mrf.mxu0
  %v4575 = vadd.f32 0.0, %v4574
  %4576 = vmatmul.bf16.gmra.mxu0 %v4505
  %v4577 = vpop.f32.mrf.mxu0
  %v4578 = vadd.f32 0.0, %v4577
  %v4579 = vpop.f32.mrf.mxu0
  %v4580 = vadd.f32 0.0, %v4579
  %4581 = vmatmul.bf16.gmra.mxu0 %v3878
  %v4582 = vpop.f32.mrf.mxu0
  %v4583 = vadd.f32 0.0, %v4582
  %v4584 = vpop.f32.mrf.mxu0
  %v4585 = vadd.f32 0.0, %v4584
  %4586 = vmatmul.bf16.gmra.mxu0 %v4171
  %v4587 = vpop.f32.mrf.mxu0
  %v4588 = vadd.f32 0.0, %v4587
  %v4589 = vpop.f32.mrf.mxu0
  %v4590 = vadd.f32 0.0, %v4589
  %4591 = vmatmul.bf16.gmra.mxu0 %v3880
  %v4592 = vpop.f32.mrf.mxu0
  %v4593 = vadd.f32 0.0, %v4592
  %v4594 = vpop.f32.mrf.mxu0
  %v4595 = vadd.f32 0.0, %v4594
  %4596 = vmatmul.bf16.gmra.mxu0 %v3881
  %v4597 = vpop.f32.mrf.mxu0
  %v4598 = vadd.f32 0.0, %v4597
  %v4599 = vpop.f32.mrf.mxu0
  %v4600 = vadd.f32 0.0, %v4599
  %4601 = vmatmul.bf16.gmra.mxu0 %v4506
  %v4602 = vpop.f32.mrf.mxu0
  %v4603 = vadd.f32 0.0, %v4602
  %v4604 = vpop.f32.mrf.mxu0
  %v4605 = vadd.f32 0.0, %v4604
  %4606 = vmatmul.bf16.gmra.mxu0 %v3883
  %v4607 = vpop.f32.mrf.mxu0
  %v4608 = vadd.f32 0.0, %v4607
  %v4609 = vpop.f32.mrf.mxu0
  %v4610 = vadd.f32 0.0, %v4609
  %4611 = vmatmul.bf16.gmra.mxu0 %v4174
  %v4612 = vpop.f32.mrf.mxu0
  %v4613 = vadd.f32 0.0, %v4612
  %v4614 = vpop.f32.mrf.mxu0
  %v4615 = vadd.f32 0.0, %v4614
  %4616 = vmatmul.bf16.gmra.mxu0 %v4507
  %v4617 = vpop.f32.mrf.mxu0
  %v4618 = vadd.f32 0.0, %v4617
  %v4619 = vpop.f32.mrf.mxu0
  %v4620 = vadd.f32 0.0, %v4619
  %4621 = vmatmul.bf16.gmra.mxu0 %v4508
  %v4622 = vpop.f32.mrf.mxu0
  %v4623 = vadd.f32 0.0, %v4622
  %v4624 = vpop.f32.mrf.mxu0
  %v4625 = vadd.f32 0.0, %v4624
  %4626 = vmatmul.bf16.gmra.mxu0 %v4509
  %v4627 = vpop.f32.mrf.mxu0
  %v4628 = vadd.f32 0.0, %v4627
  %v4629 = vpop.f32.mrf.mxu0
  %4630 = vdwg.mxu0
  %v4631 = vadd.f32 %v4464, %v4568
  %v4632 = vadd.f32 %v4465, %v4570
  %v4633 = vadd.f32 %v4466, %v4573
  %v4634 = vadd.f32 %v4467, %v4575
  %v4635 = vadd.f32 %v4468, %v4578
  %v4636 = vadd.f32 %v4469, %v4580
  %v4637 = vadd.f32 %v4470, %v4583
  %v4638 = vadd.f32 %v4471, %v4585
  %v4639 = vadd.f32 %v4472, %v4588
  %v4640 = vadd.f32 %v4473, %v4590
  %v4641 = vadd.f32 %v4474, %v4593
  %v4642 = vadd.f32 %v4475, %v4595
  %v4643 = vadd.f32 %v4476, %v4598
  %v4644 = vadd.f32 %v4477, %v4600
  %v4645 = vadd.f32 %v4478, %v4603
  %v4646 = vadd.f32 %v4479, %v4605
  %v4647 = vadd.f32 %v4480, %v4608
  %v4648 = vadd.f32 %v4481, %v4610
  %v4649 = vadd.f32 %v4482, %v4613
  %v4650 = vadd.f32 %v4483, %v4615
  %v4651 = vadd.f32 %v4484, %v4618
  %v4652 = vadd.f32 %v4485, %v4620
  %v4653 = vadd.f32 %v4486, %v4623
  %v4654 = vadd.f32 %v4487, %v4625
  %v4655 = vadd.f32 %v4488, %v4628
  %v4656 = vld [vmem:[%s1 + $0x5c0] sm:$0xf]
  %v4657 = vld [vmem:[%s1 + $0x5c4] sm:$0xf]
  %v4658 = vld [vmem:[%s1 + $0x5c8] sm:$0xf]
  %v4659 = vld [vmem:[%s1 + $0x5cc] sm:$0xf]
  %v4660 = vld [vmem:[%s1 + $0x5d0] sm:$0xf]
  %v4661 = vld [vmem:[%s1 + $0x5d4] sm:$0xf]
  %v4662 = vld [vmem:[%s1 + $0x5d8] sm:$0xf]
  %v4663 = vld [vmem:[%s1 + $0x5dc] sm:$0xf]
  %v4664 = vld [vmem:[%s1 + $0x5e0] sm:$0xf]
  %v4665 = vld [vmem:[%s1 + $0x5e4] sm:$0xf]
  %v4666 = vld [vmem:[%s1 + $0x5e8] sm:$0xf]
  %v4667 = vld [vmem:[%s1 + $0x5ec] sm:$0xf]
  %v4668 = vld [vmem:[%s1 + $0x5f0] sm:$0xf]
  %v4669 = vld [vmem:[%s1 + $0x5f4] sm:$0xf]
  %v4670 = vld [vmem:[%s1 + $0x5f8] sm:$0xf]
  %v4671 = vld [vmem:[%s1 + $0x5fc] sm:$0xf]
  %v4672 = vpack.c.bf16 %v3834, %v3832
  %v4673 = vpack.c.bf16 %v3837, %v3837
  %v4674 = vpack.c.bf16 %v3844, %v3842
  %v4675 = vpack.c.bf16 %v3852, %v3851
  %v4692 = vunpack.c.l.b16 %v4656
  %v4693 = vunpack.c.l.b16 %v4657
  %v4694 = vunpack.c.l.b16 %v4658
  %v4695 = vunpack.c.l.b16 %v4659
  %v4696 = vunpack.c.l.b16 %v4660
  %v4697 = vunpack.c.l.b16 %v4661
  %v4698 = vunpack.c.l.b16 %v4662
  %v4699 = vunpack.c.l.b16 %v4663
  %v4700 = vunpack.c.l.b16 %v4664
  %v4701 = vunpack.c.l.b16 %v4665
  %v4702 = vunpack.c.l.b16 %v4666
  %v4703 = vunpack.c.l.b16 %v4667
  %v4704 = vunpack.c.l.b16 %v4668
  %v4705 = vunpack.c.l.b16 %v4669
  %v4706 = vunpack.c.l.b16 %v4670
  %v4707 = vunpack.c.l.b16 %v4671
  %v4708 = vpack.c.b16 %v4693, %v4692
  %v4709 = vpack.c.b16 %v4695, %v4694
  %v4710 = vpack.c.b16 %v4697, %v4696
  %v4711 = vpack.c.b16 %v4699, %v4698
  %v4712 = vpack.c.b16 %v4701, %v4700
  %v4713 = vpack.c.b16 %v4703, %v4702
  %v4714 = vpack.c.b16 %v4705, %v4704
  %v4715 = vpack.c.b16 %v4707, %v4706
  %4724 = vmatpush.bf16.msra.mxu0 %v4715
  %4725 = vmatpush.bf16.msra.mxu0 %v4714
  %4726 = vmatpush.bf16.msra.mxu0 %v4713
  %4727 = vmatpush.bf16.msra.mxu0 %v4712
  %4728 = vmatpush.bf16.msra.mxu0 %v4711
  %4729 = vmatpush.bf16.msra.mxu0 %v4710
  %4730 = vmatpush.bf16.msra.mxu0 %v4709
  %4731 = vmatpush.bf16.msra.mxu0 %v4708
  %4732 = vmatmul.bf16.gmra.mxu0 %v3873
  %v4733 = vpop.f32.mrf.mxu0
  %v4734 = vadd.f32 0.0, %v4733
  %v4735 = vpop.f32.mrf.mxu0
  %v4736 = vadd.f32 0.0, %v4735
  %4737 = vmatmul.bf16.gmra.mxu0 %v3902
  %v4738 = vpop.f32.mrf.mxu0
  %v4739 = vadd.f32 0.0, %v4738
  %v4740 = vpop.f32.mrf.mxu0
  %v4741 = vadd.f32 0.0, %v4740
  %4742 = vmatmul.bf16.gmra.mxu0 %v4672
  %v4743 = vpop.f32.mrf.mxu0
  %v4744 = vadd.f32 0.0, %v4743
  %v4745 = vpop.f32.mrf.mxu0
  %v4746 = vadd.f32 0.0, %v4745
  %4747 = vmatmul.bf16.gmra.mxu0 %v3904
  %v4748 = vpop.f32.mrf.mxu0
  %v4749 = vadd.f32 0.0, %v4748
  %v4750 = vpop.f32.mrf.mxu0
  %v4751 = vadd.f32 0.0, %v4750
  %4752 = vmatmul.bf16.gmra.mxu0 %v4673
  %v4753 = vpop.f32.mrf.mxu0
  %v4754 = vadd.f32 0.0, %v4753
  %v4755 = vpop.f32.mrf.mxu0
  %v4756 = vadd.f32 0.0, %v4755
  %4757 = vmatmul.bf16.gmra.mxu0 %v3906
  %v4758 = vpop.f32.mrf.mxu0
  %v4759 = vadd.f32 0.0, %v4758
  %v4760 = vpop.f32.mrf.mxu0
  %v4761 = vadd.f32 0.0, %v4760
  %4762 = vmatmul.bf16.gmra.mxu0 %v3907
  %v4763 = vpop.f32.mrf.mxu0
  %v4764 = vadd.f32 0.0, %v4763
  %v4765 = vpop.f32.mrf.mxu0
  %v4766 = vadd.f32 0.0, %v4765
  %4767 = vmatmul.bf16.gmra.mxu0 %v4674
  %v4768 = vpop.f32.mrf.mxu0
  %v4769 = vadd.f32 0.0, %v4768
  %v4770 = vpop.f32.mrf.mxu0
  %v4771 = vadd.f32 0.0, %v4770
  %4772 = vmatmul.bf16.gmra.mxu0 %v3909
  %v4773 = vpop.f32.mrf.mxu0
  %v4774 = vadd.f32 0.0, %v4773
  %v4775 = vpop.f32.mrf.mxu0
  %v4776 = vadd.f32 0.0, %v4775
  %4777 = vmatmul.bf16.gmra.mxu0 %v3910
  %v4778 = vpop.f32.mrf.mxu0
  %v4779 = vadd.f32 0.0, %v4778
  %v4780 = vpop.f32.mrf.mxu0
  %v4781 = vadd.f32 0.0, %v4780
  %4782 = vmatmul.bf16.gmra.mxu0 %v4341
  %v4783 = vpop.f32.mrf.mxu0
  %v4784 = vadd.f32 0.0, %v4783
  %v4785 = vpop.f32.mrf.mxu0
  %v4786 = vadd.f32 0.0, %v4785
  %4787 = vmatmul.bf16.gmra.mxu0 %v4675
  %v4788 = vpop.f32.mrf.mxu0
  %v4789 = vadd.f32 0.0, %v4788
  %v4790 = vpop.f32.mrf.mxu0
  %v4791 = vadd.f32 0.0, %v4790
  %4792 = vmatmul.bf16.gmra.mxu0 %v4509
  %v4793 = vpop.f32.mrf.mxu0
  %v4794 = vadd.f32 0.0, %v4793
  %v4795 = vpop.f32.mrf.mxu0
  %4796 = vdwg.mxu0
  %v4797 = vadd.f32 %v4631, %v4734
  %v4798 = vadd.f32 %v4632, %v4736
  %v4799 = vadd.f32 %v4633, %v4739
  %v4800 = vadd.f32 %v4634, %v4741
  %v4801 = vadd.f32 %v4635, %v4744
  %v4802 = vadd.f32 %v4636, %v4746
  %v4803 = vadd.f32 %v4637, %v4749
  %v4804 = vadd.f32 %v4638, %v4751
  %v4805 = vadd.f32 %v4639, %v4754
  %v4806 = vadd.f32 %v4640, %v4756
  %v4807 = vadd.f32 %v4641, %v4759
  %v4808 = vadd.f32 %v4642, %v4761
  %v4809 = vadd.f32 %v4643, %v4764
  %v4810 = vadd.f32 %v4644, %v4766
  %v4811 = vadd.f32 %v4645, %v4769
  %v4812 = vadd.f32 %v4646, %v4771
  %v4813 = vadd.f32 %v4647, %v4774
  %v4814 = vadd.f32 %v4648, %v4776
  %v4815 = vadd.f32 %v4649, %v4779
  %v4816 = vadd.f32 %v4650, %v4781
  %v4817 = vadd.f32 %v4651, %v4784
  %v4818 = vadd.f32 %v4652, %v4786
  %v4819 = vadd.f32 %v4653, %v4789
  %v4820 = vadd.f32 %v4654, %v4791
  %v4821 = vadd.f32 %v4655, %v4794
  %v4822 = vld [vmem:[%s1 + $0x600] sm:$0xf]
  %v4823 = vld [vmem:[%s1 + $0x604] sm:$0xf]
  %v4824 = vld [vmem:[%s1 + $0x608] sm:$0xf]
  %v4825 = vld [vmem:[%s1 + $0x60c] sm:$0xf]
  %v4826 = vld [vmem:[%s1 + $0x610] sm:$0xf]
  %v4827 = vld [vmem:[%s1 + $0x614] sm:$0xf]
  %v4828 = vld [vmem:[%s1 + $0x618] sm:$0xf]
  %v4829 = vld [vmem:[%s1 + $0x61c] sm:$0xf]
  %v4830 = vld [vmem:[%s1 + $0x620] sm:$0xf]
  %v4831 = vld [vmem:[%s1 + $0x624] sm:$0xf]
  %v4832 = vld [vmem:[%s1 + $0x628] sm:$0xf]
  %v4833 = vld [vmem:[%s1 + $0x62c] sm:$0xf]
  %v4834 = vld [vmem:[%s1 + $0x630] sm:$0xf]
  %v4835 = vld [vmem:[%s1 + $0x634] sm:$0xf]
  %v4836 = vld [vmem:[%s1 + $0x638] sm:$0xf]
  %v4837 = vld [vmem:[%s1 + $0x63c] sm:$0xf]
  %v4838 = vpack.c.bf16 %v3848, %v3846
  %v4855 = vunpack.c.l.b16 %v4822
  %v4856 = vunpack.c.l.b16 %v4823
  %v4857 = vunpack.c.l.b16 %v4824
  %v4858 = vunpack.c.l.b16 %v4825
  %v4859 = vunpack.c.l.b16 %v4826
  %v4860 = vunpack.c.l.b16 %v4827
  %v4861 = vunpack.c.l.b16 %v4828
  %v4862 = vunpack.c.l.b16 %v4829
  %v4863 = vunpack.c.l.b16 %v4830
  %v4864 = vunpack.c.l.b16 %v4831
  %v4865 = vunpack.c.l.b16 %v4832
  %v4866 = vunpack.c.l.b16 %v4833
  %v4867 = vunpack.c.l.b16 %v4834
  %v4868 = vunpack.c.l.b16 %v4835
  %v4869 = vunpack.c.l.b16 %v4836
  %v4870 = vunpack.c.l.b16 %v4837
  %v4871 = vpack.c.b16 %v4856, %v4855
  %v4872 = vpack.c.b16 %v4858, %v4857
  %v4873 = vpack.c.b16 %v4860, %v4859
  %v4874 = vpack.c.b16 %v4862, %v4861
  %v4875 = vpack.c.b16 %v4864, %v4863
  %v4876 = vpack.c.b16 %v4866, %v4865
  %v4877 = vpack.c.b16 %v4868, %v4867
  %v4878 = vpack.c.b16 %v4870, %v4869
  %4887 = vmatpush.bf16.msra.mxu0 %v4878
  %4888 = vmatpush.bf16.msra.mxu0 %v4877
  %4889 = vmatpush.bf16.msra.mxu0 %v4876
  %4890 = vmatpush.bf16.msra.mxu0 %v4875
  %4891 = vmatpush.bf16.msra.mxu0 %v4874
  %4892 = vmatpush.bf16.msra.mxu0 %v4873
  %4893 = vmatpush.bf16.msra.mxu0 %v4872
  %4894 = vmatpush.bf16.msra.mxu0 %v4871
  %4895 = vmatmul.bf16.gmra.mxu0 %v3877
  %v4896 = vpop.f32.mrf.mxu0
  %v4897 = vadd.f32 0.0, %v4896
  %v4898 = vpop.f32.mrf.mxu0
  %v4899 = vadd.f32 0.0, %v4898
  %4900 = vmatmul.bf16.gmra.mxu0 %v3878
  %v4901 = vpop.f32.mrf.mxu0
  %v4902 = vadd.f32 0.0, %v4901
  %v4903 = vpop.f32.mrf.mxu0
  %v4904 = vadd.f32 0.0, %v4903
  %4905 = vmatmul.bf16.gmra.mxu0 %v3879
  %v4906 = vpop.f32.mrf.mxu0
  %v4907 = vadd.f32 0.0, %v4906
  %v4908 = vpop.f32.mrf.mxu0
  %v4909 = vadd.f32 0.0, %v4908
  %4910 = vmatmul.bf16.gmra.mxu0 %v3880
  %v4911 = vpop.f32.mrf.mxu0
  %v4912 = vadd.f32 0.0, %v4911
  %v4913 = vpop.f32.mrf.mxu0
  %v4914 = vadd.f32 0.0, %v4913
  %4915 = vmatmul.bf16.gmra.mxu0 %v3881
  %v4916 = vpop.f32.mrf.mxu0
  %v4917 = vadd.f32 0.0, %v4916
  %v4918 = vpop.f32.mrf.mxu0
  %v4919 = vadd.f32 0.0, %v4918
  %4920 = vmatmul.bf16.gmra.mxu0 %v3882
  %v4921 = vpop.f32.mrf.mxu0
  %v4922 = vadd.f32 0.0, %v4921
  %v4923 = vpop.f32.mrf.mxu0
  %v4924 = vadd.f32 0.0, %v4923
  %4925 = vmatmul.bf16.gmra.mxu0 %v3883
  %v4926 = vpop.f32.mrf.mxu0
  %v4927 = vadd.f32 0.0, %v4926
  %v4928 = vpop.f32.mrf.mxu0
  %v4929 = vadd.f32 0.0, %v4928
  %4930 = vmatmul.bf16.gmra.mxu0 %v4838
  %v4931 = vpop.f32.mrf.mxu0
  %v4932 = vadd.f32 0.0, %v4931
  %v4933 = vpop.f32.mrf.mxu0
  %v4934 = vadd.f32 0.0, %v4933
  %4935 = vmatmul.bf16.gmra.mxu0 %v4507
  %v4936 = vpop.f32.mrf.mxu0
  %v4937 = vadd.f32 0.0, %v4936
  %v4938 = vpop.f32.mrf.mxu0
  %v4939 = vadd.f32 0.0, %v4938
  %4940 = vmatmul.bf16.gmra.mxu0 %v4508
  %v4941 = vpop.f32.mrf.mxu0
  %v4942 = vadd.f32 0.0, %v4941
  %v4943 = vpop.f32.mrf.mxu0
  %v4944 = vadd.f32 0.0, %v4943
  %4945 = vmatmul.bf16.gmra.mxu0 %v4340
  %v4946 = vpop.f32.mrf.mxu0
  %v4947 = vadd.f32 0.0, %v4946
  %v4948 = vpop.f32.mrf.mxu0
  %v4949 = vadd.f32 0.0, %v4948
  %4950 = vmatmul.bf16.gmra.mxu0 %v4341
  %v4951 = vpop.f32.mrf.mxu0
  %v4952 = vadd.f32 0.0, %v4951
  %v4953 = vpop.f32.mrf.mxu0
  %v4954 = vadd.f32 0.0, %v4953
  %4955 = vmatmul.bf16.gmra.mxu0 %v4342
  %v4956 = vpop.f32.mrf.mxu0
  %v4957 = vadd.f32 0.0, %v4956
  %v4958 = vpop.f32.mrf.mxu0
  %4959 = vdwg.mxu0
  %v4960 = vadd.f32 %v4797, %v4897
  %v4961 = vadd.f32 %v4798, %v4899
  %v4962 = vadd.f32 %v4799, %v4902
  %v4963 = vadd.f32 %v4800, %v4904
  %v4964 = vadd.f32 %v4801, %v4907
  %v4965 = vadd.f32 %v4802, %v4909
  %v4966 = vadd.f32 %v4803, %v4912
  %v4967 = vadd.f32 %v4804, %v4914
  %v4968 = vadd.f32 %v4805, %v4917
  %v4969 = vadd.f32 %v4806, %v4919
  %v4970 = vadd.f32 %v4807, %v4922
  %v4971 = vadd.f32 %v4808, %v4924
  %v4972 = vadd.f32 %v4809, %v4927
  %v4973 = vadd.f32 %v4810, %v4929
  %v4974 = vadd.f32 %v4811, %v4932
  %v4975 = vadd.f32 %v4812, %v4934
  %v4976 = vadd.f32 %v4813, %v4937
  %v4977 = vadd.f32 %v4814, %v4939
  %v4978 = vadd.f32 %v4815, %v4942
  %v4979 = vadd.f32 %v4816, %v4944
  %v4980 = vadd.f32 %v4817, %v4947
  %v4981 = vadd.f32 %v4818, %v4949
  %v4982 = vadd.f32 %v4819, %v4952
  %v4983 = vadd.f32 %v4820, %v4954
  %v4984 = vadd.f32 %v4821, %v4957
  %v4985 = vld [vmem:[%s1 + $0x640] sm:$0xf]
  %v4986 = vld [vmem:[%s1 + $0x644] sm:$0xf]
  %v4987 = vld [vmem:[%s1 + $0x648] sm:$0xf]
  %v4988 = vld [vmem:[%s1 + $0x64c] sm:$0xf]
  %v4989 = vld [vmem:[%s1 + $0x650] sm:$0xf]
  %v4990 = vld [vmem:[%s1 + $0x654] sm:$0xf]
  %v4991 = vld [vmem:[%s1 + $0x658] sm:$0xf]
  %v4992 = vld [vmem:[%s1 + $0x65c] sm:$0xf]
  %v4993 = vld [vmem:[%s1 + $0x660] sm:$0xf]
  %v4994 = vld [vmem:[%s1 + $0x664] sm:$0xf]
  %v4995 = vld [vmem:[%s1 + $0x668] sm:$0xf]
  %v4996 = vld [vmem:[%s1 + $0x66c] sm:$0xf]
  %v4997 = vld [vmem:[%s1 + $0x670] sm:$0xf]
  %v4998 = vld [vmem:[%s1 + $0x674] sm:$0xf]
  %v4999 = vld [vmem:[%s1 + $0x678] sm:$0xf]
  %v5000 = vld [vmem:[%s1 + $0x67c] sm:$0xf]
  %v5001 = vpack.c.bf16 %v3848, %v3847
  %v5018 = vunpack.c.l.b16 %v4985
  %v5019 = vunpack.c.l.b16 %v4986
  %v5020 = vunpack.c.l.b16 %v4987
  %v5021 = vunpack.c.l.b16 %v4988
  %v5022 = vunpack.c.l.b16 %v4989
  %v5023 = vunpack.c.l.b16 %v4990
  %v5024 = vunpack.c.l.b16 %v4991
  %v5025 = vunpack.c.l.b16 %v4992
  %v5026 = vunpack.c.l.b16 %v4993
  %v5027 = vunpack.c.l.b16 %v4994
  %v5028 = vunpack.c.l.b16 %v4995
  %v5029 = vunpack.c.l.b16 %v4996
  %v5030 = vunpack.c.l.b16 %v4997
  %v5031 = vunpack.c.l.b16 %v4998
  %v5032 = vunpack.c.l.b16 %v4999
  %v5033 = vunpack.c.l.b16 %v5000
  %v5034 = vpack.c.b16 %v5019, %v5018
  %v5035 = vpack.c.b16 %v5021, %v5020
  %v5036 = vpack.c.b16 %v5023, %v5022
  %v5037 = vpack.c.b16 %v5025, %v5024
  %v5038 = vpack.c.b16 %v5027, %v5026
  %v5039 = vpack.c.b16 %v5029, %v5028
  %v5040 = vpack.c.b16 %v5031, %v5030
  %v5041 = vpack.c.b16 %v5033, %v5032
  %5050 = vmatpush.bf16.msra.mxu0 %v5041
  %5051 = vmatpush.bf16.msra.mxu0 %v5040
  %5052 = vmatpush.bf16.msra.mxu0 %v5039
  %5053 = vmatpush.bf16.msra.mxu0 %v5038
  %5054 = vmatpush.bf16.msra.mxu0 %v5037
  %5055 = vmatpush.bf16.msra.mxu0 %v5036
  %5056 = vmatpush.bf16.msra.mxu0 %v5035
  %5057 = vmatpush.bf16.msra.mxu0 %v5034
  %5058 = vmatmul.bf16.gmra.mxu0 %v3903
  %v5059 = vpop.f32.mrf.mxu0
  %v5060 = vadd.f32 0.0, %v5059
  %v5061 = vpop.f32.mrf.mxu0
  %v5062 = vadd.f32 0.0, %v5061
  %5063 = vmatmul.bf16.gmra.mxu0 %v3904
  %v5064 = vpop.f32.mrf.mxu0
  %v5065 = vadd.f32 0.0, %v5064
  %v5066 = vpop.f32.mrf.mxu0
  %v5067 = vadd.f32 0.0, %v5066
  %5068 = vmatmul.bf16.gmra.mxu0 %v3905
  %v5069 = vpop.f32.mrf.mxu0
  %v5070 = vadd.f32 0.0, %v5069
  %v5071 = vpop.f32.mrf.mxu0
  %v5072 = vadd.f32 0.0, %v5071
  %5073 = vmatmul.bf16.gmra.mxu0 %v3906
  %v5074 = vpop.f32.mrf.mxu0
  %v5075 = vadd.f32 0.0, %v5074
  %v5076 = vpop.f32.mrf.mxu0
  %v5077 = vadd.f32 0.0, %v5076
  %5078 = vmatmul.bf16.gmra.mxu0 %v3907
  %v5079 = vpop.f32.mrf.mxu0
  %v5080 = vadd.f32 0.0, %v5079
  %v5081 = vpop.f32.mrf.mxu0
  %v5082 = vadd.f32 0.0, %v5081
  %5083 = vmatmul.bf16.gmra.mxu0 %v3908
  %v5084 = vpop.f32.mrf.mxu0
  %v5085 = vadd.f32 0.0, %v5084
  %v5086 = vpop.f32.mrf.mxu0
  %v5087 = vadd.f32 0.0, %v5086
  %5088 = vmatmul.bf16.gmra.mxu0 %v3909
  %v5089 = vpop.f32.mrf.mxu0
  %v5090 = vadd.f32 0.0, %v5089
  %v5091 = vpop.f32.mrf.mxu0
  %v5092 = vadd.f32 0.0, %v5091
  %5093 = vmatmul.bf16.gmra.mxu0 %v5001
  %v5094 = vpop.f32.mrf.mxu0
  %v5095 = vadd.f32 0.0, %v5094
  %v5096 = vpop.f32.mrf.mxu0
  %v5097 = vadd.f32 0.0, %v5096
  %5098 = vmatmul.bf16.gmra.mxu0 %v4341
  %v5099 = vpop.f32.mrf.mxu0
  %v5100 = vadd.f32 0.0, %v5099
  %v5101 = vpop.f32.mrf.mxu0
  %v5102 = vadd.f32 0.0, %v5101
  %5103 = vmatmul.bf16.gmra.mxu0 %v4675
  %v5104 = vpop.f32.mrf.mxu0
  %v5105 = vadd.f32 0.0, %v5104
  %v5106 = vpop.f32.mrf.mxu0
  %v5107 = vadd.f32 0.0, %v5106
  %5108 = vmatmul.bf16.gmra.mxu0 %v4507
  %v5109 = vpop.f32.mrf.mxu0
  %v5110 = vadd.f32 0.0, %v5109
  %v5111 = vpop.f32.mrf.mxu0
  %v5112 = vadd.f32 0.0, %v5111
  %5113 = vmatmul.bf16.gmra.mxu0 %v4508
  %v5114 = vpop.f32.mrf.mxu0
  %v5115 = vadd.f32 0.0, %v5114
  %v5116 = vpop.f32.mrf.mxu0
  %v5117 = vadd.f32 0.0, %v5116
  %5118 = vmatmul.bf16.gmra.mxu0 %v4509
  %v5119 = vpop.f32.mrf.mxu0
  %v5120 = vadd.f32 0.0, %v5119
  %v5121 = vpop.f32.mrf.mxu0
  %5122 = vdwg.mxu0
  %v5123 = vadd.f32 %v4960, %v5060
  %v5124 = vadd.f32 %v4961, %v5062
  %v5125 = vadd.f32 %v4962, %v5065
  %v5126 = vadd.f32 %v4963, %v5067
  %v5127 = vadd.f32 %v4964, %v5070
  %v5128 = vadd.f32 %v4965, %v5072
  %v5129 = vadd.f32 %v4966, %v5075
  %v5130 = vadd.f32 %v4967, %v5077
  %v5131 = vadd.f32 %v4968, %v5080
  %v5132 = vadd.f32 %v4969, %v5082
  %v5133 = vadd.f32 %v4970, %v5085
  %v5134 = vadd.f32 %v4971, %v5087
  %v5135 = vadd.f32 %v4972, %v5090
  %v5136 = vadd.f32 %v4973, %v5092
  %v5137 = vadd.f32 %v4974, %v5095
  %v5138 = vadd.f32 %v4975, %v5097
  %v5139 = vadd.f32 %v4976, %v5100
  %v5140 = vadd.f32 %v4977, %v5102
  %v5141 = vadd.f32 %v4978, %v5105
  %v5142 = vadd.f32 %v4979, %v5107
  %v5143 = vadd.f32 %v4980, %v5110
  %v5144 = vadd.f32 %v4981, %v5112
  %v5145 = vadd.f32 %v4982, %v5115
  %v5146 = vadd.f32 %v4983, %v5117
  %v5147 = vadd.f32 %v4984, %v5120
  %v5148 = vld [vmem:[%s1 + $0x680] sm:$0xf]
  %v5149 = vld [vmem:[%s1 + $0x684] sm:$0xf]
  %v5150 = vld [vmem:[%s1 + $0x688] sm:$0xf]
  %v5151 = vld [vmem:[%s1 + $0x68c] sm:$0xf]
  %v5152 = vld [vmem:[%s1 + $0x690] sm:$0xf]
  %v5153 = vld [vmem:[%s1 + $0x694] sm:$0xf]
  %v5154 = vld [vmem:[%s1 + $0x698] sm:$0xf]
  %v5155 = vld [vmem:[%s1 + $0x69c] sm:$0xf]
  %v5156 = vld [vmem:[%s1 + $0x6a0] sm:$0xf]
  %v5157 = vld [vmem:[%s1 + $0x6a4] sm:$0xf]
  %v5158 = vld [vmem:[%s1 + $0x6a8] sm:$0xf]
  %v5159 = vld [vmem:[%s1 + $0x6ac] sm:$0xf]
  %v5160 = vld [vmem:[%s1 + $0x6b0] sm:$0xf]
  %v5161 = vld [vmem:[%s1 + $0x6b4] sm:$0xf]
  %v5162 = vld [vmem:[%s1 + $0x6b8] sm:$0xf]
  %v5163 = vld [vmem:[%s1 + $0x6bc] sm:$0xf]
  %v5164 = vpack.c.bf16 %v3849, %v3847
  %v5181 = vunpack.c.l.b16 %v5148
  %v5182 = vunpack.c.l.b16 %v5149
  %v5183 = vunpack.c.l.b16 %v5150
  %v5184 = vunpack.c.l.b16 %v5151
  %v5185 = vunpack.c.l.b16 %v5152
  %v5186 = vunpack.c.l.b16 %v5153
  %v5187 = vunpack.c.l.b16 %v5154
  %v5188 = vunpack.c.l.b16 %v5155
  %v5189 = vunpack.c.l.b16 %v5156
  %v5190 = vunpack.c.l.b16 %v5157
  %v5191 = vunpack.c.l.b16 %v5158
  %v5192 = vunpack.c.l.b16 %v5159
  %v5193 = vunpack.c.l.b16 %v5160
  %v5194 = vunpack.c.l.b16 %v5161
  %v5195 = vunpack.c.l.b16 %v5162
  %v5196 = vunpack.c.l.b16 %v5163
  %v5197 = vpack.c.b16 %v5182, %v5181
  %v5198 = vpack.c.b16 %v5184, %v5183
  %v5199 = vpack.c.b16 %v5186, %v5185
  %v5200 = vpack.c.b16 %v5188, %v5187
  %v5201 = vpack.c.b16 %v5190, %v5189
  %v5202 = vpack.c.b16 %v5192, %v5191
  %v5203 = vpack.c.b16 %v5194, %v5193
  %v5204 = vpack.c.b16 %v5196, %v5195
  %5213 = vmatpush.bf16.msra.mxu0 %v5204
  %5214 = vmatpush.bf16.msra.mxu0 %v5203
  %5215 = vmatpush.bf16.msra.mxu0 %v5202
  %5216 = vmatpush.bf16.msra.mxu0 %v5201
  %5217 = vmatpush.bf16.msra.mxu0 %v5200
  %5218 = vmatpush.bf16.msra.mxu0 %v5199
  %5219 = vmatpush.bf16.msra.mxu0 %v5198
  %5220 = vmatpush.bf16.msra.mxu0 %v5197
  %5221 = vmatmul.bf16.gmra.mxu0 %v3878
  %v5222 = vpop.f32.mrf.mxu0
  %v5223 = vadd.f32 0.0, %v5222
  %v5224 = vpop.f32.mrf.mxu0
  %v5225 = vadd.f32 0.0, %v5224
  %5226 = vmatmul.bf16.gmra.mxu0 %v4171
  %v5227 = vpop.f32.mrf.mxu0
  %v5228 = vadd.f32 0.0, %v5227
  %v5229 = vpop.f32.mrf.mxu0
  %v5230 = vadd.f32 0.0, %v5229
  %5231 = vmatmul.bf16.gmra.mxu0 %v4172
  %v5232 = vpop.f32.mrf.mxu0
  %v5233 = vadd.f32 0.0, %v5232
  %v5234 = vpop.f32.mrf.mxu0
  %v5235 = vadd.f32 0.0, %v5234
  %5236 = vmatmul.bf16.gmra.mxu0 %v3881
  %v5237 = vpop.f32.mrf.mxu0
  %v5238 = vadd.f32 0.0, %v5237
  %v5239 = vpop.f32.mrf.mxu0
  %v5240 = vadd.f32 0.0, %v5239
  %5241 = vmatmul.bf16.gmra.mxu0 %v4173
  %v5242 = vpop.f32.mrf.mxu0
  %v5243 = vadd.f32 0.0, %v5242
  %v5244 = vpop.f32.mrf.mxu0
  %v5245 = vadd.f32 0.0, %v5244
  %5246 = vmatmul.bf16.gmra.mxu0 %v3883
  %v5247 = vpop.f32.mrf.mxu0
  %v5248 = vadd.f32 0.0, %v5247
  %v5249 = vpop.f32.mrf.mxu0
  %v5250 = vadd.f32 0.0, %v5249
  %5251 = vmatmul.bf16.gmra.mxu0 %v4174
  %v5252 = vpop.f32.mrf.mxu0
  %v5253 = vadd.f32 0.0, %v5252
  %v5254 = vpop.f32.mrf.mxu0
  %v5255 = vadd.f32 0.0, %v5254
  %5256 = vmatmul.bf16.gmra.mxu0 %v5164
  %v5257 = vpop.f32.mrf.mxu0
  %v5258 = vadd.f32 0.0, %v5257
  %v5259 = vpop.f32.mrf.mxu0
  %v5260 = vadd.f32 0.0, %v5259
  %5261 = vmatmul.bf16.gmra.mxu0 %v4508
  %v5262 = vpop.f32.mrf.mxu0
  %v5263 = vadd.f32 0.0, %v5262
  %v5264 = vpop.f32.mrf.mxu0
  %v5265 = vadd.f32 0.0, %v5264
  %5266 = vmatmul.bf16.gmra.mxu0 %v4509
  %v5267 = vpop.f32.mrf.mxu0
  %v5268 = vadd.f32 0.0, %v5267
  %v5269 = vpop.f32.mrf.mxu0
  %v5270 = vadd.f32 0.0, %v5269
  %5271 = vmatmul.bf16.gmra.mxu0 %v4341
  %v5272 = vpop.f32.mrf.mxu0
  %v5273 = vadd.f32 0.0, %v5272
  %v5274 = vpop.f32.mrf.mxu0
  %v5275 = vadd.f32 0.0, %v5274
  %5276 = vmatmul.bf16.gmra.mxu0 %v4675
  %v5277 = vpop.f32.mrf.mxu0
  %v5278 = vadd.f32 0.0, %v5277
  %v5279 = vpop.f32.mrf.mxu0
  %v5280 = vadd.f32 0.0, %v5279
  %5281 = vmatmul.bf16.gmra.mxu0 %v4509
  %v5282 = vpop.f32.mrf.mxu0
  %v5283 = vadd.f32 0.0, %v5282
  %v5284 = vpop.f32.mrf.mxu0
  %5285 = vdwg.mxu0
  %v5286 = vadd.f32 %v5123, %v5223
  %v5287 = vadd.f32 %v5124, %v5225
  %v5288 = vadd.f32 %v5125, %v5228
  %v5289 = vadd.f32 %v5126, %v5230
  %v5290 = vadd.f32 %v5127, %v5233
  %v5291 = vadd.f32 %v5128, %v5235
  %v5292 = vadd.f32 %v5129, %v5238
  %v5293 = vadd.f32 %v5130, %v5240
  %v5294 = vadd.f32 %v5131, %v5243
  %v5295 = vadd.f32 %v5132, %v5245
  %v5296 = vadd.f32 %v5133, %v5248
  %v5297 = vadd.f32 %v5134, %v5250
  %v5298 = vadd.f32 %v5135, %v5253
  %v5299 = vadd.f32 %v5136, %v5255
  %v5300 = vadd.f32 %v5137, %v5258
  %v5301 = vadd.f32 %v5138, %v5260
  %v5302 = vadd.f32 %v5139, %v5263
  %v5303 = vadd.f32 %v5140, %v5265
  %v5304 = vadd.f32 %v5141, %v5268
  %v5305 = vadd.f32 %v5142, %v5270
  %v5306 = vadd.f32 %v5143, %v5273
  %v5307 = vadd.f32 %v5144, %v5275
  %v5308 = vadd.f32 %v5145, %v5278
  %v5309 = vadd.f32 %v5146, %v5280
  %v5310 = vadd.f32 %v5147, %v5283
  %v5311 = vperm.slane %v3853, 0
  %v5312 = vmul.f32 %v5286, %v5311
  %v5313 = vmul.f32 %v5287, %v5311
  %v5314 = vmul.f32 %v5288, %v5311
  %v5315 = vmul.f32 %v5289, %v5311
  %v5316 = vmul.f32 %v5290, %v5311
  %v5317 = vmul.f32 %v5291, %v5311
  %v5318 = vmul.f32 %v5292, %v5311
  %v5319 = vmul.f32 %v5293, %v5311
  %v5320 = vmul.f32 %v5294, %v5311
  %v5321 = vmul.f32 %v5295, %v5311
  %v5322 = vmul.f32 %v5296, %v5311
  %v5323 = vmul.f32 %v5297, %v5311
  %v5324 = vmul.f32 %v5298, %v5311
  %v5325 = vmul.f32 %v5299, %v5311
  %v5326 = vmul.f32 %v5300, %v5311
  %v5327 = vmul.f32 %v5301, %v5311
  %v5328 = vmul.f32 %v5302, %v5311
  %v5329 = vmul.f32 %v5303, %v5311
  %v5330 = vmul.f32 %v5304, %v5311
  %v5331 = vmul.f32 %v5305, %v5311
  %v5332 = vmul.f32 %v5306, %v5311
  %v5333 = vmul.f32 %v5307, %v5311
  %v5334 = vmul.f32 %v5308, %v5311
  %v5335 = vmul.f32 %v5309, %v5311
  %v5336 = vmul.f32 %v5310, %v5311
  %v5337 = vperm.slane %v3854, 0
  %v5338 = vadd.f32 %v5312, %v5337
  %v5339 = vadd.f32 %v5313, %v5337
  %v5340 = vadd.f32 %v5314, %v5337
  %v5341 = vadd.f32 %v5315, %v5337
  %v5342 = vadd.f32 %v5316, %v5337
  %v5343 = vadd.f32 %v5317, %v5337
  %v5344 = vadd.f32 %v5318, %v5337
  %v5345 = vadd.f32 %v5319, %v5337
  %v5346 = vadd.f32 %v5320, %v5337
  %v5347 = vadd.f32 %v5321, %v5337
  %v5348 = vadd.f32 %v5322, %v5337
  %v5349 = vadd.f32 %v5323, %v5337
  %v5350 = vadd.f32 %v5324, %v5337
  %v5351 = vadd.f32 %v5325, %v5337
  %v5352 = vadd.f32 %v5326, %v5337
  %v5353 = vadd.f32 %v5327, %v5337
  %v5354 = vadd.f32 %v5328, %v5337
  %v5355 = vadd.f32 %v5329, %v5337
  %v5356 = vadd.f32 %v5330, %v5337
  %v5357 = vadd.f32 %v5331, %v5337
  %v5358 = vadd.f32 %v5332, %v5337
  %v5359 = vadd.f32 %v5333, %v5337
  %v5360 = vadd.f32 %v5334, %v5337
  %v5361 = vadd.f32 %v5335, %v5337
  %v5362 = vadd.f32 %v5336, %v5337
  %vm5363 = vcmp.ge.f32.partialorder %v5338, 0.0
  %vm5364 = vcmp.ge.f32.partialorder %v5339, 0.0
  %vm5365 = vcmp.ge.f32.partialorder %v5340, 0.0
  %vm5366 = vcmp.ge.f32.partialorder %v5341, 0.0
  %vm5367 = vcmp.ge.f32.partialorder %v5342, 0.0
  %vm5368 = vcmp.ge.f32.partialorder %v5343, 0.0
  %vm5369 = vcmp.ge.f32.partialorder %v5344, 0.0
  %vm5370 = vcmp.ge.f32.partialorder %v5345, 0.0
  %vm5371 = vcmp.ge.f32.partialorder %v5346, 0.0
  %vm5372 = vcmp.ge.f32.partialorder %v5347, 0.0
  %vm5373 = vcmp.ge.f32.partialorder %v5348, 0.0
  %vm5374 = vcmp.ge.f32.partialorder %v5349, 0.0
  %vm5375 = vcmp.ge.f32.partialorder %v5350, 0.0
  %vm5376 = vcmp.ge.f32.partialorder %v5351, 0.0
  %vm5377 = vcmp.ge.f32.partialorder %v5352, 0.0
  %vm5378 = vcmp.ge.f32.partialorder %v5353, 0.0
  %vm5379 = vcmp.ge.f32.partialorder %v5354, 0.0
  %vm5380 = vcmp.ge.f32.partialorder %v5355, 0.0
  %vm5381 = vcmp.ge.f32.partialorder %v5356, 0.0
  %vm5382 = vcmp.ge.f32.partialorder %v5357, 0.0
  %vm5383 = vcmp.ge.f32.partialorder %v5358, 0.0
  %vm5384 = vcmp.ge.f32.partialorder %v5359, 0.0
  %vm5385 = vcmp.ge.f32.partialorder %v5360, 0.0
  %vm5386 = vcmp.ge.f32.partialorder %v5361, 0.0
  %vm5387 = vcmp.ge.f32.partialorder %v5362, 0.0
  %v5388 = vperm.slane %v3855, 0
  %v5389 = vmul.f32 %v5338, %v5388
  %v5390 = vmul.f32 %v5339, %v5388
  %v5391 = vmul.f32 %v5340, %v5388
  %v5392 = vmul.f32 %v5341, %v5388
  %v5393 = vmul.f32 %v5342, %v5388
  %v5394 = vmul.f32 %v5343, %v5388
  %v5395 = vmul.f32 %v5344, %v5388
  %v5396 = vmul.f32 %v5345, %v5388
  %v5397 = vmul.f32 %v5346, %v5388
  %v5398 = vmul.f32 %v5347, %v5388
  %v5399 = vmul.f32 %v5348, %v5388
  %v5400 = vmul.f32 %v5349, %v5388
  %v5401 = vmul.f32 %v5350, %v5388
  %v5402 = vmul.f32 %v5351, %v5388
  %v5403 = vmul.f32 %v5352, %v5388
  %v5404 = vmul.f32 %v5353, %v5388
  %v5405 = vmul.f32 %v5354, %v5388
  %v5406 = vmul.f32 %v5355, %v5388
  %v5407 = vmul.f32 %v5356, %v5388
  %v5408 = vmul.f32 %v5357, %v5388
  %v5409 = vmul.f32 %v5358, %v5388
  %v5410 = vmul.f32 %v5359, %v5388
  %v5411 = vmul.f32 %v5360, %v5388
  %v5412 = vmul.f32 %v5361, %v5388
  %v5413 = vmul.f32 %v5362, %v5388
  %v5414 = vsel %vm5363, %v5338, %v5389
  %v5415 = vsel %vm5364, %v5339, %v5390
  %v5416 = vsel %vm5365, %v5340, %v5391
  %v5417 = vsel %vm5366, %v5341, %v5392
  %v5418 = vsel %vm5367, %v5342, %v5393
  %v5419 = vsel %vm5368, %v5343, %v5394
  %v5420 = vsel %vm5369, %v5344, %v5395
  %v5421 = vsel %vm5370, %v5345, %v5396
  %v5422 = vsel %vm5371, %v5346, %v5397
  %v5423 = vsel %vm5372, %v5347, %v5398
  %v5424 = vsel %vm5373, %v5348, %v5399
  %v5425 = vsel %vm5374, %v5349, %v5400
  %v5426 = vsel %vm5375, %v5350, %v5401
  %v5427 = vsel %vm5376, %v5351, %v5402
  %v5428 = vsel %vm5377, %v5352, %v5403
  %v5429 = vsel %vm5378, %v5353, %v5404
  %v5430 = vsel %vm5379, %v5354, %v5405
  %v5431 = vsel %vm5380, %v5355, %v5406
  %v5432 = vsel %vm5381, %v5356, %v5407
  %v5433 = vsel %vm5382, %v5357, %v5408
  %v5434 = vsel %vm5383, %v5358, %v5409
  %v5435 = vsel %vm5384, %v5359, %v5410
  %v5436 = vsel %vm5385, %v5360, %v5411
  %v5437 = vsel %vm5386, %v5361, %v5412
  %v5438 = vsel %vm5387, %v5362, %v5413
  %v5439 = vadd.f32 %v5414, %v5415
  %v5440 = vadd.f32 %v5439, %v5416
  %v5441 = vadd.f32 %v5440, %v5417
  %v5442 = vadd.f32 %v5441, %v5418
  %v5443 = vadd.f32 %v5442, %v5419
  %v5444 = vadd.f32 %v5443, %v5420
  %v5445 = vadd.f32 %v5444, %v5421
  %v5446 = vadd.f32 %v5445, %v5422
  %v5447 = vadd.f32 %v5446, %v5423
  %v5448 = vadd.f32 %v5447, %v5424
  %v5449 = vadd.f32 %v5448, %v5425
  %v5450 = vadd.f32 %v5449, %v5426
  %v5451 = vadd.f32 %v5450, %v5427
  %v5452 = vadd.f32 %v5451, %v5428
  %v5453 = vadd.f32 %v5452, %v5429
  %v5454 = vadd.f32 %v5453, %v5430
  %v5455 = vadd.f32 %v5454, %v5431
  %v5456 = vadd.f32 %v5455, %v5432
  %v5457 = vadd.f32 %v5456, %v5433
  %v5458 = vadd.f32 %v5457, %v5434
  %v5459 = vadd.f32 %v5458, %v5435
  %v5460 = vadd.f32 %v5459, %v5436
  %v5461 = vadd.f32 %v5460, %v5437
  %v5462 = vadd.f32 %v5461, %v5438
  %v5463 = vrcp.pop 25.0
  %v5464 = vmul.f32 25.0, %v5463
  %v5465 = vsub.f32 1.0, %v5464
  %v5466 = vmul.f32 %v5463, %v5465
  %v5467 = vadd.f32 %v5463, %v5466
  %vm5468 = vweird.f32 %v5463
  %v5469 = vsel %vm5468, %v5463, %v5467
  %v5470 = vmul.f32 %v5462, %v5469
  %v5471 = vld [vmem:[%s3 + $0x9] sm:$0x1]
  %v5472 = vld [vmem:[%s3 + $0xa] sm:$0x1]
  %v5473 = vld [vmem:[%s2] sm:$0xf]
  %v5474 = vld [vmem:[%s2 + $0x4] sm:$0xf]
  %v5475 = vld [vmem:[%s2 + $0x8] sm:$0xf]
  %v5476 = vld [vmem:[%s2 + $0xc] sm:$0xf]
  %v5477 = vld [vmem:[%s2 + $0x10] sm:$0xf]
  %v5478 = vld [vmem:[%s2 + $0x14] sm:$0xf]
  %v5479 = vld [vmem:[%s2 + $0x18] sm:$0xf]
  %v5480 = vld [vmem:[%s2 + $0x1c] sm:$0xf]
  %v5481 = vld [vmem:[%s2 + $0x20] sm:$0xf]
  %v5482 = vld [vmem:[%s2 + $0x24] sm:$0xf]
  %v5483 = vld [vmem:[%s2 + $0x28] sm:$0xf]
  %v5484 = vld [vmem:[%s2 + $0x2c] sm:$0xf]
  %v5485 = vld [vmem:[%s2 + $0x30] sm:$0xf]
  %v5486 = vld [vmem:[%s2 + $0x34] sm:$0xf]
  %v5487 = vld [vmem:[%s2 + $0x38] sm:$0xf]
  %v5488 = vld [vmem:[%s2 + $0x3c] sm:$0xf]
  %v5489 = vpack.c.bf16 %v5470, %v5470
  %v5506 = vunpack.c.l.b16 %v5473
  %v5507 = vunpack.c.l.b16 %v5474
  %v5508 = vunpack.c.l.b16 %v5475
  %v5509 = vunpack.c.l.b16 %v5476
  %v5510 = vunpack.c.l.b16 %v5477
  %v5511 = vunpack.c.l.b16 %v5478
  %v5512 = vunpack.c.l.b16 %v5479
  %v5513 = vunpack.c.l.b16 %v5480
  %v5514 = vunpack.c.l.b16 %v5481
  %v5515 = vunpack.c.l.b16 %v5482
  %v5516 = vunpack.c.l.b16 %v5483
  %v5517 = vunpack.c.l.b16 %v5484
  %v5518 = vunpack.c.l.b16 %v5485
  %v5519 = vunpack.c.l.b16 %v5486
  %v5520 = vunpack.c.l.b16 %v5487
  %v5521 = vunpack.c.l.b16 %v5488
  %v5522 = vpack.c.b16 %v5507, %v5506
  %v5523 = vpack.c.b16 %v5509, %v5508
  %v5524 = vpack.c.b16 %v5511, %v5510
  %v5525 = vpack.c.b16 %v5513, %v5512
  %v5526 = vpack.c.b16 %v5515, %v5514
  %v5527 = vpack.c.b16 %v5517, %v5516
  %v5528 = vpack.c.b16 %v5519, %v5518
  %v5529 = vpack.c.b16 %v5521, %v5520
  %5538 = vmatpush.bf16.msra.mxu0 %v5529
  %5539 = vmatpush.bf16.msra.mxu0 %v5528
  %5540 = vmatpush.bf16.msra.mxu0 %v5527
  %5541 = vmatpush.bf16.msra.mxu0 %v5526
  %5542 = vmatpush.bf16.msra.mxu0 %v5525
  %5543 = vmatpush.bf16.msra.mxu0 %v5524
  %5544 = vmatpush.bf16.msra.mxu0 %v5523
  %5545 = vmatpush.bf16.msra.mxu0 %v5522
  %5546 = vmatmul.bf16.gmra.mxu0 %v5489
  %v5547 = vpop.f32.mrf.mxu0
  %v5548 = vadd.f32 0.0, %v5547
  %v5549 = vpop.f32.mrf.mxu0
  %5550 = vdwg.mxu0
  %v5551 = vperm.slane %v5471, 0
  %v5552 = vmul.f32 %v5548, %v5551
  %v5553 = vperm.slane %v5472, 0
  %v5554 = vadd.f32 %v5552, %v5553
  %v5555 = vld [vmem:[%s3 + $0xb] sm:$0x1]
  %vm5556 = vcmp.ge.f32.partialorder %v5554, 0.0
  %v5557 = vperm.slane %v5555, 0
  %v5558 = vmul.f32 %v5554, %v5557
  %v5559 = vsel %vm5556, %v5554, %v5558
  %v5560 = vld [vmem:[%s3 + $0xc] sm:$0x1]
  %v5561 = vld [vmem:[%s3 + $0xd] sm:$0x1]
  %v5562 = vld [vmem:[%s2 + $0x40] sm:$0xf]
  %v5563 = vld [vmem:[%s2 + $0x44] sm:$0xf]
  %v5564 = vld [vmem:[%s2 + $0x48] sm:$0xf]
  %v5565 = vld [vmem:[%s2 + $0x4c] sm:$0xf]
  %v5566 = vld [vmem:[%s2 + $0x50] sm:$0xf]
  %v5567 = vld [vmem:[%s2 + $0x54] sm:$0xf]
  %v5568 = vld [vmem:[%s2 + $0x58] sm:$0xf]
  %v5569 = vld [vmem:[%s2 + $0x5c] sm:$0xf]
  %v5570 = vld [vmem:[%s2 + $0x60] sm:$0xf]
  %v5571 = vld [vmem:[%s2 + $0x64] sm:$0xf]
  %v5572 = vld [vmem:[%s2 + $0x68] sm:$0xf]
  %v5573 = vld [vmem:[%s2 + $0x6c] sm:$0xf]
  %v5574 = vld [vmem:[%s2 + $0x70] sm:$0xf]
  %v5575 = vld [vmem:[%s2 + $0x74] sm:$0xf]
  %v5576 = vld [vmem:[%s2 + $0x78] sm:$0xf]
  %v5577 = vld [vmem:[%s2 + $0x7c] sm:$0xf]
  %v5578 = vpack.c.bf16 %v5559, %v5559
  %v5595 = vunpack.c.l.b16 %v5562
  %v5596 = vunpack.c.l.b16 %v5563
  %v5597 = vunpack.c.l.b16 %v5564
  %v5598 = vunpack.c.l.b16 %v5565
  %v5599 = vunpack.c.l.b16 %v5566
  %v5600 = vunpack.c.l.b16 %v5567
  %v5601 = vunpack.c.l.b16 %v5568
  %v5602 = vunpack.c.l.b16 %v5569
  %v5603 = vunpack.c.l.b16 %v5570
  %v5604 = vunpack.c.l.b16 %v5571
  %v5605 = vunpack.c.l.b16 %v5572
  %v5606 = vunpack.c.l.b16 %v5573
  %v5607 = vunpack.c.l.b16 %v5574
  %v5608 = vunpack.c.l.b16 %v5575
  %v5609 = vunpack.c.l.b16 %v5576
  %v5610 = vunpack.c.l.b16 %v5577
  %v5611 = vpack.c.b16 %v5596, %v5595
  %v5612 = vpack.c.b16 %v5598, %v5597
  %v5613 = vpack.c.b16 %v5600, %v5599
  %v5614 = vpack.c.b16 %v5602, %v5601
  %v5615 = vpack.c.b16 %v5604, %v5603
  %v5616 = vpack.c.b16 %v5606, %v5605
  %v5617 = vpack.c.b16 %v5608, %v5607
  %v5618 = vpack.c.b16 %v5610, %v5609
  %5627 = vmatpush.bf16.msra.mxu0 %v5618
  %5628 = vmatpush.bf16.msra.mxu0 %v5617
  %5629 = vmatpush.bf16.msra.mxu0 %v5616
  %5630 = vmatpush.bf16.msra.mxu0 %v5615
  %5631 = vmatpush.bf16.msra.mxu0 %v5614
  %5632 = vmatpush.bf16.msra.mxu0 %v5613
  %5633 = vmatpush.bf16.msra.mxu0 %v5612
  %5634 = vmatpush.bf16.msra.mxu0 %v5611
  %5635 = vmatmul.bf16.gmra.mxu0 %v5578
  %v5636 = vpop.f32.mrf.mxu0
  %v5637 = vadd.f32 0.0, %v5636
  %v5638 = vpop.f32.mrf.mxu0
  %5639 = vdwg.mxu0
  %v5640 = vperm.slane %v5560, 0
  %v5641 = vmul.f32 %v5637, %v5640
  %v5642 = vperm.slane %v5561, 0
  %v5643 = vadd.f32 %v5641, %v5642
  %v5644 = vld [vmem:[%s3 + $0xe] sm:$0x1]
  %vm5645 = vcmp.ge.f32.partialorder %v5643, 0.0
  %v5646 = vperm.slane %v5644, 0
  %v5647 = vmul.f32 %v5643, %v5646
  %v5648 = vsel %vm5645, %v5643, %v5647
  %v5649 = vld [vmem:[%s3 + $0xf] sm:$0x1]
  %v5650 = vld [vmem:[%s3 + $0x10] sm:$0x1]
  %v5651 = vld [vmem:[%s2 + $0x80] sm:$0xf]
  %v5652 = vld [vmem:[%s2 + $0x84] sm:$0xf]
  %v5653 = vld [vmem:[%s2 + $0x88] sm:$0xf]
  %v5654 = vld [vmem:[%s2 + $0x8c] sm:$0xf]
  %v5655 = vld [vmem:[%s2 + $0x90] sm:$0xf]
  %v5656 = vld [vmem:[%s2 + $0x94] sm:$0xf]
  %v5657 = vld [vmem:[%s2 + $0x98] sm:$0xf]
  %v5658 = vld [vmem:[%s2 + $0x9c] sm:$0xf]
  %v5659 = vld [vmem:[%s2 + $0xa0] sm:$0xf]
  %v5660 = vld [vmem:[%s2 + $0xa4] sm:$0xf]
  %v5661 = vld [vmem:[%s2 + $0xa8] sm:$0xf]
  %v5662 = vld [vmem:[%s2 + $0xac] sm:$0xf]
  %v5663 = vld [vmem:[%s2 + $0xb0] sm:$0xf]
  %v5664 = vld [vmem:[%s2 + $0xb4] sm:$0xf]
  %v5665 = vld [vmem:[%s2 + $0xb8] sm:$0xf]
  %v5666 = vld [vmem:[%s2 + $0xbc] sm:$0xf]
  %v5667 = vpack.c.bf16 %v5648, %v5648
  %v5684 = vunpack.c.l.b16 %v5651
  %v5685 = vunpack.c.l.b16 %v5652
  %v5686 = vunpack.c.l.b16 %v5653
  %v5687 = vunpack.c.l.b16 %v5654
  %v5688 = vunpack.c.l.b16 %v5655
  %v5689 = vunpack.c.l.b16 %v5656
  %v5690 = vunpack.c.l.b16 %v5657
  %v5691 = vunpack.c.l.b16 %v5658
  %v5692 = vunpack.c.l.b16 %v5659
  %v5693 = vunpack.c.l.b16 %v5660
  %v5694 = vunpack.c.l.b16 %v5661
  %v5695 = vunpack.c.l.b16 %v5662
  %v5696 = vunpack.c.l.b16 %v5663
  %v5697 = vunpack.c.l.b16 %v5664
  %v5698 = vunpack.c.l.b16 %v5665
  %v5699 = vunpack.c.l.b16 %v5666
  %v5700 = vpack.c.b16 %v5685, %v5684
  %v5701 = vpack.c.b16 %v5687, %v5686
  %v5702 = vpack.c.b16 %v5689, %v5688
  %v5703 = vpack.c.b16 %v5691, %v5690
  %v5704 = vpack.c.b16 %v5693, %v5692
  %v5705 = vpack.c.b16 %v5695, %v5694
  %v5706 = vpack.c.b16 %v5697, %v5696
  %v5707 = vpack.c.b16 %v5699, %v5698
  %5716 = vmatpush.bf16.msra.mxu0 %v5707
  %5717 = vmatpush.bf16.msra.mxu0 %v5706
  %5718 = vmatpush.bf16.msra.mxu0 %v5705
  %5719 = vmatpush.bf16.msra.mxu0 %v5704
  %5720 = vmatpush.bf16.msra.mxu0 %v5703
  %5721 = vmatpush.bf16.msra.mxu0 %v5702
  %5722 = vmatpush.bf16.msra.mxu0 %v5701
  %5723 = vmatpush.bf16.msra.mxu0 %v5700
  %5724 = vmatmul.bf16.gmra.mxu0 %v5667
  %v5725 = vpop.f32.mrf.mxu0
  %v5726 = vadd.f32 0.0, %v5725
  %v5727 = vpop.f32.mrf.mxu0
  %5728 = vdwg.mxu0
  %v5729 = vperm.slane %v5649, 0
  %v5730 = vmul.f32 %v5726, %v5729
  %v5731 = vperm.slane %v5650, 0
  %v5732 = vadd.f32 %v5730, %v5731
  %v5733 = vsub.f32 0.0, %v5732
  %v5734 = vmul.f32 %v5733, 1.442695
  %v5735 = vpow.pop %v5734
  %v5736 = vadd.f32 %v5735, 1.0
  %v5737 = vrcp.pop %v5736
  %v5738 = vmul.f32 %v5736, %v5737
  %v5739 = vsub.f32 1.0, %v5738
  %v5740 = vmul.f32 %v5737, %v5739
  %v5741 = vadd.f32 %v5737, %v5740
  %vm5742 = vweird.f32 %v5736
  %vm5743 = vweird.f32 %v5737
  %vm5744 = vmor %vm5742, %vm5743
  %v5745 = vsel %vm5744, %v5737, %v5741
  %v5746 = vand.u32 2147483647, %v5736
  %vm5747 = vcmp.eq.f32.partialorder %v5746, 8.507059e+37
  %v5748 = vand.u32 %v5736, 2147483648
  %v5749 = vor.u32 1.1754944e-38, %v5748
  %v5750 = vsel %vm5747, %v5749, %v5745
  %v5751 = vmul.f32 1.0, %v5750
  %5752 = vst [vmem:[%s4] sm:$0xff] %v5751
  // Predicated region
  $region18: #{se_block_conv_forward.1} parent=0 // pred_check
    _
  $region19: #{se_block_conv_forward.1} parent=0 // pred_check_branch
    %5754 = sbr.rel (0) target = $region21
  $region20: #{se_block_conv_forward.1} parent=0 // pred_region
    _
  $region21: #{se_block_conv_forward.1} parent=0 // pred_fallthru
    _
  // Predicated region
  $region22: #{se_block_conv_forward.1} parent=0 // pred_check
    _
  $region23: #{se_block_conv_forward.1} parent=0 // pred_check_branch
    %5756 = sbr.rel (0) target = $region25
  $region24: #{se_block_conv_forward.1} parent=0 // pred_region
    _
  $region25: #{se_block_conv_forward.1} parent=0 // pred_fallthru
    _

</llo_original>
